<compile_context>
chip_gen: v5e
topology: v5e:2x2
jax: 0.10.0
libtpu: 0.0.40
codegen_flags: <defaults>
</compile_context>

<pallas_src>
import math
from functools import partial

import jax
import jax.numpy as jnp
from jax.experimental import pallas as pl
from jax.experimental.pallas import tpu as pltpu


# ----------------------------------------------------------------------------
# Small helpers
# ----------------------------------------------------------------------------
def _round_up(x, m):
    return (x + m - 1) // m * m


def _tpu_vmem_capacity():
    phys = 128 << 20
    try:
        phys = int(getattr(pltpu.get_tpu_info(), "vmem_capacity_bytes", phys))
    except Exception:
        pass
    return phys


def _vmem_cap_bytes():
    phys = _tpu_vmem_capacity()
    if phys <= (64 << 20):      # v7x: 64 MiB physical per TensorCore
        return 52 << 20         # leave headroom for compiler-internal scratch
    return 100 << 20            # v5e / v6e: 128 MiB physical


def _clamp_vmem(est_bytes):
    return int(min(max(est_bytes, 32 << 20), _vmem_cap_bytes()))


def _pick_batch_tiles(B):
    # v7x has 2 TensorCores/chip: split the batch into two "parallel" tiles so
    # both cores get work (2x weight streaming, still B/2x better than the old
    # per-batch streaming).  Single-TC chips (v5e/v6e) keep one tile so each
    # layer's weights are streamed exactly once.
    if B >= 4 and B % 2 == 0 and _tpu_vmem_capacity() <= (64 << 20):
        return 2
    return 1


def _layernorm(x, gamma, beta, eps=1e-5):
    # PyTorch nn.LayerNorm semantics: biased variance over the last axis.
    mean = jnp.mean(x, axis=-1, keepdims=True)
    var = jnp.mean((x - mean) ** 2, axis=-1, keepdims=True)
    return (x - mean) * jax.lax.rsqrt(var + eps) * gamma + beta


def _gelu_tanh(x):
    # TODO(synk): nn.GELU() default is exact-erf; tanh approximation used here
    # (EUP-friendly), max abs deviation ~1e-3 of the activation magnitude.
    c = math.sqrt(2.0 / math.pi)
    return 0.5 * x * (1.0 + jnp.tanh(c * (x + 0.044715 * x * x * x)))


# ----------------------------------------------------------------------------
# Kernel 1: patch embedding (perceptron pos_embed): linear projection + bias.
#   rows = B*N patches folded together, tiled over row blocks; output bf16
#   (f32 accumulation in-kernel, cast on store).  Position embedding is NOT
#   added here (it is added once, in f32, inside the stack kernel).
# ----------------------------------------------------------------------------
def _patch_embed_kernel(x_ref, w_ref, b_ref, o_ref):
    y = jnp.dot(x_ref[...], w_ref[...], preferred_element_type=jnp.float32)
    o_ref[...] = (y + b_ref[...]).astype(o_ref.dtype)


def patch_embed(patches_rows, w, b, *, row_tile):
    R, P = patches_rows.shape
    H = w.shape[1]
    vmem = _clamp_vmem(
        2 * (row_tile * P * 2 + P * H * 2 + H * 4 + row_tile * H * 2) + (4 << 20))
    return pl.pallas_call(
        _patch_embed_kernel,
        out_shape=jax.ShapeDtypeStruct((R, H), jnp.bfloat16),
        grid=(R // row_tile,),
        in_specs=[
            pl.BlockSpec((row_tile, P), lambda r: (r, 0)),   # patches (bf16)
            pl.BlockSpec((P, H), lambda r: (0, 0)),          # proj weight (bf16)
            pl.BlockSpec((1, H), lambda r: (0, 0)),          # proj bias (f32)
        ],
        out_specs=pl.BlockSpec((row_tile, H), lambda r: (r, 0)),
        compiler_params=pltpu.CompilerParams(
            dimension_semantics=("parallel",),
            vmem_limit_bytes=vmem),
    )(patches_rows, w, b)


# ----------------------------------------------------------------------------
# Kernel 2: fused transformer stack + final LayerNorm, batch folded.
#   grid = (batch_tiles, layer); layer weights stacked on a leading L axis and
#   pipelined by BlockSpec (layer l+1 weights stream while layer l computes);
#   residual stream carried in a (Bt*S, H) f32 VMEM scratch.
#   Per layer (MONAI TransformerBlock semantics):
#     x = x + out_proj( MHA( LN1(x) ) )
#     x = x + MLP( LN2(x) )           (MLP = Linear -> GELU -> Linear)
#   After the last layer: out = LN_final(x)
# ----------------------------------------------------------------------------
def _vit_stack_kernel(x_ref, pos_ref, wqkv_ref, wo_ref, bo_ref,
                      g1_ref, b1_ref, g2_ref, b2_ref,
                      wm1_ref, bm1_ref, wm2_ref, bm2_ref,
                      gf_ref, bf_ref,
                      o_ref, xs_ref, *, num_heads, seq_real, batch_tile):
    l = pl.program_id(1)
    n_layers = pl.num_programs(1)

    Bt = batch_tile
    S = x_ref.shape[1]
    H = x_ref.shape[2]
    nh = num_heads
    dh = H // nh

    @pl.when(l == 0)
    def _():
        # Upcast the bf16 embeddings into the f32 residual stream and add the
        # (cls-token + position) embedding; pos_ref is zero at pad rows.
        xs_ref[...] = (x_ref[...].astype(jnp.float32)
                       + pos_ref[...][None]).reshape(Bt * S, H)

    x = xs_ref[...]                                   # (Bt*S, H) f32 residual

    # ---------------- attention branch ----------------
    xn = _layernorm(x, g1_ref[0], b1_ref[0])
    # 1/sqrt(dh) is folded into the q-columns of wqkv at parameter-prep time.
    qkv = jnp.dot(xn.astype(jnp.bfloat16), wqkv_ref[0],
                  preferred_element_type=jnp.float32)          # (Bt*S, 3H) f32

    key_pos = jax.lax.broadcasted_iota(jnp.int32, (1, 1, S), 2)
    key_mask = key_pos < seq_real                     # mask zero-padded keys

    # MONAI SABlock split order of the 3H axis: (qkv, head, head_dim).
    # Per-head static loop, batched over the folded batch tile (3-D einsums).
    # TODO(synk): a single (b,h)-batched 4-D einsum would merge these matmuls;
    # kept per-head for robust Mosaic lowering (dh < 128 either way).
    ctx_heads = []
    for hd in range(nh):
        q = qkv[:, 0 * H + hd * dh:0 * H + (hd + 1) * dh]
        k = qkv[:, 1 * H + hd * dh:1 * H + (hd + 1) * dh]
        v = qkv[:, 2 * H + hd * dh:2 * H + (hd + 1) * dh]
        q = q.reshape(Bt, S, dh).astype(jnp.bfloat16)
        k = k.reshape(Bt, S, dh).astype(jnp.bfloat16)
        v = v.reshape(Bt, S, dh).astype(jnp.bfloat16)

        s = jnp.einsum('bqd,bkd->bqk', q, k,
                       preferred_element_type=jnp.float32)     # (Bt, S, S)
        s = jnp.where(key_mask, s, -1e30)
        m = jnp.max(s, axis=-1, keepdims=True)
        e = jnp.exp(s - m)
        p = e * pl.reciprocal(jnp.sum(e, axis=-1, keepdims=True), approx=True)
        ctx_heads.append(
            jnp.einsum('bqk,bkd->bqd', p.astype(jnp.bfloat16), v,
                       preferred_element_type=jnp.float32))    # (Bt, S, dh)

    ctx = jnp.concatenate(ctx_heads, axis=-1).reshape(Bt * S, H)  # (h d) order
    attn_out = jnp.dot(ctx.astype(jnp.bfloat16), wo_ref[0],
                       preferred_element_type=jnp.float32) + bo_ref[0]
    x1 = x + attn_out

    # ---------------- MLP branch ----------------
    xn2 = _layernorm(x1, g2_ref[0], b2_ref[0])
    h1 = jnp.dot(xn2.astype(jnp.bfloat16), wm1_ref[0],
                 preferred_element_type=jnp.float32) + bm1_ref[0]
    h1 = _gelu_tanh(h1)
    h2 = jnp.dot(h1.astype(jnp.bfloat16), wm2_ref[0],
                 preferred_element_type=jnp.float32) + bm2_ref[0]
    x2 = x1 + h2

    xs_ref[...] = x2

    @pl.when(l == n_layers - 1)
    def _():
        o_ref[...] = _layernorm(x2, gf_ref[...], bf_ref[...]).reshape(Bt, S, H)


def _stack_vmem_bytes(Bt, S, H, M, nh):
    f32, bf16 = 4, 2
    w_layer = (H * 3 * H + H * H + H * M + M * H) * bf16   # per-layer weights
    small = (8 * H + M) * f32                               # biases + LN params
    x_in = Bt * S * H * bf16
    x_out = Bt * S * H * f32
    pos = S * H * f32
    scratch = Bt * S * H * f32
    inter = (Bt * S * 3 * H * (f32 + bf16)
             + 2 * nh * Bt * S * S * f32
             + Bt * S * H * f32
             + Bt * S * M * (f32 + bf16)
             + 4 * Bt * S * H * f32)
    est = 2 * (w_layer + small) + 2 * (x_in + x_out) + pos + scratch + inter \
        + (8 << 20)
    return _clamp_vmem(est)


def vit_stack(h, pos_full, params, *, num_heads, seq_real, batch_tiles):
    B, S, H = h.shape
    L = params['wqkv'].shape[0]
    M = params['wm1'].shape[2]
    Bt = B // batch_tiles

    # TODO(synk): for scaled-up models (H/M beyond 768/3072) on v7x, the
    # double-buffered per-layer weights exceed 64 MiB VMEM; split wm1/wm2
    # streaming along M (inner pipeline) before raising model size.
    def wspec(shape):
        return pl.BlockSpec((1,) + shape, lambda bt, l: (l, 0, 0))

    kernel = partial(_vit_stack_kernel, num_heads=num_heads,
                     seq_real=seq_real, batch_tile=Bt)
    return pl.pallas_call(
        kernel,
        out_shape=jax.ShapeDtypeStruct((B, S, H), jnp.float32),
        grid=(batch_tiles, L),
        in_specs=[
            pl.BlockSpec((Bt, S, H), lambda bt, l: (bt, 0, 0)),  # x (bf16)
            pl.BlockSpec((S, H), lambda bt, l: (0, 0)),          # cls+pos (f32)
            wspec((H, 3 * H)),     # wqkv  (bf16, qkv_bias=False, scale folded)
            wspec((H, H)),         # wo    (bf16)
            wspec((1, H)),         # bo
            wspec((1, H)),         # ln1 gamma
            wspec((1, H)),         # ln1 beta
            wspec((1, H)),         # ln2 gamma
            wspec((1, H)),         # ln2 beta
            wspec((H, M)),         # mlp w1 (bf16)
            wspec((1, M)),         # mlp b1
            wspec((M, H)),         # mlp w2 (bf16)
            wspec((1, H)),         # mlp b2
            pl.BlockSpec((1, H), lambda bt, l: (0, 0)),          # final LN gamma
            pl.BlockSpec((1, H), lambda bt, l: (0, 0)),          # final LN beta
        ],
        out_specs=pl.BlockSpec((Bt, S, H), lambda bt, l: (bt, 0, 0)),
        scratch_shapes=[pltpu.VMEM((Bt * S, H), jnp.float32)],
        compiler_params=pltpu.CompilerParams(
            dimension_semantics=("parallel", "arbitrary"),
            vmem_limit_bytes=_stack_vmem_bytes(Bt, S, H, M, num_heads)),
    )(h, pos_full, params['wqkv'], params['wo'], params['bo'],
      params['g1'], params['b1'], params['g2'], params['b2'],
      params['wm1'], params['bm1'], params['wm2'], params['bm2'],
      params['ln_f_g'], params['ln_f_b'])


# ----------------------------------------------------------------------------
# Parameters (deterministic synthetic init; torch Linear weight (out,in) is
# stored pre-transposed as (in,out); per-layer weights stacked on a leading L
# axis; matmul weights stored in bf16, biases/LN params in f32; the attention
# softmax scale is folded into the q-columns of wqkv).
# ----------------------------------------------------------------------------
def init_params(key, cfg):
    H, M, L = cfg['hidden'], cfg['mlp_dim'], cfg['num_layers']
    nh = cfg['num_heads']
    dh = H // nh
    gs = [s // p for s, p in zip(cfg['image_size'], cfg['patch_size'])]
    n_patches = math.prod(gs)
    patch_dim = math.prod(cfg['patch_size']) * cfg['image_channel']
    std = 0.02
    bf16 = jnp.bfloat16
    counter = [0]

    def nrm_f32(shp):
        counter[0] += 1
        k = jax.random.fold_in(key, counter[0])
        return std * jax.random.normal(k, shp, jnp.float32)

    wqkv = nrm_f32((L, H, 3 * H))
    # Fold 1/sqrt(head_dim) into the q columns (qkv_bias=False -> no bias).
    wqkv = wqkv.at[:, :, :H].multiply(dh ** -0.5)

    params = {
        'pe_w': nrm_f32((patch_dim, H)).astype(bf16),
        'pe_b': nrm_f32((1, H)),
        'pos': nrm_f32((n_patches, H)),
        'cls': jnp.zeros((1, 1, H), jnp.float32),   # torch init: zeros
        'ln_f_g': jnp.ones((1, H), jnp.float32),
        'ln_f_b': jnp.zeros((1, H), jnp.float32),
        # stacked per-layer parameters (leading axis = layer)
        'wqkv': wqkv.astype(bf16),
        'wo':   nrm_f32((L, H, H)).astype(bf16),
        'bo':   nrm_f32((L, 1, H)),
        'g1':   jnp.ones((L, 1, H), jnp.float32),
        'b1':   jnp.zeros((L, 1, H), jnp.float32),
        'g2':   jnp.ones((L, 1, H), jnp.float32),
        'b2':   jnp.zeros((L, 1, H), jnp.float32),
        'wm1':  nrm_f32((L, H, M)).astype(bf16),
        'bm1':  nrm_f32((L, 1, M)),
        'wm2':  nrm_f32((L, M, H)).astype(bf16),
        'bm2':  nrm_f32((L, 1, H)),
    }
    return params


# ----------------------------------------------------------------------------
# ViT3DTower forward (plain-JAX glue around the two Pallas kernels)
# ----------------------------------------------------------------------------
def vit3d_tower_forward(images, params, cfg):
    B, C = images.shape[:2]
    ps = cfg['patch_size']
    gs = tuple(s // p for s, p in zip(cfg['image_size'], ps))
    N = gs[0] * gs[1] * gs[2]
    P = ps[0] * ps[1] * ps[2] * C
    H = cfg['hidden']

    # MONAI 'perceptron' patching:
    #   "b c (h p1)(w p2)(d p3) -> b (h w d)(p1 p2 p3 c)"
    x = images.reshape(B, C, gs[0], ps[0], gs[1], ps[1], gs[2], ps[2])
    x = jnp.transpose(x, (0, 2, 4, 6, 3, 5, 7, 1))
    patches = x.reshape(B * N, P).astype(jnp.bfloat16)

    # fold batch into rows; large row tiles for MXU M-fill / overhead amortize
    R = B * N
    if R >= 512:
        row_tile = 512
    elif R >= 256:
        row_tile = 256
    elif R >= 128:
        row_tile = 128
    else:
        row_tile = _round_up(R, 16)
    R_pad = _round_up(R, row_tile)
    if R_pad != R:
        patches = jnp.pad(patches, ((0, R_pad - R), (0, 0)))

    emb = patch_embed(patches, params['pe_w'], params['pe_b'],
                      row_tile=row_tile)             # (R_pad, H) bf16
    emb = emb[:R].reshape(B, N, H)

    # classification=True -> cls token at position 0 (value injected via the
    # f32 pos/cls slab inside the stack kernel); sequence padded to a multiple
    # of 128 for lane-dense scores/softmax; padded keys masked in-kernel.
    S_real = N + 1
    S_pad = _round_up(S_real, 128)
    h = jnp.pad(emb, ((0, 0), (1, S_pad - 1 - N), (0, 0)))   # (B, S_pad, H) bf16

    pos_full = jnp.zeros((S_pad, H), jnp.float32)
    pos_full = pos_full.at[0].set(params['cls'][0, 0])       # cls token (f32)
    pos_full = pos_full.at[1:N + 1].set(params['pos'])       # pos emb (no pos on cls)

    batch_tiles = _pick_batch_tiles(B)
    last_feature = vit_stack(h, pos_full, params, num_heads=cfg['num_heads'],
                             seq_real=S_real, batch_tiles=batch_tiles)
    # (B, S_pad, H) f32, final LayerNorm already applied

    # --- ViT3DTower.forward selection logic ---
    sel_layer = cfg['vision_select_layer']
    sel_feat = cfg['vision_select_feature']
    if sel_layer == -1:
        image_features = last_feature
    elif sel_layer < -1:
        # TODO(synk): the original code indexes the hidden_states list with the
        # string select_feature (a bug that raises in PyTorch too); per-layer
        # hidden states are not materialized by the fused-stack kernel.
        raise NotImplementedError(
            'select_layer < -1 is not supported by the fused-layer kernel')
    else:
        raise ValueError(f'Unexpected select layer: {sel_layer}')

    if sel_feat == 'patch':
        image_features = image_features[:, 1:S_real]
    elif sel_feat == 'cls_patch':
        image_features = image_features[:, :S_real]
    else:
        raise ValueError(f'Unexpected select feature: {sel_feat}')
    return image_features


# ----------------------------------------------------------------------------
if __name__ == "__main__":
    cfg = dict(
        image_channel=1,
        image_size=(16, 16, 16),
        patch_size=(8, 8, 8),
        hidden=128,          # small stand-in for the 768 default
        mlp_dim=256,         # small stand-in for the 3072 default
        num_layers=2,        # small stand-in for the 12 default
        num_heads=4,
        vision_select_layer=-1,
        vision_select_feature='patch',
    )

    key = jax.random.PRNGKey(0)
    k_img, k_par = jax.random.split(key)
    images = jax.random.normal(
        k_img, (2, cfg['image_channel'], *cfg['image_size']), jnp.float32)

    params = init_params(k_par, cfg)

    fwd = jax.jit(lambda imgs, prms: vit3d_tower_forward(imgs, prms, cfg))
    out = jax.block_until_ready(fwd(images, params))

    n_patches = math.prod(s // p for s, p in zip(cfg['image_size'],
                                                 cfg['patch_size']))
    assert out.shape == (2, n_patches, cfg['hidden']), out.shape
    assert out.dtype == jnp.float32
    print("KERNEL_OK")
</pallas_src>

<mosaic_0001>
module attributes {stable_mosaic.version = 11 : i64} {
  func.func @_patch_embed_kernel(%arg0: i32, %arg1: memref<16x512xbf16, #tpu.memory_space<vmem>>, %arg2: memref<512x128xbf16, #tpu.memory_space<vmem>>, %arg3: memref<1x128xf32, #tpu.memory_space<vmem>>, %arg4: memref<16x128xbf16, #tpu.memory_space<vmem>>) attributes {dimension_semantics = [#tpu.dimension_semantics<parallel>], iteration_bounds = array<i64: 1>, scalar_prefetch = 0 : i64, scratch_operands = 0 : i64, tpu.core_type = #tpu.core_type<tc>, window_params = [{transform_indices = @transform_0, window_bounds = array<i64: 16, 512>}, {pipeline_mode = #tpu.pipeline_mode<synchronous>, transform_indices = @transform_1, window_bounds = array<i64: 512, 128>}, {pipeline_mode = #tpu.pipeline_mode<synchronous>, transform_indices = @transform_2, window_bounds = array<i64: 1, 128>}, {transform_indices = @transform_3, window_bounds = array<i64: 16, 128>}]} {
    %c0 = arith.constant 0 : index
    %c0_0 = arith.constant 0 : index
    %0 = vector.load %arg1[%c0, %c0_0] : memref<16x512xbf16, #tpu.memory_space<vmem>>, vector<16x512xbf16>
    %c0_1 = arith.constant 0 : index
    %c0_2 = arith.constant 0 : index
    %1 = vector.load %arg2[%c0_1, %c0_2] : memref<512x128xbf16, #tpu.memory_space<vmem>>, vector<512x128xbf16>
    %cst = arith.constant dense<0.000000e+00> : vector<16x128xf32>
    %2 = tpu.matmul %0, %1, %cst {dimension_numbers = #tpu.dot_dimension_numbers<[1], [0], [0], [1], [0, 0, 1, 1], [], []>} : vector<16x512xbf16>, vector<512x128xbf16>, vector<16x128xf32> -> vector<16x128xf32>
    %c0_3 = arith.constant 0 : index
    %c0_4 = arith.constant 0 : index
    %3 = vector.load %arg3[%c0_3, %c0_4] : memref<1x128xf32, #tpu.memory_space<vmem>>, vector<1x128xf32>
    %4 = vector.broadcast %3 : vector<1x128xf32> to vector<16x128xf32>
    %5 = arith.addf %2, %4 : vector<16x128xf32>
    %6 = arith.truncf %5 : vector<16x128xf32> to vector<16x128xbf16>
    %c0_5 = arith.constant 0 : index
    %c0_6 = arith.constant 0 : index
    %7 = vector.load %arg4[%c0_5, %c0_6] : memref<16x128xbf16, #tpu.memory_space<vmem>>, vector<16x128xbf16>
    tpu.vector_store %arg4[%c0_5, %c0_6], %6 {strides = array<i32>} : memref<16x128xbf16, #tpu.memory_space<vmem>>, vector<16x128xbf16>,
    return
  }
  func.func @transform_0(%arg0: i32) -> (i32, i32) {
    %c0_i32 = arith.constant 0 : i32
    %c0_i32_0 = arith.constant 0 : i32
    return %arg0, %c0_i32 : i32, i32
  }
  func.func @transform_1(%arg0: i32) -> (i32, i32) {
    %c0_i32 = arith.constant 0 : i32
    %c0_i32_0 = arith.constant 0 : i32
    %c0_i32_1 = arith.constant 0 : i32
    return %c0_i32, %c0_i32_0 : i32, i32
  }
  func.func @transform_2(%arg0: i32) -> (i32, i32) {
    %c0_i32 = arith.constant 0 : i32
    %c0_i32_0 = arith.constant 0 : i32
    %c0_i32_1 = arith.constant 0 : i32
    return %c0_i32, %c0_i32_0 : i32, i32
  }
  func.func @transform_3(%arg0: i32) -> (i32, i32) {
    %c0_i32 = arith.constant 0 : i32
    %c0_i32_0 = arith.constant 0 : i32
    return %arg0, %c0_i32 : i32, i32
  }
}

module attributes {stable_mosaic.version = 11 : i64} {
  func.func @_vit_stack_kernel(%arg0: i32, %arg1: i32, %arg2: memref<2x128x128xbf16, #tpu.memory_space<vmem>>, %arg3: memref<128x128xf32, #tpu.memory_space<vmem>>, %arg4: memref<1x128x384xbf16, #tpu.memory_space<vmem>>, %arg5: memref<1x128x128xbf16, #tpu.memory_space<vmem>>, %arg6: memref<1x1x128xf32, #tpu.memory_space<vmem>>, %arg7: memref<1x1x128xf32, #tpu.memory_space<vmem>>, %arg8: memref<1x1x128xf32, #tpu.memory_space<vmem>>, %arg9: memref<1x1x128xf32, #tpu.memory_space<vmem>>, %arg10: memref<1x1x128xf32, #tpu.memory_space<vmem>>, %arg11: memref<1x128x256xbf16, #tpu.memory_space<vmem>>, %arg12: memref<1x1x256xf32, #tpu.memory_space<vmem>>, %arg13: memref<1x256x128xbf16, #tpu.memory_space<vmem>>, %arg14: memref<1x1x128xf32, #tpu.memory_space<vmem>>, %arg15: memref<1x128xf32, #tpu.memory_space<vmem>>, %arg16: memref<1x128xf32, #tpu.memory_space<vmem>>, %arg17: memref<2x128x128xf32, #tpu.memory_space<vmem>>, %arg18: memref<256x128xf32, #tpu.memory_space<vmem>>) attributes {dimension_semantics = [#tpu.dimension_semantics<parallel>, #tpu.dimension_semantics<arbitrary>], iteration_bounds = array<i64: 1, 2>, scalar_prefetch = 0 : i64, scratch_operands = 1 : i64, tpu.core_type = #tpu.core_type<tc>, window_params = [{transform_indices = @transform_0, window_bounds = array<i64: 2, 128, 128>}, {pipeline_mode = #tpu.pipeline_mode<synchronous>, transform_indices = @transform_1, window_bounds = array<i64: 128, 128>}, {transform_indices = @transform_2, window_bounds = array<i64: 1, 128, 384>}, {transform_indices = @transform_3, window_bounds = array<i64: 1, 128, 128>}, {transform_indices = @transform_4, window_bounds = array<i64: 1, 1, 128>}, {transform_indices = @transform_5, window_bounds = array<i64: 1, 1, 128>}, {transform_indices = @transform_6, window_bounds = array<i64: 1, 1, 128>}, {transform_indices = @transform_7, window_bounds = array<i64: 1, 1, 128>}, {transform_indices = @transform_8, window_bounds = array<i64: 1, 1, 128>}, {transform_indices = @transform_9, window_bounds = array<i64: 1, 128, 256>}, {transform_indices = @transform_10, window_bounds = array<i64: 1, 1, 256>}, {transform_indices = @transform_11, window_bounds = array<i64: 1, 256, 128>}, {transform_indices = @transform_12, window_bounds = array<i64: 1, 1, 128>}, {pipeline_mode = #tpu.pipeline_mode<synchronous>, transform_indices = @transform_13, window_bounds = array<i64: 1, 128>}, {pipeline_mode = #tpu.pipeline_mode<synchronous>, transform_indices = @transform_14, window_bounds = array<i64: 1, 128>}, {transform_indices = @transform_15, window_bounds = array<i64: 2, 128, 128>}]} {
    %c0_i32 = arith.constant 0 : i32
    %0 = arith.cmpi eq, %arg1, %c0_i32 : i32
    %1 = arith.extui %0 : i1 to i32
    %c0_i32_0 = arith.constant 0 : i32
    %2 = arith.cmpi ne, %1, %c0_i32_0 : i32
    scf.if %2 {
      %c0_75 = arith.constant 0 : index
      %c0_76 = arith.constant 0 : index
      %c0_77 = arith.constant 0 : index
      %212 = vector.load %arg2[%c0_75, %c0_76, %c0_77] : memref<2x128x128xbf16, #tpu.memory_space<vmem>>, vector<2x128x128xbf16>
      %213 = arith.extf %212 : vector<2x128x128xbf16> to vector<2x128x128xf32>
      %c0_78 = arith.constant 0 : index
      %c0_79 = arith.constant 0 : index
      %214 = vector.load %arg3[%c0_78, %c0_79] : memref<128x128xf32, #tpu.memory_space<vmem>>, vector<128x128xf32>
      %215 = vector.shape_cast %214 : vector<128x128xf32> to vector<1x128x128xf32>
      %216 = vector.broadcast %215 : vector<1x128x128xf32> to vector<2x128x128xf32>
      %217 = arith.addf %213, %216 : vector<2x128x128xf32>
      %218 = vector.shape_cast %217 : vector<2x128x128xf32> to vector<256x128xf32>
      %c0_80 = arith.constant 0 : index
      %c0_81 = arith.constant 0 : index
      %219 = vector.load %arg18[%c0_80, %c0_81] : memref<256x128xf32, #tpu.memory_space<vmem>>, vector<256x128xf32>
      tpu.vector_store %arg18[%c0_80, %c0_81], %218 {strides = array<i32>} : memref<256x128xf32, #tpu.memory_space<vmem>>, vector<256x128xf32>,
    } else {
    }
    %c0 = arith.constant 0 : index
    %c0_1 = arith.constant 0 : index
    %3 = vector.load %arg18[%c0, %c0_1] : memref<256x128xf32, #tpu.memory_space<vmem>>, vector<256x128xf32>
    %c0_2 = arith.constant 0 : index
    %c0_3 = arith.constant 0 : index
    %c0_4 = arith.constant 0 : index
    %4 = vector.load %arg7[%c0_2, %c0_3, %c0_4] : memref<1x1x128xf32, #tpu.memory_space<vmem>>, vector<1x1x128xf32>
    %5 = vector.shape_cast %4 : vector<1x1x128xf32> to vector<1x128xf32>
    %c0_5 = arith.constant 0 : index
    %c0_6 = arith.constant 0 : index
    %c0_7 = arith.constant 0 : index
    %6 = vector.load %arg8[%c0_5, %c0_6, %c0_7] : memref<1x1x128xf32, #tpu.memory_space<vmem>>, vector<1x1x128xf32>
    %7 = vector.shape_cast %6 : vector<1x1x128xf32> to vector<1x128xf32>
    %cst = arith.constant dense<0.000000e+00> : vector<256xf32>
    %8 = vector.multi_reduction <add>, %3, %cst [1] : vector<256x128xf32> to vector<256xf32>
    %9 = vector.shape_cast %8 : vector<256xf32> to vector<256x1xf32>
    %cst_8 = arith.constant 1.280000e+02 : f32
    %10 = vector.broadcast %cst_8 : f32 to vector<256x1xf32>
    %11 = arith.divf %9, %10 : vector<256x1xf32>
    %12 = vector.broadcast %11 : vector<256x1xf32> to vector<256x128xf32>
    %13 = arith.subf %3, %12 : vector<256x128xf32>
    %14 = arith.mulf %13, %13 : vector<256x128xf32>
    %cst_9 = arith.constant dense<0.000000e+00> : vector<256xf32>
    %15 = vector.multi_reduction <add>, %14, %cst_9 [1] : vector<256x128xf32> to vector<256xf32>
    %16 = vector.shape_cast %15 : vector<256xf32> to vector<256x1xf32>
    %cst_10 = arith.constant 1.280000e+02 : f32
    %17 = vector.broadcast %cst_10 : f32 to vector<256x1xf32>
    %18 = arith.divf %16, %17 : vector<256x1xf32>
    %19 = vector.broadcast %11 : vector<256x1xf32> to vector<256x128xf32>
    %20 = arith.subf %3, %19 : vector<256x128xf32>
    %cst_11 = arith.constant 9.99999974E-6 : f32
    %21 = vector.broadcast %cst_11 : f32 to vector<256x1xf32>
    %22 = arith.addf %18, %21 : vector<256x1xf32>
    %23 = math.rsqrt %22 : vector<256x1xf32>
    %24 = vector.broadcast %23 : vector<256x1xf32> to vector<256x128xf32>
    %25 = arith.mulf %20, %24 : vector<256x128xf32>
    %26 = vector.broadcast %5 : vector<1x128xf32> to vector<256x128xf32>
    %27 = arith.mulf %25, %26 : vector<256x128xf32>
    %28 = vector.broadcast %7 : vector<1x128xf32> to vector<256x128xf32>
    %29 = arith.addf %27, %28 : vector<256x128xf32>
    %30 = arith.truncf %29 : vector<256x128xf32> to vector<256x128xbf16>
    %c0_12 = arith.constant 0 : index
    %c0_13 = arith.constant 0 : index
    %c0_14 = arith.constant 0 : index
    %31 = vector.load %arg4[%c0_12, %c0_13, %c0_14] : memref<1x128x384xbf16, #tpu.memory_space<vmem>>, vector<1x128x384xbf16>
    %32 = vector.shape_cast %31 : vector<1x128x384xbf16> to vector<128x384xbf16>
    %cst_15 = arith.constant dense<0.000000e+00> : vector<256x384xf32>
    %33 = tpu.matmul %30, %32, %cst_15 {dimension_numbers = #tpu.dot_dimension_numbers<[1], [0], [0], [1], [0, 0, 1, 1], [], []>} : vector<256x128xbf16>, vector<128x384xbf16>, vector<256x384xf32> -> vector<256x384xf32>
    %34 = tpu.iota {dimensions = array<i32: 2>} : vector<1x1x128xi32>
    %c9_i32 = arith.constant 9 : i32
    %35 = vector.broadcast %c9_i32 : i32 to vector<1x1x128xi32>
    %36 = arith.cmpi slt, %34, %35 : vector<1x1x128xi32>
    %37 = vector.extract_strided_slice %33 {offsets = [0, 0], sizes = [256, 32], strides = [1, 1]} : vector<256x384xf32> to vector<256x32xf32>
    %38 = vector.extract_strided_slice %33 {offsets = [0, 128], sizes = [256, 32], strides = [1, 1]} : vector<256x384xf32> to vector<256x32xf32>
    %39 = vector.extract_strided_slice %33 {offsets = [0, 256], sizes = [256, 32], strides = [1, 1]} : vector<256x384xf32> to vector<256x32xf32>
    %40 = vector.shape_cast %37 : vector<256x32xf32> to vector<2x128x32xf32>
    %41 = arith.truncf %40 : vector<2x128x32xf32> to vector<2x128x32xbf16>
    %42 = vector.shape_cast %38 : vector<256x32xf32> to vector<2x128x32xf32>
    %43 = arith.truncf %42 : vector<2x128x32xf32> to vector<2x128x32xbf16>
    %44 = vector.shape_cast %39 : vector<256x32xf32> to vector<2x128x32xf32>
    %45 = arith.truncf %44 : vector<2x128x32xf32> to vector<2x128x32xbf16>
    "tpu.trace_start"() <{level = 10 : i32, message = "bqd,bkd->bqk"}> : () -> ()
    %cst_16 = arith.constant dense<0.000000e+00> : vector<2x128x128xf32>
    %46 = tpu.matmul %41, %43, %cst_16 {dimension_numbers = #tpu.dot_dimension_numbers<[2], [2], [1], [1], [0, 0, 0, 1, 1, 1], [0], [0]>} : vector<2x128x32xbf16>, vector<2x128x32xbf16>, vector<2x128x128xf32> -> vector<2x128x128xf32>
    %cst_17 = arith.constant -1.000000e+30 : f32
    "tpu.trace_stop"() : () -> ()
    %47 = vector.shape_cast %36 : vector<1x1x128xi1> to vector<1x1x128xi1>
    %48 = vector.broadcast %47 : vector<1x1x128xi1> to vector<2x128x128xi1>
    %49 = vector.broadcast %cst_17 : f32 to vector<2x128x128xf32>
    %50 = arith.select %48, %46, %49 : vector<2x128x128xi1>, vector<2x128x128xf32>
    %cst_18 = arith.constant dense<0xFF800000> : vector<2x128xf32>
    %51 = vector.multi_reduction <maximumf>, %50, %cst_18 [2] : vector<2x128x128xf32> to vector<2x128xf32>
    %52 = vector.shape_cast %51 : vector<2x128xf32> to vector<2x128x1xf32>
    %53 = vector.broadcast %52 : vector<2x128x1xf32> to vector<2x128x128xf32>
    %54 = arith.subf %50, %53 : vector<2x128x128xf32>
    %55 = math.exp %54 : vector<2x128x128xf32>
    %cst_19 = arith.constant dense<0.000000e+00> : vector<2x128xf32>
    %56 = vector.multi_reduction <add>, %55, %cst_19 [2] : vector<2x128x128xf32> to vector<2x128xf32>
    %57 = vector.shape_cast %56 : vector<2x128xf32> to vector<2x128x1xf32>
    %58 = tpu.reciprocal %57 {approx = true} : vector<2x128x1xf32> -> vector<2x128x1xf32>
    %59 = vector.broadcast %58 : vector<2x128x1xf32> to vector<2x128x128xf32>
    %60 = arith.mulf %55, %59 : vector<2x128x128xf32>
    %61 = arith.truncf %60 : vector<2x128x128xf32> to vector<2x128x128xbf16>
    "tpu.trace_start"() <{level = 10 : i32, message = "bqk,bkd->bqd"}> : () -> ()
    %cst_20 = arith.constant dense<0.000000e+00> : vector<2x128x32xf32>
    %62 = tpu.matmul %61, %45, %cst_20 {dimension_numbers = #tpu.dot_dimension_numbers<[2], [1], [1], [2], [0, 0, 0, 1, 1, 2], [0], [0]>} : vector<2x128x128xbf16>, vector<2x128x32xbf16>, vector<2x128x32xf32> -> vector<2x128x32xf32>
    "tpu.trace_stop"() : () -> ()
    %63 = vector.extract_strided_slice %33 {offsets = [0, 32], sizes = [256, 32], strides = [1, 1]} : vector<256x384xf32> to vector<256x32xf32>
    %64 = vector.extract_strided_slice %33 {offsets = [0, 160], sizes = [256, 32], strides = [1, 1]} : vector<256x384xf32> to vector<256x32xf32>
    %65 = vector.extract_strided_slice %33 {offsets = [0, 288], sizes = [256, 32], strides = [1, 1]} : vector<256x384xf32> to vector<256x32xf32>
    %66 = vector.shape_cast %63 : vector<256x32xf32> to vector<2x128x32xf32>
    %67 = arith.truncf %66 : vector<2x128x32xf32> to vector<2x128x32xbf16>
    %68 = vector.shape_cast %64 : vector<256x32xf32> to vector<2x128x32xf32>
    %69 = arith.truncf %68 : vector<2x128x32xf32> to vector<2x128x32xbf16>
    %70 = vector.shape_cast %65 : vector<256x32xf32> to vector<2x128x32xf32>
    %71 = arith.truncf %70 : vector<2x128x32xf32> to vector<2x128x32xbf16>
    "tpu.trace_start"() <{level = 10 : i32, message = "bqd,bkd->bqk"}> : () -> ()
    %cst_21 = arith.constant dense<0.000000e+00> : vector<2x128x128xf32>
    %72 = tpu.matmul %67, %69, %cst_21 {dimension_numbers = #tpu.dot_dimension_numbers<[2], [2], [1], [1], [0, 0, 0, 1, 1, 1], [0], [0]>} : vector<2x128x32xbf16>, vector<2x128x32xbf16>, vector<2x128x128xf32> -> vector<2x128x128xf32>
    %cst_22 = arith.constant -1.000000e+30 : f32
    "tpu.trace_stop"() : () -> ()
    %73 = vector.shape_cast %36 : vector<1x1x128xi1> to vector<1x1x128xi1>
    %74 = vector.broadcast %73 : vector<1x1x128xi1> to vector<2x128x128xi1>
    %75 = vector.broadcast %cst_22 : f32 to vector<2x128x128xf32>
    %76 = arith.select %74, %72, %75 : vector<2x128x128xi1>, vector<2x128x128xf32>
    %cst_23 = arith.constant dense<0xFF800000> : vector<2x128xf32>
    %77 = vector.multi_reduction <maximumf>, %76, %cst_23 [2] : vector<2x128x128xf32> to vector<2x128xf32>
    %78 = vector.shape_cast %77 : vector<2x128xf32> to vector<2x128x1xf32>
    %79 = vector.broadcast %78 : vector<2x128x1xf32> to vector<2x128x128xf32>
    %80 = arith.subf %76, %79 : vector<2x128x128xf32>
    %81 = math.exp %80 : vector<2x128x128xf32>
    %cst_24 = arith.constant dense<0.000000e+00> : vector<2x128xf32>
    %82 = vector.multi_reduction <add>, %81, %cst_24 [2] : vector<2x128x128xf32> to vector<2x128xf32>
    %83 = vector.shape_cast %82 : vector<2x128xf32> to vector<2x128x1xf32>
    %84 = tpu.reciprocal %83 {approx = true} : vector<2x128x1xf32> -> vector<2x128x1xf32>
    %85 = vector.broadcast %84 : vector<2x128x1xf32> to vector<2x128x128xf32>
    %86 = arith.mulf %81, %85 : vector<2x128x128xf32>
    %87 = arith.truncf %86 : vector<2x128x128xf32> to vector<2x128x128xbf16>
    "tpu.trace_start"() <{level = 10 : i32, message = "bqk,bkd->bqd"}> : () -> ()
    %cst_25 = arith.constant dense<0.000000e+00> : vector<2x128x32xf32>
    %88 = tpu.matmul %87, %71, %cst_25 {dimension_numbers = #tpu.dot_dimension_numbers<[2], [1], [1], [2], [0, 0, 0, 1, 1, 2], [0], [0]>} : vector<2x128x128xbf16>, vector<2x128x32xbf16>, vector<2x128x32xf32> -> vector<2x128x32xf32>
    "tpu.trace_stop"() : () -> ()
    %89 = vector.extract_strided_slice %33 {offsets = [0, 64], sizes = [256, 32], strides = [1, 1]} : vector<256x384xf32> to vector<256x32xf32>
    %90 = vector.extract_strided_slice %33 {offsets = [0, 192], sizes = [256, 32], strides = [1, 1]} : vector<256x384xf32> to vector<256x32xf32>
    %91 = vector.extract_strided_slice %33 {offsets = [0, 320], sizes = [256, 32], strides = [1, 1]} : vector<256x384xf32> to vector<256x32xf32>
    %92 = vector.shape_cast %89 : vector<256x32xf32> to vector<2x128x32xf32>
    %93 = arith.truncf %92 : vector<2x128x32xf32> to vector<2x128x32xbf16>
    %94 = vector.shape_cast %90 : vector<256x32xf32> to vector<2x128x32xf32>
    %95 = arith.truncf %94 : vector<2x128x32xf32> to vector<2x128x32xbf16>
    %96 = vector.shape_cast %91 : vector<256x32xf32> to vector<2x128x32xf32>
    %97 = arith.truncf %96 : vector<2x128x32xf32> to vector<2x128x32xbf16>
    "tpu.trace_start"() <{level = 10 : i32, message = "bqd,bkd->bqk"}> : () -> ()
    %cst_26 = arith.constant dense<0.000000e+00> : vector<2x128x128xf32>
    %98 = tpu.matmul %93, %95, %cst_26 {dimension_numbers = #tpu.dot_dimension_numbers<[2], [2], [1], [1], [0, 0, 0, 1, 1, 1], [0], [0]>} : vector<2x128x32xbf16>, vector<2x128x32xbf16>, vector<2x128x128xf32> -> vector<2x128x128xf32>
    %cst_27 = arith.constant -1.000000e+30 : f32
    "tpu.trace_stop"() : () -> ()
    %99 = vector.shape_cast %36 : vector<1x1x128xi1> to vector<1x1x128xi1>
    %100 = vector.broadcast %99 : vector<1x1x128xi1> to vector<2x128x128xi1>
    %101 = vector.broadcast %cst_27 : f32 to vector<2x128x128xf32>
    %102 = arith.select %100, %98, %101 : vector<2x128x128xi1>, vector<2x128x128xf32>
    %cst_28 = arith.constant dense<0xFF800000> : vector<2x128xf32>
    %103 = vector.multi_reduction <maximumf>, %102, %cst_28 [2] : vector<2x128x128xf32> to vector<2x128xf32>
    %104 = vector.shape_cast %103 : vector<2x128xf32> to vector<2x128x1xf32>
    %105 = vector.broadcast %104 : vector<2x128x1xf32> to vector<2x128x128xf32>
    %106 = arith.subf %102, %105 : vector<2x128x128xf32>
    %107 = math.exp %106 : vector<2x128x128xf32>
    %cst_29 = arith.constant dense<0.000000e+00> : vector<2x128xf32>
    %108 = vector.multi_reduction <add>, %107, %cst_29 [2] : vector<2x128x128xf32> to vector<2x128xf32>
    %109 = vector.shape_cast %108 : vector<2x128xf32> to vector<2x128x1xf32>
    %110 = tpu.reciprocal %109 {approx = true} : vector<2x128x1xf32> -> vector<2x128x1xf32>
    %111 = vector.broadcast %110 : vector<2x128x1xf32> to vector<2x128x128xf32>
    %112 = arith.mulf %107, %111 : vector<2x128x128xf32>
    %113 = arith.truncf %112 : vector<2x128x128xf32> to vector<2x128x128xbf16>
    "tpu.trace_start"() <{level = 10 : i32, message = "bqk,bkd->bqd"}> : () -> ()
    %cst_30 = arith.constant dense<0.000000e+00> : vector<2x128x32xf32>
    %114 = tpu.matmul %113, %97, %cst_30 {dimension_numbers = #tpu.dot_dimension_numbers<[2], [1], [1], [2], [0, 0, 0, 1, 1, 2], [0], [0]>} : vector<2x128x128xbf16>, vector<2x128x32xbf16>, vector<2x128x32xf32> -> vector<2x128x32xf32>
    "tpu.trace_stop"() : () -> ()
    %115 = vector.extract_strided_slice %33 {offsets = [0, 96], sizes = [256, 32], strides = [1, 1]} : vector<256x384xf32> to vector<256x32xf32>
    %116 = vector.extract_strided_slice %33 {offsets = [0, 224], sizes = [256, 32], strides = [1, 1]} : vector<256x384xf32> to vector<256x32xf32>
    %117 = vector.extract_strided_slice %33 {offsets = [0, 352], sizes = [256, 32], strides = [1, 1]} : vector<256x384xf32> to vector<256x32xf32>
    %118 = vector.shape_cast %115 : vector<256x32xf32> to vector<2x128x32xf32>
    %119 = arith.truncf %118 : vector<2x128x32xf32> to vector<2x128x32xbf16>
    %120 = vector.shape_cast %116 : vector<256x32xf32> to vector<2x128x32xf32>
    %121 = arith.truncf %120 : vector<2x128x32xf32> to vector<2x128x32xbf16>
    %122 = vector.shape_cast %117 : vector<256x32xf32> to vector<2x128x32xf32>
    %123 = arith.truncf %122 : vector<2x128x32xf32> to vector<2x128x32xbf16>
    "tpu.trace_start"() <{level = 10 : i32, message = "bqd,bkd->bqk"}> : () -> ()
    %cst_31 = arith.constant dense<0.000000e+00> : vector<2x128x128xf32>
    %124 = tpu.matmul %119, %121, %cst_31 {dimension_numbers = #tpu.dot_dimension_numbers<[2], [2], [1], [1], [0, 0, 0, 1, 1, 1], [0], [0]>} : vector<2x128x32xbf16>, vector<2x128x32xbf16>, vector<2x128x128xf32> -> vector<2x128x128xf32>
    %cst_32 = arith.constant -1.000000e+30 : f32
    "tpu.trace_stop"() : () -> ()
    %125 = vector.shape_cast %36 : vector<1x1x128xi1> to vector<1x1x128xi1>
    %126 = vector.broadcast %125 : vector<1x1x128xi1> to vector<2x128x128xi1>
    %127 = vector.broadcast %cst_32 : f32 to vector<2x128x128xf32>
    %128 = arith.select %126, %124, %127 : vector<2x128x128xi1>, vector<2x128x128xf32>
    %cst_33 = arith.constant dense<0xFF800000> : vector<2x128xf32>
    %129 = vector.multi_reduction <maximumf>, %128, %cst_33 [2] : vector<2x128x128xf32> to vector<2x128xf32>
    %130 = vector.shape_cast %129 : vector<2x128xf32> to vector<2x128x1xf32>
    %131 = vector.broadcast %130 : vector<2x128x1xf32> to vector<2x128x128xf32>
    %132 = arith.subf %128, %131 : vector<2x128x128xf32>
    %133 = math.exp %132 : vector<2x128x128xf32>
    %cst_34 = arith.constant dense<0.000000e+00> : vector<2x128xf32>
    %134 = vector.multi_reduction <add>, %133, %cst_34 [2] : vector<2x128x128xf32> to vector<2x128xf32>
    %135 = vector.shape_cast %134 : vector<2x128xf32> to vector<2x128x1xf32>
    %136 = tpu.reciprocal %135 {approx = true} : vector<2x128x1xf32> -> vector<2x128x1xf32>
    %137 = vector.broadcast %136 : vector<2x128x1xf32> to vector<2x128x128xf32>
    %138 = arith.mulf %133, %137 : vector<2x128x128xf32>
    %139 = arith.truncf %138 : vector<2x128x128xf32> to vector<2x128x128xbf16>
    "tpu.trace_start"() <{level = 10 : i32, message = "bqk,bkd->bqd"}> : () -> ()
    %cst_35 = arith.constant dense<0.000000e+00> : vector<2x128x32xf32>
    %140 = tpu.matmul %139, %123, %cst_35 {dimension_numbers = #tpu.dot_dimension_numbers<[2], [1], [1], [2], [0, 0, 0, 1, 1, 2], [0], [0]>} : vector<2x128x128xbf16>, vector<2x128x32xbf16>, vector<2x128x32xf32> -> vector<2x128x32xf32>
    "tpu.trace_stop"() : () -> ()
    %141 = tpu.concatenate %62, %88, %114, %140 in 2 : vector<2x128x32xf32>, vector<2x128x32xf32>, vector<2x128x32xf32>, vector<2x128x32xf32> -> vector<2x128x128xf32>
    %142 = vector.shape_cast %141 : vector<2x128x128xf32> to vector<256x128xf32>
    %143 = arith.truncf %142 : vector<256x128xf32> to vector<256x128xbf16>
    %c0_36 = arith.constant 0 : index
    %c0_37 = arith.constant 0 : index
    %c0_38 = arith.constant 0 : index
    %144 = vector.load %arg5[%c0_36, %c0_37, %c0_38] : memref<1x128x128xbf16, #tpu.memory_space<vmem>>, vector<1x128x128xbf16>
    %145 = vector.shape_cast %144 : vector<1x128x128xbf16> to vector<128x128xbf16>
    %cst_39 = arith.constant dense<0.000000e+00> : vector<256x128xf32>
    %146 = tpu.matmul %143, %145, %cst_39 {dimension_numbers = #tpu.dot_dimension_numbers<[1], [0], [0], [1], [0, 0, 1, 1], [], []>} : vector<256x128xbf16>, vector<128x128xbf16>, vector<256x128xf32> -> vector<256x128xf32>
    %c0_40 = arith.constant 0 : index
    %c0_41 = arith.constant 0 : index
    %c0_42 = arith.constant 0 : index
    %147 = vector.load %arg6[%c0_40, %c0_41, %c0_42] : memref<1x1x128xf32, #tpu.memory_space<vmem>>, vector<1x1x128xf32>
    %148 = vector.shape_cast %147 : vector<1x1x128xf32> to vector<1x128xf32>
    %149 = vector.broadcast %148 : vector<1x128xf32> to vector<256x128xf32>
    %150 = arith.addf %146, %149 : vector<256x128xf32>
    %151 = arith.addf %3, %150 : vector<256x128xf32>
    %c0_43 = arith.constant 0 : index
    %c0_44 = arith.constant 0 : index
    %c0_45 = arith.constant 0 : index
    %152 = vector.load %arg9[%c0_43, %c0_44, %c0_45] : memref<1x1x128xf32, #tpu.memory_space<vmem>>, vector<1x1x128xf32>
    %153 = vector.shape_cast %152 : vector<1x1x128xf32> to vector<1x128xf32>
    %c0_46 = arith.constant 0 : index
    %c0_47 = arith.constant 0 : index
    %c0_48 = arith.constant 0 : index
    %154 = vector.load %arg10[%c0_46, %c0_47, %c0_48] : memref<1x1x128xf32, #tpu.memory_space<vmem>>, vector<1x1x128xf32>
    %155 = vector.shape_cast %154 : vector<1x1x128xf32> to vector<1x128xf32>
    %cst_49 = arith.constant dense<0.000000e+00> : vector<256xf32>
    %156 = vector.multi_reduction <add>, %151, %cst_49 [1] : vector<256x128xf32> to vector<256xf32>
    %157 = vector.shape_cast %156 : vector<256xf32> to vector<256x1xf32>
    %cst_50 = arith.constant 1.280000e+02 : f32
    %158 = vector.broadcast %cst_50 : f32 to vector<256x1xf32>
    %159 = arith.divf %157, %158 : vector<256x1xf32>
    %160 = vector.broadcast %159 : vector<256x1xf32> to vector<256x128xf32>
    %161 = arith.subf %151, %160 : vector<256x128xf32>
    %162 = arith.mulf %161, %161 : vector<256x128xf32>
    %cst_51 = arith.constant dense<0.000000e+00> : vector<256xf32>
    %163 = vector.multi_reduction <add>, %162, %cst_51 [1] : vector<256x128xf32> to vector<256xf32>
    %164 = vector.shape_cast %163 : vector<256xf32> to vector<256x1xf32>
    %cst_52 = arith.constant 1.280000e+02 : f32
    %165 = vector.broadcast %cst_52 : f32 to vector<256x1xf32>
    %166 = arith.divf %164, %165 : vector<256x1xf32>
    %167 = vector.broadcast %159 : vector<256x1xf32> to vector<256x128xf32>
    %168 = arith.subf %151, %167 : vector<256x128xf32>
    %cst_53 = arith.constant 9.99999974E-6 : f32
    %169 = vector.broadcast %cst_53 : f32 to vector<256x1xf32>
    %170 = arith.addf %166, %169 : vector<256x1xf32>
    %171 = math.rsqrt %170 : vector<256x1xf32>
    %172 = vector.broadcast %171 : vector<256x1xf32> to vector<256x128xf32>
    %173 = arith.mulf %168, %172 : vector<256x128xf32>
    %174 = vector.broadcast %153 : vector<1x128xf32> to vector<256x128xf32>
    %175 = arith.mulf %173, %174 : vector<256x128xf32>
    %176 = vector.broadcast %155 : vector<1x128xf32> to vector<256x128xf32>
    %177 = arith.addf %175, %176 : vector<256x128xf32>
    %178 = arith.truncf %177 : vector<256x128xf32> to vector<256x128xbf16>
    %c0_54 = arith.constant 0 : index
    %c0_55 = arith.constant 0 : index
    %c0_56 = arith.constant 0 : index
    %179 = vector.load %arg11[%c0_54, %c0_55, %c0_56] : memref<1x128x256xbf16, #tpu.memory_space<vmem>>, vector<1x128x256xbf16>
    %180 = vector.shape_cast %179 : vector<1x128x256xbf16> to vector<128x256xbf16>
    %cst_57 = arith.constant dense<0.000000e+00> : vector<256x256xf32>
    %181 = tpu.matmul %178, %180, %cst_57 {dimension_numbers = #tpu.dot_dimension_numbers<[1], [0], [0], [1], [0, 0, 1, 1], [], []>} : vector<256x128xbf16>, vector<128x256xbf16>, vector<256x256xf32> -> vector<256x256xf32>
    %c0_58 = arith.constant 0 : index
    %c0_59 = arith.constant 0 : index
    %c0_60 = arith.constant 0 : index
    %182 = vector.load %arg12[%c0_58, %c0_59, %c0_60] : memref<1x1x256xf32, #tpu.memory_space<vmem>>, vector<1x1x256xf32>
    %183 = vector.shape_cast %182 : vector<1x1x256xf32> to vector<1x256xf32>
    %184 = vector.broadcast %183 : vector<1x256xf32> to vector<256x256xf32>
    %185 = arith.addf %181, %184 : vector<256x256xf32>
    %cst_61 = arith.constant 5.000000e-01 : f32
    %186 = vector.broadcast %cst_61 : f32 to vector<256x256xf32>
    %187 = arith.mulf %186, %185 : vector<256x256xf32>
    %cst_62 = arith.constant 4.471500e-02 : f32
    %188 = vector.broadcast %cst_62 : f32 to vector<256x256xf32>
    %189 = arith.mulf %188, %185 : vector<256x256xf32>
    %190 = arith.mulf %189, %185 : vector<256x256xf32>
    %191 = arith.mulf %190, %185 : vector<256x256xf32>
    %192 = arith.addf %185, %191 : vector<256x256xf32>
    %cst_63 = arith.constant 0.797884583 : f32
    %193 = vector.broadcast %cst_63 : f32 to vector<256x256xf32>
    %194 = arith.mulf %193, %192 : vector<256x256xf32>
    %195 = math.tanh %194 : vector<256x256xf32>
    %cst_64 = arith.constant 1.000000e+00 : f32
    %196 = vector.broadcast %cst_64 : f32 to vector<256x256xf32>
    %197 = arith.addf %196, %195 : vector<256x256xf32>
    %198 = arith.mulf %187, %197 : vector<256x256xf32>
    %199 = arith.truncf %198 : vector<256x256xf32> to vector<256x256xbf16>
    %c0_65 = arith.constant 0 : index
    %c0_66 = arith.constant 0 : index
    %c0_67 = arith.constant 0 : index
    %200 = vector.load %arg13[%c0_65, %c0_66, %c0_67] : memref<1x256x128xbf16, #tpu.memory_space<vmem>>, vector<1x256x128xbf16>
    %201 = vector.shape_cast %200 : vector<1x256x128xbf16> to vector<256x128xbf16>
    %cst_68 = arith.constant dense<0.000000e+00> : vector<256x128xf32>
    %202 = tpu.matmul %199, %201, %cst_68 {dimension_numbers = #tpu.dot_dimension_numbers<[1], [0], [0], [1], [0, 0, 1, 1], [], []>} : vector<256x256xbf16>, vector<256x128xbf16>, vector<256x128xf32> -> vector<256x128xf32>
    %c0_69 = arith.constant 0 : index
    %c0_70 = arith.constant 0 : index
    %c0_71 = arith.constant 0 : index
    %203 = vector.load %arg14[%c0_69, %c0_70, %c0_71] : memref<1x1x128xf32, #tpu.memory_space<vmem>>, vector<1x1x128xf32>
    %204 = vector.shape_cast %203 : vector<1x1x128xf32> to vector<1x128xf32>
    %205 = vector.broadcast %204 : vector<1x128xf32> to vector<256x128xf32>
    %206 = arith.addf %202, %205 : vector<256x128xf32>
    %207 = arith.addf %151, %206 : vector<256x128xf32>
    %c0_72 = arith.constant 0 : index
    %c0_73 = arith.constant 0 : index
    %208 = vector.load %arg18[%c0_72, %c0_73] : memref<256x128xf32, #tpu.memory_space<vmem>>, vector<256x128xf32>
    tpu.vector_store %arg18[%c0_72, %c0_73], %207 {strides = array<i32>} : memref<256x128xf32, #tpu.memory_space<vmem>>, vector<256x128xf32>,
    %c1_i32 = arith.constant 1 : i32
    %209 = arith.cmpi eq, %arg1, %c1_i32 : i32
    %210 = arith.extui %209 : i1 to i32
    %c0_i32_74 = arith.constant 0 : i32
    %211 = arith.cmpi ne, %210, %c0_i32_74 : i32
    scf.if %211 {
      %c0_75 = arith.constant 0 : index
      %c0_76 = arith.constant 0 : index
      %212 = vector.load %arg15[%c0_75, %c0_76] : memref<1x128xf32, #tpu.memory_space<vmem>>, vector<1x128xf32>
      %c0_77 = arith.constant 0 : index
      %c0_78 = arith.constant 0 : index
      %213 = vector.load %arg16[%c0_77, %c0_78] : memref<1x128xf32, #tpu.memory_space<vmem>>, vector<1x128xf32>
      %cst_79 = arith.constant dense<0.000000e+00> : vector<256xf32>
      %214 = vector.multi_reduction <add>, %207, %cst_79 [1] : vector<256x128xf32> to vector<256xf32>
      %215 = vector.shape_cast %214 : vector<256xf32> to vector<256x1xf32>
      %cst_80 = arith.constant 1.280000e+02 : f32
      %216 = vector.broadcast %cst_80 : f32 to vector<256x1xf32>
      %217 = arith.divf %215, %216 : vector<256x1xf32>
      %218 = vector.broadcast %217 : vector<256x1xf32> to vector<256x128xf32>
      %219 = arith.subf %207, %218 : vector<256x128xf32>
      %220 = arith.mulf %219, %219 : vector<256x128xf32>
      %cst_81 = arith.constant dense<0.000000e+00> : vector<256xf32>
      %221 = vector.multi_reduction <add>, %220, %cst_81 [1] : vector<256x128xf32> to vector<256xf32>
      %222 = vector.shape_cast %221 : vector<256xf32> to vector<256x1xf32>
      %cst_82 = arith.constant 1.280000e+02 : f32
      %223 = vector.broadcast %cst_82 : f32 to vector<256x1xf32>
      %224 = arith.divf %222, %223 : vector<256x1xf32>
      %225 = vector.broadcast %217 : vector<256x1xf32> to vector<256x128xf32>
      %226 = arith.subf %207, %225 : vector<256x128xf32>
      %cst_83 = arith.constant 9.99999974E-6 : f32
      %227 = vector.broadcast %cst_83 : f32 to vector<256x1xf32>
      %228 = arith.addf %224, %227 : vector<256x1xf32>
      %229 = math.rsqrt %228 : vector<256x1xf32>
      %230 = vector.broadcast %229 : vector<256x1xf32> to vector<256x128xf32>
      %231 = arith.mulf %226, %230 : vector<256x128xf32>
      %232 = vector.broadcast %212 : vector<1x128xf32> to vector<256x128xf32>
      %233 = arith.mulf %231, %232 : vector<256x128xf32>
      %234 = vector.broadcast %213 : vector<1x128xf32> to vector<256x128xf32>
      %235 = arith.addf %233, %234 : vector<256x128xf32>
      %236 = vector.shape_cast %235 : vector<256x128xf32> to vector<2x128x128xf32>
      %c0_84 = arith.constant 0 : index
      %c0_85 = arith.constant 0 : index
      %c0_86 = arith.constant 0 : index
      %237 = vector.load %arg17[%c0_84, %c0_85, %c0_86] : memref<2x128x128xf32, #tpu.memory_space<vmem>>, vector<2x128x128xf32>
      tpu.vector_store %arg17[%c0_84, %c0_85, %c0_86], %236 {strides = array<i32>} : memref<2x128x128xf32, #tpu.memory_space<vmem>>, vector<2x128x128xf32>,
    } else {
    }
    return
  }
  func.func @transform_0(%arg0: i32, %arg1: i32) -> (i32, i32, i32) {
    %c0_i32 = arith.constant 0 : i32
    %c0_i32_0 = arith.constant 0 : i32
    %c0_i32_1 = arith.constant 0 : i32
    return %arg0, %c0_i32, %c0_i32_0 : i32, i32, i32
  }
  func.func @transform_1(%arg0: i32, %arg1: i32) -> (i32, i32) {
    %c0_i32 = arith.constant 0 : i32
    %c0_i32_0 = arith.constant 0 : i32
    %c0_i32_1 = arith.constant 0 : i32
    return %c0_i32, %c0_i32_0 : i32, i32
  }
  func.func @transform_2(%arg0: i32, %arg1: i32) -> (i32, i32, i32) {
    %c0_i32 = arith.constant 0 : i32
    %c0_i32_0 = arith.constant 0 : i32
    %c0_i32_1 = arith.constant 0 : i32
    return %arg1, %c0_i32, %c0_i32_0 : i32, i32, i32
  }
  func.func @transform_3(%arg0: i32, %arg1: i32) -> (i32, i32, i32) {
    %c0_i32 = arith.constant 0 : i32
    %c0_i32_0 = arith.constant 0 : i32
    %c0_i32_1 = arith.constant 0 : i32
    return %arg1, %c0_i32, %c0_i32_0 : i32, i32, i32
  }
  func.func @transform_4(%arg0: i32, %arg1: i32) -> (i32, i32, i32) {
    %c0_i32 = arith.constant 0 : i32
    %c0_i32_0 = arith.constant 0 : i32
    %c0_i32_1 = arith.constant 0 : i32
    return %arg1, %c0_i32, %c0_i32_0 : i32, i32, i32
  }
  func.func @transform_5(%arg0: i32, %arg1: i32) -> (i32, i32, i32) {
    %c0_i32 = arith.constant 0 : i32
    %c0_i32_0 = arith.constant 0 : i32
    %c0_i32_1 = arith.constant 0 : i32
    return %arg1, %c0_i32, %c0_i32_0 : i32, i32, i32
  }
  func.func @transform_6(%arg0: i32, %arg1: i32) -> (i32, i32, i32) {
    %c0_i32 = arith.constant 0 : i32
    %c0_i32_0 = arith.constant 0 : i32
    %c0_i32_1 = arith.constant 0 : i32
    return %arg1, %c0_i32, %c0_i32_0 : i32, i32, i32
  }
  func.func @transform_7(%arg0: i32, %arg1: i32) -> (i32, i32, i32) {
    %c0_i32 = arith.constant 0 : i32
    %c0_i32_0 = arith.constant 0 : i32
    %c0_i32_1 = arith.constant 0 : i32
    return %arg1, %c0_i32, %c0_i32_0 : i32, i32, i32
  }
  func.func @transform_8(%arg0: i32, %arg1: i32) -> (i32, i32, i32) {
    %c0_i32 = arith.constant 0 : i32
    %c0_i32_0 = arith.constant 0 : i32
    %c0_i32_1 = arith.constant 0 : i32
    return %arg1, %c0_i32, %c0_i32_0 : i32, i32, i32
  }
  func.func @transform_9(%arg0: i32, %arg1: i32) -> (i32, i32, i32) {
    %c0_i32 = arith.constant 0 : i32
    %c0_i32_0 = arith.constant 0 : i32
    %c0_i32_1 = arith.constant 0 : i32
    return %arg1, %c0_i32, %c0_i32_0 : i32, i32, i32
  }
  func.func @transform_10(%arg0: i32, %arg1: i32) -> (i32, i32, i32) {
    %c0_i32 = arith.constant 0 : i32
    %c0_i32_0 = arith.constant 0 : i32
    %c0_i32_1 = arith.constant 0 : i32
    return %arg1, %c0_i32, %c0_i32_0 : i32, i32, i32
  }
  func.func @transform_11(%arg0: i32, %arg1: i32) -> (i32, i32, i32) {
    %c0_i32 = arith.constant 0 : i32
    %c0_i32_0 = arith.constant 0 : i32
    %c0_i32_1 = arith.constant 0 : i32
    return %arg1, %c0_i32, %c0_i32_0 : i32, i32, i32
  }
  func.func @transform_12(%arg0: i32, %arg1: i32) -> (i32, i32, i32) {
    %c0_i32 = arith.constant 0 : i32
    %c0_i32_0 = arith.constant 0 : i32
    %c0_i32_1 = arith.constant 0 : i32
    return %arg1, %c0_i32, %c0_i32_0 : i32, i32, i32
  }
  func.func @transform_13(%arg0: i32, %arg1: i32) -> (i32, i32) {
    %c0_i32 = arith.constant 0 : i32
    %c0_i32_0 = arith.constant 0 : i32
    %c0_i32_1 = arith.constant 0 : i32
    return %c0_i32, %c0_i32_0 : i32, i32
  }
  func.func @transform_14(%arg0: i32, %arg1: i32) -> (i32, i32) {
    %c0_i32 = arith.constant 0 : i32
    %c0_i32_0 = arith.constant 0 : i32
    %c0_i32_1 = arith.constant 0 : i32
    return %c0_i32, %c0_i32_0 : i32, i32
  }
  func.func @transform_15(%arg0: i32, %arg1: i32) -> (i32, i32, i32) {
    %c0_i32 = arith.constant 0 : i32
    %c0_i32_0 = arith.constant 0 : i32
    %c0_i32_1 = arith.constant 0 : i32
    return %arg0, %c0_i32, %c0_i32_0 : i32, i32, i32
  }
}

</mosaic_0001>

<llo_original>
// kernel: _lambda_.2
$region0: #{_lambda_.2}
  #allocation0 [shape = 'u32[]', space=smem, size = 0x4, offset = 0x4, fixed_abs, tag = 'smem constant byte address 0x4 - core index']
  #allocation1 [shape = 'u32[72,128]{1,0:T(1,128)}', space=vmem, size = 0x9000, scoped, tag = 'internal scratch']
  %s0 = inlined_call_operand.vmem [shape: bf16[16,512], index: 0, kind: input, shape index: {}]
  %s1 = inlined_call_operand.vmem [shape: bf16[512,128], index: 1, kind: input, shape index: {}]
  %s2 = inlined_call_operand.vmem [shape: f32[1,128], index: 2, kind: input, shape index: {}]
  %s3 = inlined_call_operand.vmem [shape: bf16[16,128], index: 3, kind: output, shape index: {}]
  %s4 = sld [smem:[#allocation0]]
  $region22: #{_lambda_.2} parent=0
    _
  %s6 = ssub.s32 1, %s4
  %s7 = scalar_select 0, %s6, %s4
  // Predicated region
  $region2: #{_lambda_.2} parent=0 // pred_check
    _
  $region3: #{_lambda_.2} parent=0 // pred_check_branch
    %9 = sbr.rel (0) target = $region5
  $region4: #{_lambda_.2} parent=0 // pred_region
    _
  $region5: #{_lambda_.2} parent=0 // pred_fallthru
    _
  // Predicated region
  $region6: #{_lambda_.2} parent=0 // pred_check
    _
  $region7: #{_lambda_.2} parent=0 // pred_check_branch
    %11 = sbr.rel (0) target = $region9
  $region8: #{_lambda_.2} parent=0 // pred_region
    _
  $region9: #{_lambda_.2} parent=0 // pred_fallthru
    _
  // Predicated region
  $region10: #{_lambda_.2} parent=0 // pred_check
    _
  $region11: #{_lambda_.2} parent=0 // pred_check_branch
    %13 = sbr.rel (0) target = $region13
  $region12: #{_lambda_.2} parent=0 // pred_region
    _
  $region13: #{_lambda_.2} parent=0 // pred_fallthru
    _
  %v14 = vld [vmem:[%s0] sm:$0xff]
  %v15 = vld [vmem:[%s0 + $0x8] sm:$0xff]
  %v16 = vld [vmem:[%s0 + $0x10] sm:$0xff]
  %v17 = vld [vmem:[%s0 + $0x18] sm:$0xff]
  %v18 = vld [vmem:[%s1] sm:$0xf]
  %v19 = vld [vmem:[%s1 + $0x4] sm:$0xf]
  %v20 = vld [vmem:[%s1 + $0x8] sm:$0xf]
  %v21 = vld [vmem:[%s1 + $0xc] sm:$0xf]
  %v22 = vld [vmem:[%s1 + $0x10] sm:$0xf]
  %v23 = vld [vmem:[%s1 + $0x14] sm:$0xf]
  %v24 = vld [vmem:[%s1 + $0x18] sm:$0xf]
  %v25 = vld [vmem:[%s1 + $0x1c] sm:$0xf]
  %v26 = vld [vmem:[%s1 + $0x20] sm:$0xf]
  %v27 = vld [vmem:[%s1 + $0x24] sm:$0xf]
  %v28 = vld [vmem:[%s1 + $0x28] sm:$0xf]
  %v29 = vld [vmem:[%s1 + $0x2c] sm:$0xf]
  %v30 = vld [vmem:[%s1 + $0x30] sm:$0xf]
  %v31 = vld [vmem:[%s1 + $0x34] sm:$0xf]
  %v32 = vld [vmem:[%s1 + $0x38] sm:$0xf]
  %v33 = vld [vmem:[%s1 + $0x3c] sm:$0xf]
  %v34 = vld [vmem:[%s1 + $0x40] sm:$0xf]
  %v35 = vld [vmem:[%s1 + $0x44] sm:$0xf]
  %v36 = vld [vmem:[%s1 + $0x48] sm:$0xf]
  %v37 = vld [vmem:[%s1 + $0x4c] sm:$0xf]
  %v38 = vld [vmem:[%s1 + $0x50] sm:$0xf]
  %v39 = vld [vmem:[%s1 + $0x54] sm:$0xf]
  %v40 = vld [vmem:[%s1 + $0x58] sm:$0xf]
  %v41 = vld [vmem:[%s1 + $0x5c] sm:$0xf]
  %v42 = vld [vmem:[%s1 + $0x60] sm:$0xf]
  %v43 = vld [vmem:[%s1 + $0x64] sm:$0xf]
  %v44 = vld [vmem:[%s1 + $0x68] sm:$0xf]
  %v45 = vld [vmem:[%s1 + $0x6c] sm:$0xf]
  %v46 = vld [vmem:[%s1 + $0x70] sm:$0xf]
  %v47 = vld [vmem:[%s1 + $0x74] sm:$0xf]
  %v48 = vld [vmem:[%s1 + $0x78] sm:$0xf]
  %v49 = vld [vmem:[%s1 + $0x7c] sm:$0xf]
  %v50 = vld [vmem:[%s1 + $0x80] sm:$0xf]
  %v51 = vld [vmem:[%s1 + $0x84] sm:$0xf]
  %v52 = vld [vmem:[%s1 + $0x88] sm:$0xf]
  %v53 = vld [vmem:[%s1 + $0x8c] sm:$0xf]
  %v54 = vld [vmem:[%s1 + $0x90] sm:$0xf]
  %v55 = vld [vmem:[%s1 + $0x94] sm:$0xf]
  %v56 = vld [vmem:[%s1 + $0x98] sm:$0xf]
  %v57 = vld [vmem:[%s1 + $0x9c] sm:$0xf]
  %v58 = vld [vmem:[%s1 + $0xa0] sm:$0xf]
  %v59 = vld [vmem:[%s1 + $0xa4] sm:$0xf]
  %v60 = vld [vmem:[%s1 + $0xa8] sm:$0xf]
  %v61 = vld [vmem:[%s1 + $0xac] sm:$0xf]
  %v62 = vld [vmem:[%s1 + $0xb0] sm:$0xf]
  %v63 = vld [vmem:[%s1 + $0xb4] sm:$0xf]
  %v64 = vld [vmem:[%s1 + $0xb8] sm:$0xf]
  %v65 = vld [vmem:[%s1 + $0xbc] sm:$0xf]
  %v66 = vld [vmem:[%s1 + $0xc0] sm:$0xf]
  %v67 = vld [vmem:[%s1 + $0xc4] sm:$0xf]
  %v68 = vld [vmem:[%s1 + $0xc8] sm:$0xf]
  %v69 = vld [vmem:[%s1 + $0xcc] sm:$0xf]
  %v70 = vld [vmem:[%s1 + $0xd0] sm:$0xf]
  %v71 = vld [vmem:[%s1 + $0xd4] sm:$0xf]
  %v72 = vld [vmem:[%s1 + $0xd8] sm:$0xf]
  %v73 = vld [vmem:[%s1 + $0xdc] sm:$0xf]
  %v74 = vld [vmem:[%s1 + $0xe0] sm:$0xf]
  %v75 = vld [vmem:[%s1 + $0xe4] sm:$0xf]
  %v76 = vld [vmem:[%s1 + $0xe8] sm:$0xf]
  %v77 = vld [vmem:[%s1 + $0xec] sm:$0xf]
  %v78 = vld [vmem:[%s1 + $0xf0] sm:$0xf]
  %v79 = vld [vmem:[%s1 + $0xf4] sm:$0xf]
  %v80 = vld [vmem:[%s1 + $0xf8] sm:$0xf]
  %v81 = vld [vmem:[%s1 + $0xfc] sm:$0xf]
  %v82 = vld [vmem:[%s2] sm:$0x1]
  %v84 = vperm.slane %v82, 0
  %v90 = vunpack.c.l.b16 %v14
  %v91 = vunpack.c.h.b16 %v14
  %v92 = vunpack.c.l.b16 %v15
  %v93 = vunpack.c.h.b16 %v15
  %v94 = vunpack.c.l.b16 %v16
  %v95 = vunpack.c.h.b16 %v16
  %v96 = vunpack.c.l.b16 %v17
  %v97 = vunpack.c.h.b16 %v17
  %v98 = vpack.c.b16 %v94, %v90
  %v99 = vpack.c.b16 %v95, %v91
  %v100 = vpack.c.b16 %v96, %v92
  %v101 = vpack.c.b16 %v97, %v93
  %v170 = vunpack.c.l.b16 %v18
  %v171 = vunpack.c.l.b16 %v19
  %v172 = vunpack.c.l.b16 %v20
  %v173 = vunpack.c.l.b16 %v21
  %v174 = vunpack.c.l.b16 %v22
  %v175 = vunpack.c.l.b16 %v23
  %v176 = vunpack.c.l.b16 %v24
  %v177 = vunpack.c.l.b16 %v25
  %v178 = vunpack.c.l.b16 %v26
  %v179 = vunpack.c.l.b16 %v27
  %v180 = vunpack.c.l.b16 %v28
  %v181 = vunpack.c.l.b16 %v29
  %v182 = vunpack.c.l.b16 %v30
  %v183 = vunpack.c.l.b16 %v31
  %v184 = vunpack.c.l.b16 %v32
  %v185 = vunpack.c.l.b16 %v33
  %v186 = vunpack.c.l.b16 %v34
  %v187 = vunpack.c.l.b16 %v35
  %v188 = vunpack.c.l.b16 %v36
  %v189 = vunpack.c.l.b16 %v37
  %v190 = vunpack.c.l.b16 %v38
  %v191 = vunpack.c.l.b16 %v39
  %v192 = vunpack.c.l.b16 %v40
  %v193 = vunpack.c.l.b16 %v41
  %v194 = vunpack.c.l.b16 %v42
  %v195 = vunpack.c.l.b16 %v43
  %v196 = vunpack.c.l.b16 %v44
  %v197 = vunpack.c.l.b16 %v45
  %v198 = vunpack.c.l.b16 %v46
  %v199 = vunpack.c.l.b16 %v47
  %v200 = vunpack.c.l.b16 %v48
  %v201 = vunpack.c.l.b16 %v49
  %v202 = vunpack.c.l.b16 %v50
  %v203 = vunpack.c.l.b16 %v51
  %v204 = vunpack.c.l.b16 %v52
  %v205 = vunpack.c.l.b16 %v53
  %v206 = vunpack.c.l.b16 %v54
  %v207 = vunpack.c.l.b16 %v55
  %v208 = vunpack.c.l.b16 %v56
  %v209 = vunpack.c.l.b16 %v57
  %v210 = vunpack.c.l.b16 %v58
  %v211 = vunpack.c.l.b16 %v59
  %v212 = vunpack.c.l.b16 %v60
  %v213 = vunpack.c.l.b16 %v61
  %v214 = vunpack.c.l.b16 %v62
  %v215 = vunpack.c.l.b16 %v63
  %v216 = vunpack.c.l.b16 %v64
  %v217 = vunpack.c.l.b16 %v65
  %v218 = vunpack.c.l.b16 %v66
  %v219 = vunpack.c.l.b16 %v67
  %v220 = vunpack.c.l.b16 %v68
  %v221 = vunpack.c.l.b16 %v69
  %v222 = vunpack.c.l.b16 %v70
  %v223 = vunpack.c.l.b16 %v71
  %v224 = vunpack.c.l.b16 %v72
  %v225 = vunpack.c.l.b16 %v73
  %v226 = vunpack.c.l.b16 %v74
  %v227 = vunpack.c.l.b16 %v75
  %v228 = vunpack.c.l.b16 %v76
  %v229 = vunpack.c.l.b16 %v77
  %v230 = vunpack.c.l.b16 %v78
  %v231 = vunpack.c.l.b16 %v79
  %v232 = vunpack.c.l.b16 %v80
  %v233 = vunpack.c.l.b16 %v81
  %v234 = vpack.c.b16 %v171, %v170
  %v235 = vpack.c.b16 %v173, %v172
  %v236 = vpack.c.b16 %v175, %v174
  %v237 = vpack.c.b16 %v177, %v176
  %v238 = vpack.c.b16 %v179, %v178
  %v239 = vpack.c.b16 %v181, %v180
  %v240 = vpack.c.b16 %v183, %v182
  %v241 = vpack.c.b16 %v185, %v184
  %v242 = vpack.c.b16 %v187, %v186
  %v243 = vpack.c.b16 %v189, %v188
  %v244 = vpack.c.b16 %v191, %v190
  %v245 = vpack.c.b16 %v193, %v192
  %v246 = vpack.c.b16 %v195, %v194
  %v247 = vpack.c.b16 %v197, %v196
  %v248 = vpack.c.b16 %v199, %v198
  %v249 = vpack.c.b16 %v201, %v200
  %v250 = vpack.c.b16 %v203, %v202
  %v251 = vpack.c.b16 %v205, %v204
  %v252 = vpack.c.b16 %v207, %v206
  %v253 = vpack.c.b16 %v209, %v208
  %v254 = vpack.c.b16 %v211, %v210
  %v255 = vpack.c.b16 %v213, %v212
  %v256 = vpack.c.b16 %v215, %v214
  %v257 = vpack.c.b16 %v217, %v216
  %v258 = vpack.c.b16 %v219, %v218
  %v259 = vpack.c.b16 %v221, %v220
  %v260 = vpack.c.b16 %v223, %v222
  %v261 = vpack.c.b16 %v225, %v224
  %v262 = vpack.c.b16 %v227, %v226
  %v263 = vpack.c.b16 %v229, %v228
  %v264 = vpack.c.b16 %v231, %v230
  %v265 = vpack.c.b16 %v233, %v232
  %298 = vmatpush.bf16.msra.mxu0 %v241
  %299 = vmatpush.bf16.msra.mxu0 %v240
  %300 = vmatpush.bf16.msra.mxu0 %v239
  %301 = vmatpush.bf16.msra.mxu0 %v238
  %302 = vmatpush.bf16.msra.mxu0 %v237
  %303 = vmatpush.bf16.msra.mxu0 %v236
  %304 = vmatpush.bf16.msra.mxu0 %v235
  %305 = vmatpush.bf16.msra.mxu0 %v234
  %306 = vmatmul.bf16.gmra.mxu0 %v98
  %v307 = vpop.f32.mrf.mxu0
  %v308 = vadd.f32 %v84, %v307
  %v309 = vpop.f32.mrf.mxu0
  %v310 = vadd.f32 %v84, %v309
  %311 = vdwg.mxu0
  %312 = vmatpush.bf16.msra.mxu0 %v249
  %313 = vmatpush.bf16.msra.mxu0 %v248
  %314 = vmatpush.bf16.msra.mxu0 %v247
  %315 = vmatpush.bf16.msra.mxu0 %v246
  %316 = vmatpush.bf16.msra.mxu0 %v245
  %317 = vmatpush.bf16.msra.mxu0 %v244
  %318 = vmatpush.bf16.msra.mxu0 %v243
  %319 = vmatpush.bf16.msra.mxu0 %v242
  %320 = vmatmul.bf16.gmra.mxu0 %v99
  %v321 = vpop.f32.mrf.mxu0
  %v322 = vadd.f32 %v308, %v321
  %v323 = vpop.f32.mrf.mxu0
  %v324 = vadd.f32 %v310, %v323
  %325 = vdwg.mxu0
  %326 = vmatpush.bf16.msra.mxu0 %v257
  %327 = vmatpush.bf16.msra.mxu0 %v256
  %328 = vmatpush.bf16.msra.mxu0 %v255
  %329 = vmatpush.bf16.msra.mxu0 %v254
  %330 = vmatpush.bf16.msra.mxu0 %v253
  %331 = vmatpush.bf16.msra.mxu0 %v252
  %332 = vmatpush.bf16.msra.mxu0 %v251
  %333 = vmatpush.bf16.msra.mxu0 %v250
  %334 = vmatmul.bf16.gmra.mxu0 %v100
  %v335 = vpop.f32.mrf.mxu0
  %v336 = vadd.f32 %v322, %v335
  %v337 = vpop.f32.mrf.mxu0
  %v338 = vadd.f32 %v324, %v337
  %339 = vdwg.mxu0
  %340 = vmatpush.bf16.msra.mxu0 %v265
  %341 = vmatpush.bf16.msra.mxu0 %v264
  %342 = vmatpush.bf16.msra.mxu0 %v263
  %343 = vmatpush.bf16.msra.mxu0 %v262
  %344 = vmatpush.bf16.msra.mxu0 %v261
  %345 = vmatpush.bf16.msra.mxu0 %v260
  %346 = vmatpush.bf16.msra.mxu0 %v259
  %347 = vmatpush.bf16.msra.mxu0 %v258
  %348 = vmatmul.bf16.gmra.mxu0 %v101
  %v349 = vpop.f32.mrf.mxu0
  %v350 = vadd.f32 %v336, %v349
  %v351 = vpop.f32.mrf.mxu0
  %v352 = vadd.f32 %v338, %v351
  %353 = vdwg.mxu0
  %v354 = vpack.c.bf16 %v350, %v350
  %v355 = vpack.c.bf16 %v352, %v352
  %356 = vst [vmem:[%s3] sm:$0xf] %v354
  %357 = vst [vmem:[%s3 + $0x4] sm:$0xf] %v355
  // Predicated region
  $region14: #{_lambda_.2} parent=0 // pred_check
    _
  $region15: #{_lambda_.2} parent=0 // pred_check_branch
    %359 = sbr.rel (0) target = $region17
  $region16: #{_lambda_.2} parent=0 // pred_region
    _
  $region17: #{_lambda_.2} parent=0 // pred_fallthru
    _
  // Predicated region
  $region18: #{_lambda_.2} parent=0 // pred_check
    _
  $region19: #{_lambda_.2} parent=0 // pred_check_branch
    %361 = sbr.rel (0) target = $region21
  $region20: #{_lambda_.2} parent=0 // pred_region
    _
  $region21: #{_lambda_.2} parent=0 // pred_fallthru
    _

// kernel: _lambda_.3
$region0: #{_lambda_.3}
  #allocation0 [shape = 'u32[]', space=smem, size = 0x4, offset = 0x4, fixed_abs, tag = 'smem constant byte address 0x4 - core index']
  #allocation1 [shape = 'u32[72,128]{1,0:T(1,128)}', space=vmem, size = 0x9000, scoped, tag = 'internal scratch']
  #allocation2 [shape = 'f32[256,128]{1,0:T(8,128)}', space=vmem, size = 0x20000, scoped, tag = 'scratch operand']
  %s0 = inlined_call_operand.vmem [shape: bf16[2,128,128], index: 0, kind: input, shape index: {}]
  %s1 = inlined_call_operand.vmem [shape: f32[128,128], index: 1, kind: input, shape index: {}]
  %s2 = inlined_call_operand.vmem [shape: bf16[2,128,384], index: 2, kind: input, shape index: {}]
  %s3 = inlined_call_operand.vmem [shape: bf16[2,128,128], index: 3, kind: input, shape index: {}]
  %s4 = inlined_call_operand.vmem [shape: f32[2,1,128], index: 4, kind: input, shape index: {}]
  %s5 = inlined_call_operand.vmem [shape: f32[2,1,128], index: 5, kind: input, shape index: {}]
  %s6 = inlined_call_operand.vmem [shape: f32[2,1,128], index: 6, kind: input, shape index: {}]
  %s7 = inlined_call_operand.vmem [shape: f32[2,1,128], index: 7, kind: input, shape index: {}]
  %s8 = inlined_call_operand.vmem [shape: f32[2,1,128], index: 8, kind: input, shape index: {}]
  %s9 = inlined_call_operand.vmem [shape: bf16[2,128,256], index: 9, kind: input, shape index: {}]
  %s10 = inlined_call_operand.vmem [shape: f32[2,1,256], index: 10, kind: input, shape index: {}]
  %s11 = inlined_call_operand.vmem [shape: bf16[2,256,128], index: 11, kind: input, shape index: {}]
  %s12 = inlined_call_operand.vmem [shape: f32[2,1,128], index: 12, kind: input, shape index: {}]
  %s13 = inlined_call_operand.vmem [shape: f32[1,128], index: 13, kind: input, shape index: {}]
  %s14 = inlined_call_operand.vmem [shape: f32[1,128], index: 14, kind: input, shape index: {}]
  %s15 = inlined_call_operand.vmem [shape: f32[2,128,128], index: 15, kind: output, shape index: {}]
  %s16 = sld [smem:[#allocation0]]
  $region101: #{_lambda_.3} parent=0
    _
  %s18 = ssub.s32 1, %s16
  %s19 = scalar_select 0, %s18, %s16
  loop: start=0, step=1, limit=4
  $region2: #{_lambda_.3} parent=0 // loop_pre_header
    _
  $region3: #{_lambda_.3} parent=0 // loop_header
    %s21 = sphi 0, %s25
    %p22 = scmp.ge.s32.totalorder %s21, 4
    %s28 = sphi 0, %s40
    %s29 = sphi 0, %s36
    %s30 = sphi 0, %s28
    %s31 = sphi 0, %s29
    %s32 = sphi 0, %s30
    %s33 = sphi 0, %s31
    %s43 = sphi 0, %s45
    %s46 = sphi 0, %s43
    %s47 = sphi 0, %s46
    %s63 = sphi 0, %s47
    %s67 = sphi 0, %s67
    %s69 = sphi 0, %s67
    %s70 = sphi 0, %s69
    %s84 = sphi 0, %s70
    %s90 = sphi 0, %s92
    %s93 = sphi 0, %s90
    %s94 = sphi 0, %s93
    %s110 = sphi 0, %s94
    %s116 = sphi 0, %s118
    %s119 = sphi 0, %s116
    %s120 = sphi 0, %s119
    %s136 = sphi 0, %s120
    %s142 = sphi 0, %s144
    %s145 = sphi 0, %s142
    %s146 = sphi 0, %s145
    %s162 = sphi 0, %s146
    %s168 = sphi 0, %s170
    %s171 = sphi 0, %s168
    %s172 = sphi 0, %s171
    %s188 = sphi 0, %s172
    %s194 = sphi 0, %s196
    %s197 = sphi 0, %s194
    %s198 = sphi 0, %s197
    %s214 = sphi 0, %s198
    %s220 = sphi 0, %s222
    %s223 = sphi 0, %s220
    %s224 = sphi 0, %s223
    %s240 = sphi 0, %s224
    %s246 = sphi 0, %s248
    %s249 = sphi 0, %s246
    %s250 = sphi 0, %s249
    %s266 = sphi 0, %s250
    %s272 = sphi 0, %s274
    %s275 = sphi 0, %s272
    %s276 = sphi 0, %s275
    %s292 = sphi 0, %s276
    %s298 = sphi 0, %s300
    %s301 = sphi 0, %s298
    %s302 = sphi 0, %s301
    %s318 = sphi 0, %s302
    %s324 = sphi 0, %s326
    %s327 = sphi 0, %s324
    %s328 = sphi 0, %s327
    %s344 = sphi 0, %s328
    %s350 = sphi 0, %s352
    %s353 = sphi 0, %s350
    %s354 = sphi 0, %s353
    %s370 = sphi 0, %s354
    %s374 = sphi 0, %s374
    %s376 = sphi 0, %s374
    %s377 = sphi 0, %s376
    %s391 = sphi 0, %s377
    %s395 = sphi 0, %s395
    %s397 = sphi 0, %s395
    %s398 = sphi 0, %s397
    %s412 = sphi 0, %s398
    %s418 = sphi 0, %s420
    %s421 = sphi 0, %s418
    %s422 = sphi 0, %s421
    %s438 = sphi 0, %s422
  $region4: #{_lambda_.3} parent=0 // loop_header_branch
    %24 = sbr.rel (%p22) target = $region8
  $region5: #{_lambda_.3} parent=0 // loop_body
    %s26 = ssub.s32 %s21, 1
    %s27 = ssub.s32 %s21, 2
    %s34 = sadd.s32 1, %s29
    %p35 = scmp.ge.s32.totalorder %s34, 2
    %s36 = scalar_select %p35, 0, %s34
    %s37 = sadd.s32 1, %s28
    %s38 = scalar_select %p35, %s37, %s28
    %p39 = scmp.ge.s32.totalorder %s38, 1
    %s40 = scalar_select %p39, 0, %s38
    %s41 = ssub.s32 %s28, %s40
    %p42 = scmp.eq.s32.totalorder %s41, 0
    %s44 = sadd.s32 %s43, 1
    %s45 = scalar_select %p42, %s43, %s44
    %p48 = pneg %p42
    %p49 = scmp.eq.s32.totalorder %s21, 1
    %p50 = por %p48, %p49
    %p51 = scmp.ne.s32.totalorder %s43, %s46
    %p52 = scmp.eq.s32.totalorder %s21, 0
    %p53 = por %p51, %p52
    %p54 = scmp.ne.s32.totalorder %s43, %s46
    %p55 = scmp.eq.s32.totalorder %s26, 1
    %p56 = por %p54, %p55
    %p57 = scmp.ne.s32.totalorder %s46, %s47
    %p58 = scmp.eq.s32.totalorder %s26, 0
    %p59 = por %p57, %p58
    %p60 = scmp.ne.s32.totalorder %s46, %s47
    %p61 = scmp.eq.s32.totalorder %s27, 1
    %p62 = por %p60, %p61
    %p64 = scmp.ne.s32.totalorder %s47, %s63
    %p65 = scmp.eq.s32.totalorder %s27, 0
    %p66 = por %p64, %p65
    %s68 = sadd.s32 %s67, 1
    %p71 = scmp.eq.s32.totalorder %s21, 1
    %p72 = scmp.ne.s32.totalorder %s67, %s69
    %p73 = scmp.eq.s32.totalorder %s21, 0
    %p74 = por %p72, %p73
    %p75 = scmp.ne.s32.totalorder %s67, %s69
    %p76 = scmp.eq.s32.totalorder %s26, 1
    %p77 = por %p75, %p76
    %p78 = scmp.ne.s32.totalorder %s69, %s70
    %p79 = scmp.eq.s32.totalorder %s26, 0
    %p80 = por %p78, %p79
    %p81 = scmp.ne.s32.totalorder %s69, %s70
    %p82 = scmp.eq.s32.totalorder %s27, 1
    %p83 = por %p81, %p82
    %p85 = scmp.ne.s32.totalorder %s70, %s84
    %p86 = scmp.eq.s32.totalorder %s27, 0
    %p87 = por %p85, %p86
    %s88 = ssub.s32 %s29, %s36
    %p89 = scmp.eq.s32.totalorder %s88, 0
    %s91 = sadd.s32 %s90, 1
    %s92 = scalar_select %p89, %s90, %s91
    %p95 = pneg %p89
    %p96 = scmp.eq.s32.totalorder %s21, 1
    %p97 = por %p95, %p96
    %p98 = scmp.ne.s32.totalorder %s90, %s93
    %p99 = scmp.eq.s32.totalorder %s21, 0
    %p100 = por %p98, %p99
    %p101 = scmp.ne.s32.totalorder %s90, %s93
    %p102 = scmp.eq.s32.totalorder %s26, 1
    %p103 = por %p101, %p102
    %p104 = scmp.ne.s32.totalorder %s93, %s94
    %p105 = scmp.eq.s32.totalorder %s26, 0
    %p106 = por %p104, %p105
    %p107 = scmp.ne.s32.totalorder %s93, %s94
    %p108 = scmp.eq.s32.totalorder %s27, 1
    %p109 = por %p107, %p108
    %p111 = scmp.ne.s32.totalorder %s94, %s110
    %p112 = scmp.eq.s32.totalorder %s27, 0
    %p113 = por %p111, %p112
    %s114 = ssub.s32 %s29, %s36
    %p115 = scmp.eq.s32.totalorder %s114, 0
    %s117 = sadd.s32 %s116, 1
    %s118 = scalar_select %p115, %s116, %s117
    %p121 = pneg %p115
    %p122 = scmp.eq.s32.totalorder %s21, 1
    %p123 = por %p121, %p122
    %p124 = scmp.ne.s32.totalorder %s116, %s119
    %p125 = scmp.eq.s32.totalorder %s21, 0
    %p126 = por %p124, %p125
    %p127 = scmp.ne.s32.totalorder %s116, %s119
    %p128 = scmp.eq.s32.totalorder %s26, 1
    %p129 = por %p127, %p128
    %p130 = scmp.ne.s32.totalorder %s119, %s120
    %p131 = scmp.eq.s32.totalorder %s26, 0
    %p132 = por %p130, %p131
    %p133 = scmp.ne.s32.totalorder %s119, %s120
    %p134 = scmp.eq.s32.totalorder %s27, 1
    %p135 = por %p133, %p134
    %p137 = scmp.ne.s32.totalorder %s120, %s136
    %p138 = scmp.eq.s32.totalorder %s27, 0
    %p139 = por %p137, %p138
    %s140 = ssub.s32 %s29, %s36
    %p141 = scmp.eq.s32.totalorder %s140, 0
    %s143 = sadd.s32 %s142, 1
    %s144 = scalar_select %p141, %s142, %s143
    %p147 = pneg %p141
    %p148 = scmp.eq.s32.totalorder %s21, 1
    %p149 = por %p147, %p148
    %p150 = scmp.ne.s32.totalorder %s142, %s145
    %p151 = scmp.eq.s32.totalorder %s21, 0
    %p152 = por %p150, %p151
    %p153 = scmp.ne.s32.totalorder %s142, %s145
    %p154 = scmp.eq.s32.totalorder %s26, 1
    %p155 = por %p153, %p154
    %p156 = scmp.ne.s32.totalorder %s145, %s146
    %p157 = scmp.eq.s32.totalorder %s26, 0
    %p158 = por %p156, %p157
    %p159 = scmp.ne.s32.totalorder %s145, %s146
    %p160 = scmp.eq.s32.totalorder %s27, 1
    %p161 = por %p159, %p160
    %p163 = scmp.ne.s32.totalorder %s146, %s162
    %p164 = scmp.eq.s32.totalorder %s27, 0
    %p165 = por %p163, %p164
    %s166 = ssub.s32 %s29, %s36
    %p167 = scmp.eq.s32.totalorder %s166, 0
    %s169 = sadd.s32 %s168, 1
    %s170 = scalar_select %p167, %s168, %s169
    %p173 = pneg %p167
    %p174 = scmp.eq.s32.totalorder %s21, 1
    %p175 = por %p173, %p174
    %p176 = scmp.ne.s32.totalorder %s168, %s171
    %p177 = scmp.eq.s32.totalorder %s21, 0
    %p178 = por %p176, %p177
    %p179 = scmp.ne.s32.totalorder %s168, %s171
    %p180 = scmp.eq.s32.totalorder %s26, 1
    %p181 = por %p179, %p180
    %p182 = scmp.ne.s32.totalorder %s171, %s172
    %p183 = scmp.eq.s32.totalorder %s26, 0
    %p184 = por %p182, %p183
    %p185 = scmp.ne.s32.totalorder %s171, %s172
    %p186 = scmp.eq.s32.totalorder %s27, 1
    %p187 = por %p185, %p186
    %p189 = scmp.ne.s32.totalorder %s172, %s188
    %p190 = scmp.eq.s32.totalorder %s27, 0
    %p191 = por %p189, %p190
    %s192 = ssub.s32 %s29, %s36
    %p193 = scmp.eq.s32.totalorder %s192, 0
    %s195 = sadd.s32 %s194, 1
    %s196 = scalar_select %p193, %s194, %s195
    %p199 = pneg %p193
    %p200 = scmp.eq.s32.totalorder %s21, 1
    %p201 = por %p199, %p200
    %p202 = scmp.ne.s32.totalorder %s194, %s197
    %p203 = scmp.eq.s32.totalorder %s21, 0
    %p204 = por %p202, %p203
    %p205 = scmp.ne.s32.totalorder %s194, %s197
    %p206 = scmp.eq.s32.totalorder %s26, 1
    %p207 = por %p205, %p206
    %p208 = scmp.ne.s32.totalorder %s197, %s198
    %p209 = scmp.eq.s32.totalorder %s26, 0
    %p210 = por %p208, %p209
    %p211 = scmp.ne.s32.totalorder %s197, %s198
    %p212 = scmp.eq.s32.totalorder %s27, 1
    %p213 = por %p211, %p212
    %p215 = scmp.ne.s32.totalorder %s198, %s214
    %p216 = scmp.eq.s32.totalorder %s27, 0
    %p217 = por %p215, %p216
    %s218 = ssub.s32 %s29, %s36
    %p219 = scmp.eq.s32.totalorder %s218, 0
    %s221 = sadd.s32 %s220, 1
    %s222 = scalar_select %p219, %s220, %s221
    %p225 = pneg %p219
    %p226 = scmp.eq.s32.totalorder %s21, 1
    %p227 = por %p225, %p226
    %p228 = scmp.ne.s32.totalorder %s220, %s223
    %p229 = scmp.eq.s32.totalorder %s21, 0
    %p230 = por %p228, %p229
    %p231 = scmp.ne.s32.totalorder %s220, %s223
    %p232 = scmp.eq.s32.totalorder %s26, 1
    %p233 = por %p231, %p232
    %p234 = scmp.ne.s32.totalorder %s223, %s224
    %p235 = scmp.eq.s32.totalorder %s26, 0
    %p236 = por %p234, %p235
    %p237 = scmp.ne.s32.totalorder %s223, %s224
    %p238 = scmp.eq.s32.totalorder %s27, 1
    %p239 = por %p237, %p238
    %p241 = scmp.ne.s32.totalorder %s224, %s240
    %p242 = scmp.eq.s32.totalorder %s27, 0
    %p243 = por %p241, %p242
    %s244 = ssub.s32 %s29, %s36
    %p245 = scmp.eq.s32.totalorder %s244, 0
    %s247 = sadd.s32 %s246, 1
    %s248 = scalar_select %p245, %s246, %s247
    %p251 = pneg %p245
    %p252 = scmp.eq.s32.totalorder %s21, 1
    %p253 = por %p251, %p252
    %p254 = scmp.ne.s32.totalorder %s246, %s249
    %p255 = scmp.eq.s32.totalorder %s21, 0
    %p256 = por %p254, %p255
    %p257 = scmp.ne.s32.totalorder %s246, %s249
    %p258 = scmp.eq.s32.totalorder %s26, 1
    %p259 = por %p257, %p258
    %p260 = scmp.ne.s32.totalorder %s249, %s250
    %p261 = scmp.eq.s32.totalorder %s26, 0
    %p262 = por %p260, %p261
    %p263 = scmp.ne.s32.totalorder %s249, %s250
    %p264 = scmp.eq.s32.totalorder %s27, 1
    %p265 = por %p263, %p264
    %p267 = scmp.ne.s32.totalorder %s250, %s266
    %p268 = scmp.eq.s32.totalorder %s27, 0
    %p269 = por %p267, %p268
    %s270 = ssub.s32 %s29, %s36
    %p271 = scmp.eq.s32.totalorder %s270, 0
    %s273 = sadd.s32 %s272, 1
    %s274 = scalar_select %p271, %s272, %s273
    %p277 = pneg %p271
    %p278 = scmp.eq.s32.totalorder %s21, 1
    %p279 = por %p277, %p278
    %p280 = scmp.ne.s32.totalorder %s272, %s275
    %p281 = scmp.eq.s32.totalorder %s21, 0
    %p282 = por %p280, %p281
    %p283 = scmp.ne.s32.totalorder %s272, %s275
    %p284 = scmp.eq.s32.totalorder %s26, 1
    %p285 = por %p283, %p284
    %p286 = scmp.ne.s32.totalorder %s275, %s276
    %p287 = scmp.eq.s32.totalorder %s26, 0
    %p288 = por %p286, %p287
    %p289 = scmp.ne.s32.totalorder %s275, %s276
    %p290 = scmp.eq.s32.totalorder %s27, 1
    %p291 = por %p289, %p290
    %p293 = scmp.ne.s32.totalorder %s276, %s292
    %p294 = scmp.eq.s32.totalorder %s27, 0
    %p295 = por %p293, %p294
    %s296 = ssub.s32 %s29, %s36
    %p297 = scmp.eq.s32.totalorder %s296, 0
    %s299 = sadd.s32 %s298, 1
    %s300 = scalar_select %p297, %s298, %s299
    %p303 = pneg %p297
    %p304 = scmp.eq.s32.totalorder %s21, 1
    %p305 = por %p303, %p304
    %p306 = scmp.ne.s32.totalorder %s298, %s301
    %p307 = scmp.eq.s32.totalorder %s21, 0
    %p308 = por %p306, %p307
    %p309 = scmp.ne.s32.totalorder %s298, %s301
    %p310 = scmp.eq.s32.totalorder %s26, 1
    %p311 = por %p309, %p310
    %p312 = scmp.ne.s32.totalorder %s301, %s302
    %p313 = scmp.eq.s32.totalorder %s26, 0
    %p314 = por %p312, %p313
    %p315 = scmp.ne.s32.totalorder %s301, %s302
    %p316 = scmp.eq.s32.totalorder %s27, 1
    %p317 = por %p315, %p316
    %p319 = scmp.ne.s32.totalorder %s302, %s318
    %p320 = scmp.eq.s32.totalorder %s27, 0
    %p321 = por %p319, %p320
    %s322 = ssub.s32 %s29, %s36
    %p323 = scmp.eq.s32.totalorder %s322, 0
    %s325 = sadd.s32 %s324, 1
    %s326 = scalar_select %p323, %s324, %s325
    %p329 = pneg %p323
    %p330 = scmp.eq.s32.totalorder %s21, 1
    %p331 = por %p329, %p330
    %p332 = scmp.ne.s32.totalorder %s324, %s327
    %p333 = scmp.eq.s32.totalorder %s21, 0
    %p334 = por %p332, %p333
    %p335 = scmp.ne.s32.totalorder %s324, %s327
    %p336 = scmp.eq.s32.totalorder %s26, 1
    %p337 = por %p335, %p336
    %p338 = scmp.ne.s32.totalorder %s327, %s328
    %p339 = scmp.eq.s32.totalorder %s26, 0
    %p340 = por %p338, %p339
    %p341 = scmp.ne.s32.totalorder %s327, %s328
    %p342 = scmp.eq.s32.totalorder %s27, 1
    %p343 = por %p341, %p342
    %p345 = scmp.ne.s32.totalorder %s328, %s344
    %p346 = scmp.eq.s32.totalorder %s27, 0
    %p347 = por %p345, %p346
    %s348 = ssub.s32 %s29, %s36
    %p349 = scmp.eq.s32.totalorder %s348, 0
    %s351 = sadd.s32 %s350, 1
    %s352 = scalar_select %p349, %s350, %s351
    %p355 = pneg %p349
    %p356 = scmp.eq.s32.totalorder %s21, 1
    %p357 = por %p355, %p356
    %p358 = scmp.ne.s32.totalorder %s350, %s353
    %p359 = scmp.eq.s32.totalorder %s21, 0
    %p360 = por %p358, %p359
    %p361 = scmp.ne.s32.totalorder %s350, %s353
    %p362 = scmp.eq.s32.totalorder %s26, 1
    %p363 = por %p361, %p362
    %p364 = scmp.ne.s32.totalorder %s353, %s354
    %p365 = scmp.eq.s32.totalorder %s26, 0
    %p366 = por %p364, %p365
    %p367 = scmp.ne.s32.totalorder %s353, %s354
    %p368 = scmp.eq.s32.totalorder %s27, 1
    %p369 = por %p367, %p368
    %p371 = scmp.ne.s32.totalorder %s354, %s370
    %p372 = scmp.eq.s32.totalorder %s27, 0
    %p373 = por %p371, %p372
    %s375 = sadd.s32 %s374, 1
    %p378 = scmp.eq.s32.totalorder %s21, 1
    %p379 = scmp.ne.s32.totalorder %s374, %s376
    %p380 = scmp.eq.s32.totalorder %s21, 0
    %p381 = por %p379, %p380
    %p382 = scmp.ne.s32.totalorder %s374, %s376
    %p383 = scmp.eq.s32.totalorder %s26, 1
    %p384 = por %p382, %p383
    %p385 = scmp.ne.s32.totalorder %s376, %s377
    %p386 = scmp.eq.s32.totalorder %s26, 0
    %p387 = por %p385, %p386
    %p388 = scmp.ne.s32.totalorder %s376, %s377
    %p389 = scmp.eq.s32.totalorder %s27, 1
    %p390 = por %p388, %p389
    %p392 = scmp.ne.s32.totalorder %s377, %s391
    %p393 = scmp.eq.s32.totalorder %s27, 0
    %p394 = por %p392, %p393
    %s396 = sadd.s32 %s395, 1
    %p399 = scmp.eq.s32.totalorder %s21, 1
    %p400 = scmp.ne.s32.totalorder %s395, %s397
    %p401 = scmp.eq.s32.totalorder %s21, 0
    %p402 = por %p400, %p401
    %p403 = scmp.ne.s32.totalorder %s395, %s397
    %p404 = scmp.eq.s32.totalorder %s26, 1
    %p405 = por %p403, %p404
    %p406 = scmp.ne.s32.totalorder %s397, %s398
    %p407 = scmp.eq.s32.totalorder %s26, 0
    %p408 = por %p406, %p407
    %p409 = scmp.ne.s32.totalorder %s397, %s398
    %p410 = scmp.eq.s32.totalorder %s27, 1
    %p411 = por %p409, %p410
    %p413 = scmp.ne.s32.totalorder %s398, %s412
    %p414 = scmp.eq.s32.totalorder %s27, 0
    %p415 = por %p413, %p414
    %s416 = ssub.s32 %s28, %s40
    %p417 = scmp.eq.s32.totalorder %s416, 0
    %s419 = sadd.s32 %s418, 1
    %s420 = scalar_select %p417, %s418, %s419
    %p423 = pneg %p417
    %p424 = scmp.eq.s32.totalorder %s21, 1
    %p425 = por %p423, %p424
    %p426 = scmp.ne.s32.totalorder %s418, %s421
    %p427 = scmp.eq.s32.totalorder %s21, 0
    %p428 = por %p426, %p427
    %p429 = scmp.ne.s32.totalorder %s418, %s421
    %p430 = scmp.eq.s32.totalorder %s26, 1
    %p431 = por %p429, %p430
    %p432 = scmp.ne.s32.totalorder %s421, %s422
    %p433 = scmp.eq.s32.totalorder %s26, 0
    %p434 = por %p432, %p433
    %p435 = scmp.ne.s32.totalorder %s421, %s422
    %p436 = scmp.eq.s32.totalorder %s27, 1
    %p437 = por %p435, %p436
    %p439 = scmp.ne.s32.totalorder %s422, %s438
    %p440 = scmp.eq.s32.totalorder %s27, 0
    %p441 = por %p439, %p440
    %p442 = scmp.le.s32.totalorder 1, %s21
    %p443 = scmp.lt.s32.totalorder %s21, 3
    %p444 = pnand %p442, %p443
    %p445 = pneg %p444
    // Predicated region
    $region9: #{_lambda_.3} parent=5 // pred_check
      _
    $region10: #{_lambda_.3} parent=5 // pred_check_branch
      %447 = sbr.rel (%p444) target = $region12
    $region11: #{_lambda_.3} parent=5 // pred_region
      %s448 = ssub.s32 %s21, 1
      // Predicated region
      $region13: #{_lambda_.3} parent=11 // pred_check
        %p449 = pneg %p59
      $region14: #{_lambda_.3} parent=11 // pred_check_branch
        %451 = sbr.rel (%p449) target = $region16
      $region15: #{_lambda_.3} parent=11 // pred_region
        %s452 = smul.u32 2, %s30
        %p453 = scmp.lt.s32.totalorder %s452, 1
        %s454 = scalar_select %p453, %s452, 1
        %s455 = smul.addr %s454, 16
        %s456 = smul.addr %s455, 4
        %s457 = scalar_lea.vmem %s0, %s456
        %s458 = smul.u32 2, %s30
      $region16: #{_lambda_.3} parent=11 // pred_fallthru
        _
      // Predicated region
      $region17: #{_lambda_.3} parent=11 // pred_check
        %p459 = pneg %p80
      $region18: #{_lambda_.3} parent=11 // pred_check_branch
        %461 = sbr.rel (%p459) target = $region20
      $region19: #{_lambda_.3} parent=11 // pred_region
        _
      $region20: #{_lambda_.3} parent=11 // pred_fallthru
        _
      // Predicated region
      $region21: #{_lambda_.3} parent=11 // pred_check
        %p462 = pneg %p387
      $region22: #{_lambda_.3} parent=11 // pred_check_branch
        %464 = sbr.rel (%p462) target = $region24
      $region23: #{_lambda_.3} parent=11 // pred_region
        _
      $region24: #{_lambda_.3} parent=11 // pred_fallthru
        _
      // Predicated region
      $region25: #{_lambda_.3} parent=11 // pred_check
        %p465 = pneg %p408
      $region26: #{_lambda_.3} parent=11 // pred_check_branch
        %467 = sbr.rel (%p465) target = $region28
      $region27: #{_lambda_.3} parent=11 // pred_region
        _
      $region28: #{_lambda_.3} parent=11 // pred_fallthru
        _
    $region12: #{_lambda_.3} parent=5 // pred_fallthru
      _
    %p468 = scmp.lt.s32.totalorder %s21, 2
    // Predicated region
    $region29: #{_lambda_.3} parent=5 // pred_check
      %p469 = pneg %p468
    $region30: #{_lambda_.3} parent=5 // pred_check_branch
      %471 = sbr.rel (%p469) target = $region32
    $region31: #{_lambda_.3} parent=5 // pred_region
      // Predicated region
      $region33: #{_lambda_.3} parent=31 // pred_check
        %p472 = pneg %p100
      $region34: #{_lambda_.3} parent=31 // pred_check_branch
        %474 = sbr.rel (%p472) target = $region36
      $region35: #{_lambda_.3} parent=31 // pred_region
        %p475 = scmp.lt.s32.totalorder %s29, 1
        %s476 = scalar_select %p475, %s29, 1
        %s477 = smul.addr %s476, 48
        %s478 = smul.addr %s477, 4
        %s479 = scalar_lea.vmem %s2, %s478
      $region36: #{_lambda_.3} parent=31 // pred_fallthru
        _
      // Predicated region
      $region37: #{_lambda_.3} parent=31 // pred_check
        %p480 = pneg %p126
      $region38: #{_lambda_.3} parent=31 // pred_check_branch
        %482 = sbr.rel (%p480) target = $region40
      $region39: #{_lambda_.3} parent=31 // pred_region
        %p483 = scmp.lt.s32.totalorder %s29, 1
        %s484 = scalar_select %p483, %s29, 1
        %s485 = smul.addr %s484, 16
        %s486 = smul.addr %s485, 4
        %s487 = scalar_lea.vmem %s3, %s486
      $region40: #{_lambda_.3} parent=31 // pred_fallthru
        _
      // Predicated region
      $region41: #{_lambda_.3} parent=31 // pred_check
        %p488 = pneg %p152
      $region42: #{_lambda_.3} parent=31 // pred_check_branch
        %490 = sbr.rel (%p488) target = $region44
      $region43: #{_lambda_.3} parent=31 // pred_region
        %p491 = scmp.lt.s32.totalorder %s29, 1
        %s492 = scalar_select %p491, %s29, 1
        %s493 = scalar_lea.vmem %s4, %s492
      $region44: #{_lambda_.3} parent=31 // pred_fallthru
        _
      // Predicated region
      $region45: #{_lambda_.3} parent=31 // pred_check
        %p494 = pneg %p178
      $region46: #{_lambda_.3} parent=31 // pred_check_branch
        %496 = sbr.rel (%p494) target = $region48
      $region47: #{_lambda_.3} parent=31 // pred_region
        %p497 = scmp.lt.s32.totalorder %s29, 1
        %s498 = scalar_select %p497, %s29, 1
        %s499 = scalar_lea.vmem %s5, %s498
      $region48: #{_lambda_.3} parent=31 // pred_fallthru
        _
      // Predicated region
      $region49: #{_lambda_.3} parent=31 // pred_check
        %p500 = pneg %p204
      $region50: #{_lambda_.3} parent=31 // pred_check_branch
        %502 = sbr.rel (%p500) target = $region52
      $region51: #{_lambda_.3} parent=31 // pred_region
        %p503 = scmp.lt.s32.totalorder %s29, 1
        %s504 = scalar_select %p503, %s29, 1
        %s505 = scalar_lea.vmem %s6, %s504
      $region52: #{_lambda_.3} parent=31 // pred_fallthru
        _
      // Predicated region
      $region53: #{_lambda_.3} parent=31 // pred_check
        %p506 = pneg %p230
      $region54: #{_lambda_.3} parent=31 // pred_check_branch
        %508 = sbr.rel (%p506) target = $region56
      $region55: #{_lambda_.3} parent=31 // pred_region
        %p509 = scmp.lt.s32.totalorder %s29, 1
        %s510 = scalar_select %p509, %s29, 1
        %s511 = scalar_lea.vmem %s7, %s510
      $region56: #{_lambda_.3} parent=31 // pred_fallthru
        _
      // Predicated region
      $region57: #{_lambda_.3} parent=31 // pred_check
        %p512 = pneg %p256
      $region58: #{_lambda_.3} parent=31 // pred_check_branch
        %514 = sbr.rel (%p512) target = $region60
      $region59: #{_lambda_.3} parent=31 // pred_region
        %p515 = scmp.lt.s32.totalorder %s29, 1
        %s516 = scalar_select %p515, %s29, 1
        %s517 = scalar_lea.vmem %s8, %s516
      $region60: #{_lambda_.3} parent=31 // pred_fallthru
        _
      // Predicated region
      $region61: #{_lambda_.3} parent=31 // pred_check
        %p518 = pneg %p282
      $region62: #{_lambda_.3} parent=31 // pred_check_branch
        %520 = sbr.rel (%p518) target = $region64
      $region63: #{_lambda_.3} parent=31 // pred_region
        %p521 = scmp.lt.s32.totalorder %s29, 1
        %s522 = scalar_select %p521, %s29, 1
        %s523 = smul.addr %s522, 32
        %s524 = smul.addr %s523, 4
        %s525 = scalar_lea.vmem %s9, %s524
      $region64: #{_lambda_.3} parent=31 // pred_fallthru
        _
      // Predicated region
      $region65: #{_lambda_.3} parent=31 // pred_check
        %p526 = pneg %p308
      $region66: #{_lambda_.3} parent=31 // pred_check_branch
        %528 = sbr.rel (%p526) target = $region68
      $region67: #{_lambda_.3} parent=31 // pred_region
        %p529 = scmp.lt.s32.totalorder %s29, 1
        %s530 = scalar_select %p529, %s29, 1
        %s531 = smul.addr %s530, 2
        %s532 = scalar_lea.vmem %s10, %s531
      $region68: #{_lambda_.3} parent=31 // pred_fallthru
        _
      // Predicated region
      $region69: #{_lambda_.3} parent=31 // pred_check
        %p533 = pneg %p334
      $region70: #{_lambda_.3} parent=31 // pred_check_branch
        %535 = sbr.rel (%p533) target = $region72
      $region71: #{_lambda_.3} parent=31 // pred_region
        %p536 = scmp.lt.s32.totalorder %s29, 1
        %s537 = scalar_select %p536, %s29, 1
        %s538 = smul.addr %s537, 32
        %s539 = smul.addr %s538, 4
        %s540 = scalar_lea.vmem %s11, %s539
      $region72: #{_lambda_.3} parent=31 // pred_fallthru
        _
      // Predicated region
      $region73: #{_lambda_.3} parent=31 // pred_check
        %p541 = pneg %p360
      $region74: #{_lambda_.3} parent=31 // pred_check_branch
        %543 = sbr.rel (%p541) target = $region76
      $region75: #{_lambda_.3} parent=31 // pred_region
        %p544 = scmp.lt.s32.totalorder %s29, 1
        %s545 = scalar_select %p544, %s29, 1
        %s546 = scalar_lea.vmem %s12, %s545
      $region76: #{_lambda_.3} parent=31 // pred_fallthru
        _
    $region32: #{_lambda_.3} parent=5 // pred_fallthru
      _
    %p547 = scmp.le.s32.totalorder 1, %s21
    %p548 = scmp.lt.s32.totalorder %s21, 3
    %p549 = pnand %p547, %p548
    %p550 = pneg %p549
    // Predicated region
    $region77: #{_lambda_.3} parent=5 // pred_check
      _
    $region78: #{_lambda_.3} parent=5 // pred_check_branch
      %552 = sbr.rel (%p549) target = $region80
    $region79: #{_lambda_.3} parent=5 // pred_region
      %s553 = ssub.s32 %s21, 1
      %s554 = smul.u32 2, %s30
      %p555 = scmp.lt.s32.totalorder %s554, 1
      %s556 = scalar_select %p555, %s554, 1
      %s557 = smul.addr %s556, 16
      %s558 = smul.addr %s557, 4
      %s559 = scalar_lea.vmem %s0, %s558
      %p560 = pneg %p59
      %p561 = pneg %p56
      %p562 = pneg %p80
      %p563 = pneg %p77
      %p564 = scmp.lt.s32.totalorder %s31, 1
      %s565 = scalar_select %p564, %s31, 1
      %s566 = smul.addr %s565, 48
      %s567 = smul.addr %s566, 4
      %s568 = scalar_lea.vmem %s2, %s567
      %p569 = pneg %p106
      %p570 = pneg %p103
      %p571 = scmp.lt.s32.totalorder %s31, 1
      %s572 = scalar_select %p571, %s31, 1
      %s573 = smul.addr %s572, 16
      %s574 = smul.addr %s573, 4
      %s575 = scalar_lea.vmem %s3, %s574
      %p576 = pneg %p132
      %p577 = pneg %p129
      %p578 = scmp.lt.s32.totalorder %s31, 1
      %s579 = scalar_select %p578, %s31, 1
      %s580 = scalar_lea.vmem %s4, %s579
      %p581 = pneg %p158
      %p582 = pneg %p155
      %p583 = scmp.lt.s32.totalorder %s31, 1
      %s584 = scalar_select %p583, %s31, 1
      %s585 = scalar_lea.vmem %s5, %s584
      %p586 = pneg %p184
      %p587 = pneg %p181
      %p588 = scmp.lt.s32.totalorder %s31, 1
      %s589 = scalar_select %p588, %s31, 1
      %s590 = scalar_lea.vmem %s6, %s589
      %p591 = pneg %p210
      %p592 = pneg %p207
      %p593 = scmp.lt.s32.totalorder %s31, 1
      %s594 = scalar_select %p593, %s31, 1
      %s595 = scalar_lea.vmem %s7, %s594
      %p596 = pneg %p236
      %p597 = pneg %p233
      %p598 = scmp.lt.s32.totalorder %s31, 1
      %s599 = scalar_select %p598, %s31, 1
      %s600 = scalar_lea.vmem %s8, %s599
      %p601 = pneg %p262
      %p602 = pneg %p259
      %p603 = scmp.lt.s32.totalorder %s31, 1
      %s604 = scalar_select %p603, %s31, 1
      %s605 = smul.addr %s604, 32
      %s606 = smul.addr %s605, 4
      %s607 = scalar_lea.vmem %s9, %s606
      %p608 = pneg %p288
      %p609 = pneg %p285
      %p610 = scmp.lt.s32.totalorder %s31, 1
      %s611 = scalar_select %p610, %s31, 1
      %s612 = smul.addr %s611, 2
      %s613 = scalar_lea.vmem %s10, %s612
      %p614 = pneg %p314
      %p615 = pneg %p311
      %p616 = scmp.lt.s32.totalorder %s31, 1
      %s617 = scalar_select %p616, %s31, 1
      %s618 = smul.addr %s617, 32
      %s619 = smul.addr %s618, 4
      %s620 = scalar_lea.vmem %s11, %s619
      %p621 = pneg %p340
      %p622 = pneg %p337
      %p623 = scmp.lt.s32.totalorder %s31, 1
      %s624 = scalar_select %p623, %s31, 1
      %s625 = scalar_lea.vmem %s12, %s624
      %p626 = pneg %p366
      %p627 = pneg %p363
      %p628 = pneg %p387
      %p629 = pneg %p384
      %p630 = pneg %p408
      %p631 = pneg %p405
      %p632 = pneg %p434
      %p633 = pneg %p431
      %s634 = smul.u32 2, %s30
      %p635 = scmp.lt.s32.totalorder %s634, 1
      %s636 = scalar_select %p635, %s634, 1
      %s637 = smul.addr %s636, 16
      %s638 = smul.addr %s637, 8
      %s639 = scalar_lea.vmem %s15, %s638
      %s640 = smul.u32 2, %s30
      %p641 = scmp.lt.s32.totalorder %s640, 1
      %s642 = scalar_select %p641, %s640, 1
      %s643 = smul.addr %s642, 16
      %s644 = smul.addr %s643, 4
      %s645 = scalar_lea.vmem %s0, %s644
      %s646 = smul.u32 2, %s30
      %p647 = scmp.lt.s32.totalorder %s31, 1
      %s648 = scalar_select %p647, %s31, 1
      %s649 = smul.addr %s648, 48
      %s650 = smul.addr %s649, 4
      %s651 = scalar_lea.vmem %s2, %s650
      %p652 = scmp.lt.s32.totalorder %s31, 1
      %s653 = scalar_select %p652, %s31, 1
      %s654 = smul.addr %s653, 16
      %s655 = smul.addr %s654, 4
      %s656 = scalar_lea.vmem %s3, %s655
      %p657 = scmp.lt.s32.totalorder %s31, 1
      %s658 = scalar_select %p657, %s31, 1
      %s659 = scalar_lea.vmem %s4, %s658
      %p660 = scmp.lt.s32.totalorder %s31, 1
      %s661 = scalar_select %p660, %s31, 1
      %s662 = scalar_lea.vmem %s5, %s661
      %p663 = scmp.lt.s32.totalorder %s31, 1
      %s664 = scalar_select %p663, %s31, 1
      %s665 = scalar_lea.vmem %s6, %s664
      %p666 = scmp.lt.s32.totalorder %s31, 1
      %s667 = scalar_select %p666, %s31, 1
      %s668 = scalar_lea.vmem %s7, %s667
      %p669 = scmp.lt.s32.totalorder %s31, 1
      %s670 = scalar_select %p669, %s31, 1
      %s671 = scalar_lea.vmem %s8, %s670
      %p672 = scmp.lt.s32.totalorder %s31, 1
      %s673 = scalar_select %p672, %s31, 1
      %s674 = smul.addr %s673, 32
      %s675 = smul.addr %s674, 4
      %s676 = scalar_lea.vmem %s9, %s675
      %p677 = scmp.lt.s32.totalorder %s31, 1
      %s678 = scalar_select %p677, %s31, 1
      %s679 = smul.addr %s678, 2
      %s680 = scalar_lea.vmem %s10, %s679
      %p681 = scmp.lt.s32.totalorder %s31, 1
      %s682 = scalar_select %p681, %s31, 1
      %s683 = smul.addr %s682, 32
      %s684 = smul.addr %s683, 4
      %s685 = scalar_lea.vmem %s11, %s684
      %p686 = scmp.lt.s32.totalorder %s31, 1
      %s687 = scalar_select %p686, %s31, 1
      %s688 = scalar_lea.vmem %s12, %s687
      %s689 = smul.u32 2, %s30
      %p690 = scmp.lt.s32.totalorder %s689, 1
      %s691 = scalar_select %p690, %s689, 1
      %s692 = smul.addr %s691, 16
      %s693 = smul.addr %s692, 8
      %s694 = scalar_lea.vmem %s15, %s693
      %s695 = smul.u32 2, %s30
      %p696 = scmp.eq.s32.totalorder %s31, 0
      // Predicated region
      $region81: #{_lambda_.3} parent=79 // pred_check
        %p697 = pneg %p696
      $region82: #{_lambda_.3} parent=79 // pred_check_branch
        %699 = sbr.rel (%p697) target = $region84
      $region83: #{_lambda_.3} parent=79 // pred_region
        %v700 = vld [vmem:[%s645] sm:$0xf]
        %v701 = vld [vmem:[%s645 + $0x4] sm:$0xf]
        %v702 = vld [vmem:[%s645 + $0x8] sm:$0xf]
        %v703 = vld [vmem:[%s645 + $0xc] sm:$0xf]
        %v704 = vld [vmem:[%s645 + $0x10] sm:$0xf]
        %v705 = vld [vmem:[%s645 + $0x14] sm:$0xf]
        %v706 = vld [vmem:[%s645 + $0x18] sm:$0xf]
        %v707 = vld [vmem:[%s645 + $0x1c] sm:$0xf]
        %v708 = vld [vmem:[%s645 + $0x20] sm:$0xf]
        %v709 = vld [vmem:[%s645 + $0x24] sm:$0xf]
        %v710 = vld [vmem:[%s645 + $0x28] sm:$0xf]
        %v711 = vld [vmem:[%s645 + $0x2c] sm:$0xf]
        %v712 = vld [vmem:[%s645 + $0x30] sm:$0xf]
        %v713 = vld [vmem:[%s645 + $0x34] sm:$0xf]
        %v714 = vld [vmem:[%s645 + $0x38] sm:$0xf]
        %v715 = vld [vmem:[%s645 + $0x3c] sm:$0xf]
        %v716 = vld [vmem:[%s645 + $0x40] sm:$0xf]
        %v717 = vld [vmem:[%s645 + $0x44] sm:$0xf]
        %v718 = vld [vmem:[%s645 + $0x48] sm:$0xf]
        %v719 = vld [vmem:[%s645 + $0x4c] sm:$0xf]
        %v720 = vld [vmem:[%s645 + $0x50] sm:$0xf]
        %v721 = vld [vmem:[%s645 + $0x54] sm:$0xf]
        %v722 = vld [vmem:[%s645 + $0x58] sm:$0xf]
        %v723 = vld [vmem:[%s645 + $0x5c] sm:$0xf]
        %v724 = vld [vmem:[%s645 + $0x60] sm:$0xf]
        %v725 = vld [vmem:[%s645 + $0x64] sm:$0xf]
        %v726 = vld [vmem:[%s645 + $0x68] sm:$0xf]
        %v727 = vld [vmem:[%s645 + $0x6c] sm:$0xf]
        %v728 = vld [vmem:[%s645 + $0x70] sm:$0xf]
        %v729 = vld [vmem:[%s645 + $0x74] sm:$0xf]
        %v730 = vld [vmem:[%s645 + $0x78] sm:$0xf]
        %v731 = vld [vmem:[%s645 + $0x7c] sm:$0xf]
        %v732 = vunpack.c.l.bf16 %v700
        %v733 = vunpack.c.l.bf16 %v701
        %v734 = vunpack.c.l.bf16 %v702
        %v735 = vunpack.c.l.bf16 %v703
        %v736 = vunpack.c.l.bf16 %v704
        %v737 = vunpack.c.l.bf16 %v705
        %v738 = vunpack.c.l.bf16 %v706
        %v739 = vunpack.c.l.bf16 %v707
        %v740 = vunpack.c.l.bf16 %v708
        %v741 = vunpack.c.l.bf16 %v709
        %v742 = vunpack.c.l.bf16 %v710
        %v743 = vunpack.c.l.bf16 %v711
        %v744 = vunpack.c.l.bf16 %v712
        %v745 = vunpack.c.l.bf16 %v713
        %v746 = vunpack.c.l.bf16 %v714
        %v747 = vunpack.c.l.bf16 %v715
        %v748 = vunpack.c.l.bf16 %v716
        %v749 = vunpack.c.l.bf16 %v717
        %v750 = vunpack.c.l.bf16 %v718
        %v751 = vunpack.c.l.bf16 %v719
        %v752 = vunpack.c.l.bf16 %v720
        %v753 = vunpack.c.l.bf16 %v721
        %v754 = vunpack.c.l.bf16 %v722
        %v755 = vunpack.c.l.bf16 %v723
        %v756 = vunpack.c.l.bf16 %v724
        %v757 = vunpack.c.l.bf16 %v725
        %v758 = vunpack.c.l.bf16 %v726
        %v759 = vunpack.c.l.bf16 %v727
        %v760 = vunpack.c.l.bf16 %v728
        %v761 = vunpack.c.l.bf16 %v729
        %v762 = vunpack.c.l.bf16 %v730
        %v763 = vunpack.c.l.bf16 %v731
        %v764 = vld [vmem:[%s1] sm:$0xff]
        %v765 = vld [vmem:[%s1 + $0x8] sm:$0xff]
        %v766 = vld [vmem:[%s1 + $0x10] sm:$0xff]
        %v767 = vld [vmem:[%s1 + $0x18] sm:$0xff]
        %v768 = vld [vmem:[%s1 + $0x20] sm:$0xff]
        %v769 = vld [vmem:[%s1 + $0x28] sm:$0xff]
        %v770 = vld [vmem:[%s1 + $0x30] sm:$0xff]
        %v771 = vld [vmem:[%s1 + $0x38] sm:$0xff]
        %v772 = vld [vmem:[%s1 + $0x40] sm:$0xff]
        %v773 = vld [vmem:[%s1 + $0x48] sm:$0xff]
        %v774 = vld [vmem:[%s1 + $0x50] sm:$0xff]
        %v775 = vld [vmem:[%s1 + $0x58] sm:$0xff]
        %v776 = vld [vmem:[%s1 + $0x60] sm:$0xff]
        %v777 = vld [vmem:[%s1 + $0x68] sm:$0xff]
        %v778 = vld [vmem:[%s1 + $0x70] sm:$0xff]
        %v779 = vld [vmem:[%s1 + $0x78] sm:$0xff]
        %v780 = vadd.f32 %v732, %v764
        %v781 = vadd.f32 %v733, %v765
        %v782 = vadd.f32 %v734, %v766
        %v783 = vadd.f32 %v735, %v767
        %v784 = vadd.f32 %v736, %v768
        %v785 = vadd.f32 %v737, %v769
        %v786 = vadd.f32 %v738, %v770
        %v787 = vadd.f32 %v739, %v771
        %v788 = vadd.f32 %v740, %v772
        %v789 = vadd.f32 %v741, %v773
        %v790 = vadd.f32 %v742, %v774
        %v791 = vadd.f32 %v743, %v775
        %v792 = vadd.f32 %v744, %v776
        %v793 = vadd.f32 %v745, %v777
        %v794 = vadd.f32 %v746, %v778
        %v795 = vadd.f32 %v747, %v779
        %v796 = vadd.f32 %v748, %v764
        %v797 = vadd.f32 %v749, %v765
        %v798 = vadd.f32 %v750, %v766
        %v799 = vadd.f32 %v751, %v767
        %v800 = vadd.f32 %v752, %v768
        %v801 = vadd.f32 %v753, %v769
        %v802 = vadd.f32 %v754, %v770
        %v803 = vadd.f32 %v755, %v771
        %v804 = vadd.f32 %v756, %v772
        %v805 = vadd.f32 %v757, %v773
        %v806 = vadd.f32 %v758, %v774
        %v807 = vadd.f32 %v759, %v775
        %v808 = vadd.f32 %v760, %v776
        %v809 = vadd.f32 %v761, %v777
        %v810 = vadd.f32 %v762, %v778
        %v811 = vadd.f32 %v763, %v779
        %812 = vst [vmem:[#allocation2] sm:$0xff] %v780
        %813 = vst [vmem:[#allocation2 + $0x8] sm:$0xff] %v781
        %814 = vst [vmem:[#allocation2 + $0x10] sm:$0xff] %v782
        %815 = vst [vmem:[#allocation2 + $0x18] sm:$0xff] %v783
        %816 = vst [vmem:[#allocation2 + $0x20] sm:$0xff] %v784
        %817 = vst [vmem:[#allocation2 + $0x28] sm:$0xff] %v785
        %818 = vst [vmem:[#allocation2 + $0x30] sm:$0xff] %v786
        %819 = vst [vmem:[#allocation2 + $0x38] sm:$0xff] %v787
        %820 = vst [vmem:[#allocation2 + $0x40] sm:$0xff] %v788
        %821 = vst [vmem:[#allocation2 + $0x48] sm:$0xff] %v789
        %822 = vst [vmem:[#allocation2 + $0x50] sm:$0xff] %v790
        %823 = vst [vmem:[#allocation2 + $0x58] sm:$0xff] %v791
        %824 = vst [vmem:[#allocation2 + $0x60] sm:$0xff] %v792
        %825 = vst [vmem:[#allocation2 + $0x68] sm:$0xff] %v793
        %826 = vst [vmem:[#allocation2 + $0x70] sm:$0xff] %v794
        %827 = vst [vmem:[#allocation2 + $0x78] sm:$0xff] %v795
        %828 = vst [vmem:[#allocation2 + $0x80] sm:$0xff] %v796
        %829 = vst [vmem:[#allocation2 + $0x88] sm:$0xff] %v797
        %830 = vst [vmem:[#allocation2 + $0x90] sm:$0xff] %v798
        %831 = vst [vmem:[#allocation2 + $0x98] sm:$0xff] %v799
        %832 = vst [vmem:[#allocation2 + $0xa0] sm:$0xff] %v800
        %833 = vst [vmem:[#allocation2 + $0xa8] sm:$0xff] %v801
        %834 = vst [vmem:[#allocation2 + $0xb0] sm:$0xff] %v802
        %835 = vst [vmem:[#allocation2 + $0xb8] sm:$0xff] %v803
        %836 = vst [vmem:[#allocation2 + $0xc0] sm:$0xff] %v804
        %837 = vst [vmem:[#allocation2 + $0xc8] sm:$0xff] %v805
        %838 = vst [vmem:[#allocation2 + $0xd0] sm:$0xff] %v806
        %839 = vst [vmem:[#allocation2 + $0xd8] sm:$0xff] %v807
        %840 = vst [vmem:[#allocation2 + $0xe0] sm:$0xff] %v808
        %841 = vst [vmem:[#allocation2 + $0xe8] sm:$0xff] %v809
        %842 = vst [vmem:[#allocation2 + $0xf0] sm:$0xff] %v810
        %843 = vst [vmem:[#allocation2 + $0xf8] sm:$0xff] %v811
      $region84: #{_lambda_.3} parent=79 // pred_fallthru
        _
      %v844 = vld [vmem:[#allocation2] sm:$0xff]
      %v845 = vld [vmem:[#allocation2 + $0x8] sm:$0xff]
      %v846 = vld [vmem:[#allocation2 + $0x10] sm:$0xff]
      %v847 = vld [vmem:[#allocation2 + $0x18] sm:$0xff]
      %v848 = vld [vmem:[#allocation2 + $0x20] sm:$0xff]
      %v849 = vld [vmem:[#allocation2 + $0x28] sm:$0xff]
      %v850 = vld [vmem:[#allocation2 + $0x30] sm:$0xff]
      %v851 = vld [vmem:[#allocation2 + $0x38] sm:$0xff]
      %v852 = vld [vmem:[#allocation2 + $0x40] sm:$0xff]
      %v853 = vld [vmem:[#allocation2 + $0x48] sm:$0xff]
      %v854 = vld [vmem:[#allocation2 + $0x50] sm:$0xff]
      %v855 = vld [vmem:[#allocation2 + $0x58] sm:$0xff]
      %v856 = vld [vmem:[#allocation2 + $0x60] sm:$0xff]
      %v857 = vld [vmem:[#allocation2 + $0x68] sm:$0xff]
      %v858 = vld [vmem:[#allocation2 + $0x70] sm:$0xff]
      %v859 = vld [vmem:[#allocation2 + $0x78] sm:$0xff]
      %v860 = vld [vmem:[#allocation2 + $0x80] sm:$0xff]
      %v861 = vld [vmem:[#allocation2 + $0x88] sm:$0xff]
      %v862 = vld [vmem:[#allocation2 + $0x90] sm:$0xff]
      %v863 = vld [vmem:[#allocation2 + $0x98] sm:$0xff]
      %v864 = vld [vmem:[#allocation2 + $0xa0] sm:$0xff]
      %v865 = vld [vmem:[#allocation2 + $0xa8] sm:$0xff]
      %v866 = vld [vmem:[#allocation2 + $0xb0] sm:$0xff]
      %v867 = vld [vmem:[#allocation2 + $0xb8] sm:$0xff]
      %v868 = vld [vmem:[#allocation2 + $0xc0] sm:$0xff]
      %v869 = vld [vmem:[#allocation2 + $0xc8] sm:$0xff]
      %v870 = vld [vmem:[#allocation2 + $0xd0] sm:$0xff]
      %v871 = vld [vmem:[#allocation2 + $0xd8] sm:$0xff]
      %v872 = vld [vmem:[#allocation2 + $0xe0] sm:$0xff]
      %v873 = vld [vmem:[#allocation2 + $0xe8] sm:$0xff]
      %v874 = vld [vmem:[#allocation2 + $0xf0] sm:$0xff]
      %v875 = vld [vmem:[#allocation2 + $0xf8] sm:$0xff]
      %v876 = vld [vmem:[%s662] sm:$0x1]
      %v877 = vld [vmem:[%s665] sm:$0x1]
      %878 = vadd.xlane.f32.xlu0 %v844
      %v879 = vpop.xlane.xlu0 %878
      %880 = vadd.xlane.f32.xlu0 %v845
      %v881 = vpop.xlane.xlu0 %880
      %882 = vadd.xlane.f32.xlu0 %v846
      %v883 = vpop.xlane.xlu0 %882
      %884 = vadd.xlane.f32.xlu0 %v847
      %v885 = vpop.xlane.xlu0 %884
      %886 = vadd.xlane.f32.xlu0 %v848
      %v887 = vpop.xlane.xlu0 %886
      %888 = vadd.xlane.f32.xlu0 %v849
      %v889 = vpop.xlane.xlu0 %888
      %890 = vadd.xlane.f32.xlu0 %v850
      %v891 = vpop.xlane.xlu0 %890
      %892 = vadd.xlane.f32.xlu0 %v851
      %v893 = vpop.xlane.xlu0 %892
      %894 = vadd.xlane.f32.xlu0 %v852
      %v895 = vpop.xlane.xlu0 %894
      %896 = vadd.xlane.f32.xlu0 %v853
      %v897 = vpop.xlane.xlu0 %896
      %898 = vadd.xlane.f32.xlu0 %v854
      %v899 = vpop.xlane.xlu0 %898
      %900 = vadd.xlane.f32.xlu0 %v855
      %v901 = vpop.xlane.xlu0 %900
      %902 = vadd.xlane.f32.xlu0 %v856
      %v903 = vpop.xlane.xlu0 %902
      %904 = vadd.xlane.f32.xlu0 %v857
      %v905 = vpop.xlane.xlu0 %904
      %906 = vadd.xlane.f32.xlu0 %v858
      %v907 = vpop.xlane.xlu0 %906
      %908 = vadd.xlane.f32.xlu0 %v859
      %v909 = vpop.xlane.xlu0 %908
      %910 = vadd.xlane.f32.xlu0 %v860
      %v911 = vpop.xlane.xlu0 %910
      %912 = vadd.xlane.f32.xlu0 %v861
      %v913 = vpop.xlane.xlu0 %912
      %914 = vadd.xlane.f32.xlu0 %v862
      %v915 = vpop.xlane.xlu0 %914
      %916 = vadd.xlane.f32.xlu0 %v863
      %v917 = vpop.xlane.xlu0 %916
      %918 = vadd.xlane.f32.xlu0 %v864
      %v919 = vpop.xlane.xlu0 %918
      %920 = vadd.xlane.f32.xlu0 %v865
      %v921 = vpop.xlane.xlu0 %920
      %922 = vadd.xlane.f32.xlu0 %v866
      %v923 = vpop.xlane.xlu0 %922
      %924 = vadd.xlane.f32.xlu0 %v867
      %v925 = vpop.xlane.xlu0 %924
      %926 = vadd.xlane.f32.xlu0 %v868
      %v927 = vpop.xlane.xlu0 %926
      %928 = vadd.xlane.f32.xlu0 %v869
      %v929 = vpop.xlane.xlu0 %928
      %930 = vadd.xlane.f32.xlu0 %v870
      %v931 = vpop.xlane.xlu0 %930
      %932 = vadd.xlane.f32.xlu0 %v871
      %v933 = vpop.xlane.xlu0 %932
      %934 = vadd.xlane.f32.xlu0 %v872
      %v935 = vpop.xlane.xlu0 %934
      %936 = vadd.xlane.f32.xlu0 %v873
      %v937 = vpop.xlane.xlu0 %936
      %938 = vadd.xlane.f32.xlu0 %v874
      %v939 = vpop.xlane.xlu0 %938
      %940 = vadd.xlane.f32.xlu0 %v875
      %v941 = vpop.xlane.xlu0 %940
      %v942 = vrcp.pop 128.0
      %v943 = vmul.f32 128.0, %v942
      %v944 = vsub.f32 1.0, %v943
      %v945 = vmul.f32 %v942, %v944
      %v946 = vadd.f32 %v942, %v945
      %vm947 = vweird.f32 %v942
      %v948 = vsel %vm947, %v942, %v946
      %v949 = vmul.f32 %v879, %v948
      %v950 = vmul.f32 %v881, %v948
      %v951 = vmul.f32 %v883, %v948
      %v952 = vmul.f32 %v885, %v948
      %v953 = vmul.f32 %v887, %v948
      %v954 = vmul.f32 %v889, %v948
      %v955 = vmul.f32 %v891, %v948
      %v956 = vmul.f32 %v893, %v948
      %v957 = vmul.f32 %v895, %v948
      %v958 = vmul.f32 %v897, %v948
      %v959 = vmul.f32 %v899, %v948
      %v960 = vmul.f32 %v901, %v948
      %v961 = vmul.f32 %v903, %v948
      %v962 = vmul.f32 %v905, %v948
      %v963 = vmul.f32 %v907, %v948
      %v964 = vmul.f32 %v909, %v948
      %v965 = vmul.f32 %v911, %v948
      %v966 = vmul.f32 %v913, %v948
      %v967 = vmul.f32 %v915, %v948
      %v968 = vmul.f32 %v917, %v948
      %v969 = vmul.f32 %v919, %v948
      %v970 = vmul.f32 %v921, %v948
      %v971 = vmul.f32 %v923, %v948
      %v972 = vmul.f32 %v925, %v948
      %v973 = vmul.f32 %v927, %v948
      %v974 = vmul.f32 %v929, %v948
      %v975 = vmul.f32 %v931, %v948
      %v976 = vmul.f32 %v933, %v948
      %v977 = vmul.f32 %v935, %v948
      %v978 = vmul.f32 %v937, %v948
      %v979 = vmul.f32 %v939, %v948
      %v980 = vmul.f32 %v941, %v948
      %v981 = vsub.f32 %v844, %v949
      %v982 = vsub.f32 %v845, %v950
      %v983 = vsub.f32 %v846, %v951
      %v984 = vsub.f32 %v847, %v952
      %v985 = vsub.f32 %v848, %v953
      %v986 = vsub.f32 %v849, %v954
      %v987 = vsub.f32 %v850, %v955
      %v988 = vsub.f32 %v851, %v956
      %v989 = vsub.f32 %v852, %v957
      %v990 = vsub.f32 %v853, %v958
      %v991 = vsub.f32 %v854, %v959
      %v992 = vsub.f32 %v855, %v960
      %v993 = vsub.f32 %v856, %v961
      %v994 = vsub.f32 %v857, %v962
      %v995 = vsub.f32 %v858, %v963
      %v996 = vsub.f32 %v859, %v964
      %v997 = vsub.f32 %v860, %v965
      %v998 = vsub.f32 %v861, %v966
      %v999 = vsub.f32 %v862, %v967
      %v1000 = vsub.f32 %v863, %v968
      %v1001 = vsub.f32 %v864, %v969
      %v1002 = vsub.f32 %v865, %v970
      %v1003 = vsub.f32 %v866, %v971
      %v1004 = vsub.f32 %v867, %v972
      %v1005 = vsub.f32 %v868, %v973
      %v1006 = vsub.f32 %v869, %v974
      %v1007 = vsub.f32 %v870, %v975
      %v1008 = vsub.f32 %v871, %v976
      %v1009 = vsub.f32 %v872, %v977
      %v1010 = vsub.f32 %v873, %v978
      %v1011 = vsub.f32 %v874, %v979
      %v1012 = vsub.f32 %v875, %v980
      %v1013 = vmul.f32 %v981, %v981
      %v1014 = vmul.f32 %v982, %v982
      %v1015 = vmul.f32 %v983, %v983
      %v1016 = vmul.f32 %v984, %v984
      %v1017 = vmul.f32 %v985, %v985
      %v1018 = vmul.f32 %v986, %v986
      %v1019 = vmul.f32 %v987, %v987
      %v1020 = vmul.f32 %v988, %v988
      %v1021 = vmul.f32 %v989, %v989
      %v1022 = vmul.f32 %v990, %v990
      %v1023 = vmul.f32 %v991, %v991
      %v1024 = vmul.f32 %v992, %v992
      %v1025 = vmul.f32 %v993, %v993
      %v1026 = vmul.f32 %v994, %v994
      %v1027 = vmul.f32 %v995, %v995
      %v1028 = vmul.f32 %v996, %v996
      %v1029 = vmul.f32 %v997, %v997
      %v1030 = vmul.f32 %v998, %v998
      %v1031 = vmul.f32 %v999, %v999
      %v1032 = vmul.f32 %v1000, %v1000
      %v1033 = vmul.f32 %v1001, %v1001
      %v1034 = vmul.f32 %v1002, %v1002
      %v1035 = vmul.f32 %v1003, %v1003
      %v1036 = vmul.f32 %v1004, %v1004
      %v1037 = vmul.f32 %v1005, %v1005
      %v1038 = vmul.f32 %v1006, %v1006
      %v1039 = vmul.f32 %v1007, %v1007
      %v1040 = vmul.f32 %v1008, %v1008
      %v1041 = vmul.f32 %v1009, %v1009
      %v1042 = vmul.f32 %v1010, %v1010
      %v1043 = vmul.f32 %v1011, %v1011
      %v1044 = vmul.f32 %v1012, %v1012
      %1045 = vadd.xlane.f32.xlu0 %v1013
      %v1046 = vpop.xlane.xlu0 %1045
      %1047 = vadd.xlane.f32.xlu0 %v1014
      %v1048 = vpop.xlane.xlu0 %1047
      %1049 = vadd.xlane.f32.xlu0 %v1015
      %v1050 = vpop.xlane.xlu0 %1049
      %1051 = vadd.xlane.f32.xlu0 %v1016
      %v1052 = vpop.xlane.xlu0 %1051
      %1053 = vadd.xlane.f32.xlu0 %v1017
      %v1054 = vpop.xlane.xlu0 %1053
      %1055 = vadd.xlane.f32.xlu0 %v1018
      %v1056 = vpop.xlane.xlu0 %1055
      %1057 = vadd.xlane.f32.xlu0 %v1019
      %v1058 = vpop.xlane.xlu0 %1057
      %1059 = vadd.xlane.f32.xlu0 %v1020
      %v1060 = vpop.xlane.xlu0 %1059
      %1061 = vadd.xlane.f32.xlu0 %v1021
      %v1062 = vpop.xlane.xlu0 %1061
      %1063 = vadd.xlane.f32.xlu0 %v1022
      %v1064 = vpop.xlane.xlu0 %1063
      %1065 = vadd.xlane.f32.xlu0 %v1023
      %v1066 = vpop.xlane.xlu0 %1065
      %1067 = vadd.xlane.f32.xlu0 %v1024
      %v1068 = vpop.xlane.xlu0 %1067
      %1069 = vadd.xlane.f32.xlu0 %v1025
      %v1070 = vpop.xlane.xlu0 %1069
      %1071 = vadd.xlane.f32.xlu0 %v1026
      %v1072 = vpop.xlane.xlu0 %1071
      %1073 = vadd.xlane.f32.xlu0 %v1027
      %v1074 = vpop.xlane.xlu0 %1073
      %1075 = vadd.xlane.f32.xlu0 %v1028
      %v1076 = vpop.xlane.xlu0 %1075
      %1077 = vadd.xlane.f32.xlu0 %v1029
      %v1078 = vpop.xlane.xlu0 %1077
      %1079 = vadd.xlane.f32.xlu0 %v1030
      %v1080 = vpop.xlane.xlu0 %1079
      %1081 = vadd.xlane.f32.xlu0 %v1031
      %v1082 = vpop.xlane.xlu0 %1081
      %1083 = vadd.xlane.f32.xlu0 %v1032
      %v1084 = vpop.xlane.xlu0 %1083
      %1085 = vadd.xlane.f32.xlu0 %v1033
      %v1086 = vpop.xlane.xlu0 %1085
      %1087 = vadd.xlane.f32.xlu0 %v1034
      %v1088 = vpop.xlane.xlu0 %1087
      %1089 = vadd.xlane.f32.xlu0 %v1035
      %v1090 = vpop.xlane.xlu0 %1089
      %1091 = vadd.xlane.f32.xlu0 %v1036
      %v1092 = vpop.xlane.xlu0 %1091
      %1093 = vadd.xlane.f32.xlu0 %v1037
      %v1094 = vpop.xlane.xlu0 %1093
      %1095 = vadd.xlane.f32.xlu0 %v1038
      %v1096 = vpop.xlane.xlu0 %1095
      %1097 = vadd.xlane.f32.xlu0 %v1039
      %v1098 = vpop.xlane.xlu0 %1097
      %1099 = vadd.xlane.f32.xlu0 %v1040
      %v1100 = vpop.xlane.xlu0 %1099
      %1101 = vadd.xlane.f32.xlu0 %v1041
      %v1102 = vpop.xlane.xlu0 %1101
      %1103 = vadd.xlane.f32.xlu0 %v1042
      %v1104 = vpop.xlane.xlu0 %1103
      %1105 = vadd.xlane.f32.xlu0 %v1043
      %v1106 = vpop.xlane.xlu0 %1105
      %1107 = vadd.xlane.f32.xlu0 %v1044
      %v1108 = vpop.xlane.xlu0 %1107
      %v1109 = vmul.f32 %v1046, %v948
      %v1110 = vmul.f32 %v1048, %v948
      %v1111 = vmul.f32 %v1050, %v948
      %v1112 = vmul.f32 %v1052, %v948
      %v1113 = vmul.f32 %v1054, %v948
      %v1114 = vmul.f32 %v1056, %v948
      %v1115 = vmul.f32 %v1058, %v948
      %v1116 = vmul.f32 %v1060, %v948
      %v1117 = vmul.f32 %v1062, %v948
      %v1118 = vmul.f32 %v1064, %v948
      %v1119 = vmul.f32 %v1066, %v948
      %v1120 = vmul.f32 %v1068, %v948
      %v1121 = vmul.f32 %v1070, %v948
      %v1122 = vmul.f32 %v1072, %v948
      %v1123 = vmul.f32 %v1074, %v948
      %v1124 = vmul.f32 %v1076, %v948
      %v1125 = vmul.f32 %v1078, %v948
      %v1126 = vmul.f32 %v1080, %v948
      %v1127 = vmul.f32 %v1082, %v948
      %v1128 = vmul.f32 %v1084, %v948
      %v1129 = vmul.f32 %v1086, %v948
      %v1130 = vmul.f32 %v1088, %v948
      %v1131 = vmul.f32 %v1090, %v948
      %v1132 = vmul.f32 %v1092, %v948
      %v1133 = vmul.f32 %v1094, %v948
      %v1134 = vmul.f32 %v1096, %v948
      %v1135 = vmul.f32 %v1098, %v948
      %v1136 = vmul.f32 %v1100, %v948
      %v1137 = vmul.f32 %v1102, %v948
      %v1138 = vmul.f32 %v1104, %v948
      %v1139 = vmul.f32 %v1106, %v948
      %v1140 = vmul.f32 %v1108, %v948
      %v1141 = vadd.f32 %v1109, 1e-05
      %v1142 = vadd.f32 %v1110, 1e-05
      %v1143 = vadd.f32 %v1111, 1e-05
      %v1144 = vadd.f32 %v1112, 1e-05
      %v1145 = vadd.f32 %v1113, 1e-05
      %v1146 = vadd.f32 %v1114, 1e-05
      %v1147 = vadd.f32 %v1115, 1e-05
      %v1148 = vadd.f32 %v1116, 1e-05
      %v1149 = vadd.f32 %v1117, 1e-05
      %v1150 = vadd.f32 %v1118, 1e-05
      %v1151 = vadd.f32 %v1119, 1e-05
      %v1152 = vadd.f32 %v1120, 1e-05
      %v1153 = vadd.f32 %v1121, 1e-05
      %v1154 = vadd.f32 %v1122, 1e-05
      %v1155 = vadd.f32 %v1123, 1e-05
      %v1156 = vadd.f32 %v1124, 1e-05
      %v1157 = vadd.f32 %v1125, 1e-05
      %v1158 = vadd.f32 %v1126, 1e-05
      %v1159 = vadd.f32 %v1127, 1e-05
      %v1160 = vadd.f32 %v1128, 1e-05
      %v1161 = vadd.f32 %v1129, 1e-05
      %v1162 = vadd.f32 %v1130, 1e-05
      %v1163 = vadd.f32 %v1131, 1e-05
      %v1164 = vadd.f32 %v1132, 1e-05
      %v1165 = vadd.f32 %v1133, 1e-05
      %v1166 = vadd.f32 %v1134, 1e-05
      %v1167 = vadd.f32 %v1135, 1e-05
      %v1168 = vadd.f32 %v1136, 1e-05
      %v1169 = vadd.f32 %v1137, 1e-05
      %v1170 = vadd.f32 %v1138, 1e-05
      %v1171 = vadd.f32 %v1139, 1e-05
      %v1172 = vadd.f32 %v1140, 1e-05
      %v1173 = vrsqrt.pop %v1141
      %v1174 = vmul.f32 %v1173, %v1141
      %v1175 = vmul.f32 %v1174, %v1173
      %v1176 = vmul.f32 0.5, %v1175
      %v1177 = vsub.f32 1.5, %v1176
      %v1178 = vmul.f32 %v1173, %v1177
      %vm1179 = vweird.f32 %v1141
      %vm1180 = vweird.f32 %v1173
      %vm1181 = vmor %vm1179, %vm1180
      %v1182 = vsel %vm1181, %v1173, %v1178
      %v1183 = vrsqrt.pop %v1142
      %v1184 = vmul.f32 %v1183, %v1142
      %v1185 = vmul.f32 %v1184, %v1183
      %v1186 = vmul.f32 0.5, %v1185
      %v1187 = vsub.f32 1.5, %v1186
      %v1188 = vmul.f32 %v1183, %v1187
      %vm1189 = vweird.f32 %v1142
      %vm1190 = vweird.f32 %v1183
      %vm1191 = vmor %vm1189, %vm1190
      %v1192 = vsel %vm1191, %v1183, %v1188
      %v1193 = vrsqrt.pop %v1143
      %v1194 = vmul.f32 %v1193, %v1143
      %v1195 = vmul.f32 %v1194, %v1193
      %v1196 = vmul.f32 0.5, %v1195
      %v1197 = vsub.f32 1.5, %v1196
      %v1198 = vmul.f32 %v1193, %v1197
      %vm1199 = vweird.f32 %v1143
      %vm1200 = vweird.f32 %v1193
      %vm1201 = vmor %vm1199, %vm1200
      %v1202 = vsel %vm1201, %v1193, %v1198
      %v1203 = vrsqrt.pop %v1144
      %v1204 = vmul.f32 %v1203, %v1144
      %v1205 = vmul.f32 %v1204, %v1203
      %v1206 = vmul.f32 0.5, %v1205
      %v1207 = vsub.f32 1.5, %v1206
      %v1208 = vmul.f32 %v1203, %v1207
      %vm1209 = vweird.f32 %v1144
      %vm1210 = vweird.f32 %v1203
      %vm1211 = vmor %vm1209, %vm1210
      %v1212 = vsel %vm1211, %v1203, %v1208
      %v1213 = vrsqrt.pop %v1145
      %v1214 = vmul.f32 %v1213, %v1145
      %v1215 = vmul.f32 %v1214, %v1213
      %v1216 = vmul.f32 0.5, %v1215
      %v1217 = vsub.f32 1.5, %v1216
      %v1218 = vmul.f32 %v1213, %v1217
      %vm1219 = vweird.f32 %v1145
      %vm1220 = vweird.f32 %v1213
      %vm1221 = vmor %vm1219, %vm1220
      %v1222 = vsel %vm1221, %v1213, %v1218
      %v1223 = vrsqrt.pop %v1146
      %v1224 = vmul.f32 %v1223, %v1146
      %v1225 = vmul.f32 %v1224, %v1223
      %v1226 = vmul.f32 0.5, %v1225
      %v1227 = vsub.f32 1.5, %v1226
      %v1228 = vmul.f32 %v1223, %v1227
      %vm1229 = vweird.f32 %v1146
      %vm1230 = vweird.f32 %v1223
      %vm1231 = vmor %vm1229, %vm1230
      %v1232 = vsel %vm1231, %v1223, %v1228
      %v1233 = vrsqrt.pop %v1147
      %v1234 = vmul.f32 %v1233, %v1147
      %v1235 = vmul.f32 %v1234, %v1233
      %v1236 = vmul.f32 0.5, %v1235
      %v1237 = vsub.f32 1.5, %v1236
      %v1238 = vmul.f32 %v1233, %v1237
      %vm1239 = vweird.f32 %v1147
      %vm1240 = vweird.f32 %v1233
      %vm1241 = vmor %vm1239, %vm1240
      %v1242 = vsel %vm1241, %v1233, %v1238
      %v1243 = vrsqrt.pop %v1148
      %v1244 = vmul.f32 %v1243, %v1148
      %v1245 = vmul.f32 %v1244, %v1243
      %v1246 = vmul.f32 0.5, %v1245
      %v1247 = vsub.f32 1.5, %v1246
      %v1248 = vmul.f32 %v1243, %v1247
      %vm1249 = vweird.f32 %v1148
      %vm1250 = vweird.f32 %v1243
      %vm1251 = vmor %vm1249, %vm1250
      %v1252 = vsel %vm1251, %v1243, %v1248
      %v1253 = vrsqrt.pop %v1149
      %v1254 = vmul.f32 %v1253, %v1149
      %v1255 = vmul.f32 %v1254, %v1253
      %v1256 = vmul.f32 0.5, %v1255
      %v1257 = vsub.f32 1.5, %v1256
      %v1258 = vmul.f32 %v1253, %v1257
      %vm1259 = vweird.f32 %v1149
      %vm1260 = vweird.f32 %v1253
      %vm1261 = vmor %vm1259, %vm1260
      %v1262 = vsel %vm1261, %v1253, %v1258
      %v1263 = vrsqrt.pop %v1150
      %v1264 = vmul.f32 %v1263, %v1150
      %v1265 = vmul.f32 %v1264, %v1263
      %v1266 = vmul.f32 0.5, %v1265
      %v1267 = vsub.f32 1.5, %v1266
      %v1268 = vmul.f32 %v1263, %v1267
      %vm1269 = vweird.f32 %v1150
      %vm1270 = vweird.f32 %v1263
      %vm1271 = vmor %vm1269, %vm1270
      %v1272 = vsel %vm1271, %v1263, %v1268
      %v1273 = vrsqrt.pop %v1151
      %v1274 = vmul.f32 %v1273, %v1151
      %v1275 = vmul.f32 %v1274, %v1273
      %v1276 = vmul.f32 0.5, %v1275
      %v1277 = vsub.f32 1.5, %v1276
      %v1278 = vmul.f32 %v1273, %v1277
      %vm1279 = vweird.f32 %v1151
      %vm1280 = vweird.f32 %v1273
      %vm1281 = vmor %vm1279, %vm1280
      %v1282 = vsel %vm1281, %v1273, %v1278
      %v1283 = vrsqrt.pop %v1152
      %v1284 = vmul.f32 %v1283, %v1152
      %v1285 = vmul.f32 %v1284, %v1283
      %v1286 = vmul.f32 0.5, %v1285
      %v1287 = vsub.f32 1.5, %v1286
      %v1288 = vmul.f32 %v1283, %v1287
      %vm1289 = vweird.f32 %v1152
      %vm1290 = vweird.f32 %v1283
      %vm1291 = vmor %vm1289, %vm1290
      %v1292 = vsel %vm1291, %v1283, %v1288
      %v1293 = vrsqrt.pop %v1153
      %v1294 = vmul.f32 %v1293, %v1153
      %v1295 = vmul.f32 %v1294, %v1293
      %v1296 = vmul.f32 0.5, %v1295
      %v1297 = vsub.f32 1.5, %v1296
      %v1298 = vmul.f32 %v1293, %v1297
      %vm1299 = vweird.f32 %v1153
      %vm1300 = vweird.f32 %v1293
      %vm1301 = vmor %vm1299, %vm1300
      %v1302 = vsel %vm1301, %v1293, %v1298
      %v1303 = vrsqrt.pop %v1154
      %v1304 = vmul.f32 %v1303, %v1154
      %v1305 = vmul.f32 %v1304, %v1303
      %v1306 = vmul.f32 0.5, %v1305
      %v1307 = vsub.f32 1.5, %v1306
      %v1308 = vmul.f32 %v1303, %v1307
      %vm1309 = vweird.f32 %v1154
      %vm1310 = vweird.f32 %v1303
      %vm1311 = vmor %vm1309, %vm1310
      %v1312 = vsel %vm1311, %v1303, %v1308
      %v1313 = vrsqrt.pop %v1155
      %v1314 = vmul.f32 %v1313, %v1155
      %v1315 = vmul.f32 %v1314, %v1313
      %v1316 = vmul.f32 0.5, %v1315
      %v1317 = vsub.f32 1.5, %v1316
      %v1318 = vmul.f32 %v1313, %v1317
      %vm1319 = vweird.f32 %v1155
      %vm1320 = vweird.f32 %v1313
      %vm1321 = vmor %vm1319, %vm1320
      %v1322 = vsel %vm1321, %v1313, %v1318
      %v1323 = vrsqrt.pop %v1156
      %v1324 = vmul.f32 %v1323, %v1156
      %v1325 = vmul.f32 %v1324, %v1323
      %v1326 = vmul.f32 0.5, %v1325
      %v1327 = vsub.f32 1.5, %v1326
      %v1328 = vmul.f32 %v1323, %v1327
      %vm1329 = vweird.f32 %v1156
      %vm1330 = vweird.f32 %v1323
      %vm1331 = vmor %vm1329, %vm1330
      %v1332 = vsel %vm1331, %v1323, %v1328
      %v1333 = vrsqrt.pop %v1157
      %v1334 = vmul.f32 %v1333, %v1157
      %v1335 = vmul.f32 %v1334, %v1333
      %v1336 = vmul.f32 0.5, %v1335
      %v1337 = vsub.f32 1.5, %v1336
      %v1338 = vmul.f32 %v1333, %v1337
      %vm1339 = vweird.f32 %v1157
      %vm1340 = vweird.f32 %v1333
      %vm1341 = vmor %vm1339, %vm1340
      %v1342 = vsel %vm1341, %v1333, %v1338
      %v1343 = vrsqrt.pop %v1158
      %v1344 = vmul.f32 %v1343, %v1158
      %v1345 = vmul.f32 %v1344, %v1343
      %v1346 = vmul.f32 0.5, %v1345
      %v1347 = vsub.f32 1.5, %v1346
      %v1348 = vmul.f32 %v1343, %v1347
      %vm1349 = vweird.f32 %v1158
      %vm1350 = vweird.f32 %v1343
      %vm1351 = vmor %vm1349, %vm1350
      %v1352 = vsel %vm1351, %v1343, %v1348
      %v1353 = vrsqrt.pop %v1159
      %v1354 = vmul.f32 %v1353, %v1159
      %v1355 = vmul.f32 %v1354, %v1353
      %v1356 = vmul.f32 0.5, %v1355
      %v1357 = vsub.f32 1.5, %v1356
      %v1358 = vmul.f32 %v1353, %v1357
      %vm1359 = vweird.f32 %v1159
      %vm1360 = vweird.f32 %v1353
      %vm1361 = vmor %vm1359, %vm1360
      %v1362 = vsel %vm1361, %v1353, %v1358
      %v1363 = vrsqrt.pop %v1160
      %v1364 = vmul.f32 %v1363, %v1160
      %v1365 = vmul.f32 %v1364, %v1363
      %v1366 = vmul.f32 0.5, %v1365
      %v1367 = vsub.f32 1.5, %v1366
      %v1368 = vmul.f32 %v1363, %v1367
      %vm1369 = vweird.f32 %v1160
      %vm1370 = vweird.f32 %v1363
      %vm1371 = vmor %vm1369, %vm1370
      %v1372 = vsel %vm1371, %v1363, %v1368
      %v1373 = vrsqrt.pop %v1161
      %v1374 = vmul.f32 %v1373, %v1161
      %v1375 = vmul.f32 %v1374, %v1373
      %v1376 = vmul.f32 0.5, %v1375
      %v1377 = vsub.f32 1.5, %v1376
      %v1378 = vmul.f32 %v1373, %v1377
      %vm1379 = vweird.f32 %v1161
      %vm1380 = vweird.f32 %v1373
      %vm1381 = vmor %vm1379, %vm1380
      %v1382 = vsel %vm1381, %v1373, %v1378
      %v1383 = vrsqrt.pop %v1162
      %v1384 = vmul.f32 %v1383, %v1162
      %v1385 = vmul.f32 %v1384, %v1383
      %v1386 = vmul.f32 0.5, %v1385
      %v1387 = vsub.f32 1.5, %v1386
      %v1388 = vmul.f32 %v1383, %v1387
      %vm1389 = vweird.f32 %v1162
      %vm1390 = vweird.f32 %v1383
      %vm1391 = vmor %vm1389, %vm1390
      %v1392 = vsel %vm1391, %v1383, %v1388
      %v1393 = vrsqrt.pop %v1163
      %v1394 = vmul.f32 %v1393, %v1163
      %v1395 = vmul.f32 %v1394, %v1393
      %v1396 = vmul.f32 0.5, %v1395
      %v1397 = vsub.f32 1.5, %v1396
      %v1398 = vmul.f32 %v1393, %v1397
      %vm1399 = vweird.f32 %v1163
      %vm1400 = vweird.f32 %v1393
      %vm1401 = vmor %vm1399, %vm1400
      %v1402 = vsel %vm1401, %v1393, %v1398
      %v1403 = vrsqrt.pop %v1164
      %v1404 = vmul.f32 %v1403, %v1164
      %v1405 = vmul.f32 %v1404, %v1403
      %v1406 = vmul.f32 0.5, %v1405
      %v1407 = vsub.f32 1.5, %v1406
      %v1408 = vmul.f32 %v1403, %v1407
      %vm1409 = vweird.f32 %v1164
      %vm1410 = vweird.f32 %v1403
      %vm1411 = vmor %vm1409, %vm1410
      %v1412 = vsel %vm1411, %v1403, %v1408
      %v1413 = vrsqrt.pop %v1165
      %v1414 = vmul.f32 %v1413, %v1165
      %v1415 = vmul.f32 %v1414, %v1413
      %v1416 = vmul.f32 0.5, %v1415
      %v1417 = vsub.f32 1.5, %v1416
      %v1418 = vmul.f32 %v1413, %v1417
      %vm1419 = vweird.f32 %v1165
      %vm1420 = vweird.f32 %v1413
      %vm1421 = vmor %vm1419, %vm1420
      %v1422 = vsel %vm1421, %v1413, %v1418
      %v1423 = vrsqrt.pop %v1166
      %v1424 = vmul.f32 %v1423, %v1166
      %v1425 = vmul.f32 %v1424, %v1423
      %v1426 = vmul.f32 0.5, %v1425
      %v1427 = vsub.f32 1.5, %v1426
      %v1428 = vmul.f32 %v1423, %v1427
      %vm1429 = vweird.f32 %v1166
      %vm1430 = vweird.f32 %v1423
      %vm1431 = vmor %vm1429, %vm1430
      %v1432 = vsel %vm1431, %v1423, %v1428
      %v1433 = vrsqrt.pop %v1167
      %v1434 = vmul.f32 %v1433, %v1167
      %v1435 = vmul.f32 %v1434, %v1433
      %v1436 = vmul.f32 0.5, %v1435
      %v1437 = vsub.f32 1.5, %v1436
      %v1438 = vmul.f32 %v1433, %v1437
      %vm1439 = vweird.f32 %v1167
      %vm1440 = vweird.f32 %v1433
      %vm1441 = vmor %vm1439, %vm1440
      %v1442 = vsel %vm1441, %v1433, %v1438
      %v1443 = vrsqrt.pop %v1168
      %v1444 = vmul.f32 %v1443, %v1168
      %v1445 = vmul.f32 %v1444, %v1443
      %v1446 = vmul.f32 0.5, %v1445
      %v1447 = vsub.f32 1.5, %v1446
      %v1448 = vmul.f32 %v1443, %v1447
      %vm1449 = vweird.f32 %v1168
      %vm1450 = vweird.f32 %v1443
      %vm1451 = vmor %vm1449, %vm1450
      %v1452 = vsel %vm1451, %v1443, %v1448
      %v1453 = vrsqrt.pop %v1169
      %v1454 = vmul.f32 %v1453, %v1169
      %v1455 = vmul.f32 %v1454, %v1453
      %v1456 = vmul.f32 0.5, %v1455
      %v1457 = vsub.f32 1.5, %v1456
      %v1458 = vmul.f32 %v1453, %v1457
      %vm1459 = vweird.f32 %v1169
      %vm1460 = vweird.f32 %v1453
      %vm1461 = vmor %vm1459, %vm1460
      %v1462 = vsel %vm1461, %v1453, %v1458
      %v1463 = vrsqrt.pop %v1170
      %v1464 = vmul.f32 %v1463, %v1170
      %v1465 = vmul.f32 %v1464, %v1463
      %v1466 = vmul.f32 0.5, %v1465
      %v1467 = vsub.f32 1.5, %v1466
      %v1468 = vmul.f32 %v1463, %v1467
      %vm1469 = vweird.f32 %v1170
      %vm1470 = vweird.f32 %v1463
      %vm1471 = vmor %vm1469, %vm1470
      %v1472 = vsel %vm1471, %v1463, %v1468
      %v1473 = vrsqrt.pop %v1171
      %v1474 = vmul.f32 %v1473, %v1171
      %v1475 = vmul.f32 %v1474, %v1473
      %v1476 = vmul.f32 0.5, %v1475
      %v1477 = vsub.f32 1.5, %v1476
      %v1478 = vmul.f32 %v1473, %v1477
      %vm1479 = vweird.f32 %v1171
      %vm1480 = vweird.f32 %v1473
      %vm1481 = vmor %vm1479, %vm1480
      %v1482 = vsel %vm1481, %v1473, %v1478
      %v1483 = vrsqrt.pop %v1172
      %v1484 = vmul.f32 %v1483, %v1172
      %v1485 = vmul.f32 %v1484, %v1483
      %v1486 = vmul.f32 0.5, %v1485
      %v1487 = vsub.f32 1.5, %v1486
      %v1488 = vmul.f32 %v1483, %v1487
      %vm1489 = vweird.f32 %v1172
      %vm1490 = vweird.f32 %v1483
      %vm1491 = vmor %vm1489, %vm1490
      %v1492 = vsel %vm1491, %v1483, %v1488
      %v1493 = vmul.f32 %v981, %v1182
      %v1494 = vmul.f32 %v982, %v1192
      %v1495 = vmul.f32 %v983, %v1202
      %v1496 = vmul.f32 %v984, %v1212
      %v1497 = vmul.f32 %v985, %v1222
      %v1498 = vmul.f32 %v986, %v1232
      %v1499 = vmul.f32 %v987, %v1242
      %v1500 = vmul.f32 %v988, %v1252
      %v1501 = vmul.f32 %v989, %v1262
      %v1502 = vmul.f32 %v990, %v1272
      %v1503 = vmul.f32 %v991, %v1282
      %v1504 = vmul.f32 %v992, %v1292
      %v1505 = vmul.f32 %v993, %v1302
      %v1506 = vmul.f32 %v994, %v1312
      %v1507 = vmul.f32 %v995, %v1322
      %v1508 = vmul.f32 %v996, %v1332
      %v1509 = vmul.f32 %v997, %v1342
      %v1510 = vmul.f32 %v998, %v1352
      %v1511 = vmul.f32 %v999, %v1362
      %v1512 = vmul.f32 %v1000, %v1372
      %v1513 = vmul.f32 %v1001, %v1382
      %v1514 = vmul.f32 %v1002, %v1392
      %v1515 = vmul.f32 %v1003, %v1402
      %v1516 = vmul.f32 %v1004, %v1412
      %v1517 = vmul.f32 %v1005, %v1422
      %v1518 = vmul.f32 %v1006, %v1432
      %v1519 = vmul.f32 %v1007, %v1442
      %v1520 = vmul.f32 %v1008, %v1452
      %v1521 = vmul.f32 %v1009, %v1462
      %v1522 = vmul.f32 %v1010, %v1472
      %v1523 = vmul.f32 %v1011, %v1482
      %v1524 = vmul.f32 %v1012, %v1492
      %v1526 = vperm.slane %v876, 0
      %v1528 = vmul.f32 %v1493, %v1526
      %v1529 = vmul.f32 %v1494, %v1526
      %v1530 = vmul.f32 %v1495, %v1526
      %v1531 = vmul.f32 %v1496, %v1526
      %v1532 = vmul.f32 %v1497, %v1526
      %v1533 = vmul.f32 %v1498, %v1526
      %v1534 = vmul.f32 %v1499, %v1526
      %v1535 = vmul.f32 %v1500, %v1526
      %v1536 = vmul.f32 %v1501, %v1526
      %v1537 = vmul.f32 %v1502, %v1526
      %v1538 = vmul.f32 %v1503, %v1526
      %v1539 = vmul.f32 %v1504, %v1526
      %v1540 = vmul.f32 %v1505, %v1526
      %v1541 = vmul.f32 %v1506, %v1526
      %v1542 = vmul.f32 %v1507, %v1526
      %v1543 = vmul.f32 %v1508, %v1526
      %v1544 = vmul.f32 %v1509, %v1526
      %v1545 = vmul.f32 %v1510, %v1526
      %v1546 = vmul.f32 %v1511, %v1526
      %v1547 = vmul.f32 %v1512, %v1526
      %v1548 = vmul.f32 %v1513, %v1526
      %v1549 = vmul.f32 %v1514, %v1526
      %v1550 = vmul.f32 %v1515, %v1526
      %v1551 = vmul.f32 %v1516, %v1526
      %v1552 = vmul.f32 %v1517, %v1526
      %v1553 = vmul.f32 %v1518, %v1526
      %v1554 = vmul.f32 %v1519, %v1526
      %v1555 = vmul.f32 %v1520, %v1526
      %v1556 = vmul.f32 %v1521, %v1526
      %v1557 = vmul.f32 %v1522, %v1526
      %v1558 = vmul.f32 %v1523, %v1526
      %v1559 = vmul.f32 %v1524, %v1526
      %v1561 = vperm.slane %v877, 0
      %v1563 = vadd.f32 %v1528, %v1561
      %v1564 = vadd.f32 %v1529, %v1561
      %v1565 = vadd.f32 %v1530, %v1561
      %v1566 = vadd.f32 %v1531, %v1561
      %v1567 = vadd.f32 %v1532, %v1561
      %v1568 = vadd.f32 %v1533, %v1561
      %v1569 = vadd.f32 %v1534, %v1561
      %v1570 = vadd.f32 %v1535, %v1561
      %v1571 = vadd.f32 %v1536, %v1561
      %v1572 = vadd.f32 %v1537, %v1561
      %v1573 = vadd.f32 %v1538, %v1561
      %v1574 = vadd.f32 %v1539, %v1561
      %v1575 = vadd.f32 %v1540, %v1561
      %v1576 = vadd.f32 %v1541, %v1561
      %v1577 = vadd.f32 %v1542, %v1561
      %v1578 = vadd.f32 %v1543, %v1561
      %v1579 = vadd.f32 %v1544, %v1561
      %v1580 = vadd.f32 %v1545, %v1561
      %v1581 = vadd.f32 %v1546, %v1561
      %v1582 = vadd.f32 %v1547, %v1561
      %v1583 = vadd.f32 %v1548, %v1561
      %v1584 = vadd.f32 %v1549, %v1561
      %v1585 = vadd.f32 %v1550, %v1561
      %v1586 = vadd.f32 %v1551, %v1561
      %v1587 = vadd.f32 %v1552, %v1561
      %v1588 = vadd.f32 %v1553, %v1561
      %v1589 = vadd.f32 %v1554, %v1561
      %v1590 = vadd.f32 %v1555, %v1561
      %v1591 = vadd.f32 %v1556, %v1561
      %v1592 = vadd.f32 %v1557, %v1561
      %v1593 = vadd.f32 %v1558, %v1561
      %v1594 = vadd.f32 %v1559, %v1561
      %v1595 = vpack.c.bf16 %v1564, %v1563
      %v1596 = vpack.c.bf16 %v1566, %v1565
      %v1597 = vpack.c.bf16 %v1568, %v1567
      %v1598 = vpack.c.bf16 %v1570, %v1569
      %v1599 = vpack.c.bf16 %v1572, %v1571
      %v1600 = vpack.c.bf16 %v1574, %v1573
      %v1601 = vpack.c.bf16 %v1576, %v1575
      %v1602 = vpack.c.bf16 %v1578, %v1577
      %v1603 = vpack.c.bf16 %v1580, %v1579
      %v1604 = vpack.c.bf16 %v1582, %v1581
      %v1605 = vpack.c.bf16 %v1584, %v1583
      %v1606 = vpack.c.bf16 %v1586, %v1585
      %v1607 = vpack.c.bf16 %v1588, %v1587
      %v1608 = vpack.c.bf16 %v1590, %v1589
      %v1609 = vpack.c.bf16 %v1592, %v1591
      %v1610 = vpack.c.bf16 %v1594, %v1593
      %v1611 = vld [vmem:[%s651] sm:$0xff]
      %v1612 = vld [vmem:[%s651 + $0x8] sm:$0xf]
      %v1613 = vld [vmem:[%s651 + $0xc] sm:$0xff]
      %v1614 = vld [vmem:[%s651 + $0x14] sm:$0xf]
      %v1615 = vld [vmem:[%s651 + $0x18] sm:$0xff]
      %v1616 = vld [vmem:[%s651 + $0x20] sm:$0xf]
      %v1617 = vld [vmem:[%s651 + $0x24] sm:$0xff]
      %v1618 = vld [vmem:[%s651 + $0x2c] sm:$0xf]
      %v1619 = vld [vmem:[%s651 + $0x30] sm:$0xff]
      %v1620 = vld [vmem:[%s651 + $0x38] sm:$0xf]
      %v1621 = vld [vmem:[%s651 + $0x3c] sm:$0xff]
      %v1622 = vld [vmem:[%s651 + $0x44] sm:$0xf]
      %v1623 = vld [vmem:[%s651 + $0x48] sm:$0xff]
      %v1624 = vld [vmem:[%s651 + $0x50] sm:$0xf]
      %v1625 = vld [vmem:[%s651 + $0x54] sm:$0xff]
      %v1626 = vld [vmem:[%s651 + $0x5c] sm:$0xf]
      %v1627 = vld [vmem:[%s651 + $0x60] sm:$0xff]
      %v1628 = vld [vmem:[%s651 + $0x68] sm:$0xf]
      %v1629 = vld [vmem:[%s651 + $0x6c] sm:$0xff]
      %v1630 = vld [vmem:[%s651 + $0x74] sm:$0xf]
      %v1631 = vld [vmem:[%s651 + $0x78] sm:$0xff]
      %v1632 = vld [vmem:[%s651 + $0x80] sm:$0xf]
      %v1633 = vld [vmem:[%s651 + $0x84] sm:$0xff]
      %v1634 = vld [vmem:[%s651 + $0x8c] sm:$0xf]
      %v1635 = vld [vmem:[%s651 + $0x90] sm:$0xff]
      %v1636 = vld [vmem:[%s651 + $0x98] sm:$0xf]
      %v1637 = vld [vmem:[%s651 + $0x9c] sm:$0xff]
      %v1638 = vld [vmem:[%s651 + $0xa4] sm:$0xf]
      %v1639 = vld [vmem:[%s651 + $0xa8] sm:$0xff]
      %v1640 = vld [vmem:[%s651 + $0xb0] sm:$0xf]
      %v1641 = vld [vmem:[%s651 + $0xb4] sm:$0xff]
      %v1642 = vld [vmem:[%s651 + $0xbc] sm:$0xf]
      %v1675 = vunpack.c.l.b16 %v1611
      %v1676 = vunpack.c.h.b16 %v1611
      %v1677 = vunpack.c.l.b16 %v1612
      %v1678 = vunpack.c.l.b16 %v1613
      %v1679 = vunpack.c.h.b16 %v1613
      %v1680 = vunpack.c.l.b16 %v1614
      %v1681 = vunpack.c.l.b16 %v1615
      %v1682 = vunpack.c.h.b16 %v1615
      %v1683 = vunpack.c.l.b16 %v1616
      %v1684 = vunpack.c.l.b16 %v1617
      %v1685 = vunpack.c.h.b16 %v1617
      %v1686 = vunpack.c.l.b16 %v1618
      %v1687 = vunpack.c.l.b16 %v1619
      %v1688 = vunpack.c.h.b16 %v1619
      %v1689 = vunpack.c.l.b16 %v1620
      %v1690 = vunpack.c.l.b16 %v1621
      %v1691 = vunpack.c.h.b16 %v1621
      %v1692 = vunpack.c.l.b16 %v1622
      %v1693 = vunpack.c.l.b16 %v1623
      %v1694 = vunpack.c.h.b16 %v1623
      %v1695 = vunpack.c.l.b16 %v1624
      %v1696 = vunpack.c.l.b16 %v1625
      %v1697 = vunpack.c.h.b16 %v1625
      %v1698 = vunpack.c.l.b16 %v1626
      %v1699 = vunpack.c.l.b16 %v1627
      %v1700 = vunpack.c.h.b16 %v1627
      %v1701 = vunpack.c.l.b16 %v1628
      %v1702 = vunpack.c.l.b16 %v1629
      %v1703 = vunpack.c.h.b16 %v1629
      %v1704 = vunpack.c.l.b16 %v1630
      %v1705 = vunpack.c.l.b16 %v1631
      %v1706 = vunpack.c.h.b16 %v1631
      %v1707 = vunpack.c.l.b16 %v1632
      %v1708 = vunpack.c.l.b16 %v1633
      %v1709 = vunpack.c.h.b16 %v1633
      %v1710 = vunpack.c.l.b16 %v1634
      %v1711 = vunpack.c.l.b16 %v1635
      %v1712 = vunpack.c.h.b16 %v1635
      %v1713 = vunpack.c.l.b16 %v1636
      %v1714 = vunpack.c.l.b16 %v1637
      %v1715 = vunpack.c.h.b16 %v1637
      %v1716 = vunpack.c.l.b16 %v1638
      %v1717 = vunpack.c.l.b16 %v1639
      %v1718 = vunpack.c.h.b16 %v1639
      %v1719 = vunpack.c.l.b16 %v1640
      %v1720 = vunpack.c.l.b16 %v1641
      %v1721 = vunpack.c.h.b16 %v1641
      %v1722 = vunpack.c.l.b16 %v1642
      %v1723 = vpack.c.b16 %v1678, %v1675
      %v1724 = vpack.c.b16 %v1679, %v1676
      %v1725 = vpack.c.b16 %v1680, %v1677
      %v1726 = vpack.c.b16 %v1684, %v1681
      %v1727 = vpack.c.b16 %v1685, %v1682
      %v1728 = vpack.c.b16 %v1686, %v1683
      %v1729 = vpack.c.b16 %v1690, %v1687
      %v1730 = vpack.c.b16 %v1691, %v1688
      %v1731 = vpack.c.b16 %v1692, %v1689
      %v1732 = vpack.c.b16 %v1696, %v1693
      %v1733 = vpack.c.b16 %v1697, %v1694
      %v1734 = vpack.c.b16 %v1698, %v1695
      %v1735 = vpack.c.b16 %v1702, %v1699
      %v1736 = vpack.c.b16 %v1703, %v1700
      %v1737 = vpack.c.b16 %v1704, %v1701
      %v1738 = vpack.c.b16 %v1708, %v1705
      %v1739 = vpack.c.b16 %v1709, %v1706
      %v1740 = vpack.c.b16 %v1710, %v1707
      %v1741 = vpack.c.b16 %v1714, %v1711
      %v1742 = vpack.c.b16 %v1715, %v1712
      %v1743 = vpack.c.b16 %v1716, %v1713
      %v1744 = vpack.c.b16 %v1720, %v1717
      %v1745 = vpack.c.b16 %v1721, %v1718
      %v1746 = vpack.c.b16 %v1722, %v1719
      %1771 = vmatpush.bf16.msra.mxu0 %v1744
      %1772 = vmatpush.bf16.msra.mxu0 %v1741
      %1773 = vmatpush.bf16.msra.mxu0 %v1738
      %1774 = vmatpush.bf16.msra.mxu0 %v1735
      %1775 = vmatpush.bf16.msra.mxu0 %v1732
      %1776 = vmatpush.bf16.msra.mxu0 %v1729
      %1777 = vmatpush.bf16.msra.mxu0 %v1726
      %1778 = vmatpush.bf16.msra.mxu0 %v1723
      %1779 = vmatmul.bf16.gmra.mxu0 %v1595
      %v1780 = vpop.f32.mrf.mxu0
      %v1781 = vadd.f32 0.0, %v1780
      %v1782 = vpop.f32.mrf.mxu0
      %v1783 = vadd.f32 0.0, %v1782
      %1784 = vmatmul.bf16.gmra.mxu0 %v1596
      %v1785 = vpop.f32.mrf.mxu0
      %v1786 = vadd.f32 0.0, %v1785
      %v1787 = vpop.f32.mrf.mxu0
      %v1788 = vadd.f32 0.0, %v1787
      %1789 = vmatmul.bf16.gmra.mxu0 %v1597
      %v1790 = vpop.f32.mrf.mxu0
      %v1791 = vadd.f32 0.0, %v1790
      %v1792 = vpop.f32.mrf.mxu0
      %v1793 = vadd.f32 0.0, %v1792
      %1794 = vmatmul.bf16.gmra.mxu0 %v1598
      %v1795 = vpop.f32.mrf.mxu0
      %v1796 = vadd.f32 0.0, %v1795
      %v1797 = vpop.f32.mrf.mxu0
      %v1798 = vadd.f32 0.0, %v1797
      %1799 = vmatmul.bf16.gmra.mxu0 %v1599
      %v1800 = vpop.f32.mrf.mxu0
      %v1801 = vadd.f32 0.0, %v1800
      %v1802 = vpop.f32.mrf.mxu0
      %v1803 = vadd.f32 0.0, %v1802
      %1804 = vmatmul.bf16.gmra.mxu0 %v1600
      %v1805 = vpop.f32.mrf.mxu0
      %v1806 = vadd.f32 0.0, %v1805
      %v1807 = vpop.f32.mrf.mxu0
      %v1808 = vadd.f32 0.0, %v1807
      %1809 = vmatmul.bf16.gmra.mxu0 %v1601
      %v1810 = vpop.f32.mrf.mxu0
      %v1811 = vadd.f32 0.0, %v1810
      %v1812 = vpop.f32.mrf.mxu0
      %v1813 = vadd.f32 0.0, %v1812
      %1814 = vmatmul.bf16.gmra.mxu0 %v1602
      %v1815 = vpop.f32.mrf.mxu0
      %v1816 = vadd.f32 0.0, %v1815
      %v1817 = vpop.f32.mrf.mxu0
      %v1818 = vadd.f32 0.0, %v1817
      %1819 = vmatmul.bf16.gmra.mxu0 %v1603
      %v1820 = vpop.f32.mrf.mxu0
      %v1821 = vadd.f32 0.0, %v1820
      %v1822 = vpop.f32.mrf.mxu0
      %v1823 = vadd.f32 0.0, %v1822
      %1824 = vmatmul.bf16.gmra.mxu0 %v1604
      %v1825 = vpop.f32.mrf.mxu0
      %v1826 = vadd.f32 0.0, %v1825
      %v1827 = vpop.f32.mrf.mxu0
      %v1828 = vadd.f32 0.0, %v1827
      %1829 = vmatmul.bf16.gmra.mxu0 %v1605
      %v1830 = vpop.f32.mrf.mxu0
      %v1831 = vadd.f32 0.0, %v1830
      %v1832 = vpop.f32.mrf.mxu0
      %v1833 = vadd.f32 0.0, %v1832
      %1834 = vmatmul.bf16.gmra.mxu0 %v1606
      %v1835 = vpop.f32.mrf.mxu0
      %v1836 = vadd.f32 0.0, %v1835
      %v1837 = vpop.f32.mrf.mxu0
      %v1838 = vadd.f32 0.0, %v1837
      %1839 = vmatmul.bf16.gmra.mxu0 %v1607
      %v1840 = vpop.f32.mrf.mxu0
      %v1841 = vadd.f32 0.0, %v1840
      %v1842 = vpop.f32.mrf.mxu0
      %v1843 = vadd.f32 0.0, %v1842
      %1844 = vmatmul.bf16.gmra.mxu0 %v1608
      %v1845 = vpop.f32.mrf.mxu0
      %v1846 = vadd.f32 0.0, %v1845
      %v1847 = vpop.f32.mrf.mxu0
      %v1848 = vadd.f32 0.0, %v1847
      %1849 = vmatmul.bf16.gmra.mxu0 %v1609
      %v1850 = vpop.f32.mrf.mxu0
      %v1851 = vadd.f32 0.0, %v1850
      %v1852 = vpop.f32.mrf.mxu0
      %v1853 = vadd.f32 0.0, %v1852
      %1854 = vmatmul.bf16.gmra.mxu0 %v1610
      %v1855 = vpop.f32.mrf.mxu0
      %v1856 = vadd.f32 0.0, %v1855
      %v1857 = vpop.f32.mrf.mxu0
      %v1858 = vadd.f32 0.0, %v1857
      %1859 = vdwg.mxu0
      %1860 = vmatpush.bf16.msra.mxu0 %v1745
      %1861 = vmatpush.bf16.msra.mxu0 %v1742
      %1862 = vmatpush.bf16.msra.mxu0 %v1739
      %1863 = vmatpush.bf16.msra.mxu0 %v1736
      %1864 = vmatpush.bf16.msra.mxu0 %v1733
      %1865 = vmatpush.bf16.msra.mxu0 %v1730
      %1866 = vmatpush.bf16.msra.mxu0 %v1727
      %1867 = vmatpush.bf16.msra.mxu0 %v1724
      %1868 = vmatmul.bf16.gmra.mxu0 %v1595
      %v1869 = vpop.f32.mrf.mxu0
      %v1870 = vadd.f32 0.0, %v1869
      %v1871 = vpop.f32.mrf.mxu0
      %v1872 = vadd.f32 0.0, %v1871
      %1873 = vmatmul.bf16.gmra.mxu0 %v1596
      %v1874 = vpop.f32.mrf.mxu0
      %v1875 = vadd.f32 0.0, %v1874
      %v1876 = vpop.f32.mrf.mxu0
      %v1877 = vadd.f32 0.0, %v1876
      %1878 = vmatmul.bf16.gmra.mxu0 %v1597
      %v1879 = vpop.f32.mrf.mxu0
      %v1880 = vadd.f32 0.0, %v1879
      %v1881 = vpop.f32.mrf.mxu0
      %v1882 = vadd.f32 0.0, %v1881
      %1883 = vmatmul.bf16.gmra.mxu0 %v1598
      %v1884 = vpop.f32.mrf.mxu0
      %v1885 = vadd.f32 0.0, %v1884
      %v1886 = vpop.f32.mrf.mxu0
      %v1887 = vadd.f32 0.0, %v1886
      %1888 = vmatmul.bf16.gmra.mxu0 %v1599
      %v1889 = vpop.f32.mrf.mxu0
      %v1890 = vadd.f32 0.0, %v1889
      %v1891 = vpop.f32.mrf.mxu0
      %v1892 = vadd.f32 0.0, %v1891
      %1893 = vmatmul.bf16.gmra.mxu0 %v1600
      %v1894 = vpop.f32.mrf.mxu0
      %v1895 = vadd.f32 0.0, %v1894
      %v1896 = vpop.f32.mrf.mxu0
      %v1897 = vadd.f32 0.0, %v1896
      %1898 = vmatmul.bf16.gmra.mxu0 %v1601
      %v1899 = vpop.f32.mrf.mxu0
      %v1900 = vadd.f32 0.0, %v1899
      %v1901 = vpop.f32.mrf.mxu0
      %v1902 = vadd.f32 0.0, %v1901
      %1903 = vmatmul.bf16.gmra.mxu0 %v1602
      %v1904 = vpop.f32.mrf.mxu0
      %v1905 = vadd.f32 0.0, %v1904
      %v1906 = vpop.f32.mrf.mxu0
      %v1907 = vadd.f32 0.0, %v1906
      %1908 = vmatmul.bf16.gmra.mxu0 %v1603
      %v1909 = vpop.f32.mrf.mxu0
      %v1910 = vadd.f32 0.0, %v1909
      %v1911 = vpop.f32.mrf.mxu0
      %v1912 = vadd.f32 0.0, %v1911
      %1913 = vmatmul.bf16.gmra.mxu0 %v1604
      %v1914 = vpop.f32.mrf.mxu0
      %v1915 = vadd.f32 0.0, %v1914
      %v1916 = vpop.f32.mrf.mxu0
      %v1917 = vadd.f32 0.0, %v1916
      %1918 = vmatmul.bf16.gmra.mxu0 %v1605
      %v1919 = vpop.f32.mrf.mxu0
      %v1920 = vadd.f32 0.0, %v1919
      %v1921 = vpop.f32.mrf.mxu0
      %v1922 = vadd.f32 0.0, %v1921
      %1923 = vmatmul.bf16.gmra.mxu0 %v1606
      %v1924 = vpop.f32.mrf.mxu0
      %v1925 = vadd.f32 0.0, %v1924
      %v1926 = vpop.f32.mrf.mxu0
      %v1927 = vadd.f32 0.0, %v1926
      %1928 = vmatmul.bf16.gmra.mxu0 %v1607
      %v1929 = vpop.f32.mrf.mxu0
      %v1930 = vadd.f32 0.0, %v1929
      %v1931 = vpop.f32.mrf.mxu0
      %v1932 = vadd.f32 0.0, %v1931
      %1933 = vmatmul.bf16.gmra.mxu0 %v1608
      %v1934 = vpop.f32.mrf.mxu0
      %v1935 = vadd.f32 0.0, %v1934
      %v1936 = vpop.f32.mrf.mxu0
      %v1937 = vadd.f32 0.0, %v1936
      %1938 = vmatmul.bf16.gmra.mxu0 %v1609
      %v1939 = vpop.f32.mrf.mxu0
      %v1940 = vadd.f32 0.0, %v1939
      %v1941 = vpop.f32.mrf.mxu0
      %v1942 = vadd.f32 0.0, %v1941
      %1943 = vmatmul.bf16.gmra.mxu0 %v1610
      %v1944 = vpop.f32.mrf.mxu0
      %v1945 = vadd.f32 0.0, %v1944
      %v1946 = vpop.f32.mrf.mxu0
      %v1947 = vadd.f32 0.0, %v1946
      %1948 = vdwg.mxu0
      %1949 = vmatpush.bf16.msra.mxu0 %v1746
      %1950 = vmatpush.bf16.msra.mxu0 %v1743
      %1951 = vmatpush.bf16.msra.mxu0 %v1740
      %1952 = vmatpush.bf16.msra.mxu0 %v1737
      %1953 = vmatpush.bf16.msra.mxu0 %v1734
      %1954 = vmatpush.bf16.msra.mxu0 %v1731
      %1955 = vmatpush.bf16.msra.mxu0 %v1728
      %1956 = vmatpush.bf16.msra.mxu0 %v1725
      %1957 = vmatmul.bf16.gmra.mxu0 %v1595
      %v1958 = vpop.f32.mrf.mxu0
      %v1959 = vadd.f32 0.0, %v1958
      %v1960 = vpop.f32.mrf.mxu0
      %v1961 = vadd.f32 0.0, %v1960
      %1962 = vmatmul.bf16.gmra.mxu0 %v1596
      %v1963 = vpop.f32.mrf.mxu0
      %v1964 = vadd.f32 0.0, %v1963
      %v1965 = vpop.f32.mrf.mxu0
      %v1966 = vadd.f32 0.0, %v1965
      %1967 = vmatmul.bf16.gmra.mxu0 %v1597
      %v1968 = vpop.f32.mrf.mxu0
      %v1969 = vadd.f32 0.0, %v1968
      %v1970 = vpop.f32.mrf.mxu0
      %v1971 = vadd.f32 0.0, %v1970
      %1972 = vmatmul.bf16.gmra.mxu0 %v1598
      %v1973 = vpop.f32.mrf.mxu0
      %v1974 = vadd.f32 0.0, %v1973
      %v1975 = vpop.f32.mrf.mxu0
      %v1976 = vadd.f32 0.0, %v1975
      %1977 = vmatmul.bf16.gmra.mxu0 %v1599
      %v1978 = vpop.f32.mrf.mxu0
      %v1979 = vadd.f32 0.0, %v1978
      %v1980 = vpop.f32.mrf.mxu0
      %v1981 = vadd.f32 0.0, %v1980
      %1982 = vmatmul.bf16.gmra.mxu0 %v1600
      %v1983 = vpop.f32.mrf.mxu0
      %v1984 = vadd.f32 0.0, %v1983
      %v1985 = vpop.f32.mrf.mxu0
      %v1986 = vadd.f32 0.0, %v1985
      %1987 = vmatmul.bf16.gmra.mxu0 %v1601
      %v1988 = vpop.f32.mrf.mxu0
      %v1989 = vadd.f32 0.0, %v1988
      %v1990 = vpop.f32.mrf.mxu0
      %v1991 = vadd.f32 0.0, %v1990
      %1992 = vmatmul.bf16.gmra.mxu0 %v1602
      %v1993 = vpop.f32.mrf.mxu0
      %v1994 = vadd.f32 0.0, %v1993
      %v1995 = vpop.f32.mrf.mxu0
      %v1996 = vadd.f32 0.0, %v1995
      %1997 = vmatmul.bf16.gmra.mxu0 %v1603
      %v1998 = vpop.f32.mrf.mxu0
      %v1999 = vadd.f32 0.0, %v1998
      %v2000 = vpop.f32.mrf.mxu0
      %v2001 = vadd.f32 0.0, %v2000
      %2002 = vmatmul.bf16.gmra.mxu0 %v1604
      %v2003 = vpop.f32.mrf.mxu0
      %v2004 = vadd.f32 0.0, %v2003
      %v2005 = vpop.f32.mrf.mxu0
      %v2006 = vadd.f32 0.0, %v2005
      %2007 = vmatmul.bf16.gmra.mxu0 %v1605
      %v2008 = vpop.f32.mrf.mxu0
      %v2009 = vadd.f32 0.0, %v2008
      %v2010 = vpop.f32.mrf.mxu0
      %v2011 = vadd.f32 0.0, %v2010
      %2012 = vmatmul.bf16.gmra.mxu0 %v1606
      %v2013 = vpop.f32.mrf.mxu0
      %v2014 = vadd.f32 0.0, %v2013
      %v2015 = vpop.f32.mrf.mxu0
      %v2016 = vadd.f32 0.0, %v2015
      %2017 = vmatmul.bf16.gmra.mxu0 %v1607
      %v2018 = vpop.f32.mrf.mxu0
      %v2019 = vadd.f32 0.0, %v2018
      %v2020 = vpop.f32.mrf.mxu0
      %v2021 = vadd.f32 0.0, %v2020
      %2022 = vmatmul.bf16.gmra.mxu0 %v1608
      %v2023 = vpop.f32.mrf.mxu0
      %v2024 = vadd.f32 0.0, %v2023
      %v2025 = vpop.f32.mrf.mxu0
      %v2026 = vadd.f32 0.0, %v2025
      %2027 = vmatmul.bf16.gmra.mxu0 %v1609
      %v2028 = vpop.f32.mrf.mxu0
      %v2029 = vadd.f32 0.0, %v2028
      %v2030 = vpop.f32.mrf.mxu0
      %v2031 = vadd.f32 0.0, %v2030
      %2032 = vmatmul.bf16.gmra.mxu0 %v1610
      %v2033 = vpop.f32.mrf.mxu0
      %v2034 = vadd.f32 0.0, %v2033
      %v2035 = vpop.f32.mrf.mxu0
      %v2036 = vadd.f32 0.0, %v2035
      %2037 = vdwg.mxu0
      %v2038 = vlaneseq
      %v2039 = vand.u32 %v2038, 127
      %vm2040 = vcmp.lt.s32.totalorder %v2039, 9
      %v2041 = vpack.c.bf16 %v1781, %v1781
      %v2042 = vpack.c.bf16 %v1783, %v1783
      %v2043 = vpack.c.bf16 %v1786, %v1786
      %v2044 = vpack.c.bf16 %v1788, %v1788
      %v2045 = vpack.c.bf16 %v1791, %v1791
      %v2046 = vpack.c.bf16 %v1793, %v1793
      %v2047 = vpack.c.bf16 %v1796, %v1796
      %v2048 = vpack.c.bf16 %v1798, %v1798
      %v2049 = vpack.c.bf16 %v1801, %v1801
      %v2050 = vpack.c.bf16 %v1803, %v1803
      %v2051 = vpack.c.bf16 %v1806, %v1806
      %v2052 = vpack.c.bf16 %v1808, %v1808
      %v2053 = vpack.c.bf16 %v1811, %v1811
      %v2054 = vpack.c.bf16 %v1813, %v1813
      %v2055 = vpack.c.bf16 %v1816, %v1816
      %v2056 = vpack.c.bf16 %v1818, %v1818
      %v2057 = vpack.c.bf16 %v1821, %v1821
      %v2058 = vpack.c.bf16 %v1823, %v1823
      %v2059 = vpack.c.bf16 %v1826, %v1826
      %v2060 = vpack.c.bf16 %v1828, %v1828
      %v2061 = vpack.c.bf16 %v1831, %v1831
      %v2062 = vpack.c.bf16 %v1833, %v1833
      %v2063 = vpack.c.bf16 %v1836, %v1836
      %v2064 = vpack.c.bf16 %v1838, %v1838
      %v2065 = vpack.c.bf16 %v1841, %v1841
      %v2066 = vpack.c.bf16 %v1843, %v1843
      %v2067 = vpack.c.bf16 %v1846, %v1846
      %v2068 = vpack.c.bf16 %v1848, %v1848
      %v2069 = vpack.c.bf16 %v1851, %v1851
      %v2070 = vpack.c.bf16 %v1853, %v1853
      %v2071 = vpack.c.bf16 %v1856, %v1856
      %v2072 = vpack.c.bf16 %v1858, %v1858
      %v2073 = vpack.c.bf16 %v1870, %v1870
      %v2074 = vpack.c.bf16 %v1872, %v1872
      %v2075 = vpack.c.bf16 %v1875, %v1875
      %v2076 = vpack.c.bf16 %v1877, %v1877
      %v2077 = vpack.c.bf16 %v1880, %v1880
      %v2078 = vpack.c.bf16 %v1882, %v1882
      %v2079 = vpack.c.bf16 %v1885, %v1885
      %v2080 = vpack.c.bf16 %v1887, %v1887
      %v2081 = vpack.c.bf16 %v1890, %v1890
      %v2082 = vpack.c.bf16 %v1892, %v1892
      %v2083 = vpack.c.bf16 %v1895, %v1895
      %v2084 = vpack.c.bf16 %v1897, %v1897
      %v2085 = vpack.c.bf16 %v1900, %v1900
      %v2086 = vpack.c.bf16 %v1902, %v1902
      %v2087 = vpack.c.bf16 %v1905, %v1905
      %v2088 = vpack.c.bf16 %v1907, %v1907
      %v2089 = vpack.c.bf16 %v1910, %v1910
      %v2090 = vpack.c.bf16 %v1912, %v1912
      %v2091 = vpack.c.bf16 %v1915, %v1915
      %v2092 = vpack.c.bf16 %v1917, %v1917
      %v2093 = vpack.c.bf16 %v1920, %v1920
      %v2094 = vpack.c.bf16 %v1922, %v1922
      %v2095 = vpack.c.bf16 %v1925, %v1925
      %v2096 = vpack.c.bf16 %v1927, %v1927
      %v2097 = vpack.c.bf16 %v1930, %v1930
      %v2098 = vpack.c.bf16 %v1932, %v1932
      %v2099 = vpack.c.bf16 %v1935, %v1935
      %v2100 = vpack.c.bf16 %v1937, %v1937
      %v2101 = vpack.c.bf16 %v1940, %v1940
      %v2102 = vpack.c.bf16 %v1942, %v1942
      %v2103 = vpack.c.bf16 %v1945, %v1945
      %v2104 = vpack.c.bf16 %v1947, %v1947
      %v2105 = vpack.c.bf16 %v1959, %v1959
      %v2106 = vpack.c.bf16 %v1961, %v1961
      %v2107 = vpack.c.bf16 %v1964, %v1964
      %v2108 = vpack.c.bf16 %v1966, %v1966
      %v2109 = vpack.c.bf16 %v1969, %v1969
      %v2110 = vpack.c.bf16 %v1971, %v1971
      %v2111 = vpack.c.bf16 %v1974, %v1974
      %v2112 = vpack.c.bf16 %v1976, %v1976
      %v2113 = vpack.c.bf16 %v1979, %v1979
      %v2114 = vpack.c.bf16 %v1981, %v1981
      %v2115 = vpack.c.bf16 %v1984, %v1984
      %v2116 = vpack.c.bf16 %v1986, %v1986
      %v2117 = vpack.c.bf16 %v1989, %v1989
      %v2118 = vpack.c.bf16 %v1991, %v1991
      %v2119 = vpack.c.bf16 %v1994, %v1994
      %v2120 = vpack.c.bf16 %v1996, %v1996
      %v2121 = vpack.c.bf16 %v1999, %v1999
      %v2122 = vpack.c.bf16 %v2001, %v2001
      %v2123 = vpack.c.bf16 %v2004, %v2004
      %v2124 = vpack.c.bf16 %v2006, %v2006
      %v2125 = vpack.c.bf16 %v2009, %v2009
      %v2126 = vpack.c.bf16 %v2011, %v2011
      %v2127 = vpack.c.bf16 %v2014, %v2014
      %v2128 = vpack.c.bf16 %v2016, %v2016
      %v2129 = vpack.c.bf16 %v2019, %v2019
      %v2130 = vpack.c.bf16 %v2021, %v2021
      %v2131 = vpack.c.bf16 %v2024, %v2024
      %v2132 = vpack.c.bf16 %v2026, %v2026
      %v2133 = vpack.c.bf16 %v2029, %v2029
      %v2134 = vpack.c.bf16 %v2031, %v2031
      %v2135 = vpack.c.bf16 %v2034, %v2034
      %v2136 = vpack.c.bf16 %v2036, %v2036
      %v2153 = vunpack.c.l.b16 %v2041
      %v2154 = vunpack.c.l.b16 %v2042
      %v2155 = vunpack.c.l.b16 %v2043
      %v2156 = vunpack.c.l.b16 %v2044
      %v2157 = vunpack.c.l.b16 %v2045
      %v2158 = vunpack.c.l.b16 %v2046
      %v2159 = vunpack.c.l.b16 %v2047
      %v2160 = vunpack.c.l.b16 %v2048
      %v2161 = vunpack.c.l.b16 %v2049
      %v2162 = vunpack.c.l.b16 %v2050
      %v2163 = vunpack.c.l.b16 %v2051
      %v2164 = vunpack.c.l.b16 %v2052
      %v2165 = vunpack.c.l.b16 %v2053
      %v2166 = vunpack.c.l.b16 %v2054
      %v2167 = vunpack.c.l.b16 %v2055
      %v2168 = vunpack.c.l.b16 %v2056
      %v2169 = vpack.c.b16 %v2154, %v2153
      %v2170 = vpack.c.b16 %v2156, %v2155
      %v2171 = vpack.c.b16 %v2158, %v2157
      %v2172 = vpack.c.b16 %v2160, %v2159
      %v2173 = vpack.c.b16 %v2162, %v2161
      %v2174 = vpack.c.b16 %v2164, %v2163
      %v2175 = vpack.c.b16 %v2166, %v2165
      %v2176 = vpack.c.b16 %v2168, %v2167
      %v2193 = vunpack.c.l.b16 %v2073
      %v2194 = vunpack.c.l.b16 %v2074
      %v2195 = vunpack.c.l.b16 %v2075
      %v2196 = vunpack.c.l.b16 %v2076
      %v2197 = vunpack.c.l.b16 %v2077
      %v2198 = vunpack.c.l.b16 %v2078
      %v2199 = vunpack.c.l.b16 %v2079
      %v2200 = vunpack.c.l.b16 %v2080
      %v2201 = vunpack.c.l.b16 %v2081
      %v2202 = vunpack.c.l.b16 %v2082
      %v2203 = vunpack.c.l.b16 %v2083
      %v2204 = vunpack.c.l.b16 %v2084
      %v2205 = vunpack.c.l.b16 %v2085
      %v2206 = vunpack.c.l.b16 %v2086
      %v2207 = vunpack.c.l.b16 %v2087
      %v2208 = vunpack.c.l.b16 %v2088
      %v2209 = vpack.c.b16 %v2194, %v2193
      %v2210 = vpack.c.b16 %v2196, %v2195
      %v2211 = vpack.c.b16 %v2198, %v2197
      %v2212 = vpack.c.b16 %v2200, %v2199
      %v2213 = vpack.c.b16 %v2202, %v2201
      %v2214 = vpack.c.b16 %v2204, %v2203
      %v2215 = vpack.c.b16 %v2206, %v2205
      %v2216 = vpack.c.b16 %v2208, %v2207
      %vm2217 = vcmask 261120
      %v2219 = vsel %vm2217, %v2169, 0
      %v2222 = vsel %vm2217, %v2170, 0
      %v2225 = vsel %vm2217, %v2171, 0
      %v2228 = vsel %vm2217, %v2172, 0
      %v2231 = vsel %vm2217, %v2173, 0
      %v2234 = vsel %vm2217, %v2174, 0
      %v2237 = vsel %vm2217, %v2175, 0
      %v2240 = vsel %vm2217, %v2176, 0
      %v2243 = vsel %vm2217, %v2209, 0
      %v2246 = vsel %vm2217, %v2210, 0
      %v2249 = vsel %vm2217, %v2211, 0
      %v2252 = vsel %vm2217, %v2212, 0
      %v2255 = vsel %vm2217, %v2213, 0
      %v2258 = vsel %vm2217, %v2214, 0
      %v2261 = vsel %vm2217, %v2215, 0
      %v2264 = vsel %vm2217, %v2216, 0
      %2266 = vmatpush.bf16.xpose.msra.mxu0 %v2264
      %2267 = vmatpush.bf16.xpose.msra.mxu0 %v2261
      %2268 = vmatpush.bf16.xpose.msra.mxu0 %v2258
      %2269 = vmatpush.bf16.xpose.msra.mxu0 %v2255
      %2270 = vmatpush.bf16.xpose.msra.mxu0 %v2252
      %2271 = vmatpush.bf16.xpose.msra.mxu0 %v2249
      %2272 = vmatpush.bf16.xpose.msra.mxu0 %v2246
      %2273 = vmatpush.bf16.xpose.msra.mxu0 %v2243
      %2274 = vmatmul.bf16.gmra.mxu0 %v2219
      %v2275 = vpop.f32.mrf.mxu0
      %v2276 = vadd.f32 0.0, %v2275
      %v2277 = vpop.f32.mrf.mxu0
      %v2278 = vadd.f32 0.0, %v2277
      %2279 = vmatmul.bf16.gmra.mxu0 %v2222
      %v2280 = vpop.f32.mrf.mxu0
      %v2281 = vadd.f32 0.0, %v2280
      %v2282 = vpop.f32.mrf.mxu0
      %v2283 = vadd.f32 0.0, %v2282
      %2284 = vmatmul.bf16.gmra.mxu0 %v2225
      %v2285 = vpop.f32.mrf.mxu0
      %v2286 = vadd.f32 0.0, %v2285
      %v2287 = vpop.f32.mrf.mxu0
      %v2288 = vadd.f32 0.0, %v2287
      %2289 = vmatmul.bf16.gmra.mxu0 %v2228
      %v2290 = vpop.f32.mrf.mxu0
      %v2291 = vadd.f32 0.0, %v2290
      %v2292 = vpop.f32.mrf.mxu0
      %v2293 = vadd.f32 0.0, %v2292
      %2294 = vmatmul.bf16.gmra.mxu0 %v2231
      %v2295 = vpop.f32.mrf.mxu0
      %v2296 = vadd.f32 0.0, %v2295
      %v2297 = vpop.f32.mrf.mxu0
      %v2298 = vadd.f32 0.0, %v2297
      %2299 = vmatmul.bf16.gmra.mxu0 %v2234
      %v2300 = vpop.f32.mrf.mxu0
      %v2301 = vadd.f32 0.0, %v2300
      %v2302 = vpop.f32.mrf.mxu0
      %v2303 = vadd.f32 0.0, %v2302
      %2304 = vmatmul.bf16.gmra.mxu0 %v2237
      %v2305 = vpop.f32.mrf.mxu0
      %v2306 = vadd.f32 0.0, %v2305
      %v2307 = vpop.f32.mrf.mxu0
      %v2308 = vadd.f32 0.0, %v2307
      %2309 = vmatmul.bf16.gmra.mxu0 %v2240
      %v2310 = vpop.f32.mrf.mxu0
      %v2311 = vadd.f32 0.0, %v2310
      %v2312 = vpop.f32.mrf.mxu0
      %v2313 = vadd.f32 0.0, %v2312
      %2314 = vdwg.mxu0
      %v2331 = vunpack.c.l.b16 %v2057
      %v2332 = vunpack.c.l.b16 %v2058
      %v2333 = vunpack.c.l.b16 %v2059
      %v2334 = vunpack.c.l.b16 %v2060
      %v2335 = vunpack.c.l.b16 %v2061
      %v2336 = vunpack.c.l.b16 %v2062
      %v2337 = vunpack.c.l.b16 %v2063
      %v2338 = vunpack.c.l.b16 %v2064
      %v2339 = vunpack.c.l.b16 %v2065
      %v2340 = vunpack.c.l.b16 %v2066
      %v2341 = vunpack.c.l.b16 %v2067
      %v2342 = vunpack.c.l.b16 %v2068
      %v2343 = vunpack.c.l.b16 %v2069
      %v2344 = vunpack.c.l.b16 %v2070
      %v2345 = vunpack.c.l.b16 %v2071
      %v2346 = vunpack.c.l.b16 %v2072
      %v2347 = vpack.c.b16 %v2332, %v2331
      %v2348 = vpack.c.b16 %v2334, %v2333
      %v2349 = vpack.c.b16 %v2336, %v2335
      %v2350 = vpack.c.b16 %v2338, %v2337
      %v2351 = vpack.c.b16 %v2340, %v2339
      %v2352 = vpack.c.b16 %v2342, %v2341
      %v2353 = vpack.c.b16 %v2344, %v2343
      %v2354 = vpack.c.b16 %v2346, %v2345
      %v2371 = vunpack.c.l.b16 %v2089
      %v2372 = vunpack.c.l.b16 %v2090
      %v2373 = vunpack.c.l.b16 %v2091
      %v2374 = vunpack.c.l.b16 %v2092
      %v2375 = vunpack.c.l.b16 %v2093
      %v2376 = vunpack.c.l.b16 %v2094
      %v2377 = vunpack.c.l.b16 %v2095
      %v2378 = vunpack.c.l.b16 %v2096
      %v2379 = vunpack.c.l.b16 %v2097
      %v2380 = vunpack.c.l.b16 %v2098
      %v2381 = vunpack.c.l.b16 %v2099
      %v2382 = vunpack.c.l.b16 %v2100
      %v2383 = vunpack.c.l.b16 %v2101
      %v2384 = vunpack.c.l.b16 %v2102
      %v2385 = vunpack.c.l.b16 %v2103
      %v2386 = vunpack.c.l.b16 %v2104
      %v2387 = vpack.c.b16 %v2372, %v2371
      %v2388 = vpack.c.b16 %v2374, %v2373
      %v2389 = vpack.c.b16 %v2376, %v2375
      %v2390 = vpack.c.b16 %v2378, %v2377
      %v2391 = vpack.c.b16 %v2380, %v2379
      %v2392 = vpack.c.b16 %v2382, %v2381
      %v2393 = vpack.c.b16 %v2384, %v2383
      %v2394 = vpack.c.b16 %v2386, %v2385
      %v2396 = vsel %vm2217, %v2347, 0
      %v2399 = vsel %vm2217, %v2348, 0
      %v2402 = vsel %vm2217, %v2349, 0
      %v2405 = vsel %vm2217, %v2350, 0
      %v2408 = vsel %vm2217, %v2351, 0
      %v2411 = vsel %vm2217, %v2352, 0
      %v2414 = vsel %vm2217, %v2353, 0
      %v2417 = vsel %vm2217, %v2354, 0
      %v2420 = vsel %vm2217, %v2387, 0
      %v2423 = vsel %vm2217, %v2388, 0
      %v2426 = vsel %vm2217, %v2389, 0
      %v2429 = vsel %vm2217, %v2390, 0
      %v2432 = vsel %vm2217, %v2391, 0
      %v2435 = vsel %vm2217, %v2392, 0
      %v2438 = vsel %vm2217, %v2393, 0
      %v2441 = vsel %vm2217, %v2394, 0
      %2443 = vmatpush.bf16.xpose.msra.mxu0 %v2441
      %2444 = vmatpush.bf16.xpose.msra.mxu0 %v2438
      %2445 = vmatpush.bf16.xpose.msra.mxu0 %v2435
      %2446 = vmatpush.bf16.xpose.msra.mxu0 %v2432
      %2447 = vmatpush.bf16.xpose.msra.mxu0 %v2429
      %2448 = vmatpush.bf16.xpose.msra.mxu0 %v2426
      %2449 = vmatpush.bf16.xpose.msra.mxu0 %v2423
      %2450 = vmatpush.bf16.xpose.msra.mxu0 %v2420
      %2451 = vmatmul.bf16.gmra.mxu0 %v2396
      %v2452 = vpop.f32.mrf.mxu0
      %v2453 = vadd.f32 0.0, %v2452
      %v2454 = vpop.f32.mrf.mxu0
      %v2455 = vadd.f32 0.0, %v2454
      %2456 = vmatmul.bf16.gmra.mxu0 %v2399
      %v2457 = vpop.f32.mrf.mxu0
      %v2458 = vadd.f32 0.0, %v2457
      %v2459 = vpop.f32.mrf.mxu0
      %v2460 = vadd.f32 0.0, %v2459
      %2461 = vmatmul.bf16.gmra.mxu0 %v2402
      %v2462 = vpop.f32.mrf.mxu0
      %v2463 = vadd.f32 0.0, %v2462
      %v2464 = vpop.f32.mrf.mxu0
      %v2465 = vadd.f32 0.0, %v2464
      %2466 = vmatmul.bf16.gmra.mxu0 %v2405
      %v2467 = vpop.f32.mrf.mxu0
      %v2468 = vadd.f32 0.0, %v2467
      %v2469 = vpop.f32.mrf.mxu0
      %v2470 = vadd.f32 0.0, %v2469
      %2471 = vmatmul.bf16.gmra.mxu0 %v2408
      %v2472 = vpop.f32.mrf.mxu0
      %v2473 = vadd.f32 0.0, %v2472
      %v2474 = vpop.f32.mrf.mxu0
      %v2475 = vadd.f32 0.0, %v2474
      %2476 = vmatmul.bf16.gmra.mxu0 %v2411
      %v2477 = vpop.f32.mrf.mxu0
      %v2478 = vadd.f32 0.0, %v2477
      %v2479 = vpop.f32.mrf.mxu0
      %v2480 = vadd.f32 0.0, %v2479
      %2481 = vmatmul.bf16.gmra.mxu0 %v2414
      %v2482 = vpop.f32.mrf.mxu0
      %v2483 = vadd.f32 0.0, %v2482
      %v2484 = vpop.f32.mrf.mxu0
      %v2485 = vadd.f32 0.0, %v2484
      %2486 = vmatmul.bf16.gmra.mxu0 %v2417
      %v2487 = vpop.f32.mrf.mxu0
      %v2488 = vadd.f32 0.0, %v2487
      %v2489 = vpop.f32.mrf.mxu0
      %v2490 = vadd.f32 0.0, %v2489
      %2491 = vdwg.mxu0
      %v2492 = vsel %vm2040, 1, 0
      %vm2493 = vcmp.eq.s32.totalorder %v2492, 1
      %v2494 = vsel %vm2493, %v2276, -1e+30
      %v2495 = vsel %vm2493, %v2278, -1e+30
      %v2496 = vsel %vm2493, %v2281, -1e+30
      %v2497 = vsel %vm2493, %v2283, -1e+30
      %v2498 = vsel %vm2493, %v2286, -1e+30
      %v2499 = vsel %vm2493, %v2288, -1e+30
      %v2500 = vsel %vm2493, %v2291, -1e+30
      %v2501 = vsel %vm2493, %v2293, -1e+30
      %v2502 = vsel %vm2493, %v2296, -1e+30
      %v2503 = vsel %vm2493, %v2298, -1e+30
      %v2504 = vsel %vm2493, %v2301, -1e+30
      %v2505 = vsel %vm2493, %v2303, -1e+30
      %v2506 = vsel %vm2493, %v2306, -1e+30
      %v2507 = vsel %vm2493, %v2308, -1e+30
      %v2508 = vsel %vm2493, %v2311, -1e+30
      %v2509 = vsel %vm2493, %v2313, -1e+30
      %v2510 = vsel %vm2493, %v2453, -1e+30
      %v2511 = vsel %vm2493, %v2455, -1e+30
      %v2512 = vsel %vm2493, %v2458, -1e+30
      %v2513 = vsel %vm2493, %v2460, -1e+30
      %v2514 = vsel %vm2493, %v2463, -1e+30
      %v2515 = vsel %vm2493, %v2465, -1e+30
      %v2516 = vsel %vm2493, %v2468, -1e+30
      %v2517 = vsel %vm2493, %v2470, -1e+30
      %v2518 = vsel %vm2493, %v2473, -1e+30
      %v2519 = vsel %vm2493, %v2475, -1e+30
      %v2520 = vsel %vm2493, %v2478, -1e+30
      %v2521 = vsel %vm2493, %v2480, -1e+30
      %v2522 = vsel %vm2493, %v2483, -1e+30
      %v2523 = vsel %vm2493, %v2485, -1e+30
      %v2524 = vsel %vm2493, %v2488, -1e+30
      %v2525 = vsel %vm2493, %v2490, -1e+30
      %2526 = vmax.xlane.f32.xlu0 %v2494
      %v2527 = vpop.xlane.xlu0 %2526
      %2528 = vmax.xlane.f32.xlu0 %v2495
      %v2529 = vpop.xlane.xlu0 %2528
      %2530 = vmax.xlane.f32.xlu0 %v2496
      %v2531 = vpop.xlane.xlu0 %2530
      %2532 = vmax.xlane.f32.xlu0 %v2497
      %v2533 = vpop.xlane.xlu0 %2532
      %2534 = vmax.xlane.f32.xlu0 %v2498
      %v2535 = vpop.xlane.xlu0 %2534
      %2536 = vmax.xlane.f32.xlu0 %v2499
      %v2537 = vpop.xlane.xlu0 %2536
      %2538 = vmax.xlane.f32.xlu0 %v2500
      %v2539 = vpop.xlane.xlu0 %2538
      %2540 = vmax.xlane.f32.xlu0 %v2501
      %v2541 = vpop.xlane.xlu0 %2540
      %2542 = vmax.xlane.f32.xlu0 %v2502
      %v2543 = vpop.xlane.xlu0 %2542
      %2544 = vmax.xlane.f32.xlu0 %v2503
      %v2545 = vpop.xlane.xlu0 %2544
      %2546 = vmax.xlane.f32.xlu0 %v2504
      %v2547 = vpop.xlane.xlu0 %2546
      %2548 = vmax.xlane.f32.xlu0 %v2505
      %v2549 = vpop.xlane.xlu0 %2548
      %2550 = vmax.xlane.f32.xlu0 %v2506
      %v2551 = vpop.xlane.xlu0 %2550
      %2552 = vmax.xlane.f32.xlu0 %v2507
      %v2553 = vpop.xlane.xlu0 %2552
      %2554 = vmax.xlane.f32.xlu0 %v2508
      %v2555 = vpop.xlane.xlu0 %2554
      %2556 = vmax.xlane.f32.xlu0 %v2509
      %v2557 = vpop.xlane.xlu0 %2556
      %2558 = vmax.xlane.f32.xlu0 %v2510
      %v2559 = vpop.xlane.xlu0 %2558
      %2560 = vmax.xlane.f32.xlu0 %v2511
      %v2561 = vpop.xlane.xlu0 %2560
      %2562 = vmax.xlane.f32.xlu0 %v2512
      %v2563 = vpop.xlane.xlu0 %2562
      %2564 = vmax.xlane.f32.xlu0 %v2513
      %v2565 = vpop.xlane.xlu0 %2564
      %2566 = vmax.xlane.f32.xlu0 %v2514
      %v2567 = vpop.xlane.xlu0 %2566
      %2568 = vmax.xlane.f32.xlu0 %v2515
      %v2569 = vpop.xlane.xlu0 %2568
      %2570 = vmax.xlane.f32.xlu0 %v2516
      %v2571 = vpop.xlane.xlu0 %2570
      %2572 = vmax.xlane.f32.xlu0 %v2517
      %v2573 = vpop.xlane.xlu0 %2572
      %2574 = vmax.xlane.f32.xlu0 %v2518
      %v2575 = vpop.xlane.xlu0 %2574
      %2576 = vmax.xlane.f32.xlu0 %v2519
      %v2577 = vpop.xlane.xlu0 %2576
      %2578 = vmax.xlane.f32.xlu0 %v2520
      %v2579 = vpop.xlane.xlu0 %2578
      %2580 = vmax.xlane.f32.xlu0 %v2521
      %v2581 = vpop.xlane.xlu0 %2580
      %2582 = vmax.xlane.f32.xlu0 %v2522
      %v2583 = vpop.xlane.xlu0 %2582
      %2584 = vmax.xlane.f32.xlu0 %v2523
      %v2585 = vpop.xlane.xlu0 %2584
      %2586 = vmax.xlane.f32.xlu0 %v2524
      %v2587 = vpop.xlane.xlu0 %2586
      %2588 = vmax.xlane.f32.xlu0 %v2525
      %v2589 = vpop.xlane.xlu0 %2588
      %v2590 = vsub.f32 %v2494, %v2527
      %v2591 = vsub.f32 %v2495, %v2529
      %v2592 = vsub.f32 %v2496, %v2531
      %v2593 = vsub.f32 %v2497, %v2533
      %v2594 = vsub.f32 %v2498, %v2535
      %v2595 = vsub.f32 %v2499, %v2537
      %v2596 = vsub.f32 %v2500, %v2539
      %v2597 = vsub.f32 %v2501, %v2541
      %v2598 = vsub.f32 %v2502, %v2543
      %v2599 = vsub.f32 %v2503, %v2545
      %v2600 = vsub.f32 %v2504, %v2547
      %v2601 = vsub.f32 %v2505, %v2549
      %v2602 = vsub.f32 %v2506, %v2551
      %v2603 = vsub.f32 %v2507, %v2553
      %v2604 = vsub.f32 %v2508, %v2555
      %v2605 = vsub.f32 %v2509, %v2557
      %v2606 = vsub.f32 %v2510, %v2559
      %v2607 = vsub.f32 %v2511, %v2561
      %v2608 = vsub.f32 %v2512, %v2563
      %v2609 = vsub.f32 %v2513, %v2565
      %v2610 = vsub.f32 %v2514, %v2567
      %v2611 = vsub.f32 %v2515, %v2569
      %v2612 = vsub.f32 %v2516, %v2571
      %v2613 = vsub.f32 %v2517, %v2573
      %v2614 = vsub.f32 %v2518, %v2575
      %v2615 = vsub.f32 %v2519, %v2577
      %v2616 = vsub.f32 %v2520, %v2579
      %v2617 = vsub.f32 %v2521, %v2581
      %v2618 = vsub.f32 %v2522, %v2583
      %v2619 = vsub.f32 %v2523, %v2585
      %v2620 = vsub.f32 %v2524, %v2587
      %v2621 = vsub.f32 %v2525, %v2589
      %v2622 = vmul.f32 %v2590, 1.442695
      %v2623 = vpow.pop %v2622
      %v2624 = vmul.f32 %v2591, 1.442695
      %v2625 = vpow.pop %v2624
      %v2626 = vmul.f32 %v2592, 1.442695
      %v2627 = vpow.pop %v2626
      %v2628 = vmul.f32 %v2593, 1.442695
      %v2629 = vpow.pop %v2628
      %v2630 = vmul.f32 %v2594, 1.442695
      %v2631 = vpow.pop %v2630
      %v2632 = vmul.f32 %v2595, 1.442695
      %v2633 = vpow.pop %v2632
      %v2634 = vmul.f32 %v2596, 1.442695
      %v2635 = vpow.pop %v2634
      %v2636 = vmul.f32 %v2597, 1.442695
      %v2637 = vpow.pop %v2636
      %v2638 = vmul.f32 %v2598, 1.442695
      %v2639 = vpow.pop %v2638
      %v2640 = vmul.f32 %v2599, 1.442695
      %v2641 = vpow.pop %v2640
      %v2642 = vmul.f32 %v2600, 1.442695
      %v2643 = vpow.pop %v2642
      %v2644 = vmul.f32 %v2601, 1.442695
      %v2645 = vpow.pop %v2644
      %v2646 = vmul.f32 %v2602, 1.442695
      %v2647 = vpow.pop %v2646
      %v2648 = vmul.f32 %v2603, 1.442695
      %v2649 = vpow.pop %v2648
      %v2650 = vmul.f32 %v2604, 1.442695
      %v2651 = vpow.pop %v2650
      %v2652 = vmul.f32 %v2605, 1.442695
      %v2653 = vpow.pop %v2652
      %v2654 = vmul.f32 %v2606, 1.442695
      %v2655 = vpow.pop %v2654
      %v2656 = vmul.f32 %v2607, 1.442695
      %v2657 = vpow.pop %v2656
      %v2658 = vmul.f32 %v2608, 1.442695
      %v2659 = vpow.pop %v2658
      %v2660 = vmul.f32 %v2609, 1.442695
      %v2661 = vpow.pop %v2660
      %v2662 = vmul.f32 %v2610, 1.442695
      %v2663 = vpow.pop %v2662
      %v2664 = vmul.f32 %v2611, 1.442695
      %v2665 = vpow.pop %v2664
      %v2666 = vmul.f32 %v2612, 1.442695
      %v2667 = vpow.pop %v2666
      %v2668 = vmul.f32 %v2613, 1.442695
      %v2669 = vpow.pop %v2668
      %v2670 = vmul.f32 %v2614, 1.442695
      %v2671 = vpow.pop %v2670
      %v2672 = vmul.f32 %v2615, 1.442695
      %v2673 = vpow.pop %v2672
      %v2674 = vmul.f32 %v2616, 1.442695
      %v2675 = vpow.pop %v2674
      %v2676 = vmul.f32 %v2617, 1.442695
      %v2677 = vpow.pop %v2676
      %v2678 = vmul.f32 %v2618, 1.442695
      %v2679 = vpow.pop %v2678
      %v2680 = vmul.f32 %v2619, 1.442695
      %v2681 = vpow.pop %v2680
      %v2682 = vmul.f32 %v2620, 1.442695
      %v2683 = vpow.pop %v2682
      %v2684 = vmul.f32 %v2621, 1.442695
      %v2685 = vpow.pop %v2684
      %2686 = vadd.xlane.f32.xlu0 %v2623
      %v2687 = vpop.xlane.xlu0 %2686
      %2688 = vadd.xlane.f32.xlu0 %v2625
      %v2689 = vpop.xlane.xlu0 %2688
      %2690 = vadd.xlane.f32.xlu0 %v2627
      %v2691 = vpop.xlane.xlu0 %2690
      %2692 = vadd.xlane.f32.xlu0 %v2629
      %v2693 = vpop.xlane.xlu0 %2692
      %2694 = vadd.xlane.f32.xlu0 %v2631
      %v2695 = vpop.xlane.xlu0 %2694
      %2696 = vadd.xlane.f32.xlu0 %v2633
      %v2697 = vpop.xlane.xlu0 %2696
      %2698 = vadd.xlane.f32.xlu0 %v2635
      %v2699 = vpop.xlane.xlu0 %2698
      %2700 = vadd.xlane.f32.xlu0 %v2637
      %v2701 = vpop.xlane.xlu0 %2700
      %2702 = vadd.xlane.f32.xlu0 %v2639
      %v2703 = vpop.xlane.xlu0 %2702
      %2704 = vadd.xlane.f32.xlu0 %v2641
      %v2705 = vpop.xlane.xlu0 %2704
      %2706 = vadd.xlane.f32.xlu0 %v2643
      %v2707 = vpop.xlane.xlu0 %2706
      %2708 = vadd.xlane.f32.xlu0 %v2645
      %v2709 = vpop.xlane.xlu0 %2708
      %2710 = vadd.xlane.f32.xlu0 %v2647
      %v2711 = vpop.xlane.xlu0 %2710
      %2712 = vadd.xlane.f32.xlu0 %v2649
      %v2713 = vpop.xlane.xlu0 %2712
      %2714 = vadd.xlane.f32.xlu0 %v2651
      %v2715 = vpop.xlane.xlu0 %2714
      %2716 = vadd.xlane.f32.xlu0 %v2653
      %v2717 = vpop.xlane.xlu0 %2716
      %2718 = vadd.xlane.f32.xlu0 %v2655
      %v2719 = vpop.xlane.xlu0 %2718
      %2720 = vadd.xlane.f32.xlu0 %v2657
      %v2721 = vpop.xlane.xlu0 %2720
      %2722 = vadd.xlane.f32.xlu0 %v2659
      %v2723 = vpop.xlane.xlu0 %2722
      %2724 = vadd.xlane.f32.xlu0 %v2661
      %v2725 = vpop.xlane.xlu0 %2724
      %2726 = vadd.xlane.f32.xlu0 %v2663
      %v2727 = vpop.xlane.xlu0 %2726
      %2728 = vadd.xlane.f32.xlu0 %v2665
      %v2729 = vpop.xlane.xlu0 %2728
      %2730 = vadd.xlane.f32.xlu0 %v2667
      %v2731 = vpop.xlane.xlu0 %2730
      %2732 = vadd.xlane.f32.xlu0 %v2669
      %v2733 = vpop.xlane.xlu0 %2732
      %2734 = vadd.xlane.f32.xlu0 %v2671
      %v2735 = vpop.xlane.xlu0 %2734
      %2736 = vadd.xlane.f32.xlu0 %v2673
      %v2737 = vpop.xlane.xlu0 %2736
      %2738 = vadd.xlane.f32.xlu0 %v2675
      %v2739 = vpop.xlane.xlu0 %2738
      %2740 = vadd.xlane.f32.xlu0 %v2677
      %v2741 = vpop.xlane.xlu0 %2740
      %2742 = vadd.xlane.f32.xlu0 %v2679
      %v2743 = vpop.xlane.xlu0 %2742
      %2744 = vadd.xlane.f32.xlu0 %v2681
      %v2745 = vpop.xlane.xlu0 %2744
      %2746 = vadd.xlane.f32.xlu0 %v2683
      %v2747 = vpop.xlane.xlu0 %2746
      %2748 = vadd.xlane.f32.xlu0 %v2685
      %v2749 = vpop.xlane.xlu0 %2748
      %v2750 = vrcp.pop %v2687
      %v2751 = vrcp.pop %v2689
      %v2752 = vrcp.pop %v2691
      %v2753 = vrcp.pop %v2693
      %v2754 = vrcp.pop %v2695
      %v2755 = vrcp.pop %v2697
      %v2756 = vrcp.pop %v2699
      %v2757 = vrcp.pop %v2701
      %v2758 = vrcp.pop %v2703
      %v2759 = vrcp.pop %v2705
      %v2760 = vrcp.pop %v2707
      %v2761 = vrcp.pop %v2709
      %v2762 = vrcp.pop %v2711
      %v2763 = vrcp.pop %v2713
      %v2764 = vrcp.pop %v2715
      %v2765 = vrcp.pop %v2717
      %v2766 = vrcp.pop %v2719
      %v2767 = vrcp.pop %v2721
      %v2768 = vrcp.pop %v2723
      %v2769 = vrcp.pop %v2725
      %v2770 = vrcp.pop %v2727
      %v2771 = vrcp.pop %v2729
      %v2772 = vrcp.pop %v2731
      %v2773 = vrcp.pop %v2733
      %v2774 = vrcp.pop %v2735
      %v2775 = vrcp.pop %v2737
      %v2776 = vrcp.pop %v2739
      %v2777 = vrcp.pop %v2741
      %v2778 = vrcp.pop %v2743
      %v2779 = vrcp.pop %v2745
      %v2780 = vrcp.pop %v2747
      %v2781 = vrcp.pop %v2749
      %v2782 = vmul.f32 %v2623, %v2750
      %v2783 = vmul.f32 %v2625, %v2751
      %v2784 = vmul.f32 %v2627, %v2752
      %v2785 = vmul.f32 %v2629, %v2753
      %v2786 = vmul.f32 %v2631, %v2754
      %v2787 = vmul.f32 %v2633, %v2755
      %v2788 = vmul.f32 %v2635, %v2756
      %v2789 = vmul.f32 %v2637, %v2757
      %v2790 = vmul.f32 %v2639, %v2758
      %v2791 = vmul.f32 %v2641, %v2759
      %v2792 = vmul.f32 %v2643, %v2760
      %v2793 = vmul.f32 %v2645, %v2761
      %v2794 = vmul.f32 %v2647, %v2762
      %v2795 = vmul.f32 %v2649, %v2763
      %v2796 = vmul.f32 %v2651, %v2764
      %v2797 = vmul.f32 %v2653, %v2765
      %v2798 = vmul.f32 %v2655, %v2766
      %v2799 = vmul.f32 %v2657, %v2767
      %v2800 = vmul.f32 %v2659, %v2768
      %v2801 = vmul.f32 %v2661, %v2769
      %v2802 = vmul.f32 %v2663, %v2770
      %v2803 = vmul.f32 %v2665, %v2771
      %v2804 = vmul.f32 %v2667, %v2772
      %v2805 = vmul.f32 %v2669, %v2773
      %v2806 = vmul.f32 %v2671, %v2774
      %v2807 = vmul.f32 %v2673, %v2775
      %v2808 = vmul.f32 %v2675, %v2776
      %v2809 = vmul.f32 %v2677, %v2777
      %v2810 = vmul.f32 %v2679, %v2778
      %v2811 = vmul.f32 %v2681, %v2779
      %v2812 = vmul.f32 %v2683, %v2780
      %v2813 = vmul.f32 %v2685, %v2781
      %v2814 = vpack.c.bf16 %v2782, %v2782
      %v2815 = vpack.c.bf16 %v2783, %v2783
      %v2816 = vpack.c.bf16 %v2784, %v2784
      %v2817 = vpack.c.bf16 %v2785, %v2785
      %v2818 = vpack.c.bf16 %v2786, %v2786
      %v2819 = vpack.c.bf16 %v2787, %v2787
      %v2820 = vpack.c.bf16 %v2788, %v2788
      %v2821 = vpack.c.bf16 %v2789, %v2789
      %v2822 = vpack.c.bf16 %v2790, %v2790
      %v2823 = vpack.c.bf16 %v2791, %v2791
      %v2824 = vpack.c.bf16 %v2792, %v2792
      %v2825 = vpack.c.bf16 %v2793, %v2793
      %v2826 = vpack.c.bf16 %v2794, %v2794
      %v2827 = vpack.c.bf16 %v2795, %v2795
      %v2828 = vpack.c.bf16 %v2796, %v2796
      %v2829 = vpack.c.bf16 %v2797, %v2797
      %v2830 = vpack.c.bf16 %v2798, %v2798
      %v2831 = vpack.c.bf16 %v2799, %v2799
      %v2832 = vpack.c.bf16 %v2800, %v2800
      %v2833 = vpack.c.bf16 %v2801, %v2801
      %v2834 = vpack.c.bf16 %v2802, %v2802
      %v2835 = vpack.c.bf16 %v2803, %v2803
      %v2836 = vpack.c.bf16 %v2804, %v2804
      %v2837 = vpack.c.bf16 %v2805, %v2805
      %v2838 = vpack.c.bf16 %v2806, %v2806
      %v2839 = vpack.c.bf16 %v2807, %v2807
      %v2840 = vpack.c.bf16 %v2808, %v2808
      %v2841 = vpack.c.bf16 %v2809, %v2809
      %v2842 = vpack.c.bf16 %v2810, %v2810
      %v2843 = vpack.c.bf16 %v2811, %v2811
      %v2844 = vpack.c.bf16 %v2812, %v2812
      %v2845 = vpack.c.bf16 %v2813, %v2813
      %v2862 = vunpack.c.l.b16 %v2814
      %v2863 = vunpack.c.l.b16 %v2815
      %v2864 = vunpack.c.l.b16 %v2816
      %v2865 = vunpack.c.l.b16 %v2817
      %v2866 = vunpack.c.l.b16 %v2818
      %v2867 = vunpack.c.l.b16 %v2819
      %v2868 = vunpack.c.l.b16 %v2820
      %v2869 = vunpack.c.l.b16 %v2821
      %v2870 = vunpack.c.l.b16 %v2822
      %v2871 = vunpack.c.l.b16 %v2823
      %v2872 = vunpack.c.l.b16 %v2824
      %v2873 = vunpack.c.l.b16 %v2825
      %v2874 = vunpack.c.l.b16 %v2826
      %v2875 = vunpack.c.l.b16 %v2827
      %v2876 = vunpack.c.l.b16 %v2828
      %v2877 = vunpack.c.l.b16 %v2829
      %v2878 = vpack.c.b16 %v2863, %v2862
      %v2879 = vpack.c.b16 %v2865, %v2864
      %v2880 = vpack.c.b16 %v2867, %v2866
      %v2881 = vpack.c.b16 %v2869, %v2868
      %v2882 = vpack.c.b16 %v2871, %v2870
      %v2883 = vpack.c.b16 %v2873, %v2872
      %v2884 = vpack.c.b16 %v2875, %v2874
      %v2885 = vpack.c.b16 %v2877, %v2876
      %v2910 = vunpack.c.l.b16 %v2105
      %v2911 = vunpack.c.l.b16 %v2106
      %v2912 = vunpack.c.l.b16 %v2107
      %v2913 = vunpack.c.l.b16 %v2108
      %v2914 = vunpack.c.l.b16 %v2109
      %v2915 = vunpack.c.l.b16 %v2110
      %v2916 = vunpack.c.l.b16 %v2111
      %v2917 = vunpack.c.l.b16 %v2112
      %v2918 = vunpack.c.l.b16 %v2113
      %v2919 = vunpack.c.l.b16 %v2114
      %v2920 = vunpack.c.l.b16 %v2115
      %v2921 = vunpack.c.l.b16 %v2116
      %v2922 = vunpack.c.l.b16 %v2117
      %v2923 = vunpack.c.l.b16 %v2118
      %v2924 = vunpack.c.l.b16 %v2119
      %v2925 = vunpack.c.l.b16 %v2120
      %v2926 = vpack.c.b16 %v2911, %v2910
      %v2927 = vpack.c.b16 %v2913, %v2912
      %v2928 = vpack.c.b16 %v2915, %v2914
      %v2929 = vpack.c.b16 %v2917, %v2916
      %v2930 = vpack.c.b16 %v2919, %v2918
      %v2931 = vpack.c.b16 %v2921, %v2920
      %v2932 = vpack.c.b16 %v2923, %v2922
      %v2933 = vpack.c.b16 %v2925, %v2924
      %2942 = vmatpush.bf16.msra.mxu0 %v2933
      %2943 = vmatpush.bf16.msra.mxu0 %v2932
      %2944 = vmatpush.bf16.msra.mxu0 %v2931
      %2945 = vmatpush.bf16.msra.mxu0 %v2930
      %2946 = vmatpush.bf16.msra.mxu0 %v2929
      %2947 = vmatpush.bf16.msra.mxu0 %v2928
      %2948 = vmatpush.bf16.msra.mxu0 %v2927
      %2949 = vmatpush.bf16.msra.mxu0 %v2926
      %2950 = vmatmul.bf16.gmra.mxu0 %v2878
      %v2951 = vpop.f32.mrf.mxu0
      %v2952 = vadd.f32 0.0, %v2951
      %v2953 = vpop.f32.mrf.mxu0
      %v2954 = vadd.f32 0.0, %v2953
      %2955 = vmatmul.bf16.gmra.mxu0 %v2879
      %v2956 = vpop.f32.mrf.mxu0
      %v2957 = vadd.f32 0.0, %v2956
      %v2958 = vpop.f32.mrf.mxu0
      %v2959 = vadd.f32 0.0, %v2958
      %2960 = vmatmul.bf16.gmra.mxu0 %v2880
      %v2961 = vpop.f32.mrf.mxu0
      %v2962 = vadd.f32 0.0, %v2961
      %v2963 = vpop.f32.mrf.mxu0
      %v2964 = vadd.f32 0.0, %v2963
      %2965 = vmatmul.bf16.gmra.mxu0 %v2881
      %v2966 = vpop.f32.mrf.mxu0
      %v2967 = vadd.f32 0.0, %v2966
      %v2968 = vpop.f32.mrf.mxu0
      %v2969 = vadd.f32 0.0, %v2968
      %2970 = vmatmul.bf16.gmra.mxu0 %v2882
      %v2971 = vpop.f32.mrf.mxu0
      %v2972 = vadd.f32 0.0, %v2971
      %v2973 = vpop.f32.mrf.mxu0
      %v2974 = vadd.f32 0.0, %v2973
      %2975 = vmatmul.bf16.gmra.mxu0 %v2883
      %v2976 = vpop.f32.mrf.mxu0
      %v2977 = vadd.f32 0.0, %v2976
      %v2978 = vpop.f32.mrf.mxu0
      %v2979 = vadd.f32 0.0, %v2978
      %2980 = vmatmul.bf16.gmra.mxu0 %v2884
      %v2981 = vpop.f32.mrf.mxu0
      %v2982 = vadd.f32 0.0, %v2981
      %v2983 = vpop.f32.mrf.mxu0
      %v2984 = vadd.f32 0.0, %v2983
      %2985 = vmatmul.bf16.gmra.mxu0 %v2885
      %v2986 = vpop.f32.mrf.mxu0
      %v2987 = vadd.f32 0.0, %v2986
      %v2988 = vpop.f32.mrf.mxu0
      %v2989 = vadd.f32 0.0, %v2988
      %2990 = vdwg.mxu0
      %v3007 = vunpack.c.l.b16 %v2830
      %v3008 = vunpack.c.l.b16 %v2831
      %v3009 = vunpack.c.l.b16 %v2832
      %v3010 = vunpack.c.l.b16 %v2833
      %v3011 = vunpack.c.l.b16 %v2834
      %v3012 = vunpack.c.l.b16 %v2835
      %v3013 = vunpack.c.l.b16 %v2836
      %v3014 = vunpack.c.l.b16 %v2837
      %v3015 = vunpack.c.l.b16 %v2838
      %v3016 = vunpack.c.l.b16 %v2839
      %v3017 = vunpack.c.l.b16 %v2840
      %v3018 = vunpack.c.l.b16 %v2841
      %v3019 = vunpack.c.l.b16 %v2842
      %v3020 = vunpack.c.l.b16 %v2843
      %v3021 = vunpack.c.l.b16 %v2844
      %v3022 = vunpack.c.l.b16 %v2845
      %v3023 = vpack.c.b16 %v3008, %v3007
      %v3024 = vpack.c.b16 %v3010, %v3009
      %v3025 = vpack.c.b16 %v3012, %v3011
      %v3026 = vpack.c.b16 %v3014, %v3013
      %v3027 = vpack.c.b16 %v3016, %v3015
      %v3028 = vpack.c.b16 %v3018, %v3017
      %v3029 = vpack.c.b16 %v3020, %v3019
      %v3030 = vpack.c.b16 %v3022, %v3021
      %v3055 = vunpack.c.l.b16 %v2121
      %v3056 = vunpack.c.l.b16 %v2122
      %v3057 = vunpack.c.l.b16 %v2123
      %v3058 = vunpack.c.l.b16 %v2124
      %v3059 = vunpack.c.l.b16 %v2125
      %v3060 = vunpack.c.l.b16 %v2126
      %v3061 = vunpack.c.l.b16 %v2127
      %v3062 = vunpack.c.l.b16 %v2128
      %v3063 = vunpack.c.l.b16 %v2129
      %v3064 = vunpack.c.l.b16 %v2130
      %v3065 = vunpack.c.l.b16 %v2131
      %v3066 = vunpack.c.l.b16 %v2132
      %v3067 = vunpack.c.l.b16 %v2133
      %v3068 = vunpack.c.l.b16 %v2134
      %v3069 = vunpack.c.l.b16 %v2135
      %v3070 = vunpack.c.l.b16 %v2136
      %v3071 = vpack.c.b16 %v3056, %v3055
      %v3072 = vpack.c.b16 %v3058, %v3057
      %v3073 = vpack.c.b16 %v3060, %v3059
      %v3074 = vpack.c.b16 %v3062, %v3061
      %v3075 = vpack.c.b16 %v3064, %v3063
      %v3076 = vpack.c.b16 %v3066, %v3065
      %v3077 = vpack.c.b16 %v3068, %v3067
      %v3078 = vpack.c.b16 %v3070, %v3069
      %3087 = vmatpush.bf16.msra.mxu0 %v3078
      %3088 = vmatpush.bf16.msra.mxu0 %v3077
      %3089 = vmatpush.bf16.msra.mxu0 %v3076
      %3090 = vmatpush.bf16.msra.mxu0 %v3075
      %3091 = vmatpush.bf16.msra.mxu0 %v3074
      %3092 = vmatpush.bf16.msra.mxu0 %v3073
      %3093 = vmatpush.bf16.msra.mxu0 %v3072
      %3094 = vmatpush.bf16.msra.mxu0 %v3071
      %3095 = vmatmul.bf16.gmra.mxu0 %v3023
      %v3096 = vpop.f32.mrf.mxu0
      %v3097 = vadd.f32 0.0, %v3096
      %v3098 = vpop.f32.mrf.mxu0
      %v3099 = vadd.f32 0.0, %v3098
      %3100 = vmatmul.bf16.gmra.mxu0 %v3024
      %v3101 = vpop.f32.mrf.mxu0
      %v3102 = vadd.f32 0.0, %v3101
      %v3103 = vpop.f32.mrf.mxu0
      %v3104 = vadd.f32 0.0, %v3103
      %3105 = vmatmul.bf16.gmra.mxu0 %v3025
      %v3106 = vpop.f32.mrf.mxu0
      %v3107 = vadd.f32 0.0, %v3106
      %v3108 = vpop.f32.mrf.mxu0
      %v3109 = vadd.f32 0.0, %v3108
      %3110 = vmatmul.bf16.gmra.mxu0 %v3026
      %v3111 = vpop.f32.mrf.mxu0
      %v3112 = vadd.f32 0.0, %v3111
      %v3113 = vpop.f32.mrf.mxu0
      %v3114 = vadd.f32 0.0, %v3113
      %3115 = vmatmul.bf16.gmra.mxu0 %v3027
      %v3116 = vpop.f32.mrf.mxu0
      %v3117 = vadd.f32 0.0, %v3116
      %v3118 = vpop.f32.mrf.mxu0
      %v3119 = vadd.f32 0.0, %v3118
      %3120 = vmatmul.bf16.gmra.mxu0 %v3028
      %v3121 = vpop.f32.mrf.mxu0
      %v3122 = vadd.f32 0.0, %v3121
      %v3123 = vpop.f32.mrf.mxu0
      %v3124 = vadd.f32 0.0, %v3123
      %3125 = vmatmul.bf16.gmra.mxu0 %v3029
      %v3126 = vpop.f32.mrf.mxu0
      %v3127 = vadd.f32 0.0, %v3126
      %v3128 = vpop.f32.mrf.mxu0
      %v3129 = vadd.f32 0.0, %v3128
      %3130 = vmatmul.bf16.gmra.mxu0 %v3030
      %v3131 = vpop.f32.mrf.mxu0
      %v3132 = vadd.f32 0.0, %v3131
      %v3133 = vpop.f32.mrf.mxu0
      %v3134 = vadd.f32 0.0, %v3133
      %3135 = vdwg.mxu0
      %3136 = vrot.lane.b32.xlu0 %v2169, 96
      %v3137 = vpop.permute.xlu0 %3136
      %3138 = vrot.lane.b32.xlu0 %v2170, 96
      %v3139 = vpop.permute.xlu0 %3138
      %3140 = vrot.lane.b32.xlu0 %v2171, 96
      %v3141 = vpop.permute.xlu0 %3140
      %3142 = vrot.lane.b32.xlu0 %v2172, 96
      %v3143 = vpop.permute.xlu0 %3142
      %3144 = vrot.lane.b32.xlu0 %v2173, 96
      %v3145 = vpop.permute.xlu0 %3144
      %3146 = vrot.lane.b32.xlu0 %v2174, 96
      %v3147 = vpop.permute.xlu0 %3146
      %3148 = vrot.lane.b32.xlu0 %v2175, 96
      %v3149 = vpop.permute.xlu0 %3148
      %3150 = vrot.lane.b32.xlu0 %v2176, 96
      %v3151 = vpop.permute.xlu0 %3150
      %3152 = vrot.lane.b32.xlu0 %v2209, 96
      %v3153 = vpop.permute.xlu0 %3152
      %3154 = vrot.lane.b32.xlu0 %v2210, 96
      %v3155 = vpop.permute.xlu0 %3154
      %3156 = vrot.lane.b32.xlu0 %v2211, 96
      %v3157 = vpop.permute.xlu0 %3156
      %3158 = vrot.lane.b32.xlu0 %v2212, 96
      %v3159 = vpop.permute.xlu0 %3158
      %3160 = vrot.lane.b32.xlu0 %v2213, 96
      %v3161 = vpop.permute.xlu0 %3160
      %3162 = vrot.lane.b32.xlu0 %v2214, 96
      %v3163 = vpop.permute.xlu0 %3162
      %3164 = vrot.lane.b32.xlu0 %v2215, 96
      %v3165 = vpop.permute.xlu0 %3164
      %3166 = vrot.lane.b32.xlu0 %v2216, 96
      %v3167 = vpop.permute.xlu0 %3166
      %v3169 = vsel %vm2217, %v3137, 0
      %v3172 = vsel %vm2217, %v3139, 0
      %v3175 = vsel %vm2217, %v3141, 0
      %v3178 = vsel %vm2217, %v3143, 0
      %v3181 = vsel %vm2217, %v3145, 0
      %v3184 = vsel %vm2217, %v3147, 0
      %v3187 = vsel %vm2217, %v3149, 0
      %v3190 = vsel %vm2217, %v3151, 0
      %v3193 = vsel %vm2217, %v3153, 0
      %v3196 = vsel %vm2217, %v3155, 0
      %v3199 = vsel %vm2217, %v3157, 0
      %v3202 = vsel %vm2217, %v3159, 0
      %v3205 = vsel %vm2217, %v3161, 0
      %v3208 = vsel %vm2217, %v3163, 0
      %v3211 = vsel %vm2217, %v3165, 0
      %v3214 = vsel %vm2217, %v3167, 0
      %3216 = vmatpush.bf16.xpose.msra.mxu0 %v3214
      %3217 = vmatpush.bf16.xpose.msra.mxu0 %v3211
      %3218 = vmatpush.bf16.xpose.msra.mxu0 %v3208
      %3219 = vmatpush.bf16.xpose.msra.mxu0 %v3205
      %3220 = vmatpush.bf16.xpose.msra.mxu0 %v3202
      %3221 = vmatpush.bf16.xpose.msra.mxu0 %v3199
      %3222 = vmatpush.bf16.xpose.msra.mxu0 %v3196
      %3223 = vmatpush.bf16.xpose.msra.mxu0 %v3193
      %3224 = vmatmul.bf16.gmra.mxu0 %v3169
      %v3225 = vpop.f32.mrf.mxu0
      %v3226 = vadd.f32 0.0, %v3225
      %v3227 = vpop.f32.mrf.mxu0
      %v3228 = vadd.f32 0.0, %v3227
      %3229 = vmatmul.bf16.gmra.mxu0 %v3172
      %v3230 = vpop.f32.mrf.mxu0
      %v3231 = vadd.f32 0.0, %v3230
      %v3232 = vpop.f32.mrf.mxu0
      %v3233 = vadd.f32 0.0, %v3232
      %3234 = vmatmul.bf16.gmra.mxu0 %v3175
      %v3235 = vpop.f32.mrf.mxu0
      %v3236 = vadd.f32 0.0, %v3235
      %v3237 = vpop.f32.mrf.mxu0
      %v3238 = vadd.f32 0.0, %v3237
      %3239 = vmatmul.bf16.gmra.mxu0 %v3178
      %v3240 = vpop.f32.mrf.mxu0
      %v3241 = vadd.f32 0.0, %v3240
      %v3242 = vpop.f32.mrf.mxu0
      %v3243 = vadd.f32 0.0, %v3242
      %3244 = vmatmul.bf16.gmra.mxu0 %v3181
      %v3245 = vpop.f32.mrf.mxu0
      %v3246 = vadd.f32 0.0, %v3245
      %v3247 = vpop.f32.mrf.mxu0
      %v3248 = vadd.f32 0.0, %v3247
      %3249 = vmatmul.bf16.gmra.mxu0 %v3184
      %v3250 = vpop.f32.mrf.mxu0
      %v3251 = vadd.f32 0.0, %v3250
      %v3252 = vpop.f32.mrf.mxu0
      %v3253 = vadd.f32 0.0, %v3252
      %3254 = vmatmul.bf16.gmra.mxu0 %v3187
      %v3255 = vpop.f32.mrf.mxu0
      %v3256 = vadd.f32 0.0, %v3255
      %v3257 = vpop.f32.mrf.mxu0
      %v3258 = vadd.f32 0.0, %v3257
      %3259 = vmatmul.bf16.gmra.mxu0 %v3190
      %v3260 = vpop.f32.mrf.mxu0
      %v3261 = vadd.f32 0.0, %v3260
      %v3262 = vpop.f32.mrf.mxu0
      %v3263 = vadd.f32 0.0, %v3262
      %3264 = vdwg.mxu0
      %3265 = vrot.lane.b32.xlu0 %v2347, 96
      %v3266 = vpop.permute.xlu0 %3265
      %3267 = vrot.lane.b32.xlu0 %v2348, 96
      %v3268 = vpop.permute.xlu0 %3267
      %3269 = vrot.lane.b32.xlu0 %v2349, 96
      %v3270 = vpop.permute.xlu0 %3269
      %3271 = vrot.lane.b32.xlu0 %v2350, 96
      %v3272 = vpop.permute.xlu0 %3271
      %3273 = vrot.lane.b32.xlu0 %v2351, 96
      %v3274 = vpop.permute.xlu0 %3273
      %3275 = vrot.lane.b32.xlu0 %v2352, 96
      %v3276 = vpop.permute.xlu0 %3275
      %3277 = vrot.lane.b32.xlu0 %v2353, 96
      %v3278 = vpop.permute.xlu0 %3277
      %3279 = vrot.lane.b32.xlu0 %v2354, 96
      %v3280 = vpop.permute.xlu0 %3279
      %3281 = vrot.lane.b32.xlu0 %v2387, 96
      %v3282 = vpop.permute.xlu0 %3281
      %3283 = vrot.lane.b32.xlu0 %v2388, 96
      %v3284 = vpop.permute.xlu0 %3283
      %3285 = vrot.lane.b32.xlu0 %v2389, 96
      %v3286 = vpop.permute.xlu0 %3285
      %3287 = vrot.lane.b32.xlu0 %v2390, 96
      %v3288 = vpop.permute.xlu0 %3287
      %3289 = vrot.lane.b32.xlu0 %v2391, 96
      %v3290 = vpop.permute.xlu0 %3289
      %3291 = vrot.lane.b32.xlu0 %v2392, 96
      %v3292 = vpop.permute.xlu0 %3291
      %3293 = vrot.lane.b32.xlu0 %v2393, 96
      %v3294 = vpop.permute.xlu0 %3293
      %3295 = vrot.lane.b32.xlu0 %v2394, 96
      %v3296 = vpop.permute.xlu0 %3295
      %v3298 = vsel %vm2217, %v3266, 0
      %v3301 = vsel %vm2217, %v3268, 0
      %v3304 = vsel %vm2217, %v3270, 0
      %v3307 = vsel %vm2217, %v3272, 0
      %v3310 = vsel %vm2217, %v3274, 0
      %v3313 = vsel %vm2217, %v3276, 0
      %v3316 = vsel %vm2217, %v3278, 0
      %v3319 = vsel %vm2217, %v3280, 0
      %v3322 = vsel %vm2217, %v3282, 0
      %v3325 = vsel %vm2217, %v3284, 0
      %v3328 = vsel %vm2217, %v3286, 0
      %v3331 = vsel %vm2217, %v3288, 0
      %v3334 = vsel %vm2217, %v3290, 0
      %v3337 = vsel %vm2217, %v3292, 0
      %v3340 = vsel %vm2217, %v3294, 0
      %v3343 = vsel %vm2217, %v3296, 0
      %3345 = vmatpush.bf16.xpose.msra.mxu0 %v3343
      %3346 = vmatpush.bf16.xpose.msra.mxu0 %v3340
      %3347 = vmatpush.bf16.xpose.msra.mxu0 %v3337
      %3348 = vmatpush.bf16.xpose.msra.mxu0 %v3334
      %3349 = vmatpush.bf16.xpose.msra.mxu0 %v3331
      %3350 = vmatpush.bf16.xpose.msra.mxu0 %v3328
      %3351 = vmatpush.bf16.xpose.msra.mxu0 %v3325
      %3352 = vmatpush.bf16.xpose.msra.mxu0 %v3322
      %3353 = vmatmul.bf16.gmra.mxu0 %v3298
      %v3354 = vpop.f32.mrf.mxu0
      %v3355 = vadd.f32 0.0, %v3354
      %v3356 = vpop.f32.mrf.mxu0
      %v3357 = vadd.f32 0.0, %v3356
      %3358 = vmatmul.bf16.gmra.mxu0 %v3301
      %v3359 = vpop.f32.mrf.mxu0
      %v3360 = vadd.f32 0.0, %v3359
      %v3361 = vpop.f32.mrf.mxu0
      %v3362 = vadd.f32 0.0, %v3361
      %3363 = vmatmul.bf16.gmra.mxu0 %v3304
      %v3364 = vpop.f32.mrf.mxu0
      %v3365 = vadd.f32 0.0, %v3364
      %v3366 = vpop.f32.mrf.mxu0
      %v3367 = vadd.f32 0.0, %v3366
      %3368 = vmatmul.bf16.gmra.mxu0 %v3307
      %v3369 = vpop.f32.mrf.mxu0
      %v3370 = vadd.f32 0.0, %v3369
      %v3371 = vpop.f32.mrf.mxu0
      %v3372 = vadd.f32 0.0, %v3371
      %3373 = vmatmul.bf16.gmra.mxu0 %v3310
      %v3374 = vpop.f32.mrf.mxu0
      %v3375 = vadd.f32 0.0, %v3374
      %v3376 = vpop.f32.mrf.mxu0
      %v3377 = vadd.f32 0.0, %v3376
      %3378 = vmatmul.bf16.gmra.mxu0 %v3313
      %v3379 = vpop.f32.mrf.mxu0
      %v3380 = vadd.f32 0.0, %v3379
      %v3381 = vpop.f32.mrf.mxu0
      %v3382 = vadd.f32 0.0, %v3381
      %3383 = vmatmul.bf16.gmra.mxu0 %v3316
      %v3384 = vpop.f32.mrf.mxu0
      %v3385 = vadd.f32 0.0, %v3384
      %v3386 = vpop.f32.mrf.mxu0
      %v3387 = vadd.f32 0.0, %v3386
      %3388 = vmatmul.bf16.gmra.mxu0 %v3319
      %v3389 = vpop.f32.mrf.mxu0
      %v3390 = vadd.f32 0.0, %v3389
      %v3391 = vpop.f32.mrf.mxu0
      %v3392 = vadd.f32 0.0, %v3391
      %3393 = vdwg.mxu0
      %v3394 = vsel %vm2493, %v3226, -1e+30
      %v3395 = vsel %vm2493, %v3228, -1e+30
      %v3396 = vsel %vm2493, %v3231, -1e+30
      %v3397 = vsel %vm2493, %v3233, -1e+30
      %v3398 = vsel %vm2493, %v3236, -1e+30
      %v3399 = vsel %vm2493, %v3238, -1e+30
      %v3400 = vsel %vm2493, %v3241, -1e+30
      %v3401 = vsel %vm2493, %v3243, -1e+30
      %v3402 = vsel %vm2493, %v3246, -1e+30
      %v3403 = vsel %vm2493, %v3248, -1e+30
      %v3404 = vsel %vm2493, %v3251, -1e+30
      %v3405 = vsel %vm2493, %v3253, -1e+30
      %v3406 = vsel %vm2493, %v3256, -1e+30
      %v3407 = vsel %vm2493, %v3258, -1e+30
      %v3408 = vsel %vm2493, %v3261, -1e+30
      %v3409 = vsel %vm2493, %v3263, -1e+30
      %v3410 = vsel %vm2493, %v3355, -1e+30
      %v3411 = vsel %vm2493, %v3357, -1e+30
      %v3412 = vsel %vm2493, %v3360, -1e+30
      %v3413 = vsel %vm2493, %v3362, -1e+30
      %v3414 = vsel %vm2493, %v3365, -1e+30
      %v3415 = vsel %vm2493, %v3367, -1e+30
      %v3416 = vsel %vm2493, %v3370, -1e+30
      %v3417 = vsel %vm2493, %v3372, -1e+30
      %v3418 = vsel %vm2493, %v3375, -1e+30
      %v3419 = vsel %vm2493, %v3377, -1e+30
      %v3420 = vsel %vm2493, %v3380, -1e+30
      %v3421 = vsel %vm2493, %v3382, -1e+30
      %v3422 = vsel %vm2493, %v3385, -1e+30
      %v3423 = vsel %vm2493, %v3387, -1e+30
      %v3424 = vsel %vm2493, %v3390, -1e+30
      %v3425 = vsel %vm2493, %v3392, -1e+30
      %3426 = vmax.xlane.f32.xlu0 %v3394
      %v3427 = vpop.xlane.xlu0 %3426
      %3428 = vmax.xlane.f32.xlu0 %v3395
      %v3429 = vpop.xlane.xlu0 %3428
      %3430 = vmax.xlane.f32.xlu0 %v3396
      %v3431 = vpop.xlane.xlu0 %3430
      %3432 = vmax.xlane.f32.xlu0 %v3397
      %v3433 = vpop.xlane.xlu0 %3432
      %3434 = vmax.xlane.f32.xlu0 %v3398
      %v3435 = vpop.xlane.xlu0 %3434
      %3436 = vmax.xlane.f32.xlu0 %v3399
      %v3437 = vpop.xlane.xlu0 %3436
      %3438 = vmax.xlane.f32.xlu0 %v3400
      %v3439 = vpop.xlane.xlu0 %3438
      %3440 = vmax.xlane.f32.xlu0 %v3401
      %v3441 = vpop.xlane.xlu0 %3440
      %3442 = vmax.xlane.f32.xlu0 %v3402
      %v3443 = vpop.xlane.xlu0 %3442
      %3444 = vmax.xlane.f32.xlu0 %v3403
      %v3445 = vpop.xlane.xlu0 %3444
      %3446 = vmax.xlane.f32.xlu0 %v3404
      %v3447 = vpop.xlane.xlu0 %3446
      %3448 = vmax.xlane.f32.xlu0 %v3405
      %v3449 = vpop.xlane.xlu0 %3448
      %3450 = vmax.xlane.f32.xlu0 %v3406
      %v3451 = vpop.xlane.xlu0 %3450
      %3452 = vmax.xlane.f32.xlu0 %v3407
      %v3453 = vpop.xlane.xlu0 %3452
      %3454 = vmax.xlane.f32.xlu0 %v3408
      %v3455 = vpop.xlane.xlu0 %3454
      %3456 = vmax.xlane.f32.xlu0 %v3409
      %v3457 = vpop.xlane.xlu0 %3456
      %3458 = vmax.xlane.f32.xlu0 %v3410
      %v3459 = vpop.xlane.xlu0 %3458
      %3460 = vmax.xlane.f32.xlu0 %v3411
      %v3461 = vpop.xlane.xlu0 %3460
      %3462 = vmax.xlane.f32.xlu0 %v3412
      %v3463 = vpop.xlane.xlu0 %3462
      %3464 = vmax.xlane.f32.xlu0 %v3413
      %v3465 = vpop.xlane.xlu0 %3464
      %3466 = vmax.xlane.f32.xlu0 %v3414
      %v3467 = vpop.xlane.xlu0 %3466
      %3468 = vmax.xlane.f32.xlu0 %v3415
      %v3469 = vpop.xlane.xlu0 %3468
      %3470 = vmax.xlane.f32.xlu0 %v3416
      %v3471 = vpop.xlane.xlu0 %3470
      %3472 = vmax.xlane.f32.xlu0 %v3417
      %v3473 = vpop.xlane.xlu0 %3472
      %3474 = vmax.xlane.f32.xlu0 %v3418
      %v3475 = vpop.xlane.xlu0 %3474
      %3476 = vmax.xlane.f32.xlu0 %v3419
      %v3477 = vpop.xlane.xlu0 %3476
      %3478 = vmax.xlane.f32.xlu0 %v3420
      %v3479 = vpop.xlane.xlu0 %3478
      %3480 = vmax.xlane.f32.xlu0 %v3421
      %v3481 = vpop.xlane.xlu0 %3480
      %3482 = vmax.xlane.f32.xlu0 %v3422
      %v3483 = vpop.xlane.xlu0 %3482
      %3484 = vmax.xlane.f32.xlu0 %v3423
      %v3485 = vpop.xlane.xlu0 %3484
      %3486 = vmax.xlane.f32.xlu0 %v3424
      %v3487 = vpop.xlane.xlu0 %3486
      %3488 = vmax.xlane.f32.xlu0 %v3425
      %v3489 = vpop.xlane.xlu0 %3488
      %v3490 = vsub.f32 %v3394, %v3427
      %v3491 = vsub.f32 %v3395, %v3429
      %v3492 = vsub.f32 %v3396, %v3431
      %v3493 = vsub.f32 %v3397, %v3433
      %v3494 = vsub.f32 %v3398, %v3435
      %v3495 = vsub.f32 %v3399, %v3437
      %v3496 = vsub.f32 %v3400, %v3439
      %v3497 = vsub.f32 %v3401, %v3441
      %v3498 = vsub.f32 %v3402, %v3443
      %v3499 = vsub.f32 %v3403, %v3445
      %v3500 = vsub.f32 %v3404, %v3447
      %v3501 = vsub.f32 %v3405, %v3449
      %v3502 = vsub.f32 %v3406, %v3451
      %v3503 = vsub.f32 %v3407, %v3453
      %v3504 = vsub.f32 %v3408, %v3455
      %v3505 = vsub.f32 %v3409, %v3457
      %v3506 = vsub.f32 %v3410, %v3459
      %v3507 = vsub.f32 %v3411, %v3461
      %v3508 = vsub.f32 %v3412, %v3463
      %v3509 = vsub.f32 %v3413, %v3465
      %v3510 = vsub.f32 %v3414, %v3467
      %v3511 = vsub.f32 %v3415, %v3469
      %v3512 = vsub.f32 %v3416, %v3471
      %v3513 = vsub.f32 %v3417, %v3473
      %v3514 = vsub.f32 %v3418, %v3475
      %v3515 = vsub.f32 %v3419, %v3477
      %v3516 = vsub.f32 %v3420, %v3479
      %v3517 = vsub.f32 %v3421, %v3481
      %v3518 = vsub.f32 %v3422, %v3483
      %v3519 = vsub.f32 %v3423, %v3485
      %v3520 = vsub.f32 %v3424, %v3487
      %v3521 = vsub.f32 %v3425, %v3489
      %v3522 = vmul.f32 %v3490, 1.442695
      %v3523 = vpow.pop %v3522
      %v3524 = vmul.f32 %v3491, 1.442695
      %v3525 = vpow.pop %v3524
      %v3526 = vmul.f32 %v3492, 1.442695
      %v3527 = vpow.pop %v3526
      %v3528 = vmul.f32 %v3493, 1.442695
      %v3529 = vpow.pop %v3528
      %v3530 = vmul.f32 %v3494, 1.442695
      %v3531 = vpow.pop %v3530
      %v3532 = vmul.f32 %v3495, 1.442695
      %v3533 = vpow.pop %v3532
      %v3534 = vmul.f32 %v3496, 1.442695
      %v3535 = vpow.pop %v3534
      %v3536 = vmul.f32 %v3497, 1.442695
      %v3537 = vpow.pop %v3536
      %v3538 = vmul.f32 %v3498, 1.442695
      %v3539 = vpow.pop %v3538
      %v3540 = vmul.f32 %v3499, 1.442695
      %v3541 = vpow.pop %v3540
      %v3542 = vmul.f32 %v3500, 1.442695
      %v3543 = vpow.pop %v3542
      %v3544 = vmul.f32 %v3501, 1.442695
      %v3545 = vpow.pop %v3544
      %v3546 = vmul.f32 %v3502, 1.442695
      %v3547 = vpow.pop %v3546
      %v3548 = vmul.f32 %v3503, 1.442695
      %v3549 = vpow.pop %v3548
      %v3550 = vmul.f32 %v3504, 1.442695
      %v3551 = vpow.pop %v3550
      %v3552 = vmul.f32 %v3505, 1.442695
      %v3553 = vpow.pop %v3552
      %v3554 = vmul.f32 %v3506, 1.442695
      %v3555 = vpow.pop %v3554
      %v3556 = vmul.f32 %v3507, 1.442695
      %v3557 = vpow.pop %v3556
      %v3558 = vmul.f32 %v3508, 1.442695
      %v3559 = vpow.pop %v3558
      %v3560 = vmul.f32 %v3509, 1.442695
      %v3561 = vpow.pop %v3560
      %v3562 = vmul.f32 %v3510, 1.442695
      %v3563 = vpow.pop %v3562
      %v3564 = vmul.f32 %v3511, 1.442695
      %v3565 = vpow.pop %v3564
      %v3566 = vmul.f32 %v3512, 1.442695
      %v3567 = vpow.pop %v3566
      %v3568 = vmul.f32 %v3513, 1.442695
      %v3569 = vpow.pop %v3568
      %v3570 = vmul.f32 %v3514, 1.442695
      %v3571 = vpow.pop %v3570
      %v3572 = vmul.f32 %v3515, 1.442695
      %v3573 = vpow.pop %v3572
      %v3574 = vmul.f32 %v3516, 1.442695
      %v3575 = vpow.pop %v3574
      %v3576 = vmul.f32 %v3517, 1.442695
      %v3577 = vpow.pop %v3576
      %v3578 = vmul.f32 %v3518, 1.442695
      %v3579 = vpow.pop %v3578
      %v3580 = vmul.f32 %v3519, 1.442695
      %v3581 = vpow.pop %v3580
      %v3582 = vmul.f32 %v3520, 1.442695
      %v3583 = vpow.pop %v3582
      %v3584 = vmul.f32 %v3521, 1.442695
      %v3585 = vpow.pop %v3584
      %3586 = vadd.xlane.f32.xlu0 %v3523
      %v3587 = vpop.xlane.xlu0 %3586
      %3588 = vadd.xlane.f32.xlu0 %v3525
      %v3589 = vpop.xlane.xlu0 %3588
      %3590 = vadd.xlane.f32.xlu0 %v3527
      %v3591 = vpop.xlane.xlu0 %3590
      %3592 = vadd.xlane.f32.xlu0 %v3529
      %v3593 = vpop.xlane.xlu0 %3592
      %3594 = vadd.xlane.f32.xlu0 %v3531
      %v3595 = vpop.xlane.xlu0 %3594
      %3596 = vadd.xlane.f32.xlu0 %v3533
      %v3597 = vpop.xlane.xlu0 %3596
      %3598 = vadd.xlane.f32.xlu0 %v3535
      %v3599 = vpop.xlane.xlu0 %3598
      %3600 = vadd.xlane.f32.xlu0 %v3537
      %v3601 = vpop.xlane.xlu0 %3600
      %3602 = vadd.xlane.f32.xlu0 %v3539
      %v3603 = vpop.xlane.xlu0 %3602
      %3604 = vadd.xlane.f32.xlu0 %v3541
      %v3605 = vpop.xlane.xlu0 %3604
      %3606 = vadd.xlane.f32.xlu0 %v3543
      %v3607 = vpop.xlane.xlu0 %3606
      %3608 = vadd.xlane.f32.xlu0 %v3545
      %v3609 = vpop.xlane.xlu0 %3608
      %3610 = vadd.xlane.f32.xlu0 %v3547
      %v3611 = vpop.xlane.xlu0 %3610
      %3612 = vadd.xlane.f32.xlu0 %v3549
      %v3613 = vpop.xlane.xlu0 %3612
      %3614 = vadd.xlane.f32.xlu0 %v3551
      %v3615 = vpop.xlane.xlu0 %3614
      %3616 = vadd.xlane.f32.xlu0 %v3553
      %v3617 = vpop.xlane.xlu0 %3616
      %3618 = vadd.xlane.f32.xlu0 %v3555
      %v3619 = vpop.xlane.xlu0 %3618
      %3620 = vadd.xlane.f32.xlu0 %v3557
      %v3621 = vpop.xlane.xlu0 %3620
      %3622 = vadd.xlane.f32.xlu0 %v3559
      %v3623 = vpop.xlane.xlu0 %3622
      %3624 = vadd.xlane.f32.xlu0 %v3561
      %v3625 = vpop.xlane.xlu0 %3624
      %3626 = vadd.xlane.f32.xlu0 %v3563
      %v3627 = vpop.xlane.xlu0 %3626
      %3628 = vadd.xlane.f32.xlu0 %v3565
      %v3629 = vpop.xlane.xlu0 %3628
      %3630 = vadd.xlane.f32.xlu0 %v3567
      %v3631 = vpop.xlane.xlu0 %3630
      %3632 = vadd.xlane.f32.xlu0 %v3569
      %v3633 = vpop.xlane.xlu0 %3632
      %3634 = vadd.xlane.f32.xlu0 %v3571
      %v3635 = vpop.xlane.xlu0 %3634
      %3636 = vadd.xlane.f32.xlu0 %v3573
      %v3637 = vpop.xlane.xlu0 %3636
      %3638 = vadd.xlane.f32.xlu0 %v3575
      %v3639 = vpop.xlane.xlu0 %3638
      %3640 = vadd.xlane.f32.xlu0 %v3577
      %v3641 = vpop.xlane.xlu0 %3640
      %3642 = vadd.xlane.f32.xlu0 %v3579
      %v3643 = vpop.xlane.xlu0 %3642
      %3644 = vadd.xlane.f32.xlu0 %v3581
      %v3645 = vpop.xlane.xlu0 %3644
      %3646 = vadd.xlane.f32.xlu0 %v3583
      %v3647 = vpop.xlane.xlu0 %3646
      %3648 = vadd.xlane.f32.xlu0 %v3585
      %v3649 = vpop.xlane.xlu0 %3648
      %v3650 = vrcp.pop %v3587
      %v3651 = vrcp.pop %v3589
      %v3652 = vrcp.pop %v3591
      %v3653 = vrcp.pop %v3593
      %v3654 = vrcp.pop %v3595
      %v3655 = vrcp.pop %v3597
      %v3656 = vrcp.pop %v3599
      %v3657 = vrcp.pop %v3601
      %v3658 = vrcp.pop %v3603
      %v3659 = vrcp.pop %v3605
      %v3660 = vrcp.pop %v3607
      %v3661 = vrcp.pop %v3609
      %v3662 = vrcp.pop %v3611
      %v3663 = vrcp.pop %v3613
      %v3664 = vrcp.pop %v3615
      %v3665 = vrcp.pop %v3617
      %v3666 = vrcp.pop %v3619
      %v3667 = vrcp.pop %v3621
      %v3668 = vrcp.pop %v3623
      %v3669 = vrcp.pop %v3625
      %v3670 = vrcp.pop %v3627
      %v3671 = vrcp.pop %v3629
      %v3672 = vrcp.pop %v3631
      %v3673 = vrcp.pop %v3633
      %v3674 = vrcp.pop %v3635
      %v3675 = vrcp.pop %v3637
      %v3676 = vrcp.pop %v3639
      %v3677 = vrcp.pop %v3641
      %v3678 = vrcp.pop %v3643
      %v3679 = vrcp.pop %v3645
      %v3680 = vrcp.pop %v3647
      %v3681 = vrcp.pop %v3649
      %v3682 = vmul.f32 %v3523, %v3650
      %v3683 = vmul.f32 %v3525, %v3651
      %v3684 = vmul.f32 %v3527, %v3652
      %v3685 = vmul.f32 %v3529, %v3653
      %v3686 = vmul.f32 %v3531, %v3654
      %v3687 = vmul.f32 %v3533, %v3655
      %v3688 = vmul.f32 %v3535, %v3656
      %v3689 = vmul.f32 %v3537, %v3657
      %v3690 = vmul.f32 %v3539, %v3658
      %v3691 = vmul.f32 %v3541, %v3659
      %v3692 = vmul.f32 %v3543, %v3660
      %v3693 = vmul.f32 %v3545, %v3661
      %v3694 = vmul.f32 %v3547, %v3662
      %v3695 = vmul.f32 %v3549, %v3663
      %v3696 = vmul.f32 %v3551, %v3664
      %v3697 = vmul.f32 %v3553, %v3665
      %v3698 = vmul.f32 %v3555, %v3666
      %v3699 = vmul.f32 %v3557, %v3667
      %v3700 = vmul.f32 %v3559, %v3668
      %v3701 = vmul.f32 %v3561, %v3669
      %v3702 = vmul.f32 %v3563, %v3670
      %v3703 = vmul.f32 %v3565, %v3671
      %v3704 = vmul.f32 %v3567, %v3672
      %v3705 = vmul.f32 %v3569, %v3673
      %v3706 = vmul.f32 %v3571, %v3674
      %v3707 = vmul.f32 %v3573, %v3675
      %v3708 = vmul.f32 %v3575, %v3676
      %v3709 = vmul.f32 %v3577, %v3677
      %v3710 = vmul.f32 %v3579, %v3678
      %v3711 = vmul.f32 %v3581, %v3679
      %v3712 = vmul.f32 %v3583, %v3680
      %v3713 = vmul.f32 %v3585, %v3681
      %v3714 = vpack.c.bf16 %v3682, %v3682
      %v3715 = vpack.c.bf16 %v3683, %v3683
      %v3716 = vpack.c.bf16 %v3684, %v3684
      %v3717 = vpack.c.bf16 %v3685, %v3685
      %v3718 = vpack.c.bf16 %v3686, %v3686
      %v3719 = vpack.c.bf16 %v3687, %v3687
      %v3720 = vpack.c.bf16 %v3688, %v3688
      %v3721 = vpack.c.bf16 %v3689, %v3689
      %v3722 = vpack.c.bf16 %v3690, %v3690
      %v3723 = vpack.c.bf16 %v3691, %v3691
      %v3724 = vpack.c.bf16 %v3692, %v3692
      %v3725 = vpack.c.bf16 %v3693, %v3693
      %v3726 = vpack.c.bf16 %v3694, %v3694
      %v3727 = vpack.c.bf16 %v3695, %v3695
      %v3728 = vpack.c.bf16 %v3696, %v3696
      %v3729 = vpack.c.bf16 %v3697, %v3697
      %v3730 = vpack.c.bf16 %v3698, %v3698
      %v3731 = vpack.c.bf16 %v3699, %v3699
      %v3732 = vpack.c.bf16 %v3700, %v3700
      %v3733 = vpack.c.bf16 %v3701, %v3701
      %v3734 = vpack.c.bf16 %v3702, %v3702
      %v3735 = vpack.c.bf16 %v3703, %v3703
      %v3736 = vpack.c.bf16 %v3704, %v3704
      %v3737 = vpack.c.bf16 %v3705, %v3705
      %v3738 = vpack.c.bf16 %v3706, %v3706
      %v3739 = vpack.c.bf16 %v3707, %v3707
      %v3740 = vpack.c.bf16 %v3708, %v3708
      %v3741 = vpack.c.bf16 %v3709, %v3709
      %v3742 = vpack.c.bf16 %v3710, %v3710
      %v3743 = vpack.c.bf16 %v3711, %v3711
      %v3744 = vpack.c.bf16 %v3712, %v3712
      %v3745 = vpack.c.bf16 %v3713, %v3713
      %v3762 = vunpack.c.l.b16 %v3714
      %v3763 = vunpack.c.l.b16 %v3715
      %v3764 = vunpack.c.l.b16 %v3716
      %v3765 = vunpack.c.l.b16 %v3717
      %v3766 = vunpack.c.l.b16 %v3718
      %v3767 = vunpack.c.l.b16 %v3719
      %v3768 = vunpack.c.l.b16 %v3720
      %v3769 = vunpack.c.l.b16 %v3721
      %v3770 = vunpack.c.l.b16 %v3722
      %v3771 = vunpack.c.l.b16 %v3723
      %v3772 = vunpack.c.l.b16 %v3724
      %v3773 = vunpack.c.l.b16 %v3725
      %v3774 = vunpack.c.l.b16 %v3726
      %v3775 = vunpack.c.l.b16 %v3727
      %v3776 = vunpack.c.l.b16 %v3728
      %v3777 = vunpack.c.l.b16 %v3729
      %v3778 = vpack.c.b16 %v3763, %v3762
      %v3779 = vpack.c.b16 %v3765, %v3764
      %v3780 = vpack.c.b16 %v3767, %v3766
      %v3781 = vpack.c.b16 %v3769, %v3768
      %v3782 = vpack.c.b16 %v3771, %v3770
      %v3783 = vpack.c.b16 %v3773, %v3772
      %v3784 = vpack.c.b16 %v3775, %v3774
      %v3785 = vpack.c.b16 %v3777, %v3776
      %3794 = vrot.lane.b32.xlu0 %v2926, 96
      %v3795 = vpop.permute.xlu0 %3794
      %3796 = vrot.lane.b32.xlu0 %v2927, 96
      %v3797 = vpop.permute.xlu0 %3796
      %3798 = vrot.lane.b32.xlu0 %v2928, 96
      %v3799 = vpop.permute.xlu0 %3798
      %3800 = vrot.lane.b32.xlu0 %v2929, 96
      %v3801 = vpop.permute.xlu0 %3800
      %3802 = vrot.lane.b32.xlu0 %v2930, 96
      %v3803 = vpop.permute.xlu0 %3802
      %3804 = vrot.lane.b32.xlu0 %v2931, 96
      %v3805 = vpop.permute.xlu0 %3804
      %3806 = vrot.lane.b32.xlu0 %v2932, 96
      %v3807 = vpop.permute.xlu0 %3806
      %3808 = vrot.lane.b32.xlu0 %v2933, 96
      %v3809 = vpop.permute.xlu0 %3808
      %3818 = vmatpush.bf16.msra.mxu0 %v3809
      %3819 = vmatpush.bf16.msra.mxu0 %v3807
      %3820 = vmatpush.bf16.msra.mxu0 %v3805
      %3821 = vmatpush.bf16.msra.mxu0 %v3803
      %3822 = vmatpush.bf16.msra.mxu0 %v3801
      %3823 = vmatpush.bf16.msra.mxu0 %v3799
      %3824 = vmatpush.bf16.msra.mxu0 %v3797
      %3825 = vmatpush.bf16.msra.mxu0 %v3795
      %3826 = vmatmul.bf16.gmra.mxu0 %v3778
      %v3827 = vpop.f32.mrf.mxu0
      %v3828 = vadd.f32 0.0, %v3827
      %v3829 = vpop.f32.mrf.mxu0
      %v3830 = vadd.f32 0.0, %v3829
      %3831 = vmatmul.bf16.gmra.mxu0 %v3779
      %v3832 = vpop.f32.mrf.mxu0
      %v3833 = vadd.f32 0.0, %v3832
      %v3834 = vpop.f32.mrf.mxu0
      %v3835 = vadd.f32 0.0, %v3834
      %3836 = vmatmul.bf16.gmra.mxu0 %v3780
      %v3837 = vpop.f32.mrf.mxu0
      %v3838 = vadd.f32 0.0, %v3837
      %v3839 = vpop.f32.mrf.mxu0
      %v3840 = vadd.f32 0.0, %v3839
      %3841 = vmatmul.bf16.gmra.mxu0 %v3781
      %v3842 = vpop.f32.mrf.mxu0
      %v3843 = vadd.f32 0.0, %v3842
      %v3844 = vpop.f32.mrf.mxu0
      %v3845 = vadd.f32 0.0, %v3844
      %3846 = vmatmul.bf16.gmra.mxu0 %v3782
      %v3847 = vpop.f32.mrf.mxu0
      %v3848 = vadd.f32 0.0, %v3847
      %v3849 = vpop.f32.mrf.mxu0
      %v3850 = vadd.f32 0.0, %v3849
      %3851 = vmatmul.bf16.gmra.mxu0 %v3783
      %v3852 = vpop.f32.mrf.mxu0
      %v3853 = vadd.f32 0.0, %v3852
      %v3854 = vpop.f32.mrf.mxu0
      %v3855 = vadd.f32 0.0, %v3854
      %3856 = vmatmul.bf16.gmra.mxu0 %v3784
      %v3857 = vpop.f32.mrf.mxu0
      %v3858 = vadd.f32 0.0, %v3857
      %v3859 = vpop.f32.mrf.mxu0
      %v3860 = vadd.f32 0.0, %v3859
      %3861 = vmatmul.bf16.gmra.mxu0 %v3785
      %v3862 = vpop.f32.mrf.mxu0
      %v3863 = vadd.f32 0.0, %v3862
      %v3864 = vpop.f32.mrf.mxu0
      %v3865 = vadd.f32 0.0, %v3864
      %3866 = vdwg.mxu0
      %v3883 = vunpack.c.l.b16 %v3730
      %v3884 = vunpack.c.l.b16 %v3731
      %v3885 = vunpack.c.l.b16 %v3732
      %v3886 = vunpack.c.l.b16 %v3733
      %v3887 = vunpack.c.l.b16 %v3734
      %v3888 = vunpack.c.l.b16 %v3735
      %v3889 = vunpack.c.l.b16 %v3736
      %v3890 = vunpack.c.l.b16 %v3737
      %v3891 = vunpack.c.l.b16 %v3738
      %v3892 = vunpack.c.l.b16 %v3739
      %v3893 = vunpack.c.l.b16 %v3740
      %v3894 = vunpack.c.l.b16 %v3741
      %v3895 = vunpack.c.l.b16 %v3742
      %v3896 = vunpack.c.l.b16 %v3743
      %v3897 = vunpack.c.l.b16 %v3744
      %v3898 = vunpack.c.l.b16 %v3745
      %v3899 = vpack.c.b16 %v3884, %v3883
      %v3900 = vpack.c.b16 %v3886, %v3885
      %v3901 = vpack.c.b16 %v3888, %v3887
      %v3902 = vpack.c.b16 %v3890, %v3889
      %v3903 = vpack.c.b16 %v3892, %v3891
      %v3904 = vpack.c.b16 %v3894, %v3893
      %v3905 = vpack.c.b16 %v3896, %v3895
      %v3906 = vpack.c.b16 %v3898, %v3897
      %3915 = vrot.lane.b32.xlu0 %v3071, 96
      %v3916 = vpop.permute.xlu0 %3915
      %3917 = vrot.lane.b32.xlu0 %v3072, 96
      %v3918 = vpop.permute.xlu0 %3917
      %3919 = vrot.lane.b32.xlu0 %v3073, 96
      %v3920 = vpop.permute.xlu0 %3919
      %3921 = vrot.lane.b32.xlu0 %v3074, 96
      %v3922 = vpop.permute.xlu0 %3921
      %3923 = vrot.lane.b32.xlu0 %v3075, 96
      %v3924 = vpop.permute.xlu0 %3923
      %3925 = vrot.lane.b32.xlu0 %v3076, 96
      %v3926 = vpop.permute.xlu0 %3925
      %3927 = vrot.lane.b32.xlu0 %v3077, 96
      %v3928 = vpop.permute.xlu0 %3927
      %3929 = vrot.lane.b32.xlu0 %v3078, 96
      %v3930 = vpop.permute.xlu0 %3929
      %3939 = vmatpush.bf16.msra.mxu0 %v3930
      %3940 = vmatpush.bf16.msra.mxu0 %v3928
      %3941 = vmatpush.bf16.msra.mxu0 %v3926
      %3942 = vmatpush.bf16.msra.mxu0 %v3924
      %3943 = vmatpush.bf16.msra.mxu0 %v3922
      %3944 = vmatpush.bf16.msra.mxu0 %v3920
      %3945 = vmatpush.bf16.msra.mxu0 %v3918
      %3946 = vmatpush.bf16.msra.mxu0 %v3916
      %3947 = vmatmul.bf16.gmra.mxu0 %v3899
      %v3948 = vpop.f32.mrf.mxu0
      %v3949 = vadd.f32 0.0, %v3948
      %v3950 = vpop.f32.mrf.mxu0
      %v3951 = vadd.f32 0.0, %v3950
      %3952 = vmatmul.bf16.gmra.mxu0 %v3900
      %v3953 = vpop.f32.mrf.mxu0
      %v3954 = vadd.f32 0.0, %v3953
      %v3955 = vpop.f32.mrf.mxu0
      %v3956 = vadd.f32 0.0, %v3955
      %3957 = vmatmul.bf16.gmra.mxu0 %v3901
      %v3958 = vpop.f32.mrf.mxu0
      %v3959 = vadd.f32 0.0, %v3958
      %v3960 = vpop.f32.mrf.mxu0
      %v3961 = vadd.f32 0.0, %v3960
      %3962 = vmatmul.bf16.gmra.mxu0 %v3902
      %v3963 = vpop.f32.mrf.mxu0
      %v3964 = vadd.f32 0.0, %v3963
      %v3965 = vpop.f32.mrf.mxu0
      %v3966 = vadd.f32 0.0, %v3965
      %3967 = vmatmul.bf16.gmra.mxu0 %v3903
      %v3968 = vpop.f32.mrf.mxu0
      %v3969 = vadd.f32 0.0, %v3968
      %v3970 = vpop.f32.mrf.mxu0
      %v3971 = vadd.f32 0.0, %v3970
      %3972 = vmatmul.bf16.gmra.mxu0 %v3904
      %v3973 = vpop.f32.mrf.mxu0
      %v3974 = vadd.f32 0.0, %v3973
      %v3975 = vpop.f32.mrf.mxu0
      %v3976 = vadd.f32 0.0, %v3975
      %3977 = vmatmul.bf16.gmra.mxu0 %v3905
      %v3978 = vpop.f32.mrf.mxu0
      %v3979 = vadd.f32 0.0, %v3978
      %v3980 = vpop.f32.mrf.mxu0
      %v3981 = vadd.f32 0.0, %v3980
      %3982 = vmatmul.bf16.gmra.mxu0 %v3906
      %v3983 = vpop.f32.mrf.mxu0
      %v3984 = vadd.f32 0.0, %v3983
      %v3985 = vpop.f32.mrf.mxu0
      %v3986 = vadd.f32 0.0, %v3985
      %3987 = vdwg.mxu0
      %3988 = vrot.lane.b32.xlu0 %v2169, 64
      %v3989 = vpop.permute.xlu0 %3988
      %3990 = vrot.lane.b32.xlu0 %v2170, 64
      %v3991 = vpop.permute.xlu0 %3990
      %3992 = vrot.lane.b32.xlu0 %v2171, 64
      %v3993 = vpop.permute.xlu0 %3992
      %3994 = vrot.lane.b32.xlu0 %v2172, 64
      %v3995 = vpop.permute.xlu0 %3994
      %3996 = vrot.lane.b32.xlu0 %v2173, 64
      %v3997 = vpop.permute.xlu0 %3996
      %3998 = vrot.lane.b32.xlu0 %v2174, 64
      %v3999 = vpop.permute.xlu0 %3998
      %4000 = vrot.lane.b32.xlu0 %v2175, 64
      %v4001 = vpop.permute.xlu0 %4000
      %4002 = vrot.lane.b32.xlu0 %v2176, 64
      %v4003 = vpop.permute.xlu0 %4002
      %4004 = vrot.lane.b32.xlu0 %v2209, 64
      %v4005 = vpop.permute.xlu0 %4004
      %4006 = vrot.lane.b32.xlu0 %v2210, 64
      %v4007 = vpop.permute.xlu0 %4006
      %4008 = vrot.lane.b32.xlu0 %v2211, 64
      %v4009 = vpop.permute.xlu0 %4008
      %4010 = vrot.lane.b32.xlu0 %v2212, 64
      %v4011 = vpop.permute.xlu0 %4010
      %4012 = vrot.lane.b32.xlu0 %v2213, 64
      %v4013 = vpop.permute.xlu0 %4012
      %4014 = vrot.lane.b32.xlu0 %v2214, 64
      %v4015 = vpop.permute.xlu0 %4014
      %4016 = vrot.lane.b32.xlu0 %v2215, 64
      %v4017 = vpop.permute.xlu0 %4016
      %4018 = vrot.lane.b32.xlu0 %v2216, 64
      %v4019 = vpop.permute.xlu0 %4018
      %v4021 = vsel %vm2217, %v3989, 0
      %v4024 = vsel %vm2217, %v3991, 0
      %v4027 = vsel %vm2217, %v3993, 0
      %v4030 = vsel %vm2217, %v3995, 0
      %v4033 = vsel %vm2217, %v3997, 0
      %v4036 = vsel %vm2217, %v3999, 0
      %v4039 = vsel %vm2217, %v4001, 0
      %v4042 = vsel %vm2217, %v4003, 0
      %v4045 = vsel %vm2217, %v4005, 0
      %v4048 = vsel %vm2217, %v4007, 0
      %v4051 = vsel %vm2217, %v4009, 0
      %v4054 = vsel %vm2217, %v4011, 0
      %v4057 = vsel %vm2217, %v4013, 0
      %v4060 = vsel %vm2217, %v4015, 0
      %v4063 = vsel %vm2217, %v4017, 0
      %v4066 = vsel %vm2217, %v4019, 0
      %4068 = vmatpush.bf16.xpose.msra.mxu0 %v4066
      %4069 = vmatpush.bf16.xpose.msra.mxu0 %v4063
      %4070 = vmatpush.bf16.xpose.msra.mxu0 %v4060
      %4071 = vmatpush.bf16.xpose.msra.mxu0 %v4057
      %4072 = vmatpush.bf16.xpose.msra.mxu0 %v4054
      %4073 = vmatpush.bf16.xpose.msra.mxu0 %v4051
      %4074 = vmatpush.bf16.xpose.msra.mxu0 %v4048
      %4075 = vmatpush.bf16.xpose.msra.mxu0 %v4045
      %4076 = vmatmul.bf16.gmra.mxu0 %v4021
      %v4077 = vpop.f32.mrf.mxu0
      %v4078 = vadd.f32 0.0, %v4077
      %v4079 = vpop.f32.mrf.mxu0
      %v4080 = vadd.f32 0.0, %v4079
      %4081 = vmatmul.bf16.gmra.mxu0 %v4024
      %v4082 = vpop.f32.mrf.mxu0
      %v4083 = vadd.f32 0.0, %v4082
      %v4084 = vpop.f32.mrf.mxu0
      %v4085 = vadd.f32 0.0, %v4084
      %4086 = vmatmul.bf16.gmra.mxu0 %v4027
      %v4087 = vpop.f32.mrf.mxu0
      %v4088 = vadd.f32 0.0, %v4087
      %v4089 = vpop.f32.mrf.mxu0
      %v4090 = vadd.f32 0.0, %v4089
      %4091 = vmatmul.bf16.gmra.mxu0 %v4030
      %v4092 = vpop.f32.mrf.mxu0
      %v4093 = vadd.f32 0.0, %v4092
      %v4094 = vpop.f32.mrf.mxu0
      %v4095 = vadd.f32 0.0, %v4094
      %4096 = vmatmul.bf16.gmra.mxu0 %v4033
      %v4097 = vpop.f32.mrf.mxu0
      %v4098 = vadd.f32 0.0, %v4097
      %v4099 = vpop.f32.mrf.mxu0
      %v4100 = vadd.f32 0.0, %v4099
      %4101 = vmatmul.bf16.gmra.mxu0 %v4036
      %v4102 = vpop.f32.mrf.mxu0
      %v4103 = vadd.f32 0.0, %v4102
      %v4104 = vpop.f32.mrf.mxu0
      %v4105 = vadd.f32 0.0, %v4104
      %4106 = vmatmul.bf16.gmra.mxu0 %v4039
      %v4107 = vpop.f32.mrf.mxu0
      %v4108 = vadd.f32 0.0, %v4107
      %v4109 = vpop.f32.mrf.mxu0
      %v4110 = vadd.f32 0.0, %v4109
      %4111 = vmatmul.bf16.gmra.mxu0 %v4042
      %v4112 = vpop.f32.mrf.mxu0
      %v4113 = vadd.f32 0.0, %v4112
      %v4114 = vpop.f32.mrf.mxu0
      %v4115 = vadd.f32 0.0, %v4114
      %4116 = vdwg.mxu0
      %4117 = vrot.lane.b32.xlu0 %v2347, 64
      %v4118 = vpop.permute.xlu0 %4117
      %4119 = vrot.lane.b32.xlu0 %v2348, 64
      %v4120 = vpop.permute.xlu0 %4119
      %4121 = vrot.lane.b32.xlu0 %v2349, 64
      %v4122 = vpop.permute.xlu0 %4121
      %4123 = vrot.lane.b32.xlu0 %v2350, 64
      %v4124 = vpop.permute.xlu0 %4123
      %4125 = vrot.lane.b32.xlu0 %v2351, 64
      %v4126 = vpop.permute.xlu0 %4125
      %4127 = vrot.lane.b32.xlu0 %v2352, 64
      %v4128 = vpop.permute.xlu0 %4127
      %4129 = vrot.lane.b32.xlu0 %v2353, 64
      %v4130 = vpop.permute.xlu0 %4129
      %4131 = vrot.lane.b32.xlu0 %v2354, 64
      %v4132 = vpop.permute.xlu0 %4131
      %4133 = vrot.lane.b32.xlu0 %v2387, 64
      %v4134 = vpop.permute.xlu0 %4133
      %4135 = vrot.lane.b32.xlu0 %v2388, 64
      %v4136 = vpop.permute.xlu0 %4135
      %4137 = vrot.lane.b32.xlu0 %v2389, 64
      %v4138 = vpop.permute.xlu0 %4137
      %4139 = vrot.lane.b32.xlu0 %v2390, 64
      %v4140 = vpop.permute.xlu0 %4139
      %4141 = vrot.lane.b32.xlu0 %v2391, 64
      %v4142 = vpop.permute.xlu0 %4141
      %4143 = vrot.lane.b32.xlu0 %v2392, 64
      %v4144 = vpop.permute.xlu0 %4143
      %4145 = vrot.lane.b32.xlu0 %v2393, 64
      %v4146 = vpop.permute.xlu0 %4145
      %4147 = vrot.lane.b32.xlu0 %v2394, 64
      %v4148 = vpop.permute.xlu0 %4147
      %v4150 = vsel %vm2217, %v4118, 0
      %v4153 = vsel %vm2217, %v4120, 0
      %v4156 = vsel %vm2217, %v4122, 0
      %v4159 = vsel %vm2217, %v4124, 0
      %v4162 = vsel %vm2217, %v4126, 0
      %v4165 = vsel %vm2217, %v4128, 0
      %v4168 = vsel %vm2217, %v4130, 0
      %v4171 = vsel %vm2217, %v4132, 0
      %v4174 = vsel %vm2217, %v4134, 0
      %v4177 = vsel %vm2217, %v4136, 0
      %v4180 = vsel %vm2217, %v4138, 0
      %v4183 = vsel %vm2217, %v4140, 0
      %v4186 = vsel %vm2217, %v4142, 0
      %v4189 = vsel %vm2217, %v4144, 0
      %v4192 = vsel %vm2217, %v4146, 0
      %v4195 = vsel %vm2217, %v4148, 0
      %4197 = vmatpush.bf16.xpose.msra.mxu0 %v4195
      %4198 = vmatpush.bf16.xpose.msra.mxu0 %v4192
      %4199 = vmatpush.bf16.xpose.msra.mxu0 %v4189
      %4200 = vmatpush.bf16.xpose.msra.mxu0 %v4186
      %4201 = vmatpush.bf16.xpose.msra.mxu0 %v4183
      %4202 = vmatpush.bf16.xpose.msra.mxu0 %v4180
      %4203 = vmatpush.bf16.xpose.msra.mxu0 %v4177
      %4204 = vmatpush.bf16.xpose.msra.mxu0 %v4174
      %4205 = vmatmul.bf16.gmra.mxu0 %v4150
      %v4206 = vpop.f32.mrf.mxu0
      %v4207 = vadd.f32 0.0, %v4206
      %v4208 = vpop.f32.mrf.mxu0
      %v4209 = vadd.f32 0.0, %v4208
      %4210 = vmatmul.bf16.gmra.mxu0 %v4153
      %v4211 = vpop.f32.mrf.mxu0
      %v4212 = vadd.f32 0.0, %v4211
      %v4213 = vpop.f32.mrf.mxu0
      %v4214 = vadd.f32 0.0, %v4213
      %4215 = vmatmul.bf16.gmra.mxu0 %v4156
      %v4216 = vpop.f32.mrf.mxu0
      %v4217 = vadd.f32 0.0, %v4216
      %v4218 = vpop.f32.mrf.mxu0
      %v4219 = vadd.f32 0.0, %v4218
      %4220 = vmatmul.bf16.gmra.mxu0 %v4159
      %v4221 = vpop.f32.mrf.mxu0
      %v4222 = vadd.f32 0.0, %v4221
      %v4223 = vpop.f32.mrf.mxu0
      %v4224 = vadd.f32 0.0, %v4223
      %4225 = vmatmul.bf16.gmra.mxu0 %v4162
      %v4226 = vpop.f32.mrf.mxu0
      %v4227 = vadd.f32 0.0, %v4226
      %v4228 = vpop.f32.mrf.mxu0
      %v4229 = vadd.f32 0.0, %v4228
      %4230 = vmatmul.bf16.gmra.mxu0 %v4165
      %v4231 = vpop.f32.mrf.mxu0
      %v4232 = vadd.f32 0.0, %v4231
      %v4233 = vpop.f32.mrf.mxu0
      %v4234 = vadd.f32 0.0, %v4233
      %4235 = vmatmul.bf16.gmra.mxu0 %v4168
      %v4236 = vpop.f32.mrf.mxu0
      %v4237 = vadd.f32 0.0, %v4236
      %v4238 = vpop.f32.mrf.mxu0
      %v4239 = vadd.f32 0.0, %v4238
      %4240 = vmatmul.bf16.gmra.mxu0 %v4171
      %v4241 = vpop.f32.mrf.mxu0
      %v4242 = vadd.f32 0.0, %v4241
      %v4243 = vpop.f32.mrf.mxu0
      %v4244 = vadd.f32 0.0, %v4243
      %4245 = vdwg.mxu0
      %v4246 = vsel %vm2493, %v4078, -1e+30
      %v4247 = vsel %vm2493, %v4080, -1e+30
      %v4248 = vsel %vm2493, %v4083, -1e+30
      %v4249 = vsel %vm2493, %v4085, -1e+30
      %v4250 = vsel %vm2493, %v4088, -1e+30
      %v4251 = vsel %vm2493, %v4090, -1e+30
      %v4252 = vsel %vm2493, %v4093, -1e+30
      %v4253 = vsel %vm2493, %v4095, -1e+30
      %v4254 = vsel %vm2493, %v4098, -1e+30
      %v4255 = vsel %vm2493, %v4100, -1e+30
      %v4256 = vsel %vm2493, %v4103, -1e+30
      %v4257 = vsel %vm2493, %v4105, -1e+30
      %v4258 = vsel %vm2493, %v4108, -1e+30
      %v4259 = vsel %vm2493, %v4110, -1e+30
      %v4260 = vsel %vm2493, %v4113, -1e+30
      %v4261 = vsel %vm2493, %v4115, -1e+30
      %v4262 = vsel %vm2493, %v4207, -1e+30
      %v4263 = vsel %vm2493, %v4209, -1e+30
      %v4264 = vsel %vm2493, %v4212, -1e+30
      %v4265 = vsel %vm2493, %v4214, -1e+30
      %v4266 = vsel %vm2493, %v4217, -1e+30
      %v4267 = vsel %vm2493, %v4219, -1e+30
      %v4268 = vsel %vm2493, %v4222, -1e+30
      %v4269 = vsel %vm2493, %v4224, -1e+30
      %v4270 = vsel %vm2493, %v4227, -1e+30
      %v4271 = vsel %vm2493, %v4229, -1e+30
      %v4272 = vsel %vm2493, %v4232, -1e+30
      %v4273 = vsel %vm2493, %v4234, -1e+30
      %v4274 = vsel %vm2493, %v4237, -1e+30
      %v4275 = vsel %vm2493, %v4239, -1e+30
      %v4276 = vsel %vm2493, %v4242, -1e+30
      %v4277 = vsel %vm2493, %v4244, -1e+30
      %4278 = vmax.xlane.f32.xlu0 %v4246
      %v4279 = vpop.xlane.xlu0 %4278
      %4280 = vmax.xlane.f32.xlu0 %v4247
      %v4281 = vpop.xlane.xlu0 %4280
      %4282 = vmax.xlane.f32.xlu0 %v4248
      %v4283 = vpop.xlane.xlu0 %4282
      %4284 = vmax.xlane.f32.xlu0 %v4249
      %v4285 = vpop.xlane.xlu0 %4284
      %4286 = vmax.xlane.f32.xlu0 %v4250
      %v4287 = vpop.xlane.xlu0 %4286
      %4288 = vmax.xlane.f32.xlu0 %v4251
      %v4289 = vpop.xlane.xlu0 %4288
      %4290 = vmax.xlane.f32.xlu0 %v4252
      %v4291 = vpop.xlane.xlu0 %4290
      %4292 = vmax.xlane.f32.xlu0 %v4253
      %v4293 = vpop.xlane.xlu0 %4292
      %4294 = vmax.xlane.f32.xlu0 %v4254
      %v4295 = vpop.xlane.xlu0 %4294
      %4296 = vmax.xlane.f32.xlu0 %v4255
      %v4297 = vpop.xlane.xlu0 %4296
      %4298 = vmax.xlane.f32.xlu0 %v4256
      %v4299 = vpop.xlane.xlu0 %4298
      %4300 = vmax.xlane.f32.xlu0 %v4257
      %v4301 = vpop.xlane.xlu0 %4300
      %4302 = vmax.xlane.f32.xlu0 %v4258
      %v4303 = vpop.xlane.xlu0 %4302
      %4304 = vmax.xlane.f32.xlu0 %v4259
      %v4305 = vpop.xlane.xlu0 %4304
      %4306 = vmax.xlane.f32.xlu0 %v4260
      %v4307 = vpop.xlane.xlu0 %4306
      %4308 = vmax.xlane.f32.xlu0 %v4261
      %v4309 = vpop.xlane.xlu0 %4308
      %4310 = vmax.xlane.f32.xlu0 %v4262
      %v4311 = vpop.xlane.xlu0 %4310
      %4312 = vmax.xlane.f32.xlu0 %v4263
      %v4313 = vpop.xlane.xlu0 %4312
      %4314 = vmax.xlane.f32.xlu0 %v4264
      %v4315 = vpop.xlane.xlu0 %4314
      %4316 = vmax.xlane.f32.xlu0 %v4265
      %v4317 = vpop.xlane.xlu0 %4316
      %4318 = vmax.xlane.f32.xlu0 %v4266
      %v4319 = vpop.xlane.xlu0 %4318
      %4320 = vmax.xlane.f32.xlu0 %v4267
      %v4321 = vpop.xlane.xlu0 %4320
      %4322 = vmax.xlane.f32.xlu0 %v4268
      %v4323 = vpop.xlane.xlu0 %4322
      %4324 = vmax.xlane.f32.xlu0 %v4269
      %v4325 = vpop.xlane.xlu0 %4324
      %4326 = vmax.xlane.f32.xlu0 %v4270
      %v4327 = vpop.xlane.xlu0 %4326
      %4328 = vmax.xlane.f32.xlu0 %v4271
      %v4329 = vpop.xlane.xlu0 %4328
      %4330 = vmax.xlane.f32.xlu0 %v4272
      %v4331 = vpop.xlane.xlu0 %4330
      %4332 = vmax.xlane.f32.xlu0 %v4273
      %v4333 = vpop.xlane.xlu0 %4332
      %4334 = vmax.xlane.f32.xlu0 %v4274
      %v4335 = vpop.xlane.xlu0 %4334
      %4336 = vmax.xlane.f32.xlu0 %v4275
      %v4337 = vpop.xlane.xlu0 %4336
      %4338 = vmax.xlane.f32.xlu0 %v4276
      %v4339 = vpop.xlane.xlu0 %4338
      %4340 = vmax.xlane.f32.xlu0 %v4277
      %v4341 = vpop.xlane.xlu0 %4340
      %v4342 = vsub.f32 %v4246, %v4279
      %v4343 = vsub.f32 %v4247, %v4281
      %v4344 = vsub.f32 %v4248, %v4283
      %v4345 = vsub.f32 %v4249, %v4285
      %v4346 = vsub.f32 %v4250, %v4287
      %v4347 = vsub.f32 %v4251, %v4289
      %v4348 = vsub.f32 %v4252, %v4291
      %v4349 = vsub.f32 %v4253, %v4293
      %v4350 = vsub.f32 %v4254, %v4295
      %v4351 = vsub.f32 %v4255, %v4297
      %v4352 = vsub.f32 %v4256, %v4299
      %v4353 = vsub.f32 %v4257, %v4301
      %v4354 = vsub.f32 %v4258, %v4303
      %v4355 = vsub.f32 %v4259, %v4305
      %v4356 = vsub.f32 %v4260, %v4307
      %v4357 = vsub.f32 %v4261, %v4309
      %v4358 = vsub.f32 %v4262, %v4311
      %v4359 = vsub.f32 %v4263, %v4313
      %v4360 = vsub.f32 %v4264, %v4315
      %v4361 = vsub.f32 %v4265, %v4317
      %v4362 = vsub.f32 %v4266, %v4319
      %v4363 = vsub.f32 %v4267, %v4321
      %v4364 = vsub.f32 %v4268, %v4323
      %v4365 = vsub.f32 %v4269, %v4325
      %v4366 = vsub.f32 %v4270, %v4327
      %v4367 = vsub.f32 %v4271, %v4329
      %v4368 = vsub.f32 %v4272, %v4331
      %v4369 = vsub.f32 %v4273, %v4333
      %v4370 = vsub.f32 %v4274, %v4335
      %v4371 = vsub.f32 %v4275, %v4337
      %v4372 = vsub.f32 %v4276, %v4339
      %v4373 = vsub.f32 %v4277, %v4341
      %v4374 = vmul.f32 %v4342, 1.442695
      %v4375 = vpow.pop %v4374
      %v4376 = vmul.f32 %v4343, 1.442695
      %v4377 = vpow.pop %v4376
      %v4378 = vmul.f32 %v4344, 1.442695
      %v4379 = vpow.pop %v4378
      %v4380 = vmul.f32 %v4345, 1.442695
      %v4381 = vpow.pop %v4380
      %v4382 = vmul.f32 %v4346, 1.442695
      %v4383 = vpow.pop %v4382
      %v4384 = vmul.f32 %v4347, 1.442695
      %v4385 = vpow.pop %v4384
      %v4386 = vmul.f32 %v4348, 1.442695
      %v4387 = vpow.pop %v4386
      %v4388 = vmul.f32 %v4349, 1.442695
      %v4389 = vpow.pop %v4388
      %v4390 = vmul.f32 %v4350, 1.442695
      %v4391 = vpow.pop %v4390
      %v4392 = vmul.f32 %v4351, 1.442695
      %v4393 = vpow.pop %v4392
      %v4394 = vmul.f32 %v4352, 1.442695
      %v4395 = vpow.pop %v4394
      %v4396 = vmul.f32 %v4353, 1.442695
      %v4397 = vpow.pop %v4396
      %v4398 = vmul.f32 %v4354, 1.442695
      %v4399 = vpow.pop %v4398
      %v4400 = vmul.f32 %v4355, 1.442695
      %v4401 = vpow.pop %v4400
      %v4402 = vmul.f32 %v4356, 1.442695
      %v4403 = vpow.pop %v4402
      %v4404 = vmul.f32 %v4357, 1.442695
      %v4405 = vpow.pop %v4404
      %v4406 = vmul.f32 %v4358, 1.442695
      %v4407 = vpow.pop %v4406
      %v4408 = vmul.f32 %v4359, 1.442695
      %v4409 = vpow.pop %v4408
      %v4410 = vmul.f32 %v4360, 1.442695
      %v4411 = vpow.pop %v4410
      %v4412 = vmul.f32 %v4361, 1.442695
      %v4413 = vpow.pop %v4412
      %v4414 = vmul.f32 %v4362, 1.442695
      %v4415 = vpow.pop %v4414
      %v4416 = vmul.f32 %v4363, 1.442695
      %v4417 = vpow.pop %v4416
      %v4418 = vmul.f32 %v4364, 1.442695
      %v4419 = vpow.pop %v4418
      %v4420 = vmul.f32 %v4365, 1.442695
      %v4421 = vpow.pop %v4420
      %v4422 = vmul.f32 %v4366, 1.442695
      %v4423 = vpow.pop %v4422
      %v4424 = vmul.f32 %v4367, 1.442695
      %v4425 = vpow.pop %v4424
      %v4426 = vmul.f32 %v4368, 1.442695
      %v4427 = vpow.pop %v4426
      %v4428 = vmul.f32 %v4369, 1.442695
      %v4429 = vpow.pop %v4428
      %v4430 = vmul.f32 %v4370, 1.442695
      %v4431 = vpow.pop %v4430
      %v4432 = vmul.f32 %v4371, 1.442695
      %v4433 = vpow.pop %v4432
      %v4434 = vmul.f32 %v4372, 1.442695
      %v4435 = vpow.pop %v4434
      %v4436 = vmul.f32 %v4373, 1.442695
      %v4437 = vpow.pop %v4436
      %4438 = vadd.xlane.f32.xlu0 %v4375
      %v4439 = vpop.xlane.xlu0 %4438
      %4440 = vadd.xlane.f32.xlu0 %v4377
      %v4441 = vpop.xlane.xlu0 %4440
      %4442 = vadd.xlane.f32.xlu0 %v4379
      %v4443 = vpop.xlane.xlu0 %4442
      %4444 = vadd.xlane.f32.xlu0 %v4381
      %v4445 = vpop.xlane.xlu0 %4444
      %4446 = vadd.xlane.f32.xlu0 %v4383
      %v4447 = vpop.xlane.xlu0 %4446
      %4448 = vadd.xlane.f32.xlu0 %v4385
      %v4449 = vpop.xlane.xlu0 %4448
      %4450 = vadd.xlane.f32.xlu0 %v4387
      %v4451 = vpop.xlane.xlu0 %4450
      %4452 = vadd.xlane.f32.xlu0 %v4389
      %v4453 = vpop.xlane.xlu0 %4452
      %4454 = vadd.xlane.f32.xlu0 %v4391
      %v4455 = vpop.xlane.xlu0 %4454
      %4456 = vadd.xlane.f32.xlu0 %v4393
      %v4457 = vpop.xlane.xlu0 %4456
      %4458 = vadd.xlane.f32.xlu0 %v4395
      %v4459 = vpop.xlane.xlu0 %4458
      %4460 = vadd.xlane.f32.xlu0 %v4397
      %v4461 = vpop.xlane.xlu0 %4460
      %4462 = vadd.xlane.f32.xlu0 %v4399
      %v4463 = vpop.xlane.xlu0 %4462
      %4464 = vadd.xlane.f32.xlu0 %v4401
      %v4465 = vpop.xlane.xlu0 %4464
      %4466 = vadd.xlane.f32.xlu0 %v4403
      %v4467 = vpop.xlane.xlu0 %4466
      %4468 = vadd.xlane.f32.xlu0 %v4405
      %v4469 = vpop.xlane.xlu0 %4468
      %4470 = vadd.xlane.f32.xlu0 %v4407
      %v4471 = vpop.xlane.xlu0 %4470
      %4472 = vadd.xlane.f32.xlu0 %v4409
      %v4473 = vpop.xlane.xlu0 %4472
      %4474 = vadd.xlane.f32.xlu0 %v4411
      %v4475 = vpop.xlane.xlu0 %4474
      %4476 = vadd.xlane.f32.xlu0 %v4413
      %v4477 = vpop.xlane.xlu0 %4476
      %4478 = vadd.xlane.f32.xlu0 %v4415
      %v4479 = vpop.xlane.xlu0 %4478
      %4480 = vadd.xlane.f32.xlu0 %v4417
      %v4481 = vpop.xlane.xlu0 %4480
      %4482 = vadd.xlane.f32.xlu0 %v4419
      %v4483 = vpop.xlane.xlu0 %4482
      %4484 = vadd.xlane.f32.xlu0 %v4421
      %v4485 = vpop.xlane.xlu0 %4484
      %4486 = vadd.xlane.f32.xlu0 %v4423
      %v4487 = vpop.xlane.xlu0 %4486
      %4488 = vadd.xlane.f32.xlu0 %v4425
      %v4489 = vpop.xlane.xlu0 %4488
      %4490 = vadd.xlane.f32.xlu0 %v4427
      %v4491 = vpop.xlane.xlu0 %4490
      %4492 = vadd.xlane.f32.xlu0 %v4429
      %v4493 = vpop.xlane.xlu0 %4492
      %4494 = vadd.xlane.f32.xlu0 %v4431
      %v4495 = vpop.xlane.xlu0 %4494
      %4496 = vadd.xlane.f32.xlu0 %v4433
      %v4497 = vpop.xlane.xlu0 %4496
      %4498 = vadd.xlane.f32.xlu0 %v4435
      %v4499 = vpop.xlane.xlu0 %4498
      %4500 = vadd.xlane.f32.xlu0 %v4437
      %v4501 = vpop.xlane.xlu0 %4500
      %v4502 = vrcp.pop %v4439
      %v4503 = vrcp.pop %v4441
      %v4504 = vrcp.pop %v4443
      %v4505 = vrcp.pop %v4445
      %v4506 = vrcp.pop %v4447
      %v4507 = vrcp.pop %v4449
      %v4508 = vrcp.pop %v4451
      %v4509 = vrcp.pop %v4453
      %v4510 = vrcp.pop %v4455
      %v4511 = vrcp.pop %v4457
      %v4512 = vrcp.pop %v4459
      %v4513 = vrcp.pop %v4461
      %v4514 = vrcp.pop %v4463
      %v4515 = vrcp.pop %v4465
      %v4516 = vrcp.pop %v4467
      %v4517 = vrcp.pop %v4469
      %v4518 = vrcp.pop %v4471
      %v4519 = vrcp.pop %v4473
      %v4520 = vrcp.pop %v4475
      %v4521 = vrcp.pop %v4477
      %v4522 = vrcp.pop %v4479
      %v4523 = vrcp.pop %v4481
      %v4524 = vrcp.pop %v4483
      %v4525 = vrcp.pop %v4485
      %v4526 = vrcp.pop %v4487
      %v4527 = vrcp.pop %v4489
      %v4528 = vrcp.pop %v4491
      %v4529 = vrcp.pop %v4493
      %v4530 = vrcp.pop %v4495
      %v4531 = vrcp.pop %v4497
      %v4532 = vrcp.pop %v4499
      %v4533 = vrcp.pop %v4501
      %v4534 = vmul.f32 %v4375, %v4502
      %v4535 = vmul.f32 %v4377, %v4503
      %v4536 = vmul.f32 %v4379, %v4504
      %v4537 = vmul.f32 %v4381, %v4505
      %v4538 = vmul.f32 %v4383, %v4506
      %v4539 = vmul.f32 %v4385, %v4507
      %v4540 = vmul.f32 %v4387, %v4508
      %v4541 = vmul.f32 %v4389, %v4509
      %v4542 = vmul.f32 %v4391, %v4510
      %v4543 = vmul.f32 %v4393, %v4511
      %v4544 = vmul.f32 %v4395, %v4512
      %v4545 = vmul.f32 %v4397, %v4513
      %v4546 = vmul.f32 %v4399, %v4514
      %v4547 = vmul.f32 %v4401, %v4515
      %v4548 = vmul.f32 %v4403, %v4516
      %v4549 = vmul.f32 %v4405, %v4517
      %v4550 = vmul.f32 %v4407, %v4518
      %v4551 = vmul.f32 %v4409, %v4519
      %v4552 = vmul.f32 %v4411, %v4520
      %v4553 = vmul.f32 %v4413, %v4521
      %v4554 = vmul.f32 %v4415, %v4522
      %v4555 = vmul.f32 %v4417, %v4523
      %v4556 = vmul.f32 %v4419, %v4524
      %v4557 = vmul.f32 %v4421, %v4525
      %v4558 = vmul.f32 %v4423, %v4526
      %v4559 = vmul.f32 %v4425, %v4527
      %v4560 = vmul.f32 %v4427, %v4528
      %v4561 = vmul.f32 %v4429, %v4529
      %v4562 = vmul.f32 %v4431, %v4530
      %v4563 = vmul.f32 %v4433, %v4531
      %v4564 = vmul.f32 %v4435, %v4532
      %v4565 = vmul.f32 %v4437, %v4533
      %v4566 = vpack.c.bf16 %v4534, %v4534
      %v4567 = vpack.c.bf16 %v4535, %v4535
      %v4568 = vpack.c.bf16 %v4536, %v4536
      %v4569 = vpack.c.bf16 %v4537, %v4537
      %v4570 = vpack.c.bf16 %v4538, %v4538
      %v4571 = vpack.c.bf16 %v4539, %v4539
      %v4572 = vpack.c.bf16 %v4540, %v4540
      %v4573 = vpack.c.bf16 %v4541, %v4541
      %v4574 = vpack.c.bf16 %v4542, %v4542
      %v4575 = vpack.c.bf16 %v4543, %v4543
      %v4576 = vpack.c.bf16 %v4544, %v4544
      %v4577 = vpack.c.bf16 %v4545, %v4545
      %v4578 = vpack.c.bf16 %v4546, %v4546
      %v4579 = vpack.c.bf16 %v4547, %v4547
      %v4580 = vpack.c.bf16 %v4548, %v4548
      %v4581 = vpack.c.bf16 %v4549, %v4549
      %v4582 = vpack.c.bf16 %v4550, %v4550
      %v4583 = vpack.c.bf16 %v4551, %v4551
      %v4584 = vpack.c.bf16 %v4552, %v4552
      %v4585 = vpack.c.bf16 %v4553, %v4553
      %v4586 = vpack.c.bf16 %v4554, %v4554
      %v4587 = vpack.c.bf16 %v4555, %v4555
      %v4588 = vpack.c.bf16 %v4556, %v4556
      %v4589 = vpack.c.bf16 %v4557, %v4557
      %v4590 = vpack.c.bf16 %v4558, %v4558
      %v4591 = vpack.c.bf16 %v4559, %v4559
      %v4592 = vpack.c.bf16 %v4560, %v4560
      %v4593 = vpack.c.bf16 %v4561, %v4561
      %v4594 = vpack.c.bf16 %v4562, %v4562
      %v4595 = vpack.c.bf16 %v4563, %v4563
      %v4596 = vpack.c.bf16 %v4564, %v4564
      %v4597 = vpack.c.bf16 %v4565, %v4565
      %v4614 = vunpack.c.l.b16 %v4566
      %v4615 = vunpack.c.l.b16 %v4567
      %v4616 = vunpack.c.l.b16 %v4568
      %v4617 = vunpack.c.l.b16 %v4569
      %v4618 = vunpack.c.l.b16 %v4570
      %v4619 = vunpack.c.l.b16 %v4571
      %v4620 = vunpack.c.l.b16 %v4572
      %v4621 = vunpack.c.l.b16 %v4573
      %v4622 = vunpack.c.l.b16 %v4574
      %v4623 = vunpack.c.l.b16 %v4575
      %v4624 = vunpack.c.l.b16 %v4576
      %v4625 = vunpack.c.l.b16 %v4577
      %v4626 = vunpack.c.l.b16 %v4578
      %v4627 = vunpack.c.l.b16 %v4579
      %v4628 = vunpack.c.l.b16 %v4580
      %v4629 = vunpack.c.l.b16 %v4581
      %v4630 = vpack.c.b16 %v4615, %v4614
      %v4631 = vpack.c.b16 %v4617, %v4616
      %v4632 = vpack.c.b16 %v4619, %v4618
      %v4633 = vpack.c.b16 %v4621, %v4620
      %v4634 = vpack.c.b16 %v4623, %v4622
      %v4635 = vpack.c.b16 %v4625, %v4624
      %v4636 = vpack.c.b16 %v4627, %v4626
      %v4637 = vpack.c.b16 %v4629, %v4628
      %4646 = vrot.lane.b32.xlu0 %v2926, 64
      %v4647 = vpop.permute.xlu0 %4646
      %4648 = vrot.lane.b32.xlu0 %v2927, 64
      %v4649 = vpop.permute.xlu0 %4648
      %4650 = vrot.lane.b32.xlu0 %v2928, 64
      %v4651 = vpop.permute.xlu0 %4650
      %4652 = vrot.lane.b32.xlu0 %v2929, 64
      %v4653 = vpop.permute.xlu0 %4652
      %4654 = vrot.lane.b32.xlu0 %v2930, 64
      %v4655 = vpop.permute.xlu0 %4654
      %4656 = vrot.lane.b32.xlu0 %v2931, 64
      %v4657 = vpop.permute.xlu0 %4656
      %4658 = vrot.lane.b32.xlu0 %v2932, 64
      %v4659 = vpop.permute.xlu0 %4658
      %4660 = vrot.lane.b32.xlu0 %v2933, 64
      %v4661 = vpop.permute.xlu0 %4660
      %4670 = vmatpush.bf16.msra.mxu0 %v4661
      %4671 = vmatpush.bf16.msra.mxu0 %v4659
      %4672 = vmatpush.bf16.msra.mxu0 %v4657
      %4673 = vmatpush.bf16.msra.mxu0 %v4655
      %4674 = vmatpush.bf16.msra.mxu0 %v4653
      %4675 = vmatpush.bf16.msra.mxu0 %v4651
      %4676 = vmatpush.bf16.msra.mxu0 %v4649
      %4677 = vmatpush.bf16.msra.mxu0 %v4647
      %4678 = vmatmul.bf16.gmra.mxu0 %v4630
      %v4679 = vpop.f32.mrf.mxu0
      %v4680 = vadd.f32 0.0, %v4679
      %v4681 = vpop.f32.mrf.mxu0
      %v4682 = vadd.f32 0.0, %v4681
      %4683 = vmatmul.bf16.gmra.mxu0 %v4631
      %v4684 = vpop.f32.mrf.mxu0
      %v4685 = vadd.f32 0.0, %v4684
      %v4686 = vpop.f32.mrf.mxu0
      %v4687 = vadd.f32 0.0, %v4686
      %4688 = vmatmul.bf16.gmra.mxu0 %v4632
      %v4689 = vpop.f32.mrf.mxu0
      %v4690 = vadd.f32 0.0, %v4689
      %v4691 = vpop.f32.mrf.mxu0
      %v4692 = vadd.f32 0.0, %v4691
      %4693 = vmatmul.bf16.gmra.mxu0 %v4633
      %v4694 = vpop.f32.mrf.mxu0
      %v4695 = vadd.f32 0.0, %v4694
      %v4696 = vpop.f32.mrf.mxu0
      %v4697 = vadd.f32 0.0, %v4696
      %4698 = vmatmul.bf16.gmra.mxu0 %v4634
      %v4699 = vpop.f32.mrf.mxu0
      %v4700 = vadd.f32 0.0, %v4699
      %v4701 = vpop.f32.mrf.mxu0
      %v4702 = vadd.f32 0.0, %v4701
      %4703 = vmatmul.bf16.gmra.mxu0 %v4635
      %v4704 = vpop.f32.mrf.mxu0
      %v4705 = vadd.f32 0.0, %v4704
      %v4706 = vpop.f32.mrf.mxu0
      %v4707 = vadd.f32 0.0, %v4706
      %4708 = vmatmul.bf16.gmra.mxu0 %v4636
      %v4709 = vpop.f32.mrf.mxu0
      %v4710 = vadd.f32 0.0, %v4709
      %v4711 = vpop.f32.mrf.mxu0
      %v4712 = vadd.f32 0.0, %v4711
      %4713 = vmatmul.bf16.gmra.mxu0 %v4637
      %v4714 = vpop.f32.mrf.mxu0
      %v4715 = vadd.f32 0.0, %v4714
      %v4716 = vpop.f32.mrf.mxu0
      %v4717 = vadd.f32 0.0, %v4716
      %4718 = vdwg.mxu0
      %v4735 = vunpack.c.l.b16 %v4582
      %v4736 = vunpack.c.l.b16 %v4583
      %v4737 = vunpack.c.l.b16 %v4584
      %v4738 = vunpack.c.l.b16 %v4585
      %v4739 = vunpack.c.l.b16 %v4586
      %v4740 = vunpack.c.l.b16 %v4587
      %v4741 = vunpack.c.l.b16 %v4588
      %v4742 = vunpack.c.l.b16 %v4589
      %v4743 = vunpack.c.l.b16 %v4590
      %v4744 = vunpack.c.l.b16 %v4591
      %v4745 = vunpack.c.l.b16 %v4592
      %v4746 = vunpack.c.l.b16 %v4593
      %v4747 = vunpack.c.l.b16 %v4594
      %v4748 = vunpack.c.l.b16 %v4595
      %v4749 = vunpack.c.l.b16 %v4596
      %v4750 = vunpack.c.l.b16 %v4597
      %v4751 = vpack.c.b16 %v4736, %v4735
      %v4752 = vpack.c.b16 %v4738, %v4737
      %v4753 = vpack.c.b16 %v4740, %v4739
      %v4754 = vpack.c.b16 %v4742, %v4741
      %v4755 = vpack.c.b16 %v4744, %v4743
      %v4756 = vpack.c.b16 %v4746, %v4745
      %v4757 = vpack.c.b16 %v4748, %v4747
      %v4758 = vpack.c.b16 %v4750, %v4749
      %4767 = vrot.lane.b32.xlu0 %v3071, 64
      %v4768 = vpop.permute.xlu0 %4767
      %4769 = vrot.lane.b32.xlu0 %v3072, 64
      %v4770 = vpop.permute.xlu0 %4769
      %4771 = vrot.lane.b32.xlu0 %v3073, 64
      %v4772 = vpop.permute.xlu0 %4771
      %4773 = vrot.lane.b32.xlu0 %v3074, 64
      %v4774 = vpop.permute.xlu0 %4773
      %4775 = vrot.lane.b32.xlu0 %v3075, 64
      %v4776 = vpop.permute.xlu0 %4775
      %4777 = vrot.lane.b32.xlu0 %v3076, 64
      %v4778 = vpop.permute.xlu0 %4777
      %4779 = vrot.lane.b32.xlu0 %v3077, 64
      %v4780 = vpop.permute.xlu0 %4779
      %4781 = vrot.lane.b32.xlu0 %v3078, 64
      %v4782 = vpop.permute.xlu0 %4781
      %4791 = vmatpush.bf16.msra.mxu0 %v4782
      %4792 = vmatpush.bf16.msra.mxu0 %v4780
      %4793 = vmatpush.bf16.msra.mxu0 %v4778
      %4794 = vmatpush.bf16.msra.mxu0 %v4776
      %4795 = vmatpush.bf16.msra.mxu0 %v4774
      %4796 = vmatpush.bf16.msra.mxu0 %v4772
      %4797 = vmatpush.bf16.msra.mxu0 %v4770
      %4798 = vmatpush.bf16.msra.mxu0 %v4768
      %4799 = vmatmul.bf16.gmra.mxu0 %v4751
      %v4800 = vpop.f32.mrf.mxu0
      %v4801 = vadd.f32 0.0, %v4800
      %v4802 = vpop.f32.mrf.mxu0
      %v4803 = vadd.f32 0.0, %v4802
      %4804 = vmatmul.bf16.gmra.mxu0 %v4752
      %v4805 = vpop.f32.mrf.mxu0
      %v4806 = vadd.f32 0.0, %v4805
      %v4807 = vpop.f32.mrf.mxu0
      %v4808 = vadd.f32 0.0, %v4807
      %4809 = vmatmul.bf16.gmra.mxu0 %v4753
      %v4810 = vpop.f32.mrf.mxu0
      %v4811 = vadd.f32 0.0, %v4810
      %v4812 = vpop.f32.mrf.mxu0
      %v4813 = vadd.f32 0.0, %v4812
      %4814 = vmatmul.bf16.gmra.mxu0 %v4754
      %v4815 = vpop.f32.mrf.mxu0
      %v4816 = vadd.f32 0.0, %v4815
      %v4817 = vpop.f32.mrf.mxu0
      %v4818 = vadd.f32 0.0, %v4817
      %4819 = vmatmul.bf16.gmra.mxu0 %v4755
      %v4820 = vpop.f32.mrf.mxu0
      %v4821 = vadd.f32 0.0, %v4820
      %v4822 = vpop.f32.mrf.mxu0
      %v4823 = vadd.f32 0.0, %v4822
      %4824 = vmatmul.bf16.gmra.mxu0 %v4756
      %v4825 = vpop.f32.mrf.mxu0
      %v4826 = vadd.f32 0.0, %v4825
      %v4827 = vpop.f32.mrf.mxu0
      %v4828 = vadd.f32 0.0, %v4827
      %4829 = vmatmul.bf16.gmra.mxu0 %v4757
      %v4830 = vpop.f32.mrf.mxu0
      %v4831 = vadd.f32 0.0, %v4830
      %v4832 = vpop.f32.mrf.mxu0
      %v4833 = vadd.f32 0.0, %v4832
      %4834 = vmatmul.bf16.gmra.mxu0 %v4758
      %v4835 = vpop.f32.mrf.mxu0
      %v4836 = vadd.f32 0.0, %v4835
      %v4837 = vpop.f32.mrf.mxu0
      %v4838 = vadd.f32 0.0, %v4837
      %4839 = vdwg.mxu0
      %4840 = vrot.lane.b32.xlu0 %v2169, 32
      %v4841 = vpop.permute.xlu0 %4840
      %4842 = vrot.lane.b32.xlu0 %v2170, 32
      %v4843 = vpop.permute.xlu0 %4842
      %4844 = vrot.lane.b32.xlu0 %v2171, 32
      %v4845 = vpop.permute.xlu0 %4844
      %4846 = vrot.lane.b32.xlu0 %v2172, 32
      %v4847 = vpop.permute.xlu0 %4846
      %4848 = vrot.lane.b32.xlu0 %v2173, 32
      %v4849 = vpop.permute.xlu0 %4848
      %4850 = vrot.lane.b32.xlu0 %v2174, 32
      %v4851 = vpop.permute.xlu0 %4850
      %4852 = vrot.lane.b32.xlu0 %v2175, 32
      %v4853 = vpop.permute.xlu0 %4852
      %4854 = vrot.lane.b32.xlu0 %v2176, 32
      %v4855 = vpop.permute.xlu0 %4854
      %4856 = vrot.lane.b32.xlu0 %v2209, 32
      %v4857 = vpop.permute.xlu0 %4856
      %4858 = vrot.lane.b32.xlu0 %v2210, 32
      %v4859 = vpop.permute.xlu0 %4858
      %4860 = vrot.lane.b32.xlu0 %v2211, 32
      %v4861 = vpop.permute.xlu0 %4860
      %4862 = vrot.lane.b32.xlu0 %v2212, 32
      %v4863 = vpop.permute.xlu0 %4862
      %4864 = vrot.lane.b32.xlu0 %v2213, 32
      %v4865 = vpop.permute.xlu0 %4864
      %4866 = vrot.lane.b32.xlu0 %v2214, 32
      %v4867 = vpop.permute.xlu0 %4866
      %4868 = vrot.lane.b32.xlu0 %v2215, 32
      %v4869 = vpop.permute.xlu0 %4868
      %4870 = vrot.lane.b32.xlu0 %v2216, 32
      %v4871 = vpop.permute.xlu0 %4870
      %v4873 = vsel %vm2217, %v4841, 0
      %v4876 = vsel %vm2217, %v4843, 0
      %v4879 = vsel %vm2217, %v4845, 0
      %v4882 = vsel %vm2217, %v4847, 0
      %v4885 = vsel %vm2217, %v4849, 0
      %v4888 = vsel %vm2217, %v4851, 0
      %v4891 = vsel %vm2217, %v4853, 0
      %v4894 = vsel %vm2217, %v4855, 0
      %v4897 = vsel %vm2217, %v4857, 0
      %v4900 = vsel %vm2217, %v4859, 0
      %v4903 = vsel %vm2217, %v4861, 0
      %v4906 = vsel %vm2217, %v4863, 0
      %v4909 = vsel %vm2217, %v4865, 0
      %v4912 = vsel %vm2217, %v4867, 0
      %v4915 = vsel %vm2217, %v4869, 0
      %v4918 = vsel %vm2217, %v4871, 0
      %4920 = vmatpush.bf16.xpose.msra.mxu0 %v4918
      %4921 = vmatpush.bf16.xpose.msra.mxu0 %v4915
      %4922 = vmatpush.bf16.xpose.msra.mxu0 %v4912
      %4923 = vmatpush.bf16.xpose.msra.mxu0 %v4909
      %4924 = vmatpush.bf16.xpose.msra.mxu0 %v4906
      %4925 = vmatpush.bf16.xpose.msra.mxu0 %v4903
      %4926 = vmatpush.bf16.xpose.msra.mxu0 %v4900
      %4927 = vmatpush.bf16.xpose.msra.mxu0 %v4897
      %4928 = vmatmul.bf16.gmra.mxu0 %v4873
      %v4929 = vpop.f32.mrf.mxu0
      %v4930 = vadd.f32 0.0, %v4929
      %v4931 = vpop.f32.mrf.mxu0
      %v4932 = vadd.f32 0.0, %v4931
      %4933 = vmatmul.bf16.gmra.mxu0 %v4876
      %v4934 = vpop.f32.mrf.mxu0
      %v4935 = vadd.f32 0.0, %v4934
      %v4936 = vpop.f32.mrf.mxu0
      %v4937 = vadd.f32 0.0, %v4936
      %4938 = vmatmul.bf16.gmra.mxu0 %v4879
      %v4939 = vpop.f32.mrf.mxu0
      %v4940 = vadd.f32 0.0, %v4939
      %v4941 = vpop.f32.mrf.mxu0
      %v4942 = vadd.f32 0.0, %v4941
      %4943 = vmatmul.bf16.gmra.mxu0 %v4882
      %v4944 = vpop.f32.mrf.mxu0
      %v4945 = vadd.f32 0.0, %v4944
      %v4946 = vpop.f32.mrf.mxu0
      %v4947 = vadd.f32 0.0, %v4946
      %4948 = vmatmul.bf16.gmra.mxu0 %v4885
      %v4949 = vpop.f32.mrf.mxu0
      %v4950 = vadd.f32 0.0, %v4949
      %v4951 = vpop.f32.mrf.mxu0
      %v4952 = vadd.f32 0.0, %v4951
      %4953 = vmatmul.bf16.gmra.mxu0 %v4888
      %v4954 = vpop.f32.mrf.mxu0
      %v4955 = vadd.f32 0.0, %v4954
      %v4956 = vpop.f32.mrf.mxu0
      %v4957 = vadd.f32 0.0, %v4956
      %4958 = vmatmul.bf16.gmra.mxu0 %v4891
      %v4959 = vpop.f32.mrf.mxu0
      %v4960 = vadd.f32 0.0, %v4959
      %v4961 = vpop.f32.mrf.mxu0
      %v4962 = vadd.f32 0.0, %v4961
      %4963 = vmatmul.bf16.gmra.mxu0 %v4894
      %v4964 = vpop.f32.mrf.mxu0
      %v4965 = vadd.f32 0.0, %v4964
      %v4966 = vpop.f32.mrf.mxu0
      %v4967 = vadd.f32 0.0, %v4966
      %4968 = vdwg.mxu0
      %4969 = vrot.lane.b32.xlu0 %v2347, 32
      %v4970 = vpop.permute.xlu0 %4969
      %4971 = vrot.lane.b32.xlu0 %v2348, 32
      %v4972 = vpop.permute.xlu0 %4971
      %4973 = vrot.lane.b32.xlu0 %v2349, 32
      %v4974 = vpop.permute.xlu0 %4973
      %4975 = vrot.lane.b32.xlu0 %v2350, 32
      %v4976 = vpop.permute.xlu0 %4975
      %4977 = vrot.lane.b32.xlu0 %v2351, 32
      %v4978 = vpop.permute.xlu0 %4977
      %4979 = vrot.lane.b32.xlu0 %v2352, 32
      %v4980 = vpop.permute.xlu0 %4979
      %4981 = vrot.lane.b32.xlu0 %v2353, 32
      %v4982 = vpop.permute.xlu0 %4981
      %4983 = vrot.lane.b32.xlu0 %v2354, 32
      %v4984 = vpop.permute.xlu0 %4983
      %4985 = vrot.lane.b32.xlu0 %v2387, 32
      %v4986 = vpop.permute.xlu0 %4985
      %4987 = vrot.lane.b32.xlu0 %v2388, 32
      %v4988 = vpop.permute.xlu0 %4987
      %4989 = vrot.lane.b32.xlu0 %v2389, 32
      %v4990 = vpop.permute.xlu0 %4989
      %4991 = vrot.lane.b32.xlu0 %v2390, 32
      %v4992 = vpop.permute.xlu0 %4991
      %4993 = vrot.lane.b32.xlu0 %v2391, 32
      %v4994 = vpop.permute.xlu0 %4993
      %4995 = vrot.lane.b32.xlu0 %v2392, 32
      %v4996 = vpop.permute.xlu0 %4995
      %4997 = vrot.lane.b32.xlu0 %v2393, 32
      %v4998 = vpop.permute.xlu0 %4997
      %4999 = vrot.lane.b32.xlu0 %v2394, 32
      %v5000 = vpop.permute.xlu0 %4999
      %v5002 = vsel %vm2217, %v4970, 0
      %v5005 = vsel %vm2217, %v4972, 0
      %v5008 = vsel %vm2217, %v4974, 0
      %v5011 = vsel %vm2217, %v4976, 0
      %v5014 = vsel %vm2217, %v4978, 0
      %v5017 = vsel %vm2217, %v4980, 0
      %v5020 = vsel %vm2217, %v4982, 0
      %v5023 = vsel %vm2217, %v4984, 0
      %v5026 = vsel %vm2217, %v4986, 0
      %v5029 = vsel %vm2217, %v4988, 0
      %v5032 = vsel %vm2217, %v4990, 0
      %v5035 = vsel %vm2217, %v4992, 0
      %v5038 = vsel %vm2217, %v4994, 0
      %v5041 = vsel %vm2217, %v4996, 0
      %v5044 = vsel %vm2217, %v4998, 0
      %v5047 = vsel %vm2217, %v5000, 0
      %5049 = vmatpush.bf16.xpose.msra.mxu0 %v5047
      %5050 = vmatpush.bf16.xpose.msra.mxu0 %v5044
      %5051 = vmatpush.bf16.xpose.msra.mxu0 %v5041
      %5052 = vmatpush.bf16.xpose.msra.mxu0 %v5038
      %5053 = vmatpush.bf16.xpose.msra.mxu0 %v5035
      %5054 = vmatpush.bf16.xpose.msra.mxu0 %v5032
      %5055 = vmatpush.bf16.xpose.msra.mxu0 %v5029
      %5056 = vmatpush.bf16.xpose.msra.mxu0 %v5026
      %5057 = vmatmul.bf16.gmra.mxu0 %v5002
      %v5058 = vpop.f32.mrf.mxu0
      %v5059 = vadd.f32 0.0, %v5058
      %v5060 = vpop.f32.mrf.mxu0
      %v5061 = vadd.f32 0.0, %v5060
      %5062 = vmatmul.bf16.gmra.mxu0 %v5005
      %v5063 = vpop.f32.mrf.mxu0
      %v5064 = vadd.f32 0.0, %v5063
      %v5065 = vpop.f32.mrf.mxu0
      %v5066 = vadd.f32 0.0, %v5065
      %5067 = vmatmul.bf16.gmra.mxu0 %v5008
      %v5068 = vpop.f32.mrf.mxu0
      %v5069 = vadd.f32 0.0, %v5068
      %v5070 = vpop.f32.mrf.mxu0
      %v5071 = vadd.f32 0.0, %v5070
      %5072 = vmatmul.bf16.gmra.mxu0 %v5011
      %v5073 = vpop.f32.mrf.mxu0
      %v5074 = vadd.f32 0.0, %v5073
      %v5075 = vpop.f32.mrf.mxu0
      %v5076 = vadd.f32 0.0, %v5075
      %5077 = vmatmul.bf16.gmra.mxu0 %v5014
      %v5078 = vpop.f32.mrf.mxu0
      %v5079 = vadd.f32 0.0, %v5078
      %v5080 = vpop.f32.mrf.mxu0
      %v5081 = vadd.f32 0.0, %v5080
      %5082 = vmatmul.bf16.gmra.mxu0 %v5017
      %v5083 = vpop.f32.mrf.mxu0
      %v5084 = vadd.f32 0.0, %v5083
      %v5085 = vpop.f32.mrf.mxu0
      %v5086 = vadd.f32 0.0, %v5085
      %5087 = vmatmul.bf16.gmra.mxu0 %v5020
      %v5088 = vpop.f32.mrf.mxu0
      %v5089 = vadd.f32 0.0, %v5088
      %v5090 = vpop.f32.mrf.mxu0
      %v5091 = vadd.f32 0.0, %v5090
      %5092 = vmatmul.bf16.gmra.mxu0 %v5023
      %v5093 = vpop.f32.mrf.mxu0
      %v5094 = vadd.f32 0.0, %v5093
      %v5095 = vpop.f32.mrf.mxu0
      %v5096 = vadd.f32 0.0, %v5095
      %5097 = vdwg.mxu0
      %v5098 = vsel %vm2493, %v4930, -1e+30
      %v5099 = vsel %vm2493, %v4932, -1e+30
      %v5100 = vsel %vm2493, %v4935, -1e+30
      %v5101 = vsel %vm2493, %v4937, -1e+30
      %v5102 = vsel %vm2493, %v4940, -1e+30
      %v5103 = vsel %vm2493, %v4942, -1e+30
      %v5104 = vsel %vm2493, %v4945, -1e+30
      %v5105 = vsel %vm2493, %v4947, -1e+30
      %v5106 = vsel %vm2493, %v4950, -1e+30
      %v5107 = vsel %vm2493, %v4952, -1e+30
      %v5108 = vsel %vm2493, %v4955, -1e+30
      %v5109 = vsel %vm2493, %v4957, -1e+30
      %v5110 = vsel %vm2493, %v4960, -1e+30
      %v5111 = vsel %vm2493, %v4962, -1e+30
      %v5112 = vsel %vm2493, %v4965, -1e+30
      %v5113 = vsel %vm2493, %v4967, -1e+30
      %v5114 = vsel %vm2493, %v5059, -1e+30
      %v5115 = vsel %vm2493, %v5061, -1e+30
      %v5116 = vsel %vm2493, %v5064, -1e+30
      %v5117 = vsel %vm2493, %v5066, -1e+30
      %v5118 = vsel %vm2493, %v5069, -1e+30
      %v5119 = vsel %vm2493, %v5071, -1e+30
      %v5120 = vsel %vm2493, %v5074, -1e+30
      %v5121 = vsel %vm2493, %v5076, -1e+30
      %v5122 = vsel %vm2493, %v5079, -1e+30
      %v5123 = vsel %vm2493, %v5081, -1e+30
      %v5124 = vsel %vm2493, %v5084, -1e+30
      %v5125 = vsel %vm2493, %v5086, -1e+30
      %v5126 = vsel %vm2493, %v5089, -1e+30
      %v5127 = vsel %vm2493, %v5091, -1e+30
      %v5128 = vsel %vm2493, %v5094, -1e+30
      %v5129 = vsel %vm2493, %v5096, -1e+30
      %5130 = vmax.xlane.f32.xlu0 %v5098
      %v5131 = vpop.xlane.xlu0 %5130
      %5132 = vmax.xlane.f32.xlu0 %v5099
      %v5133 = vpop.xlane.xlu0 %5132
      %5134 = vmax.xlane.f32.xlu0 %v5100
      %v5135 = vpop.xlane.xlu0 %5134
      %5136 = vmax.xlane.f32.xlu0 %v5101
      %v5137 = vpop.xlane.xlu0 %5136
      %5138 = vmax.xlane.f32.xlu0 %v5102
      %v5139 = vpop.xlane.xlu0 %5138
      %5140 = vmax.xlane.f32.xlu0 %v5103
      %v5141 = vpop.xlane.xlu0 %5140
      %5142 = vmax.xlane.f32.xlu0 %v5104
      %v5143 = vpop.xlane.xlu0 %5142
      %5144 = vmax.xlane.f32.xlu0 %v5105
      %v5145 = vpop.xlane.xlu0 %5144
      %5146 = vmax.xlane.f32.xlu0 %v5106
      %v5147 = vpop.xlane.xlu0 %5146
      %5148 = vmax.xlane.f32.xlu0 %v5107
      %v5149 = vpop.xlane.xlu0 %5148
      %5150 = vmax.xlane.f32.xlu0 %v5108
      %v5151 = vpop.xlane.xlu0 %5150
      %5152 = vmax.xlane.f32.xlu0 %v5109
      %v5153 = vpop.xlane.xlu0 %5152
      %5154 = vmax.xlane.f32.xlu0 %v5110
      %v5155 = vpop.xlane.xlu0 %5154
      %5156 = vmax.xlane.f32.xlu0 %v5111
      %v5157 = vpop.xlane.xlu0 %5156
      %5158 = vmax.xlane.f32.xlu0 %v5112
      %v5159 = vpop.xlane.xlu0 %5158
      %5160 = vmax.xlane.f32.xlu0 %v5113
      %v5161 = vpop.xlane.xlu0 %5160
      %5162 = vmax.xlane.f32.xlu0 %v5114
      %v5163 = vpop.xlane.xlu0 %5162
      %5164 = vmax.xlane.f32.xlu0 %v5115
      %v5165 = vpop.xlane.xlu0 %5164
      %5166 = vmax.xlane.f32.xlu0 %v5116
      %v5167 = vpop.xlane.xlu0 %5166
      %5168 = vmax.xlane.f32.xlu0 %v5117
      %v5169 = vpop.xlane.xlu0 %5168
      %5170 = vmax.xlane.f32.xlu0 %v5118
      %v5171 = vpop.xlane.xlu0 %5170
      %5172 = vmax.xlane.f32.xlu0 %v5119
      %v5173 = vpop.xlane.xlu0 %5172
      %5174 = vmax.xlane.f32.xlu0 %v5120
      %v5175 = vpop.xlane.xlu0 %5174
      %5176 = vmax.xlane.f32.xlu0 %v5121
      %v5177 = vpop.xlane.xlu0 %5176
      %5178 = vmax.xlane.f32.xlu0 %v5122
      %v5179 = vpop.xlane.xlu0 %5178
      %5180 = vmax.xlane.f32.xlu0 %v5123
      %v5181 = vpop.xlane.xlu0 %5180
      %5182 = vmax.xlane.f32.xlu0 %v5124
      %v5183 = vpop.xlane.xlu0 %5182
      %5184 = vmax.xlane.f32.xlu0 %v5125
      %v5185 = vpop.xlane.xlu0 %5184
      %5186 = vmax.xlane.f32.xlu0 %v5126
      %v5187 = vpop.xlane.xlu0 %5186
      %5188 = vmax.xlane.f32.xlu0 %v5127
      %v5189 = vpop.xlane.xlu0 %5188
      %5190 = vmax.xlane.f32.xlu0 %v5128
      %v5191 = vpop.xlane.xlu0 %5190
      %5192 = vmax.xlane.f32.xlu0 %v5129
      %v5193 = vpop.xlane.xlu0 %5192
      %v5194 = vsub.f32 %v5098, %v5131
      %v5195 = vsub.f32 %v5099, %v5133
      %v5196 = vsub.f32 %v5100, %v5135
      %v5197 = vsub.f32 %v5101, %v5137
      %v5198 = vsub.f32 %v5102, %v5139
      %v5199 = vsub.f32 %v5103, %v5141
      %v5200 = vsub.f32 %v5104, %v5143
      %v5201 = vsub.f32 %v5105, %v5145
      %v5202 = vsub.f32 %v5106, %v5147
      %v5203 = vsub.f32 %v5107, %v5149
      %v5204 = vsub.f32 %v5108, %v5151
      %v5205 = vsub.f32 %v5109, %v5153
      %v5206 = vsub.f32 %v5110, %v5155
      %v5207 = vsub.f32 %v5111, %v5157
      %v5208 = vsub.f32 %v5112, %v5159
      %v5209 = vsub.f32 %v5113, %v5161
      %v5210 = vsub.f32 %v5114, %v5163
      %v5211 = vsub.f32 %v5115, %v5165
      %v5212 = vsub.f32 %v5116, %v5167
      %v5213 = vsub.f32 %v5117, %v5169
      %v5214 = vsub.f32 %v5118, %v5171
      %v5215 = vsub.f32 %v5119, %v5173
      %v5216 = vsub.f32 %v5120, %v5175
      %v5217 = vsub.f32 %v5121, %v5177
      %v5218 = vsub.f32 %v5122, %v5179
      %v5219 = vsub.f32 %v5123, %v5181
      %v5220 = vsub.f32 %v5124, %v5183
      %v5221 = vsub.f32 %v5125, %v5185
      %v5222 = vsub.f32 %v5126, %v5187
      %v5223 = vsub.f32 %v5127, %v5189
      %v5224 = vsub.f32 %v5128, %v5191
      %v5225 = vsub.f32 %v5129, %v5193
      %v5226 = vmul.f32 %v5194, 1.442695
      %v5227 = vpow.pop %v5226
      %v5228 = vmul.f32 %v5195, 1.442695
      %v5229 = vpow.pop %v5228
      %v5230 = vmul.f32 %v5196, 1.442695
      %v5231 = vpow.pop %v5230
      %v5232 = vmul.f32 %v5197, 1.442695
      %v5233 = vpow.pop %v5232
      %v5234 = vmul.f32 %v5198, 1.442695
      %v5235 = vpow.pop %v5234
      %v5236 = vmul.f32 %v5199, 1.442695
      %v5237 = vpow.pop %v5236
      %v5238 = vmul.f32 %v5200, 1.442695
      %v5239 = vpow.pop %v5238
      %v5240 = vmul.f32 %v5201, 1.442695
      %v5241 = vpow.pop %v5240
      %v5242 = vmul.f32 %v5202, 1.442695
      %v5243 = vpow.pop %v5242
      %v5244 = vmul.f32 %v5203, 1.442695
      %v5245 = vpow.pop %v5244
      %v5246 = vmul.f32 %v5204, 1.442695
      %v5247 = vpow.pop %v5246
      %v5248 = vmul.f32 %v5205, 1.442695
      %v5249 = vpow.pop %v5248
      %v5250 = vmul.f32 %v5206, 1.442695
      %v5251 = vpow.pop %v5250
      %v5252 = vmul.f32 %v5207, 1.442695
      %v5253 = vpow.pop %v5252
      %v5254 = vmul.f32 %v5208, 1.442695
      %v5255 = vpow.pop %v5254
      %v5256 = vmul.f32 %v5209, 1.442695
      %v5257 = vpow.pop %v5256
      %v5258 = vmul.f32 %v5210, 1.442695
      %v5259 = vpow.pop %v5258
      %v5260 = vmul.f32 %v5211, 1.442695
      %v5261 = vpow.pop %v5260
      %v5262 = vmul.f32 %v5212, 1.442695
      %v5263 = vpow.pop %v5262
      %v5264 = vmul.f32 %v5213, 1.442695
      %v5265 = vpow.pop %v5264
      %v5266 = vmul.f32 %v5214, 1.442695
      %v5267 = vpow.pop %v5266
      %v5268 = vmul.f32 %v5215, 1.442695
      %v5269 = vpow.pop %v5268
      %v5270 = vmul.f32 %v5216, 1.442695
      %v5271 = vpow.pop %v5270
      %v5272 = vmul.f32 %v5217, 1.442695
      %v5273 = vpow.pop %v5272
      %v5274 = vmul.f32 %v5218, 1.442695
      %v5275 = vpow.pop %v5274
      %v5276 = vmul.f32 %v5219, 1.442695
      %v5277 = vpow.pop %v5276
      %v5278 = vmul.f32 %v5220, 1.442695
      %v5279 = vpow.pop %v5278
      %v5280 = vmul.f32 %v5221, 1.442695
      %v5281 = vpow.pop %v5280
      %v5282 = vmul.f32 %v5222, 1.442695
      %v5283 = vpow.pop %v5282
      %v5284 = vmul.f32 %v5223, 1.442695
      %v5285 = vpow.pop %v5284
      %v5286 = vmul.f32 %v5224, 1.442695
      %v5287 = vpow.pop %v5286
      %v5288 = vmul.f32 %v5225, 1.442695
      %v5289 = vpow.pop %v5288
      %5290 = vadd.xlane.f32.xlu0 %v5227
      %v5291 = vpop.xlane.xlu0 %5290
      %5292 = vadd.xlane.f32.xlu0 %v5229
      %v5293 = vpop.xlane.xlu0 %5292
      %5294 = vadd.xlane.f32.xlu0 %v5231
      %v5295 = vpop.xlane.xlu0 %5294
      %5296 = vadd.xlane.f32.xlu0 %v5233
      %v5297 = vpop.xlane.xlu0 %5296
      %5298 = vadd.xlane.f32.xlu0 %v5235
      %v5299 = vpop.xlane.xlu0 %5298
      %5300 = vadd.xlane.f32.xlu0 %v5237
      %v5301 = vpop.xlane.xlu0 %5300
      %5302 = vadd.xlane.f32.xlu0 %v5239
      %v5303 = vpop.xlane.xlu0 %5302
      %5304 = vadd.xlane.f32.xlu0 %v5241
      %v5305 = vpop.xlane.xlu0 %5304
      %5306 = vadd.xlane.f32.xlu0 %v5243
      %v5307 = vpop.xlane.xlu0 %5306
      %5308 = vadd.xlane.f32.xlu0 %v5245
      %v5309 = vpop.xlane.xlu0 %5308
      %5310 = vadd.xlane.f32.xlu0 %v5247
      %v5311 = vpop.xlane.xlu0 %5310
      %5312 = vadd.xlane.f32.xlu0 %v5249
      %v5313 = vpop.xlane.xlu0 %5312
      %5314 = vadd.xlane.f32.xlu0 %v5251
      %v5315 = vpop.xlane.xlu0 %5314
      %5316 = vadd.xlane.f32.xlu0 %v5253
      %v5317 = vpop.xlane.xlu0 %5316
      %5318 = vadd.xlane.f32.xlu0 %v5255
      %v5319 = vpop.xlane.xlu0 %5318
      %5320 = vadd.xlane.f32.xlu0 %v5257
      %v5321 = vpop.xlane.xlu0 %5320
      %5322 = vadd.xlane.f32.xlu0 %v5259
      %v5323 = vpop.xlane.xlu0 %5322
      %5324 = vadd.xlane.f32.xlu0 %v5261
      %v5325 = vpop.xlane.xlu0 %5324
      %5326 = vadd.xlane.f32.xlu0 %v5263
      %v5327 = vpop.xlane.xlu0 %5326
      %5328 = vadd.xlane.f32.xlu0 %v5265
      %v5329 = vpop.xlane.xlu0 %5328
      %5330 = vadd.xlane.f32.xlu0 %v5267
      %v5331 = vpop.xlane.xlu0 %5330
      %5332 = vadd.xlane.f32.xlu0 %v5269
      %v5333 = vpop.xlane.xlu0 %5332
      %5334 = vadd.xlane.f32.xlu0 %v5271
      %v5335 = vpop.xlane.xlu0 %5334
      %5336 = vadd.xlane.f32.xlu0 %v5273
      %v5337 = vpop.xlane.xlu0 %5336
      %5338 = vadd.xlane.f32.xlu0 %v5275
      %v5339 = vpop.xlane.xlu0 %5338
      %5340 = vadd.xlane.f32.xlu0 %v5277
      %v5341 = vpop.xlane.xlu0 %5340
      %5342 = vadd.xlane.f32.xlu0 %v5279
      %v5343 = vpop.xlane.xlu0 %5342
      %5344 = vadd.xlane.f32.xlu0 %v5281
      %v5345 = vpop.xlane.xlu0 %5344
      %5346 = vadd.xlane.f32.xlu0 %v5283
      %v5347 = vpop.xlane.xlu0 %5346
      %5348 = vadd.xlane.f32.xlu0 %v5285
      %v5349 = vpop.xlane.xlu0 %5348
      %5350 = vadd.xlane.f32.xlu0 %v5287
      %v5351 = vpop.xlane.xlu0 %5350
      %5352 = vadd.xlane.f32.xlu0 %v5289
      %v5353 = vpop.xlane.xlu0 %5352
      %v5354 = vrcp.pop %v5291
      %v5355 = vrcp.pop %v5293
      %v5356 = vrcp.pop %v5295
      %v5357 = vrcp.pop %v5297
      %v5358 = vrcp.pop %v5299
      %v5359 = vrcp.pop %v5301
      %v5360 = vrcp.pop %v5303
      %v5361 = vrcp.pop %v5305
      %v5362 = vrcp.pop %v5307
      %v5363 = vrcp.pop %v5309
      %v5364 = vrcp.pop %v5311
      %v5365 = vrcp.pop %v5313
      %v5366 = vrcp.pop %v5315
      %v5367 = vrcp.pop %v5317
      %v5368 = vrcp.pop %v5319
      %v5369 = vrcp.pop %v5321
      %v5370 = vrcp.pop %v5323
      %v5371 = vrcp.pop %v5325
      %v5372 = vrcp.pop %v5327
      %v5373 = vrcp.pop %v5329
      %v5374 = vrcp.pop %v5331
      %v5375 = vrcp.pop %v5333
      %v5376 = vrcp.pop %v5335
      %v5377 = vrcp.pop %v5337
      %v5378 = vrcp.pop %v5339
      %v5379 = vrcp.pop %v5341
      %v5380 = vrcp.pop %v5343
      %v5381 = vrcp.pop %v5345
      %v5382 = vrcp.pop %v5347
      %v5383 = vrcp.pop %v5349
      %v5384 = vrcp.pop %v5351
      %v5385 = vrcp.pop %v5353
      %v5386 = vmul.f32 %v5227, %v5354
      %v5387 = vmul.f32 %v5229, %v5355
      %v5388 = vmul.f32 %v5231, %v5356
      %v5389 = vmul.f32 %v5233, %v5357
      %v5390 = vmul.f32 %v5235, %v5358
      %v5391 = vmul.f32 %v5237, %v5359
      %v5392 = vmul.f32 %v5239, %v5360
      %v5393 = vmul.f32 %v5241, %v5361
      %v5394 = vmul.f32 %v5243, %v5362
      %v5395 = vmul.f32 %v5245, %v5363
      %v5396 = vmul.f32 %v5247, %v5364
      %v5397 = vmul.f32 %v5249, %v5365
      %v5398 = vmul.f32 %v5251, %v5366
      %v5399 = vmul.f32 %v5253, %v5367
      %v5400 = vmul.f32 %v5255, %v5368
      %v5401 = vmul.f32 %v5257, %v5369
      %v5402 = vmul.f32 %v5259, %v5370
      %v5403 = vmul.f32 %v5261, %v5371
      %v5404 = vmul.f32 %v5263, %v5372
      %v5405 = vmul.f32 %v5265, %v5373
      %v5406 = vmul.f32 %v5267, %v5374
      %v5407 = vmul.f32 %v5269, %v5375
      %v5408 = vmul.f32 %v5271, %v5376
      %v5409 = vmul.f32 %v5273, %v5377
      %v5410 = vmul.f32 %v5275, %v5378
      %v5411 = vmul.f32 %v5277, %v5379
      %v5412 = vmul.f32 %v5279, %v5380
      %v5413 = vmul.f32 %v5281, %v5381
      %v5414 = vmul.f32 %v5283, %v5382
      %v5415 = vmul.f32 %v5285, %v5383
      %v5416 = vmul.f32 %v5287, %v5384
      %v5417 = vmul.f32 %v5289, %v5385
      %v5418 = vpack.c.bf16 %v5386, %v5386
      %v5419 = vpack.c.bf16 %v5387, %v5387
      %v5420 = vpack.c.bf16 %v5388, %v5388
      %v5421 = vpack.c.bf16 %v5389, %v5389
      %v5422 = vpack.c.bf16 %v5390, %v5390
      %v5423 = vpack.c.bf16 %v5391, %v5391
      %v5424 = vpack.c.bf16 %v5392, %v5392
      %v5425 = vpack.c.bf16 %v5393, %v5393
      %v5426 = vpack.c.bf16 %v5394, %v5394
      %v5427 = vpack.c.bf16 %v5395, %v5395
      %v5428 = vpack.c.bf16 %v5396, %v5396
      %v5429 = vpack.c.bf16 %v5397, %v5397
      %v5430 = vpack.c.bf16 %v5398, %v5398
      %v5431 = vpack.c.bf16 %v5399, %v5399
      %v5432 = vpack.c.bf16 %v5400, %v5400
      %v5433 = vpack.c.bf16 %v5401, %v5401
      %v5434 = vpack.c.bf16 %v5402, %v5402
      %v5435 = vpack.c.bf16 %v5403, %v5403
      %v5436 = vpack.c.bf16 %v5404, %v5404
      %v5437 = vpack.c.bf16 %v5405, %v5405
      %v5438 = vpack.c.bf16 %v5406, %v5406
      %v5439 = vpack.c.bf16 %v5407, %v5407
      %v5440 = vpack.c.bf16 %v5408, %v5408
      %v5441 = vpack.c.bf16 %v5409, %v5409
      %v5442 = vpack.c.bf16 %v5410, %v5410
      %v5443 = vpack.c.bf16 %v5411, %v5411
      %v5444 = vpack.c.bf16 %v5412, %v5412
      %v5445 = vpack.c.bf16 %v5413, %v5413
      %v5446 = vpack.c.bf16 %v5414, %v5414
      %v5447 = vpack.c.bf16 %v5415, %v5415
      %v5448 = vpack.c.bf16 %v5416, %v5416
      %v5449 = vpack.c.bf16 %v5417, %v5417
      %v5466 = vunpack.c.l.b16 %v5418
      %v5467 = vunpack.c.l.b16 %v5419
      %v5468 = vunpack.c.l.b16 %v5420
      %v5469 = vunpack.c.l.b16 %v5421
      %v5470 = vunpack.c.l.b16 %v5422
      %v5471 = vunpack.c.l.b16 %v5423
      %v5472 = vunpack.c.l.b16 %v5424
      %v5473 = vunpack.c.l.b16 %v5425
      %v5474 = vunpack.c.l.b16 %v5426
      %v5475 = vunpack.c.l.b16 %v5427
      %v5476 = vunpack.c.l.b16 %v5428
      %v5477 = vunpack.c.l.b16 %v5429
      %v5478 = vunpack.c.l.b16 %v5430
      %v5479 = vunpack.c.l.b16 %v5431
      %v5480 = vunpack.c.l.b16 %v5432
      %v5481 = vunpack.c.l.b16 %v5433
      %v5482 = vpack.c.b16 %v5467, %v5466
      %v5483 = vpack.c.b16 %v5469, %v5468
      %v5484 = vpack.c.b16 %v5471, %v5470
      %v5485 = vpack.c.b16 %v5473, %v5472
      %v5486 = vpack.c.b16 %v5475, %v5474
      %v5487 = vpack.c.b16 %v5477, %v5476
      %v5488 = vpack.c.b16 %v5479, %v5478
      %v5489 = vpack.c.b16 %v5481, %v5480
      %5498 = vrot.lane.b32.xlu0 %v2926, 32
      %v5499 = vpop.permute.xlu0 %5498
      %5500 = vrot.lane.b32.xlu0 %v2927, 32
      %v5501 = vpop.permute.xlu0 %5500
      %5502 = vrot.lane.b32.xlu0 %v2928, 32
      %v5503 = vpop.permute.xlu0 %5502
      %5504 = vrot.lane.b32.xlu0 %v2929, 32
      %v5505 = vpop.permute.xlu0 %5504
      %5506 = vrot.lane.b32.xlu0 %v2930, 32
      %v5507 = vpop.permute.xlu0 %5506
      %5508 = vrot.lane.b32.xlu0 %v2931, 32
      %v5509 = vpop.permute.xlu0 %5508
      %5510 = vrot.lane.b32.xlu0 %v2932, 32
      %v5511 = vpop.permute.xlu0 %5510
      %5512 = vrot.lane.b32.xlu0 %v2933, 32
      %v5513 = vpop.permute.xlu0 %5512
      %5522 = vmatpush.bf16.msra.mxu0 %v5513
      %5523 = vmatpush.bf16.msra.mxu0 %v5511
      %5524 = vmatpush.bf16.msra.mxu0 %v5509
      %5525 = vmatpush.bf16.msra.mxu0 %v5507
      %5526 = vmatpush.bf16.msra.mxu0 %v5505
      %5527 = vmatpush.bf16.msra.mxu0 %v5503
      %5528 = vmatpush.bf16.msra.mxu0 %v5501
      %5529 = vmatpush.bf16.msra.mxu0 %v5499
      %5530 = vmatmul.bf16.gmra.mxu0 %v5482
      %v5531 = vpop.f32.mrf.mxu0
      %v5532 = vadd.f32 0.0, %v5531
      %v5533 = vpop.f32.mrf.mxu0
      %v5534 = vadd.f32 0.0, %v5533
      %5535 = vmatmul.bf16.gmra.mxu0 %v5483
      %v5536 = vpop.f32.mrf.mxu0
      %v5537 = vadd.f32 0.0, %v5536
      %v5538 = vpop.f32.mrf.mxu0
      %v5539 = vadd.f32 0.0, %v5538
      %5540 = vmatmul.bf16.gmra.mxu0 %v5484
      %v5541 = vpop.f32.mrf.mxu0
      %v5542 = vadd.f32 0.0, %v5541
      %v5543 = vpop.f32.mrf.mxu0
      %v5544 = vadd.f32 0.0, %v5543
      %5545 = vmatmul.bf16.gmra.mxu0 %v5485
      %v5546 = vpop.f32.mrf.mxu0
      %v5547 = vadd.f32 0.0, %v5546
      %v5548 = vpop.f32.mrf.mxu0
      %v5549 = vadd.f32 0.0, %v5548
      %5550 = vmatmul.bf16.gmra.mxu0 %v5486
      %v5551 = vpop.f32.mrf.mxu0
      %v5552 = vadd.f32 0.0, %v5551
      %v5553 = vpop.f32.mrf.mxu0
      %v5554 = vadd.f32 0.0, %v5553
      %5555 = vmatmul.bf16.gmra.mxu0 %v5487
      %v5556 = vpop.f32.mrf.mxu0
      %v5557 = vadd.f32 0.0, %v5556
      %v5558 = vpop.f32.mrf.mxu0
      %v5559 = vadd.f32 0.0, %v5558
      %5560 = vmatmul.bf16.gmra.mxu0 %v5488
      %v5561 = vpop.f32.mrf.mxu0
      %v5562 = vadd.f32 0.0, %v5561
      %v5563 = vpop.f32.mrf.mxu0
      %v5564 = vadd.f32 0.0, %v5563
      %5565 = vmatmul.bf16.gmra.mxu0 %v5489
      %v5566 = vpop.f32.mrf.mxu0
      %v5567 = vadd.f32 0.0, %v5566
      %v5568 = vpop.f32.mrf.mxu0
      %v5569 = vadd.f32 0.0, %v5568
      %5570 = vdwg.mxu0
      %v5587 = vunpack.c.l.b16 %v5434
      %v5588 = vunpack.c.l.b16 %v5435
      %v5589 = vunpack.c.l.b16 %v5436
      %v5590 = vunpack.c.l.b16 %v5437
      %v5591 = vunpack.c.l.b16 %v5438
      %v5592 = vunpack.c.l.b16 %v5439
      %v5593 = vunpack.c.l.b16 %v5440
      %v5594 = vunpack.c.l.b16 %v5441
      %v5595 = vunpack.c.l.b16 %v5442
      %v5596 = vunpack.c.l.b16 %v5443
      %v5597 = vunpack.c.l.b16 %v5444
      %v5598 = vunpack.c.l.b16 %v5445
      %v5599 = vunpack.c.l.b16 %v5446
      %v5600 = vunpack.c.l.b16 %v5447
      %v5601 = vunpack.c.l.b16 %v5448
      %v5602 = vunpack.c.l.b16 %v5449
      %v5603 = vpack.c.b16 %v5588, %v5587
      %v5604 = vpack.c.b16 %v5590, %v5589
      %v5605 = vpack.c.b16 %v5592, %v5591
      %v5606 = vpack.c.b16 %v5594, %v5593
      %v5607 = vpack.c.b16 %v5596, %v5595
      %v5608 = vpack.c.b16 %v5598, %v5597
      %v5609 = vpack.c.b16 %v5600, %v5599
      %v5610 = vpack.c.b16 %v5602, %v5601
      %5619 = vrot.lane.b32.xlu0 %v3071, 32
      %v5620 = vpop.permute.xlu0 %5619
      %5621 = vrot.lane.b32.xlu0 %v3072, 32
      %v5622 = vpop.permute.xlu0 %5621
      %5623 = vrot.lane.b32.xlu0 %v3073, 32
      %v5624 = vpop.permute.xlu0 %5623
      %5625 = vrot.lane.b32.xlu0 %v3074, 32
      %v5626 = vpop.permute.xlu0 %5625
      %5627 = vrot.lane.b32.xlu0 %v3075, 32
      %v5628 = vpop.permute.xlu0 %5627
      %5629 = vrot.lane.b32.xlu0 %v3076, 32
      %v5630 = vpop.permute.xlu0 %5629
      %5631 = vrot.lane.b32.xlu0 %v3077, 32
      %v5632 = vpop.permute.xlu0 %5631
      %5633 = vrot.lane.b32.xlu0 %v3078, 32
      %v5634 = vpop.permute.xlu0 %5633
      %5643 = vmatpush.bf16.msra.mxu0 %v5634
      %5644 = vmatpush.bf16.msra.mxu0 %v5632
      %5645 = vmatpush.bf16.msra.mxu0 %v5630
      %5646 = vmatpush.bf16.msra.mxu0 %v5628
      %5647 = vmatpush.bf16.msra.mxu0 %v5626
      %5648 = vmatpush.bf16.msra.mxu0 %v5624
      %5649 = vmatpush.bf16.msra.mxu0 %v5622
      %5650 = vmatpush.bf16.msra.mxu0 %v5620
      %5651 = vmatmul.bf16.gmra.mxu0 %v5603
      %v5652 = vpop.f32.mrf.mxu0
      %v5653 = vadd.f32 0.0, %v5652
      %v5654 = vpop.f32.mrf.mxu0
      %v5655 = vadd.f32 0.0, %v5654
      %5656 = vmatmul.bf16.gmra.mxu0 %v5604
      %v5657 = vpop.f32.mrf.mxu0
      %v5658 = vadd.f32 0.0, %v5657
      %v5659 = vpop.f32.mrf.mxu0
      %v5660 = vadd.f32 0.0, %v5659
      %5661 = vmatmul.bf16.gmra.mxu0 %v5605
      %v5662 = vpop.f32.mrf.mxu0
      %v5663 = vadd.f32 0.0, %v5662
      %v5664 = vpop.f32.mrf.mxu0
      %v5665 = vadd.f32 0.0, %v5664
      %5666 = vmatmul.bf16.gmra.mxu0 %v5606
      %v5667 = vpop.f32.mrf.mxu0
      %v5668 = vadd.f32 0.0, %v5667
      %v5669 = vpop.f32.mrf.mxu0
      %v5670 = vadd.f32 0.0, %v5669
      %5671 = vmatmul.bf16.gmra.mxu0 %v5607
      %v5672 = vpop.f32.mrf.mxu0
      %v5673 = vadd.f32 0.0, %v5672
      %v5674 = vpop.f32.mrf.mxu0
      %v5675 = vadd.f32 0.0, %v5674
      %5676 = vmatmul.bf16.gmra.mxu0 %v5608
      %v5677 = vpop.f32.mrf.mxu0
      %v5678 = vadd.f32 0.0, %v5677
      %v5679 = vpop.f32.mrf.mxu0
      %v5680 = vadd.f32 0.0, %v5679
      %5681 = vmatmul.bf16.gmra.mxu0 %v5609
      %v5682 = vpop.f32.mrf.mxu0
      %v5683 = vadd.f32 0.0, %v5682
      %v5684 = vpop.f32.mrf.mxu0
      %v5685 = vadd.f32 0.0, %v5684
      %5686 = vmatmul.bf16.gmra.mxu0 %v5610
      %v5687 = vpop.f32.mrf.mxu0
      %v5688 = vadd.f32 0.0, %v5687
      %v5689 = vpop.f32.mrf.mxu0
      %v5690 = vadd.f32 0.0, %v5689
      %5691 = vdwg.mxu0
      %5724 = vrot.lane.b32.xlu0 %v3828, 32
      %v5725 = vpop.permute.xlu0 %5724
      %5726 = vrot.lane.b32.xlu0 %v3830, 32
      %v5727 = vpop.permute.xlu0 %5726
      %5728 = vrot.lane.b32.xlu0 %v3833, 32
      %v5729 = vpop.permute.xlu0 %5728
      %5730 = vrot.lane.b32.xlu0 %v3835, 32
      %v5731 = vpop.permute.xlu0 %5730
      %5732 = vrot.lane.b32.xlu0 %v3838, 32
      %v5733 = vpop.permute.xlu0 %5732
      %5734 = vrot.lane.b32.xlu0 %v3840, 32
      %v5735 = vpop.permute.xlu0 %5734
      %5736 = vrot.lane.b32.xlu0 %v3843, 32
      %v5737 = vpop.permute.xlu0 %5736
      %5738 = vrot.lane.b32.xlu0 %v3845, 32
      %v5739 = vpop.permute.xlu0 %5738
      %5740 = vrot.lane.b32.xlu0 %v3848, 32
      %v5741 = vpop.permute.xlu0 %5740
      %5742 = vrot.lane.b32.xlu0 %v3850, 32
      %v5743 = vpop.permute.xlu0 %5742
      %5744 = vrot.lane.b32.xlu0 %v3853, 32
      %v5745 = vpop.permute.xlu0 %5744
      %5746 = vrot.lane.b32.xlu0 %v3855, 32
      %v5747 = vpop.permute.xlu0 %5746
      %5748 = vrot.lane.b32.xlu0 %v3858, 32
      %v5749 = vpop.permute.xlu0 %5748
      %5750 = vrot.lane.b32.xlu0 %v3860, 32
      %v5751 = vpop.permute.xlu0 %5750
      %5752 = vrot.lane.b32.xlu0 %v3863, 32
      %v5753 = vpop.permute.xlu0 %5752
      %5754 = vrot.lane.b32.xlu0 %v3865, 32
      %v5755 = vpop.permute.xlu0 %5754
      %5756 = vrot.lane.b32.xlu0 %v3949, 32
      %v5757 = vpop.permute.xlu0 %5756
      %5758 = vrot.lane.b32.xlu0 %v3951, 32
      %v5759 = vpop.permute.xlu0 %5758
      %5760 = vrot.lane.b32.xlu0 %v3954, 32
      %v5761 = vpop.permute.xlu0 %5760
      %5762 = vrot.lane.b32.xlu0 %v3956, 32
      %v5763 = vpop.permute.xlu0 %5762
      %5764 = vrot.lane.b32.xlu0 %v3959, 32
      %v5765 = vpop.permute.xlu0 %5764
      %5766 = vrot.lane.b32.xlu0 %v3961, 32
      %v5767 = vpop.permute.xlu0 %5766
      %5768 = vrot.lane.b32.xlu0 %v3964, 32
      %v5769 = vpop.permute.xlu0 %5768
      %5770 = vrot.lane.b32.xlu0 %v3966, 32
      %v5771 = vpop.permute.xlu0 %5770
      %5772 = vrot.lane.b32.xlu0 %v3969, 32
      %v5773 = vpop.permute.xlu0 %5772
      %5774 = vrot.lane.b32.xlu0 %v3971, 32
      %v5775 = vpop.permute.xlu0 %5774
      %5776 = vrot.lane.b32.xlu0 %v3974, 32
      %v5777 = vpop.permute.xlu0 %5776
      %5778 = vrot.lane.b32.xlu0 %v3976, 32
      %v5779 = vpop.permute.xlu0 %5778
      %5780 = vrot.lane.b32.xlu0 %v3979, 32
      %v5781 = vpop.permute.xlu0 %5780
      %5782 = vrot.lane.b32.xlu0 %v3981, 32
      %v5783 = vpop.permute.xlu0 %5782
      %5784 = vrot.lane.b32.xlu0 %v3984, 32
      %v5785 = vpop.permute.xlu0 %5784
      %5786 = vrot.lane.b32.xlu0 %v3986, 32
      %v5787 = vpop.permute.xlu0 %5786
      %5852 = vrot.lane.b32.xlu0 %v4680, 64
      %v5853 = vpop.permute.xlu0 %5852
      %5854 = vrot.lane.b32.xlu0 %v4682, 64
      %v5855 = vpop.permute.xlu0 %5854
      %5856 = vrot.lane.b32.xlu0 %v4685, 64
      %v5857 = vpop.permute.xlu0 %5856
      %5858 = vrot.lane.b32.xlu0 %v4687, 64
      %v5859 = vpop.permute.xlu0 %5858
      %5860 = vrot.lane.b32.xlu0 %v4690, 64
      %v5861 = vpop.permute.xlu0 %5860
      %5862 = vrot.lane.b32.xlu0 %v4692, 64
      %v5863 = vpop.permute.xlu0 %5862
      %5864 = vrot.lane.b32.xlu0 %v4695, 64
      %v5865 = vpop.permute.xlu0 %5864
      %5866 = vrot.lane.b32.xlu0 %v4697, 64
      %v5867 = vpop.permute.xlu0 %5866
      %5868 = vrot.lane.b32.xlu0 %v4700, 64
      %v5869 = vpop.permute.xlu0 %5868
      %5870 = vrot.lane.b32.xlu0 %v4702, 64
      %v5871 = vpop.permute.xlu0 %5870
      %5872 = vrot.lane.b32.xlu0 %v4705, 64
      %v5873 = vpop.permute.xlu0 %5872
      %5874 = vrot.lane.b32.xlu0 %v4707, 64
      %v5875 = vpop.permute.xlu0 %5874
      %5876 = vrot.lane.b32.xlu0 %v4710, 64
      %v5877 = vpop.permute.xlu0 %5876
      %5878 = vrot.lane.b32.xlu0 %v4712, 64
      %v5879 = vpop.permute.xlu0 %5878
      %5880 = vrot.lane.b32.xlu0 %v4715, 64
      %v5881 = vpop.permute.xlu0 %5880
      %5882 = vrot.lane.b32.xlu0 %v4717, 64
      %v5883 = vpop.permute.xlu0 %5882
      %5884 = vrot.lane.b32.xlu0 %v4801, 64
      %v5885 = vpop.permute.xlu0 %5884
      %5886 = vrot.lane.b32.xlu0 %v4803, 64
      %v5887 = vpop.permute.xlu0 %5886
      %5888 = vrot.lane.b32.xlu0 %v4806, 64
      %v5889 = vpop.permute.xlu0 %5888
      %5890 = vrot.lane.b32.xlu0 %v4808, 64
      %v5891 = vpop.permute.xlu0 %5890
      %5892 = vrot.lane.b32.xlu0 %v4811, 64
      %v5893 = vpop.permute.xlu0 %5892
      %5894 = vrot.lane.b32.xlu0 %v4813, 64
      %v5895 = vpop.permute.xlu0 %5894
      %5896 = vrot.lane.b32.xlu0 %v4816, 64
      %v5897 = vpop.permute.xlu0 %5896
      %5898 = vrot.lane.b32.xlu0 %v4818, 64
      %v5899 = vpop.permute.xlu0 %5898
      %5900 = vrot.lane.b32.xlu0 %v4821, 64
      %v5901 = vpop.permute.xlu0 %5900
      %5902 = vrot.lane.b32.xlu0 %v4823, 64
      %v5903 = vpop.permute.xlu0 %5902
      %5904 = vrot.lane.b32.xlu0 %v4826, 64
      %v5905 = vpop.permute.xlu0 %5904
      %5906 = vrot.lane.b32.xlu0 %v4828, 64
      %v5907 = vpop.permute.xlu0 %5906
      %5908 = vrot.lane.b32.xlu0 %v4831, 64
      %v5909 = vpop.permute.xlu0 %5908
      %5910 = vrot.lane.b32.xlu0 %v4833, 64
      %v5911 = vpop.permute.xlu0 %5910
      %5912 = vrot.lane.b32.xlu0 %v4836, 64
      %v5913 = vpop.permute.xlu0 %5912
      %5914 = vrot.lane.b32.xlu0 %v4838, 64
      %v5915 = vpop.permute.xlu0 %5914
      %5980 = vrot.lane.b32.xlu0 %v5532, 96
      %v5981 = vpop.permute.xlu0 %5980
      %5982 = vrot.lane.b32.xlu0 %v5534, 96
      %v5983 = vpop.permute.xlu0 %5982
      %5984 = vrot.lane.b32.xlu0 %v5537, 96
      %v5985 = vpop.permute.xlu0 %5984
      %5986 = vrot.lane.b32.xlu0 %v5539, 96
      %v5987 = vpop.permute.xlu0 %5986
      %5988 = vrot.lane.b32.xlu0 %v5542, 96
      %v5989 = vpop.permute.xlu0 %5988
      %5990 = vrot.lane.b32.xlu0 %v5544, 96
      %v5991 = vpop.permute.xlu0 %5990
      %5992 = vrot.lane.b32.xlu0 %v5547, 96
      %v5993 = vpop.permute.xlu0 %5992
      %5994 = vrot.lane.b32.xlu0 %v5549, 96
      %v5995 = vpop.permute.xlu0 %5994
      %5996 = vrot.lane.b32.xlu0 %v5552, 96
      %v5997 = vpop.permute.xlu0 %5996
      %5998 = vrot.lane.b32.xlu0 %v5554, 96
      %v5999 = vpop.permute.xlu0 %5998
      %6000 = vrot.lane.b32.xlu0 %v5557, 96
      %v6001 = vpop.permute.xlu0 %6000
      %6002 = vrot.lane.b32.xlu0 %v5559, 96
      %v6003 = vpop.permute.xlu0 %6002
      %6004 = vrot.lane.b32.xlu0 %v5562, 96
      %v6005 = vpop.permute.xlu0 %6004
      %6006 = vrot.lane.b32.xlu0 %v5564, 96
      %v6007 = vpop.permute.xlu0 %6006
      %6008 = vrot.lane.b32.xlu0 %v5567, 96
      %v6009 = vpop.permute.xlu0 %6008
      %6010 = vrot.lane.b32.xlu0 %v5569, 96
      %v6011 = vpop.permute.xlu0 %6010
      %6012 = vrot.lane.b32.xlu0 %v5653, 96
      %v6013 = vpop.permute.xlu0 %6012
      %6014 = vrot.lane.b32.xlu0 %v5655, 96
      %v6015 = vpop.permute.xlu0 %6014
      %6016 = vrot.lane.b32.xlu0 %v5658, 96
      %v6017 = vpop.permute.xlu0 %6016
      %6018 = vrot.lane.b32.xlu0 %v5660, 96
      %v6019 = vpop.permute.xlu0 %6018
      %6020 = vrot.lane.b32.xlu0 %v5663, 96
      %v6021 = vpop.permute.xlu0 %6020
      %6022 = vrot.lane.b32.xlu0 %v5665, 96
      %v6023 = vpop.permute.xlu0 %6022
      %6024 = vrot.lane.b32.xlu0 %v5668, 96
      %v6025 = vpop.permute.xlu0 %6024
      %6026 = vrot.lane.b32.xlu0 %v5670, 96
      %v6027 = vpop.permute.xlu0 %6026
      %6028 = vrot.lane.b32.xlu0 %v5673, 96
      %v6029 = vpop.permute.xlu0 %6028
      %6030 = vrot.lane.b32.xlu0 %v5675, 96
      %v6031 = vpop.permute.xlu0 %6030
      %6032 = vrot.lane.b32.xlu0 %v5678, 96
      %v6033 = vpop.permute.xlu0 %6032
      %6034 = vrot.lane.b32.xlu0 %v5680, 96
      %v6035 = vpop.permute.xlu0 %6034
      %6036 = vrot.lane.b32.xlu0 %v5683, 96
      %v6037 = vpop.permute.xlu0 %6036
      %6038 = vrot.lane.b32.xlu0 %v5685, 96
      %v6039 = vpop.permute.xlu0 %6038
      %6040 = vrot.lane.b32.xlu0 %v5688, 96
      %v6041 = vpop.permute.xlu0 %6040
      %6042 = vrot.lane.b32.xlu0 %v5690, 96
      %v6043 = vpop.permute.xlu0 %6042
      %v6076 = vsel %vm2217, %v2952, %v5725
      %v6077 = vsel %vm2217, %v2954, %v5727
      %v6078 = vsel %vm2217, %v2957, %v5729
      %v6079 = vsel %vm2217, %v2959, %v5731
      %v6080 = vsel %vm2217, %v2962, %v5733
      %v6081 = vsel %vm2217, %v2964, %v5735
      %v6082 = vsel %vm2217, %v2967, %v5737
      %v6083 = vsel %vm2217, %v2969, %v5739
      %v6084 = vsel %vm2217, %v2972, %v5741
      %v6085 = vsel %vm2217, %v2974, %v5743
      %v6086 = vsel %vm2217, %v2977, %v5745
      %v6087 = vsel %vm2217, %v2979, %v5747
      %v6088 = vsel %vm2217, %v2982, %v5749
      %v6089 = vsel %vm2217, %v2984, %v5751
      %v6090 = vsel %vm2217, %v2987, %v5753
      %v6091 = vsel %vm2217, %v2989, %v5755
      %v6092 = vsel %vm2217, %v3097, %v5757
      %v6093 = vsel %vm2217, %v3099, %v5759
      %v6094 = vsel %vm2217, %v3102, %v5761
      %v6095 = vsel %vm2217, %v3104, %v5763
      %v6096 = vsel %vm2217, %v3107, %v5765
      %v6097 = vsel %vm2217, %v3109, %v5767
      %v6098 = vsel %vm2217, %v3112, %v5769
      %v6099 = vsel %vm2217, %v3114, %v5771
      %v6100 = vsel %vm2217, %v3117, %v5773
      %v6101 = vsel %vm2217, %v3119, %v5775
      %v6102 = vsel %vm2217, %v3122, %v5777
      %v6103 = vsel %vm2217, %v3124, %v5779
      %v6104 = vsel %vm2217, %v3127, %v5781
      %v6105 = vsel %vm2217, %v3129, %v5783
      %v6106 = vsel %vm2217, %v3132, %v5785
      %v6107 = vsel %vm2217, %v3134, %v5787
      %vm6108 = vcmask 523264
      %v6109 = vsel %vm6108, %v6076, %v5853
      %v6110 = vsel %vm6108, %v6077, %v5855
      %v6111 = vsel %vm6108, %v6078, %v5857
      %v6112 = vsel %vm6108, %v6079, %v5859
      %v6113 = vsel %vm6108, %v6080, %v5861
      %v6114 = vsel %vm6108, %v6081, %v5863
      %v6115 = vsel %vm6108, %v6082, %v5865
      %v6116 = vsel %vm6108, %v6083, %v5867
      %v6117 = vsel %vm6108, %v6084, %v5869
      %v6118 = vsel %vm6108, %v6085, %v5871
      %v6119 = vsel %vm6108, %v6086, %v5873
      %v6120 = vsel %vm6108, %v6087, %v5875
      %v6121 = vsel %vm6108, %v6088, %v5877
      %v6122 = vsel %vm6108, %v6089, %v5879
      %v6123 = vsel %vm6108, %v6090, %v5881
      %v6124 = vsel %vm6108, %v6091, %v5883
      %v6125 = vsel %vm6108, %v6092, %v5885
      %v6126 = vsel %vm6108, %v6093, %v5887
      %v6127 = vsel %vm6108, %v6094, %v5889
      %v6128 = vsel %vm6108, %v6095, %v5891
      %v6129 = vsel %vm6108, %v6096, %v5893
      %v6130 = vsel %vm6108, %v6097, %v5895
      %v6131 = vsel %vm6108, %v6098, %v5897
      %v6132 = vsel %vm6108, %v6099, %v5899
      %v6133 = vsel %vm6108, %v6100, %v5901
      %v6134 = vsel %vm6108, %v6101, %v5903
      %v6135 = vsel %vm6108, %v6102, %v5905
      %v6136 = vsel %vm6108, %v6103, %v5907
      %v6137 = vsel %vm6108, %v6104, %v5909
      %v6138 = vsel %vm6108, %v6105, %v5911
      %v6139 = vsel %vm6108, %v6106, %v5913
      %v6140 = vsel %vm6108, %v6107, %v5915
      %vm6141 = vcmask 785408
      %v6142 = vsel %vm6141, %v6109, %v5981
      %v6143 = vsel %vm6141, %v6110, %v5983
      %v6144 = vsel %vm6141, %v6111, %v5985
      %v6145 = vsel %vm6141, %v6112, %v5987
      %v6146 = vsel %vm6141, %v6113, %v5989
      %v6147 = vsel %vm6141, %v6114, %v5991
      %v6148 = vsel %vm6141, %v6115, %v5993
      %v6149 = vsel %vm6141, %v6116, %v5995
      %v6150 = vsel %vm6141, %v6117, %v5997
      %v6151 = vsel %vm6141, %v6118, %v5999
      %v6152 = vsel %vm6141, %v6119, %v6001
      %v6153 = vsel %vm6141, %v6120, %v6003
      %v6154 = vsel %vm6141, %v6121, %v6005
      %v6155 = vsel %vm6141, %v6122, %v6007
      %v6156 = vsel %vm6141, %v6123, %v6009
      %v6157 = vsel %vm6141, %v6124, %v6011
      %v6158 = vsel %vm6141, %v6125, %v6013
      %v6159 = vsel %vm6141, %v6126, %v6015
      %v6160 = vsel %vm6141, %v6127, %v6017
      %v6161 = vsel %vm6141, %v6128, %v6019
      %v6162 = vsel %vm6141, %v6129, %v6021
      %v6163 = vsel %vm6141, %v6130, %v6023
      %v6164 = vsel %vm6141, %v6131, %v6025
      %v6165 = vsel %vm6141, %v6132, %v6027
      %v6166 = vsel %vm6141, %v6133, %v6029
      %v6167 = vsel %vm6141, %v6134, %v6031
      %v6168 = vsel %vm6141, %v6135, %v6033
      %v6169 = vsel %vm6141, %v6136, %v6035
      %v6170 = vsel %vm6141, %v6137, %v6037
      %v6171 = vsel %vm6141, %v6138, %v6039
      %v6172 = vsel %vm6141, %v6139, %v6041
      %v6173 = vsel %vm6141, %v6140, %v6043
      %v6174 = vpack.c.bf16 %v6143, %v6142
      %v6175 = vpack.c.bf16 %v6145, %v6144
      %v6176 = vpack.c.bf16 %v6147, %v6146
      %v6177 = vpack.c.bf16 %v6149, %v6148
      %v6178 = vpack.c.bf16 %v6151, %v6150
      %v6179 = vpack.c.bf16 %v6153, %v6152
      %v6180 = vpack.c.bf16 %v6155, %v6154
      %v6181 = vpack.c.bf16 %v6157, %v6156
      %v6182 = vpack.c.bf16 %v6159, %v6158
      %v6183 = vpack.c.bf16 %v6161, %v6160
      %v6184 = vpack.c.bf16 %v6163, %v6162
      %v6185 = vpack.c.bf16 %v6165, %v6164
      %v6186 = vpack.c.bf16 %v6167, %v6166
      %v6187 = vpack.c.bf16 %v6169, %v6168
      %v6188 = vpack.c.bf16 %v6171, %v6170
      %v6189 = vpack.c.bf16 %v6173, %v6172
      %v6190 = vld [vmem:[%s656] sm:$0xf]
      %v6191 = vld [vmem:[%s656 + $0x4] sm:$0xf]
      %v6192 = vld [vmem:[%s656 + $0x8] sm:$0xf]
      %v6193 = vld [vmem:[%s656 + $0xc] sm:$0xf]
      %v6194 = vld [vmem:[%s656 + $0x10] sm:$0xf]
      %v6195 = vld [vmem:[%s656 + $0x14] sm:$0xf]
      %v6196 = vld [vmem:[%s656 + $0x18] sm:$0xf]
      %v6197 = vld [vmem:[%s656 + $0x1c] sm:$0xf]
      %v6198 = vld [vmem:[%s656 + $0x20] sm:$0xf]
      %v6199 = vld [vmem:[%s656 + $0x24] sm:$0xf]
      %v6200 = vld [vmem:[%s656 + $0x28] sm:$0xf]
      %v6201 = vld [vmem:[%s656 + $0x2c] sm:$0xf]
      %v6202 = vld [vmem:[%s656 + $0x30] sm:$0xf]
      %v6203 = vld [vmem:[%s656 + $0x34] sm:$0xf]
      %v6204 = vld [vmem:[%s656 + $0x38] sm:$0xf]
      %v6205 = vld [vmem:[%s656 + $0x3c] sm:$0xf]
      %v6206 = vld [vmem:[%s659] sm:$0x1]
      %v6208 = vperm.slane %v6206, 0
      %v6226 = vunpack.c.l.b16 %v6190
      %v6227 = vunpack.c.l.b16 %v6191
      %v6228 = vunpack.c.l.b16 %v6192
      %v6229 = vunpack.c.l.b16 %v6193
      %v6230 = vunpack.c.l.b16 %v6194
      %v6231 = vunpack.c.l.b16 %v6195
      %v6232 = vunpack.c.l.b16 %v6196
      %v6233 = vunpack.c.l.b16 %v6197
      %v6234 = vunpack.c.l.b16 %v6198
      %v6235 = vunpack.c.l.b16 %v6199
      %v6236 = vunpack.c.l.b16 %v6200
      %v6237 = vunpack.c.l.b16 %v6201
      %v6238 = vunpack.c.l.b16 %v6202
      %v6239 = vunpack.c.l.b16 %v6203
      %v6240 = vunpack.c.l.b16 %v6204
      %v6241 = vunpack.c.l.b16 %v6205
      %v6242 = vpack.c.b16 %v6227, %v6226
      %v6243 = vpack.c.b16 %v6229, %v6228
      %v6244 = vpack.c.b16 %v6231, %v6230
      %v6245 = vpack.c.b16 %v6233, %v6232
      %v6246 = vpack.c.b16 %v6235, %v6234
      %v6247 = vpack.c.b16 %v6237, %v6236
      %v6248 = vpack.c.b16 %v6239, %v6238
      %v6249 = vpack.c.b16 %v6241, %v6240
      %6258 = vmatpush.bf16.msra.mxu0 %v6249
      %6259 = vmatpush.bf16.msra.mxu0 %v6248
      %6260 = vmatpush.bf16.msra.mxu0 %v6247
      %6261 = vmatpush.bf16.msra.mxu0 %v6246
      %6262 = vmatpush.bf16.msra.mxu0 %v6245
      %6263 = vmatpush.bf16.msra.mxu0 %v6244
      %6264 = vmatpush.bf16.msra.mxu0 %v6243
      %6265 = vmatpush.bf16.msra.mxu0 %v6242
      %6266 = vmatmul.bf16.gmra.mxu0 %v6174
      %v6267 = vpop.f32.mrf.mxu0
      %v6268 = vadd.f32 %v6208, %v6267
      %v6269 = vpop.f32.mrf.mxu0
      %v6270 = vadd.f32 %v6208, %v6269
      %6271 = vmatmul.bf16.gmra.mxu0 %v6175
      %v6272 = vpop.f32.mrf.mxu0
      %v6273 = vadd.f32 %v6208, %v6272
      %v6274 = vpop.f32.mrf.mxu0
      %v6275 = vadd.f32 %v6208, %v6274
      %6276 = vmatmul.bf16.gmra.mxu0 %v6176
      %v6277 = vpop.f32.mrf.mxu0
      %v6278 = vadd.f32 %v6208, %v6277
      %v6279 = vpop.f32.mrf.mxu0
      %v6280 = vadd.f32 %v6208, %v6279
      %6281 = vmatmul.bf16.gmra.mxu0 %v6177
      %v6282 = vpop.f32.mrf.mxu0
      %v6283 = vadd.f32 %v6208, %v6282
      %v6284 = vpop.f32.mrf.mxu0
      %v6285 = vadd.f32 %v6208, %v6284
      %6286 = vmatmul.bf16.gmra.mxu0 %v6178
      %v6287 = vpop.f32.mrf.mxu0
      %v6288 = vadd.f32 %v6208, %v6287
      %v6289 = vpop.f32.mrf.mxu0
      %v6290 = vadd.f32 %v6208, %v6289
      %6291 = vmatmul.bf16.gmra.mxu0 %v6179
      %v6292 = vpop.f32.mrf.mxu0
      %v6293 = vadd.f32 %v6208, %v6292
      %v6294 = vpop.f32.mrf.mxu0
      %v6295 = vadd.f32 %v6208, %v6294
      %6296 = vmatmul.bf16.gmra.mxu0 %v6180
      %v6297 = vpop.f32.mrf.mxu0
      %v6298 = vadd.f32 %v6208, %v6297
      %v6299 = vpop.f32.mrf.mxu0
      %v6300 = vadd.f32 %v6208, %v6299
      %6301 = vmatmul.bf16.gmra.mxu0 %v6181
      %v6302 = vpop.f32.mrf.mxu0
      %v6303 = vadd.f32 %v6208, %v6302
      %v6304 = vpop.f32.mrf.mxu0
      %v6305 = vadd.f32 %v6208, %v6304
      %6306 = vmatmul.bf16.gmra.mxu0 %v6182
      %v6307 = vpop.f32.mrf.mxu0
      %v6308 = vadd.f32 %v6208, %v6307
      %v6309 = vpop.f32.mrf.mxu0
      %v6310 = vadd.f32 %v6208, %v6309
      %6311 = vmatmul.bf16.gmra.mxu0 %v6183
      %v6312 = vpop.f32.mrf.mxu0
      %v6313 = vadd.f32 %v6208, %v6312
      %v6314 = vpop.f32.mrf.mxu0
      %v6315 = vadd.f32 %v6208, %v6314
      %6316 = vmatmul.bf16.gmra.mxu0 %v6184
      %v6317 = vpop.f32.mrf.mxu0
      %v6318 = vadd.f32 %v6208, %v6317
      %v6319 = vpop.f32.mrf.mxu0
      %v6320 = vadd.f32 %v6208, %v6319
      %6321 = vmatmul.bf16.gmra.mxu0 %v6185
      %v6322 = vpop.f32.mrf.mxu0
      %v6323 = vadd.f32 %v6208, %v6322
      %v6324 = vpop.f32.mrf.mxu0
      %v6325 = vadd.f32 %v6208, %v6324
      %6326 = vmatmul.bf16.gmra.mxu0 %v6186
      %v6327 = vpop.f32.mrf.mxu0
      %v6328 = vadd.f32 %v6208, %v6327
      %v6329 = vpop.f32.mrf.mxu0
      %v6330 = vadd.f32 %v6208, %v6329
      %6331 = vmatmul.bf16.gmra.mxu0 %v6187
      %v6332 = vpop.f32.mrf.mxu0
      %v6333 = vadd.f32 %v6208, %v6332
      %v6334 = vpop.f32.mrf.mxu0
      %v6335 = vadd.f32 %v6208, %v6334
      %6336 = vmatmul.bf16.gmra.mxu0 %v6188
      %v6337 = vpop.f32.mrf.mxu0
      %v6338 = vadd.f32 %v6208, %v6337
      %v6339 = vpop.f32.mrf.mxu0
      %v6340 = vadd.f32 %v6208, %v6339
      %6341 = vmatmul.bf16.gmra.mxu0 %v6189
      %v6342 = vpop.f32.mrf.mxu0
      %v6343 = vadd.f32 %v6208, %v6342
      %v6344 = vpop.f32.mrf.mxu0
      %v6345 = vadd.f32 %v6208, %v6344
      %6346 = vdwg.mxu0
      %v6347 = vadd.f32 %v844, %v6268
      %v6348 = vadd.f32 %v845, %v6270
      %v6349 = vadd.f32 %v846, %v6273
      %v6350 = vadd.f32 %v847, %v6275
      %v6351 = vadd.f32 %v848, %v6278
      %v6352 = vadd.f32 %v849, %v6280
      %v6353 = vadd.f32 %v850, %v6283
      %v6354 = vadd.f32 %v851, %v6285
      %v6355 = vadd.f32 %v852, %v6288
      %v6356 = vadd.f32 %v853, %v6290
      %v6357 = vadd.f32 %v854, %v6293
      %v6358 = vadd.f32 %v855, %v6295
      %v6359 = vadd.f32 %v856, %v6298
      %v6360 = vadd.f32 %v857, %v6300
      %v6361 = vadd.f32 %v858, %v6303
      %v6362 = vadd.f32 %v859, %v6305
      %v6363 = vadd.f32 %v860, %v6308
      %v6364 = vadd.f32 %v861, %v6310
      %v6365 = vadd.f32 %v862, %v6313
      %v6366 = vadd.f32 %v863, %v6315
      %v6367 = vadd.f32 %v864, %v6318
      %v6368 = vadd.f32 %v865, %v6320
      %v6369 = vadd.f32 %v866, %v6323
      %v6370 = vadd.f32 %v867, %v6325
      %v6371 = vadd.f32 %v868, %v6328
      %v6372 = vadd.f32 %v869, %v6330
      %v6373 = vadd.f32 %v870, %v6333
      %v6374 = vadd.f32 %v871, %v6335
      %v6375 = vadd.f32 %v872, %v6338
      %v6376 = vadd.f32 %v873, %v6340
      %v6377 = vadd.f32 %v874, %v6343
      %v6378 = vadd.f32 %v875, %v6345
      %v6379 = vld [vmem:[%s668] sm:$0x1]
      %v6380 = vld [vmem:[%s671] sm:$0x1]
      %6381 = vadd.xlane.f32.xlu0 %v6347
      %v6382 = vpop.xlane.xlu0 %6381
      %6383 = vadd.xlane.f32.xlu0 %v6348
      %v6384 = vpop.xlane.xlu0 %6383
      %6385 = vadd.xlane.f32.xlu0 %v6349
      %v6386 = vpop.xlane.xlu0 %6385
      %6387 = vadd.xlane.f32.xlu0 %v6350
      %v6388 = vpop.xlane.xlu0 %6387
      %6389 = vadd.xlane.f32.xlu0 %v6351
      %v6390 = vpop.xlane.xlu0 %6389
      %6391 = vadd.xlane.f32.xlu0 %v6352
      %v6392 = vpop.xlane.xlu0 %6391
      %6393 = vadd.xlane.f32.xlu0 %v6353
      %v6394 = vpop.xlane.xlu0 %6393
      %6395 = vadd.xlane.f32.xlu0 %v6354
      %v6396 = vpop.xlane.xlu0 %6395
      %6397 = vadd.xlane.f32.xlu0 %v6355
      %v6398 = vpop.xlane.xlu0 %6397
      %6399 = vadd.xlane.f32.xlu0 %v6356
      %v6400 = vpop.xlane.xlu0 %6399
      %6401 = vadd.xlane.f32.xlu0 %v6357
      %v6402 = vpop.xlane.xlu0 %6401
      %6403 = vadd.xlane.f32.xlu0 %v6358
      %v6404 = vpop.xlane.xlu0 %6403
      %6405 = vadd.xlane.f32.xlu0 %v6359
      %v6406 = vpop.xlane.xlu0 %6405
      %6407 = vadd.xlane.f32.xlu0 %v6360
      %v6408 = vpop.xlane.xlu0 %6407
      %6409 = vadd.xlane.f32.xlu0 %v6361
      %v6410 = vpop.xlane.xlu0 %6409
      %6411 = vadd.xlane.f32.xlu0 %v6362
      %v6412 = vpop.xlane.xlu0 %6411
      %6413 = vadd.xlane.f32.xlu0 %v6363
      %v6414 = vpop.xlane.xlu0 %6413
      %6415 = vadd.xlane.f32.xlu0 %v6364
      %v6416 = vpop.xlane.xlu0 %6415
      %6417 = vadd.xlane.f32.xlu0 %v6365
      %v6418 = vpop.xlane.xlu0 %6417
      %6419 = vadd.xlane.f32.xlu0 %v6366
      %v6420 = vpop.xlane.xlu0 %6419
      %6421 = vadd.xlane.f32.xlu0 %v6367
      %v6422 = vpop.xlane.xlu0 %6421
      %6423 = vadd.xlane.f32.xlu0 %v6368
      %v6424 = vpop.xlane.xlu0 %6423
      %6425 = vadd.xlane.f32.xlu0 %v6369
      %v6426 = vpop.xlane.xlu0 %6425
      %6427 = vadd.xlane.f32.xlu0 %v6370
      %v6428 = vpop.xlane.xlu0 %6427
      %6429 = vadd.xlane.f32.xlu0 %v6371
      %v6430 = vpop.xlane.xlu0 %6429
      %6431 = vadd.xlane.f32.xlu0 %v6372
      %v6432 = vpop.xlane.xlu0 %6431
      %6433 = vadd.xlane.f32.xlu0 %v6373
      %v6434 = vpop.xlane.xlu0 %6433
      %6435 = vadd.xlane.f32.xlu0 %v6374
      %v6436 = vpop.xlane.xlu0 %6435
      %6437 = vadd.xlane.f32.xlu0 %v6375
      %v6438 = vpop.xlane.xlu0 %6437
      %6439 = vadd.xlane.f32.xlu0 %v6376
      %v6440 = vpop.xlane.xlu0 %6439
      %6441 = vadd.xlane.f32.xlu0 %v6377
      %v6442 = vpop.xlane.xlu0 %6441
      %6443 = vadd.xlane.f32.xlu0 %v6378
      %v6444 = vpop.xlane.xlu0 %6443
      %v6445 = vmul.f32 %v6382, %v948
      %v6446 = vmul.f32 %v6384, %v948
      %v6447 = vmul.f32 %v6386, %v948
      %v6448 = vmul.f32 %v6388, %v948
      %v6449 = vmul.f32 %v6390, %v948
      %v6450 = vmul.f32 %v6392, %v948
      %v6451 = vmul.f32 %v6394, %v948
      %v6452 = vmul.f32 %v6396, %v948
      %v6453 = vmul.f32 %v6398, %v948
      %v6454 = vmul.f32 %v6400, %v948
      %v6455 = vmul.f32 %v6402, %v948
      %v6456 = vmul.f32 %v6404, %v948
      %v6457 = vmul.f32 %v6406, %v948
      %v6458 = vmul.f32 %v6408, %v948
      %v6459 = vmul.f32 %v6410, %v948
      %v6460 = vmul.f32 %v6412, %v948
      %v6461 = vmul.f32 %v6414, %v948
      %v6462 = vmul.f32 %v6416, %v948
      %v6463 = vmul.f32 %v6418, %v948
      %v6464 = vmul.f32 %v6420, %v948
      %v6465 = vmul.f32 %v6422, %v948
      %v6466 = vmul.f32 %v6424, %v948
      %v6467 = vmul.f32 %v6426, %v948
      %v6468 = vmul.f32 %v6428, %v948
      %v6469 = vmul.f32 %v6430, %v948
      %v6470 = vmul.f32 %v6432, %v948
      %v6471 = vmul.f32 %v6434, %v948
      %v6472 = vmul.f32 %v6436, %v948
      %v6473 = vmul.f32 %v6438, %v948
      %v6474 = vmul.f32 %v6440, %v948
      %v6475 = vmul.f32 %v6442, %v948
      %v6476 = vmul.f32 %v6444, %v948
      %v6477 = vsub.f32 %v6347, %v6445
      %v6478 = vsub.f32 %v6348, %v6446
      %v6479 = vsub.f32 %v6349, %v6447
      %v6480 = vsub.f32 %v6350, %v6448
      %v6481 = vsub.f32 %v6351, %v6449
      %v6482 = vsub.f32 %v6352, %v6450
      %v6483 = vsub.f32 %v6353, %v6451
      %v6484 = vsub.f32 %v6354, %v6452
      %v6485 = vsub.f32 %v6355, %v6453
      %v6486 = vsub.f32 %v6356, %v6454
      %v6487 = vsub.f32 %v6357, %v6455
      %v6488 = vsub.f32 %v6358, %v6456
      %v6489 = vsub.f32 %v6359, %v6457
      %v6490 = vsub.f32 %v6360, %v6458
      %v6491 = vsub.f32 %v6361, %v6459
      %v6492 = vsub.f32 %v6362, %v6460
      %v6493 = vsub.f32 %v6363, %v6461
      %v6494 = vsub.f32 %v6364, %v6462
      %v6495 = vsub.f32 %v6365, %v6463
      %v6496 = vsub.f32 %v6366, %v6464
      %v6497 = vsub.f32 %v6367, %v6465
      %v6498 = vsub.f32 %v6368, %v6466
      %v6499 = vsub.f32 %v6369, %v6467
      %v6500 = vsub.f32 %v6370, %v6468
      %v6501 = vsub.f32 %v6371, %v6469
      %v6502 = vsub.f32 %v6372, %v6470
      %v6503 = vsub.f32 %v6373, %v6471
      %v6504 = vsub.f32 %v6374, %v6472
      %v6505 = vsub.f32 %v6375, %v6473
      %v6506 = vsub.f32 %v6376, %v6474
      %v6507 = vsub.f32 %v6377, %v6475
      %v6508 = vsub.f32 %v6378, %v6476
      %v6509 = vmul.f32 %v6477, %v6477
      %v6510 = vmul.f32 %v6478, %v6478
      %v6511 = vmul.f32 %v6479, %v6479
      %v6512 = vmul.f32 %v6480, %v6480
      %v6513 = vmul.f32 %v6481, %v6481
      %v6514 = vmul.f32 %v6482, %v6482
      %v6515 = vmul.f32 %v6483, %v6483
      %v6516 = vmul.f32 %v6484, %v6484
      %v6517 = vmul.f32 %v6485, %v6485
      %v6518 = vmul.f32 %v6486, %v6486
      %v6519 = vmul.f32 %v6487, %v6487
      %v6520 = vmul.f32 %v6488, %v6488
      %v6521 = vmul.f32 %v6489, %v6489
      %v6522 = vmul.f32 %v6490, %v6490
      %v6523 = vmul.f32 %v6491, %v6491
      %v6524 = vmul.f32 %v6492, %v6492
      %v6525 = vmul.f32 %v6493, %v6493
      %v6526 = vmul.f32 %v6494, %v6494
      %v6527 = vmul.f32 %v6495, %v6495
      %v6528 = vmul.f32 %v6496, %v6496
      %v6529 = vmul.f32 %v6497, %v6497
      %v6530 = vmul.f32 %v6498, %v6498
      %v6531 = vmul.f32 %v6499, %v6499
      %v6532 = vmul.f32 %v6500, %v6500
      %v6533 = vmul.f32 %v6501, %v6501
      %v6534 = vmul.f32 %v6502, %v6502
      %v6535 = vmul.f32 %v6503, %v6503
      %v6536 = vmul.f32 %v6504, %v6504
      %v6537 = vmul.f32 %v6505, %v6505
      %v6538 = vmul.f32 %v6506, %v6506
      %v6539 = vmul.f32 %v6507, %v6507
      %v6540 = vmul.f32 %v6508, %v6508
      %6541 = vadd.xlane.f32.xlu0 %v6509
      %v6542 = vpop.xlane.xlu0 %6541
      %6543 = vadd.xlane.f32.xlu0 %v6510
      %v6544 = vpop.xlane.xlu0 %6543
      %6545 = vadd.xlane.f32.xlu0 %v6511
      %v6546 = vpop.xlane.xlu0 %6545
      %6547 = vadd.xlane.f32.xlu0 %v6512
      %v6548 = vpop.xlane.xlu0 %6547
      %6549 = vadd.xlane.f32.xlu0 %v6513
      %v6550 = vpop.xlane.xlu0 %6549
      %6551 = vadd.xlane.f32.xlu0 %v6514
      %v6552 = vpop.xlane.xlu0 %6551
      %6553 = vadd.xlane.f32.xlu0 %v6515
      %v6554 = vpop.xlane.xlu0 %6553
      %6555 = vadd.xlane.f32.xlu0 %v6516
      %v6556 = vpop.xlane.xlu0 %6555
      %6557 = vadd.xlane.f32.xlu0 %v6517
      %v6558 = vpop.xlane.xlu0 %6557
      %6559 = vadd.xlane.f32.xlu0 %v6518
      %v6560 = vpop.xlane.xlu0 %6559
      %6561 = vadd.xlane.f32.xlu0 %v6519
      %v6562 = vpop.xlane.xlu0 %6561
      %6563 = vadd.xlane.f32.xlu0 %v6520
      %v6564 = vpop.xlane.xlu0 %6563
      %6565 = vadd.xlane.f32.xlu0 %v6521
      %v6566 = vpop.xlane.xlu0 %6565
      %6567 = vadd.xlane.f32.xlu0 %v6522
      %v6568 = vpop.xlane.xlu0 %6567
      %6569 = vadd.xlane.f32.xlu0 %v6523
      %v6570 = vpop.xlane.xlu0 %6569
      %6571 = vadd.xlane.f32.xlu0 %v6524
      %v6572 = vpop.xlane.xlu0 %6571
      %6573 = vadd.xlane.f32.xlu0 %v6525
      %v6574 = vpop.xlane.xlu0 %6573
      %6575 = vadd.xlane.f32.xlu0 %v6526
      %v6576 = vpop.xlane.xlu0 %6575
      %6577 = vadd.xlane.f32.xlu0 %v6527
      %v6578 = vpop.xlane.xlu0 %6577
      %6579 = vadd.xlane.f32.xlu0 %v6528
      %v6580 = vpop.xlane.xlu0 %6579
      %6581 = vadd.xlane.f32.xlu0 %v6529
      %v6582 = vpop.xlane.xlu0 %6581
      %6583 = vadd.xlane.f32.xlu0 %v6530
      %v6584 = vpop.xlane.xlu0 %6583
      %6585 = vadd.xlane.f32.xlu0 %v6531
      %v6586 = vpop.xlane.xlu0 %6585
      %6587 = vadd.xlane.f32.xlu0 %v6532
      %v6588 = vpop.xlane.xlu0 %6587
      %6589 = vadd.xlane.f32.xlu0 %v6533
      %v6590 = vpop.xlane.xlu0 %6589
      %6591 = vadd.xlane.f32.xlu0 %v6534
      %v6592 = vpop.xlane.xlu0 %6591
      %6593 = vadd.xlane.f32.xlu0 %v6535
      %v6594 = vpop.xlane.xlu0 %6593
      %6595 = vadd.xlane.f32.xlu0 %v6536
      %v6596 = vpop.xlane.xlu0 %6595
      %6597 = vadd.xlane.f32.xlu0 %v6537
      %v6598 = vpop.xlane.xlu0 %6597
      %6599 = vadd.xlane.f32.xlu0 %v6538
      %v6600 = vpop.xlane.xlu0 %6599
      %6601 = vadd.xlane.f32.xlu0 %v6539
      %v6602 = vpop.xlane.xlu0 %6601
      %6603 = vadd.xlane.f32.xlu0 %v6540
      %v6604 = vpop.xlane.xlu0 %6603
      %v6605 = vmul.f32 %v6542, %v948
      %v6606 = vmul.f32 %v6544, %v948
      %v6607 = vmul.f32 %v6546, %v948
      %v6608 = vmul.f32 %v6548, %v948
      %v6609 = vmul.f32 %v6550, %v948
      %v6610 = vmul.f32 %v6552, %v948
      %v6611 = vmul.f32 %v6554, %v948
      %v6612 = vmul.f32 %v6556, %v948
      %v6613 = vmul.f32 %v6558, %v948
      %v6614 = vmul.f32 %v6560, %v948
      %v6615 = vmul.f32 %v6562, %v948
      %v6616 = vmul.f32 %v6564, %v948
      %v6617 = vmul.f32 %v6566, %v948
      %v6618 = vmul.f32 %v6568, %v948
      %v6619 = vmul.f32 %v6570, %v948
      %v6620 = vmul.f32 %v6572, %v948
      %v6621 = vmul.f32 %v6574, %v948
      %v6622 = vmul.f32 %v6576, %v948
      %v6623 = vmul.f32 %v6578, %v948
      %v6624 = vmul.f32 %v6580, %v948
      %v6625 = vmul.f32 %v6582, %v948
      %v6626 = vmul.f32 %v6584, %v948
      %v6627 = vmul.f32 %v6586, %v948
      %v6628 = vmul.f32 %v6588, %v948
      %v6629 = vmul.f32 %v6590, %v948
      %v6630 = vmul.f32 %v6592, %v948
      %v6631 = vmul.f32 %v6594, %v948
      %v6632 = vmul.f32 %v6596, %v948
      %v6633 = vmul.f32 %v6598, %v948
      %v6634 = vmul.f32 %v6600, %v948
      %v6635 = vmul.f32 %v6602, %v948
      %v6636 = vmul.f32 %v6604, %v948
      %v6637 = vadd.f32 %v6605, 1e-05
      %v6638 = vadd.f32 %v6606, 1e-05
      %v6639 = vadd.f32 %v6607, 1e-05
      %v6640 = vadd.f32 %v6608, 1e-05
      %v6641 = vadd.f32 %v6609, 1e-05
      %v6642 = vadd.f32 %v6610, 1e-05
      %v6643 = vadd.f32 %v6611, 1e-05
      %v6644 = vadd.f32 %v6612, 1e-05
      %v6645 = vadd.f32 %v6613, 1e-05
      %v6646 = vadd.f32 %v6614, 1e-05
      %v6647 = vadd.f32 %v6615, 1e-05
      %v6648 = vadd.f32 %v6616, 1e-05
      %v6649 = vadd.f32 %v6617, 1e-05
      %v6650 = vadd.f32 %v6618, 1e-05
      %v6651 = vadd.f32 %v6619, 1e-05
      %v6652 = vadd.f32 %v6620, 1e-05
      %v6653 = vadd.f32 %v6621, 1e-05
      %v6654 = vadd.f32 %v6622, 1e-05
      %v6655 = vadd.f32 %v6623, 1e-05
      %v6656 = vadd.f32 %v6624, 1e-05
      %v6657 = vadd.f32 %v6625, 1e-05
      %v6658 = vadd.f32 %v6626, 1e-05
      %v6659 = vadd.f32 %v6627, 1e-05
      %v6660 = vadd.f32 %v6628, 1e-05
      %v6661 = vadd.f32 %v6629, 1e-05
      %v6662 = vadd.f32 %v6630, 1e-05
      %v6663 = vadd.f32 %v6631, 1e-05
      %v6664 = vadd.f32 %v6632, 1e-05
      %v6665 = vadd.f32 %v6633, 1e-05
      %v6666 = vadd.f32 %v6634, 1e-05
      %v6667 = vadd.f32 %v6635, 1e-05
      %v6668 = vadd.f32 %v6636, 1e-05
      %v6669 = vrsqrt.pop %v6637
      %v6670 = vmul.f32 %v6669, %v6637
      %v6671 = vmul.f32 %v6670, %v6669
      %v6672 = vmul.f32 0.5, %v6671
      %v6673 = vsub.f32 1.5, %v6672
      %v6674 = vmul.f32 %v6669, %v6673
      %vm6675 = vweird.f32 %v6637
      %vm6676 = vweird.f32 %v6669
      %vm6677 = vmor %vm6675, %vm6676
      %v6678 = vsel %vm6677, %v6669, %v6674
      %v6679 = vrsqrt.pop %v6638
      %v6680 = vmul.f32 %v6679, %v6638
      %v6681 = vmul.f32 %v6680, %v6679
      %v6682 = vmul.f32 0.5, %v6681
      %v6683 = vsub.f32 1.5, %v6682
      %v6684 = vmul.f32 %v6679, %v6683
      %vm6685 = vweird.f32 %v6638
      %vm6686 = vweird.f32 %v6679
      %vm6687 = vmor %vm6685, %vm6686
      %v6688 = vsel %vm6687, %v6679, %v6684
      %v6689 = vrsqrt.pop %v6639
      %v6690 = vmul.f32 %v6689, %v6639
      %v6691 = vmul.f32 %v6690, %v6689
      %v6692 = vmul.f32 0.5, %v6691
      %v6693 = vsub.f32 1.5, %v6692
      %v6694 = vmul.f32 %v6689, %v6693
      %vm6695 = vweird.f32 %v6639
      %vm6696 = vweird.f32 %v6689
      %vm6697 = vmor %vm6695, %vm6696
      %v6698 = vsel %vm6697, %v6689, %v6694
      %v6699 = vrsqrt.pop %v6640
      %v6700 = vmul.f32 %v6699, %v6640
      %v6701 = vmul.f32 %v6700, %v6699
      %v6702 = vmul.f32 0.5, %v6701
      %v6703 = vsub.f32 1.5, %v6702
      %v6704 = vmul.f32 %v6699, %v6703
      %vm6705 = vweird.f32 %v6640
      %vm6706 = vweird.f32 %v6699
      %vm6707 = vmor %vm6705, %vm6706
      %v6708 = vsel %vm6707, %v6699, %v6704
      %v6709 = vrsqrt.pop %v6641
      %v6710 = vmul.f32 %v6709, %v6641
      %v6711 = vmul.f32 %v6710, %v6709
      %v6712 = vmul.f32 0.5, %v6711
      %v6713 = vsub.f32 1.5, %v6712
      %v6714 = vmul.f32 %v6709, %v6713
      %vm6715 = vweird.f32 %v6641
      %vm6716 = vweird.f32 %v6709
      %vm6717 = vmor %vm6715, %vm6716
      %v6718 = vsel %vm6717, %v6709, %v6714
      %v6719 = vrsqrt.pop %v6642
      %v6720 = vmul.f32 %v6719, %v6642
      %v6721 = vmul.f32 %v6720, %v6719
      %v6722 = vmul.f32 0.5, %v6721
      %v6723 = vsub.f32 1.5, %v6722
      %v6724 = vmul.f32 %v6719, %v6723
      %vm6725 = vweird.f32 %v6642
      %vm6726 = vweird.f32 %v6719
      %vm6727 = vmor %vm6725, %vm6726
      %v6728 = vsel %vm6727, %v6719, %v6724
      %v6729 = vrsqrt.pop %v6643
      %v6730 = vmul.f32 %v6729, %v6643
      %v6731 = vmul.f32 %v6730, %v6729
      %v6732 = vmul.f32 0.5, %v6731
      %v6733 = vsub.f32 1.5, %v6732
      %v6734 = vmul.f32 %v6729, %v6733
      %vm6735 = vweird.f32 %v6643
      %vm6736 = vweird.f32 %v6729
      %vm6737 = vmor %vm6735, %vm6736
      %v6738 = vsel %vm6737, %v6729, %v6734
      %v6739 = vrsqrt.pop %v6644
      %v6740 = vmul.f32 %v6739, %v6644
      %v6741 = vmul.f32 %v6740, %v6739
      %v6742 = vmul.f32 0.5, %v6741
      %v6743 = vsub.f32 1.5, %v6742
      %v6744 = vmul.f32 %v6739, %v6743
      %vm6745 = vweird.f32 %v6644
      %vm6746 = vweird.f32 %v6739
      %vm6747 = vmor %vm6745, %vm6746
      %v6748 = vsel %vm6747, %v6739, %v6744
      %v6749 = vrsqrt.pop %v6645
      %v6750 = vmul.f32 %v6749, %v6645
      %v6751 = vmul.f32 %v6750, %v6749
      %v6752 = vmul.f32 0.5, %v6751
      %v6753 = vsub.f32 1.5, %v6752
      %v6754 = vmul.f32 %v6749, %v6753
      %vm6755 = vweird.f32 %v6645
      %vm6756 = vweird.f32 %v6749
      %vm6757 = vmor %vm6755, %vm6756
      %v6758 = vsel %vm6757, %v6749, %v6754
      %v6759 = vrsqrt.pop %v6646
      %v6760 = vmul.f32 %v6759, %v6646
      %v6761 = vmul.f32 %v6760, %v6759
      %v6762 = vmul.f32 0.5, %v6761
      %v6763 = vsub.f32 1.5, %v6762
      %v6764 = vmul.f32 %v6759, %v6763
      %vm6765 = vweird.f32 %v6646
      %vm6766 = vweird.f32 %v6759
      %vm6767 = vmor %vm6765, %vm6766
      %v6768 = vsel %vm6767, %v6759, %v6764
      %v6769 = vrsqrt.pop %v6647
      %v6770 = vmul.f32 %v6769, %v6647
      %v6771 = vmul.f32 %v6770, %v6769
      %v6772 = vmul.f32 0.5, %v6771
      %v6773 = vsub.f32 1.5, %v6772
      %v6774 = vmul.f32 %v6769, %v6773
      %vm6775 = vweird.f32 %v6647
      %vm6776 = vweird.f32 %v6769
      %vm6777 = vmor %vm6775, %vm6776
      %v6778 = vsel %vm6777, %v6769, %v6774
      %v6779 = vrsqrt.pop %v6648
      %v6780 = vmul.f32 %v6779, %v6648
      %v6781 = vmul.f32 %v6780, %v6779
      %v6782 = vmul.f32 0.5, %v6781
      %v6783 = vsub.f32 1.5, %v6782
      %v6784 = vmul.f32 %v6779, %v6783
      %vm6785 = vweird.f32 %v6648
      %vm6786 = vweird.f32 %v6779
      %vm6787 = vmor %vm6785, %vm6786
      %v6788 = vsel %vm6787, %v6779, %v6784
      %v6789 = vrsqrt.pop %v6649
      %v6790 = vmul.f32 %v6789, %v6649
      %v6791 = vmul.f32 %v6790, %v6789
      %v6792 = vmul.f32 0.5, %v6791
      %v6793 = vsub.f32 1.5, %v6792
      %v6794 = vmul.f32 %v6789, %v6793
      %vm6795 = vweird.f32 %v6649
      %vm6796 = vweird.f32 %v6789
      %vm6797 = vmor %vm6795, %vm6796
      %v6798 = vsel %vm6797, %v6789, %v6794
      %v6799 = vrsqrt.pop %v6650
      %v6800 = vmul.f32 %v6799, %v6650
      %v6801 = vmul.f32 %v6800, %v6799
      %v6802 = vmul.f32 0.5, %v6801
      %v6803 = vsub.f32 1.5, %v6802
      %v6804 = vmul.f32 %v6799, %v6803
      %vm6805 = vweird.f32 %v6650
      %vm6806 = vweird.f32 %v6799
      %vm6807 = vmor %vm6805, %vm6806
      %v6808 = vsel %vm6807, %v6799, %v6804
      %v6809 = vrsqrt.pop %v6651
      %v6810 = vmul.f32 %v6809, %v6651
      %v6811 = vmul.f32 %v6810, %v6809
      %v6812 = vmul.f32 0.5, %v6811
      %v6813 = vsub.f32 1.5, %v6812
      %v6814 = vmul.f32 %v6809, %v6813
      %vm6815 = vweird.f32 %v6651
      %vm6816 = vweird.f32 %v6809
      %vm6817 = vmor %vm6815, %vm6816
      %v6818 = vsel %vm6817, %v6809, %v6814
      %v6819 = vrsqrt.pop %v6652
      %v6820 = vmul.f32 %v6819, %v6652
      %v6821 = vmul.f32 %v6820, %v6819
      %v6822 = vmul.f32 0.5, %v6821
      %v6823 = vsub.f32 1.5, %v6822
      %v6824 = vmul.f32 %v6819, %v6823
      %vm6825 = vweird.f32 %v6652
      %vm6826 = vweird.f32 %v6819
      %vm6827 = vmor %vm6825, %vm6826
      %v6828 = vsel %vm6827, %v6819, %v6824
      %v6829 = vrsqrt.pop %v6653
      %v6830 = vmul.f32 %v6829, %v6653
      %v6831 = vmul.f32 %v6830, %v6829
      %v6832 = vmul.f32 0.5, %v6831
      %v6833 = vsub.f32 1.5, %v6832
      %v6834 = vmul.f32 %v6829, %v6833
      %vm6835 = vweird.f32 %v6653
      %vm6836 = vweird.f32 %v6829
      %vm6837 = vmor %vm6835, %vm6836
      %v6838 = vsel %vm6837, %v6829, %v6834
      %v6839 = vrsqrt.pop %v6654
      %v6840 = vmul.f32 %v6839, %v6654
      %v6841 = vmul.f32 %v6840, %v6839
      %v6842 = vmul.f32 0.5, %v6841
      %v6843 = vsub.f32 1.5, %v6842
      %v6844 = vmul.f32 %v6839, %v6843
      %vm6845 = vweird.f32 %v6654
      %vm6846 = vweird.f32 %v6839
      %vm6847 = vmor %vm6845, %vm6846
      %v6848 = vsel %vm6847, %v6839, %v6844
      %v6849 = vrsqrt.pop %v6655
      %v6850 = vmul.f32 %v6849, %v6655
      %v6851 = vmul.f32 %v6850, %v6849
      %v6852 = vmul.f32 0.5, %v6851
      %v6853 = vsub.f32 1.5, %v6852
      %v6854 = vmul.f32 %v6849, %v6853
      %vm6855 = vweird.f32 %v6655
      %vm6856 = vweird.f32 %v6849
      %vm6857 = vmor %vm6855, %vm6856
      %v6858 = vsel %vm6857, %v6849, %v6854
      %v6859 = vrsqrt.pop %v6656
      %v6860 = vmul.f32 %v6859, %v6656
      %v6861 = vmul.f32 %v6860, %v6859
      %v6862 = vmul.f32 0.5, %v6861
      %v6863 = vsub.f32 1.5, %v6862
      %v6864 = vmul.f32 %v6859, %v6863
      %vm6865 = vweird.f32 %v6656
      %vm6866 = vweird.f32 %v6859
      %vm6867 = vmor %vm6865, %vm6866
      %v6868 = vsel %vm6867, %v6859, %v6864
      %v6869 = vrsqrt.pop %v6657
      %v6870 = vmul.f32 %v6869, %v6657
      %v6871 = vmul.f32 %v6870, %v6869
      %v6872 = vmul.f32 0.5, %v6871
      %v6873 = vsub.f32 1.5, %v6872
      %v6874 = vmul.f32 %v6869, %v6873
      %vm6875 = vweird.f32 %v6657
      %vm6876 = vweird.f32 %v6869
      %vm6877 = vmor %vm6875, %vm6876
      %v6878 = vsel %vm6877, %v6869, %v6874
      %v6879 = vrsqrt.pop %v6658
      %v6880 = vmul.f32 %v6879, %v6658
      %v6881 = vmul.f32 %v6880, %v6879
      %v6882 = vmul.f32 0.5, %v6881
      %v6883 = vsub.f32 1.5, %v6882
      %v6884 = vmul.f32 %v6879, %v6883
      %vm6885 = vweird.f32 %v6658
      %vm6886 = vweird.f32 %v6879
      %vm6887 = vmor %vm6885, %vm6886
      %v6888 = vsel %vm6887, %v6879, %v6884
      %v6889 = vrsqrt.pop %v6659
      %v6890 = vmul.f32 %v6889, %v6659
      %v6891 = vmul.f32 %v6890, %v6889
      %v6892 = vmul.f32 0.5, %v6891
      %v6893 = vsub.f32 1.5, %v6892
      %v6894 = vmul.f32 %v6889, %v6893
      %vm6895 = vweird.f32 %v6659
      %vm6896 = vweird.f32 %v6889
      %vm6897 = vmor %vm6895, %vm6896
      %v6898 = vsel %vm6897, %v6889, %v6894
      %v6899 = vrsqrt.pop %v6660
      %v6900 = vmul.f32 %v6899, %v6660
      %v6901 = vmul.f32 %v6900, %v6899
      %v6902 = vmul.f32 0.5, %v6901
      %v6903 = vsub.f32 1.5, %v6902
      %v6904 = vmul.f32 %v6899, %v6903
      %vm6905 = vweird.f32 %v6660
      %vm6906 = vweird.f32 %v6899
      %vm6907 = vmor %vm6905, %vm6906
      %v6908 = vsel %vm6907, %v6899, %v6904
      %v6909 = vrsqrt.pop %v6661
      %v6910 = vmul.f32 %v6909, %v6661
      %v6911 = vmul.f32 %v6910, %v6909
      %v6912 = vmul.f32 0.5, %v6911
      %v6913 = vsub.f32 1.5, %v6912
      %v6914 = vmul.f32 %v6909, %v6913
      %vm6915 = vweird.f32 %v6661
      %vm6916 = vweird.f32 %v6909
      %vm6917 = vmor %vm6915, %vm6916
      %v6918 = vsel %vm6917, %v6909, %v6914
      %v6919 = vrsqrt.pop %v6662
      %v6920 = vmul.f32 %v6919, %v6662
      %v6921 = vmul.f32 %v6920, %v6919
      %v6922 = vmul.f32 0.5, %v6921
      %v6923 = vsub.f32 1.5, %v6922
      %v6924 = vmul.f32 %v6919, %v6923
      %vm6925 = vweird.f32 %v6662
      %vm6926 = vweird.f32 %v6919
      %vm6927 = vmor %vm6925, %vm6926
      %v6928 = vsel %vm6927, %v6919, %v6924
      %v6929 = vrsqrt.pop %v6663
      %v6930 = vmul.f32 %v6929, %v6663
      %v6931 = vmul.f32 %v6930, %v6929
      %v6932 = vmul.f32 0.5, %v6931
      %v6933 = vsub.f32 1.5, %v6932
      %v6934 = vmul.f32 %v6929, %v6933
      %vm6935 = vweird.f32 %v6663
      %vm6936 = vweird.f32 %v6929
      %vm6937 = vmor %vm6935, %vm6936
      %v6938 = vsel %vm6937, %v6929, %v6934
      %v6939 = vrsqrt.pop %v6664
      %v6940 = vmul.f32 %v6939, %v6664
      %v6941 = vmul.f32 %v6940, %v6939
      %v6942 = vmul.f32 0.5, %v6941
      %v6943 = vsub.f32 1.5, %v6942
      %v6944 = vmul.f32 %v6939, %v6943
      %vm6945 = vweird.f32 %v6664
      %vm6946 = vweird.f32 %v6939
      %vm6947 = vmor %vm6945, %vm6946
      %v6948 = vsel %vm6947, %v6939, %v6944
      %v6949 = vrsqrt.pop %v6665
      %v6950 = vmul.f32 %v6949, %v6665
      %v6951 = vmul.f32 %v6950, %v6949
      %v6952 = vmul.f32 0.5, %v6951
      %v6953 = vsub.f32 1.5, %v6952
      %v6954 = vmul.f32 %v6949, %v6953
      %vm6955 = vweird.f32 %v6665
      %vm6956 = vweird.f32 %v6949
      %vm6957 = vmor %vm6955, %vm6956
      %v6958 = vsel %vm6957, %v6949, %v6954
      %v6959 = vrsqrt.pop %v6666
      %v6960 = vmul.f32 %v6959, %v6666
      %v6961 = vmul.f32 %v6960, %v6959
      %v6962 = vmul.f32 0.5, %v6961
      %v6963 = vsub.f32 1.5, %v6962
      %v6964 = vmul.f32 %v6959, %v6963
      %vm6965 = vweird.f32 %v6666
      %vm6966 = vweird.f32 %v6959
      %vm6967 = vmor %vm6965, %vm6966
      %v6968 = vsel %vm6967, %v6959, %v6964
      %v6969 = vrsqrt.pop %v6667
      %v6970 = vmul.f32 %v6969, %v6667
      %v6971 = vmul.f32 %v6970, %v6969
      %v6972 = vmul.f32 0.5, %v6971
      %v6973 = vsub.f32 1.5, %v6972
      %v6974 = vmul.f32 %v6969, %v6973
      %vm6975 = vweird.f32 %v6667
      %vm6976 = vweird.f32 %v6969
      %vm6977 = vmor %vm6975, %vm6976
      %v6978 = vsel %vm6977, %v6969, %v6974
      %v6979 = vrsqrt.pop %v6668
      %v6980 = vmul.f32 %v6979, %v6668
      %v6981 = vmul.f32 %v6980, %v6979
      %v6982 = vmul.f32 0.5, %v6981
      %v6983 = vsub.f32 1.5, %v6982
      %v6984 = vmul.f32 %v6979, %v6983
      %vm6985 = vweird.f32 %v6668
      %vm6986 = vweird.f32 %v6979
      %vm6987 = vmor %vm6985, %vm6986
      %v6988 = vsel %vm6987, %v6979, %v6984
      %v6989 = vmul.f32 %v6477, %v6678
      %v6990 = vmul.f32 %v6478, %v6688
      %v6991 = vmul.f32 %v6479, %v6698
      %v6992 = vmul.f32 %v6480, %v6708
      %v6993 = vmul.f32 %v6481, %v6718
      %v6994 = vmul.f32 %v6482, %v6728
      %v6995 = vmul.f32 %v6483, %v6738
      %v6996 = vmul.f32 %v6484, %v6748
      %v6997 = vmul.f32 %v6485, %v6758
      %v6998 = vmul.f32 %v6486, %v6768
      %v6999 = vmul.f32 %v6487, %v6778
      %v7000 = vmul.f32 %v6488, %v6788
      %v7001 = vmul.f32 %v6489, %v6798
      %v7002 = vmul.f32 %v6490, %v6808
      %v7003 = vmul.f32 %v6491, %v6818
      %v7004 = vmul.f32 %v6492, %v6828
      %v7005 = vmul.f32 %v6493, %v6838
      %v7006 = vmul.f32 %v6494, %v6848
      %v7007 = vmul.f32 %v6495, %v6858
      %v7008 = vmul.f32 %v6496, %v6868
      %v7009 = vmul.f32 %v6497, %v6878
      %v7010 = vmul.f32 %v6498, %v6888
      %v7011 = vmul.f32 %v6499, %v6898
      %v7012 = vmul.f32 %v6500, %v6908
      %v7013 = vmul.f32 %v6501, %v6918
      %v7014 = vmul.f32 %v6502, %v6928
      %v7015 = vmul.f32 %v6503, %v6938
      %v7016 = vmul.f32 %v6504, %v6948
      %v7017 = vmul.f32 %v6505, %v6958
      %v7018 = vmul.f32 %v6506, %v6968
      %v7019 = vmul.f32 %v6507, %v6978
      %v7020 = vmul.f32 %v6508, %v6988
      %v7022 = vperm.slane %v6379, 0
      %v7024 = vmul.f32 %v6989, %v7022
      %v7025 = vmul.f32 %v6990, %v7022
      %v7026 = vmul.f32 %v6991, %v7022
      %v7027 = vmul.f32 %v6992, %v7022
      %v7028 = vmul.f32 %v6993, %v7022
      %v7029 = vmul.f32 %v6994, %v7022
      %v7030 = vmul.f32 %v6995, %v7022
      %v7031 = vmul.f32 %v6996, %v7022
      %v7032 = vmul.f32 %v6997, %v7022
      %v7033 = vmul.f32 %v6998, %v7022
      %v7034 = vmul.f32 %v6999, %v7022
      %v7035 = vmul.f32 %v7000, %v7022
      %v7036 = vmul.f32 %v7001, %v7022
      %v7037 = vmul.f32 %v7002, %v7022
      %v7038 = vmul.f32 %v7003, %v7022
      %v7039 = vmul.f32 %v7004, %v7022
      %v7040 = vmul.f32 %v7005, %v7022
      %v7041 = vmul.f32 %v7006, %v7022
      %v7042 = vmul.f32 %v7007, %v7022
      %v7043 = vmul.f32 %v7008, %v7022
      %v7044 = vmul.f32 %v7009, %v7022
      %v7045 = vmul.f32 %v7010, %v7022
      %v7046 = vmul.f32 %v7011, %v7022
      %v7047 = vmul.f32 %v7012, %v7022
      %v7048 = vmul.f32 %v7013, %v7022
      %v7049 = vmul.f32 %v7014, %v7022
      %v7050 = vmul.f32 %v7015, %v7022
      %v7051 = vmul.f32 %v7016, %v7022
      %v7052 = vmul.f32 %v7017, %v7022
      %v7053 = vmul.f32 %v7018, %v7022
      %v7054 = vmul.f32 %v7019, %v7022
      %v7055 = vmul.f32 %v7020, %v7022
      %v7057 = vperm.slane %v6380, 0
      %v7059 = vadd.f32 %v7024, %v7057
      %v7060 = vadd.f32 %v7025, %v7057
      %v7061 = vadd.f32 %v7026, %v7057
      %v7062 = vadd.f32 %v7027, %v7057
      %v7063 = vadd.f32 %v7028, %v7057
      %v7064 = vadd.f32 %v7029, %v7057
      %v7065 = vadd.f32 %v7030, %v7057
      %v7066 = vadd.f32 %v7031, %v7057
      %v7067 = vadd.f32 %v7032, %v7057
      %v7068 = vadd.f32 %v7033, %v7057
      %v7069 = vadd.f32 %v7034, %v7057
      %v7070 = vadd.f32 %v7035, %v7057
      %v7071 = vadd.f32 %v7036, %v7057
      %v7072 = vadd.f32 %v7037, %v7057
      %v7073 = vadd.f32 %v7038, %v7057
      %v7074 = vadd.f32 %v7039, %v7057
      %v7075 = vadd.f32 %v7040, %v7057
      %v7076 = vadd.f32 %v7041, %v7057
      %v7077 = vadd.f32 %v7042, %v7057
      %v7078 = vadd.f32 %v7043, %v7057
      %v7079 = vadd.f32 %v7044, %v7057
      %v7080 = vadd.f32 %v7045, %v7057
      %v7081 = vadd.f32 %v7046, %v7057
      %v7082 = vadd.f32 %v7047, %v7057
      %v7083 = vadd.f32 %v7048, %v7057
      %v7084 = vadd.f32 %v7049, %v7057
      %v7085 = vadd.f32 %v7050, %v7057
      %v7086 = vadd.f32 %v7051, %v7057
      %v7087 = vadd.f32 %v7052, %v7057
      %v7088 = vadd.f32 %v7053, %v7057
      %v7089 = vadd.f32 %v7054, %v7057
      %v7090 = vadd.f32 %v7055, %v7057
      %v7091 = vpack.c.bf16 %v7060, %v7059
      %v7092 = vpack.c.bf16 %v7062, %v7061
      %v7093 = vpack.c.bf16 %v7064, %v7063
      %v7094 = vpack.c.bf16 %v7066, %v7065
      %v7095 = vpack.c.bf16 %v7068, %v7067
      %v7096 = vpack.c.bf16 %v7070, %v7069
      %v7097 = vpack.c.bf16 %v7072, %v7071
      %v7098 = vpack.c.bf16 %v7074, %v7073
      %v7099 = vpack.c.bf16 %v7076, %v7075
      %v7100 = vpack.c.bf16 %v7078, %v7077
      %v7101 = vpack.c.bf16 %v7080, %v7079
      %v7102 = vpack.c.bf16 %v7082, %v7081
      %v7103 = vpack.c.bf16 %v7084, %v7083
      %v7104 = vpack.c.bf16 %v7086, %v7085
      %v7105 = vpack.c.bf16 %v7088, %v7087
      %v7106 = vpack.c.bf16 %v7090, %v7089
      %v7107 = vld [vmem:[%s676] sm:$0xff]
      %v7108 = vld [vmem:[%s676 + $0x8] sm:$0xff]
      %v7109 = vld [vmem:[%s676 + $0x10] sm:$0xff]
      %v7110 = vld [vmem:[%s676 + $0x18] sm:$0xff]
      %v7111 = vld [vmem:[%s676 + $0x20] sm:$0xff]
      %v7112 = vld [vmem:[%s676 + $0x28] sm:$0xff]
      %v7113 = vld [vmem:[%s676 + $0x30] sm:$0xff]
      %v7114 = vld [vmem:[%s676 + $0x38] sm:$0xff]
      %v7115 = vld [vmem:[%s676 + $0x40] sm:$0xff]
      %v7116 = vld [vmem:[%s676 + $0x48] sm:$0xff]
      %v7117 = vld [vmem:[%s676 + $0x50] sm:$0xff]
      %v7118 = vld [vmem:[%s676 + $0x58] sm:$0xff]
      %v7119 = vld [vmem:[%s676 + $0x60] sm:$0xff]
      %v7120 = vld [vmem:[%s676 + $0x68] sm:$0xff]
      %v7121 = vld [vmem:[%s676 + $0x70] sm:$0xff]
      %v7122 = vld [vmem:[%s676 + $0x78] sm:$0xff]
      %v7123 = vld [vmem:[%s680] sm:$0x3]
      %v7125 = vperm.slane %v7123, 0
      %v7126 = vperm.slane %v7123, 1
      %v7145 = vunpack.c.l.b16 %v7107
      %v7146 = vunpack.c.h.b16 %v7107
      %v7147 = vunpack.c.l.b16 %v7108
      %v7148 = vunpack.c.h.b16 %v7108
      %v7149 = vunpack.c.l.b16 %v7109
      %v7150 = vunpack.c.h.b16 %v7109
      %v7151 = vunpack.c.l.b16 %v7110
      %v7152 = vunpack.c.h.b16 %v7110
      %v7153 = vunpack.c.l.b16 %v7111
      %v7154 = vunpack.c.h.b16 %v7111
      %v7155 = vunpack.c.l.b16 %v7112
      %v7156 = vunpack.c.h.b16 %v7112
      %v7157 = vunpack.c.l.b16 %v7113
      %v7158 = vunpack.c.h.b16 %v7113
      %v7159 = vunpack.c.l.b16 %v7114
      %v7160 = vunpack.c.h.b16 %v7114
      %v7161 = vunpack.c.l.b16 %v7115
      %v7162 = vunpack.c.h.b16 %v7115
      %v7163 = vunpack.c.l.b16 %v7116
      %v7164 = vunpack.c.h.b16 %v7116
      %v7165 = vunpack.c.l.b16 %v7117
      %v7166 = vunpack.c.h.b16 %v7117
      %v7167 = vunpack.c.l.b16 %v7118
      %v7168 = vunpack.c.h.b16 %v7118
      %v7169 = vunpack.c.l.b16 %v7119
      %v7170 = vunpack.c.h.b16 %v7119
      %v7171 = vunpack.c.l.b16 %v7120
      %v7172 = vunpack.c.h.b16 %v7120
      %v7173 = vunpack.c.l.b16 %v7121
      %v7174 = vunpack.c.h.b16 %v7121
      %v7175 = vunpack.c.l.b16 %v7122
      %v7176 = vunpack.c.h.b16 %v7122
      %v7177 = vpack.c.b16 %v7147, %v7145
      %v7178 = vpack.c.b16 %v7148, %v7146
      %v7179 = vpack.c.b16 %v7151, %v7149
      %v7180 = vpack.c.b16 %v7152, %v7150
      %v7181 = vpack.c.b16 %v7155, %v7153
      %v7182 = vpack.c.b16 %v7156, %v7154
      %v7183 = vpack.c.b16 %v7159, %v7157
      %v7184 = vpack.c.b16 %v7160, %v7158
      %v7185 = vpack.c.b16 %v7163, %v7161
      %v7186 = vpack.c.b16 %v7164, %v7162
      %v7187 = vpack.c.b16 %v7167, %v7165
      %v7188 = vpack.c.b16 %v7168, %v7166
      %v7189 = vpack.c.b16 %v7171, %v7169
      %v7190 = vpack.c.b16 %v7172, %v7170
      %v7191 = vpack.c.b16 %v7175, %v7173
      %v7192 = vpack.c.b16 %v7176, %v7174
      %7209 = vmatpush.bf16.msra.mxu0 %v7191
      %7210 = vmatpush.bf16.msra.mxu0 %v7189
      %7211 = vmatpush.bf16.msra.mxu0 %v7187
      %7212 = vmatpush.bf16.msra.mxu0 %v7185
      %7213 = vmatpush.bf16.msra.mxu0 %v7183
      %7214 = vmatpush.bf16.msra.mxu0 %v7181
      %7215 = vmatpush.bf16.msra.mxu0 %v7179
      %7216 = vmatpush.bf16.msra.mxu0 %v7177
      %7217 = vmatmul.bf16.gmra.mxu0 %v7091
      %v7218 = vpop.f32.mrf.mxu0
      %v7219 = vadd.f32 %v7125, %v7218
      %v7220 = vpop.f32.mrf.mxu0
      %v7221 = vadd.f32 %v7125, %v7220
      %7222 = vmatmul.bf16.gmra.mxu0 %v7092
      %v7223 = vpop.f32.mrf.mxu0
      %v7224 = vadd.f32 %v7125, %v7223
      %v7225 = vpop.f32.mrf.mxu0
      %v7226 = vadd.f32 %v7125, %v7225
      %7227 = vmatmul.bf16.gmra.mxu0 %v7093
      %v7228 = vpop.f32.mrf.mxu0
      %v7229 = vadd.f32 %v7125, %v7228
      %v7230 = vpop.f32.mrf.mxu0
      %v7231 = vadd.f32 %v7125, %v7230
      %7232 = vmatmul.bf16.gmra.mxu0 %v7094
      %v7233 = vpop.f32.mrf.mxu0
      %v7234 = vadd.f32 %v7125, %v7233
      %v7235 = vpop.f32.mrf.mxu0
      %v7236 = vadd.f32 %v7125, %v7235
      %7237 = vmatmul.bf16.gmra.mxu0 %v7095
      %v7238 = vpop.f32.mrf.mxu0
      %v7239 = vadd.f32 %v7125, %v7238
      %v7240 = vpop.f32.mrf.mxu0
      %v7241 = vadd.f32 %v7125, %v7240
      %7242 = vmatmul.bf16.gmra.mxu0 %v7096
      %v7243 = vpop.f32.mrf.mxu0
      %v7244 = vadd.f32 %v7125, %v7243
      %v7245 = vpop.f32.mrf.mxu0
      %v7246 = vadd.f32 %v7125, %v7245
      %7247 = vmatmul.bf16.gmra.mxu0 %v7097
      %v7248 = vpop.f32.mrf.mxu0
      %v7249 = vadd.f32 %v7125, %v7248
      %v7250 = vpop.f32.mrf.mxu0
      %v7251 = vadd.f32 %v7125, %v7250
      %7252 = vmatmul.bf16.gmra.mxu0 %v7098
      %v7253 = vpop.f32.mrf.mxu0
      %v7254 = vadd.f32 %v7125, %v7253
      %v7255 = vpop.f32.mrf.mxu0
      %v7256 = vadd.f32 %v7125, %v7255
      %7257 = vmatmul.bf16.gmra.mxu0 %v7099
      %v7258 = vpop.f32.mrf.mxu0
      %v7259 = vadd.f32 %v7125, %v7258
      %v7260 = vpop.f32.mrf.mxu0
      %v7261 = vadd.f32 %v7125, %v7260
      %7262 = vmatmul.bf16.gmra.mxu0 %v7100
      %v7263 = vpop.f32.mrf.mxu0
      %v7264 = vadd.f32 %v7125, %v7263
      %v7265 = vpop.f32.mrf.mxu0
      %v7266 = vadd.f32 %v7125, %v7265
      %7267 = vmatmul.bf16.gmra.mxu0 %v7101
      %v7268 = vpop.f32.mrf.mxu0
      %v7269 = vadd.f32 %v7125, %v7268
      %v7270 = vpop.f32.mrf.mxu0
      %v7271 = vadd.f32 %v7125, %v7270
      %7272 = vmatmul.bf16.gmra.mxu0 %v7102
      %v7273 = vpop.f32.mrf.mxu0
      %v7274 = vadd.f32 %v7125, %v7273
      %v7275 = vpop.f32.mrf.mxu0
      %v7276 = vadd.f32 %v7125, %v7275
      %7277 = vmatmul.bf16.gmra.mxu0 %v7103
      %v7278 = vpop.f32.mrf.mxu0
      %v7279 = vadd.f32 %v7125, %v7278
      %v7280 = vpop.f32.mrf.mxu0
      %v7281 = vadd.f32 %v7125, %v7280
      %7282 = vmatmul.bf16.gmra.mxu0 %v7104
      %v7283 = vpop.f32.mrf.mxu0
      %v7284 = vadd.f32 %v7125, %v7283
      %v7285 = vpop.f32.mrf.mxu0
      %v7286 = vadd.f32 %v7125, %v7285
      %7287 = vmatmul.bf16.gmra.mxu0 %v7105
      %v7288 = vpop.f32.mrf.mxu0
      %v7289 = vadd.f32 %v7125, %v7288
      %v7290 = vpop.f32.mrf.mxu0
      %v7291 = vadd.f32 %v7125, %v7290
      %7292 = vmatmul.bf16.gmra.mxu0 %v7106
      %v7293 = vpop.f32.mrf.mxu0
      %v7294 = vadd.f32 %v7125, %v7293
      %v7295 = vpop.f32.mrf.mxu0
      %v7296 = vadd.f32 %v7125, %v7295
      %7297 = vdwg.mxu0
      %7298 = vmatpush.bf16.msra.mxu0 %v7192
      %7299 = vmatpush.bf16.msra.mxu0 %v7190
      %7300 = vmatpush.bf16.msra.mxu0 %v7188
      %7301 = vmatpush.bf16.msra.mxu0 %v7186
      %7302 = vmatpush.bf16.msra.mxu0 %v7184
      %7303 = vmatpush.bf16.msra.mxu0 %v7182
      %7304 = vmatpush.bf16.msra.mxu0 %v7180
      %7305 = vmatpush.bf16.msra.mxu0 %v7178
      %7306 = vmatmul.bf16.gmra.mxu0 %v7091
      %v7307 = vpop.f32.mrf.mxu0
      %v7308 = vadd.f32 %v7126, %v7307
      %v7309 = vpop.f32.mrf.mxu0
      %v7310 = vadd.f32 %v7126, %v7309
      %7311 = vmatmul.bf16.gmra.mxu0 %v7092
      %v7312 = vpop.f32.mrf.mxu0
      %v7313 = vadd.f32 %v7126, %v7312
      %v7314 = vpop.f32.mrf.mxu0
      %v7315 = vadd.f32 %v7126, %v7314
      %7316 = vmatmul.bf16.gmra.mxu0 %v7093
      %v7317 = vpop.f32.mrf.mxu0
      %v7318 = vadd.f32 %v7126, %v7317
      %v7319 = vpop.f32.mrf.mxu0
      %v7320 = vadd.f32 %v7126, %v7319
      %7321 = vmatmul.bf16.gmra.mxu0 %v7094
      %v7322 = vpop.f32.mrf.mxu0
      %v7323 = vadd.f32 %v7126, %v7322
      %v7324 = vpop.f32.mrf.mxu0
      %v7325 = vadd.f32 %v7126, %v7324
      %7326 = vmatmul.bf16.gmra.mxu0 %v7095
      %v7327 = vpop.f32.mrf.mxu0
      %v7328 = vadd.f32 %v7126, %v7327
      %v7329 = vpop.f32.mrf.mxu0
      %v7330 = vadd.f32 %v7126, %v7329
      %7331 = vmatmul.bf16.gmra.mxu0 %v7096
      %v7332 = vpop.f32.mrf.mxu0
      %v7333 = vadd.f32 %v7126, %v7332
      %v7334 = vpop.f32.mrf.mxu0
      %v7335 = vadd.f32 %v7126, %v7334
      %7336 = vmatmul.bf16.gmra.mxu0 %v7097
      %v7337 = vpop.f32.mrf.mxu0
      %v7338 = vadd.f32 %v7126, %v7337
      %v7339 = vpop.f32.mrf.mxu0
      %v7340 = vadd.f32 %v7126, %v7339
      %7341 = vmatmul.bf16.gmra.mxu0 %v7098
      %v7342 = vpop.f32.mrf.mxu0
      %v7343 = vadd.f32 %v7126, %v7342
      %v7344 = vpop.f32.mrf.mxu0
      %v7345 = vadd.f32 %v7126, %v7344
      %7346 = vmatmul.bf16.gmra.mxu0 %v7099
      %v7347 = vpop.f32.mrf.mxu0
      %v7348 = vadd.f32 %v7126, %v7347
      %v7349 = vpop.f32.mrf.mxu0
      %v7350 = vadd.f32 %v7126, %v7349
      %7351 = vmatmul.bf16.gmra.mxu0 %v7100
      %v7352 = vpop.f32.mrf.mxu0
      %v7353 = vadd.f32 %v7126, %v7352
      %v7354 = vpop.f32.mrf.mxu0
      %v7355 = vadd.f32 %v7126, %v7354
      %7356 = vmatmul.bf16.gmra.mxu0 %v7101
      %v7357 = vpop.f32.mrf.mxu0
      %v7358 = vadd.f32 %v7126, %v7357
      %v7359 = vpop.f32.mrf.mxu0
      %v7360 = vadd.f32 %v7126, %v7359
      %7361 = vmatmul.bf16.gmra.mxu0 %v7102
      %v7362 = vpop.f32.mrf.mxu0
      %v7363 = vadd.f32 %v7126, %v7362
      %v7364 = vpop.f32.mrf.mxu0
      %v7365 = vadd.f32 %v7126, %v7364
      %7366 = vmatmul.bf16.gmra.mxu0 %v7103
      %v7367 = vpop.f32.mrf.mxu0
      %v7368 = vadd.f32 %v7126, %v7367
      %v7369 = vpop.f32.mrf.mxu0
      %v7370 = vadd.f32 %v7126, %v7369
      %7371 = vmatmul.bf16.gmra.mxu0 %v7104
      %v7372 = vpop.f32.mrf.mxu0
      %v7373 = vadd.f32 %v7126, %v7372
      %v7374 = vpop.f32.mrf.mxu0
      %v7375 = vadd.f32 %v7126, %v7374
      %7376 = vmatmul.bf16.gmra.mxu0 %v7105
      %v7377 = vpop.f32.mrf.mxu0
      %v7378 = vadd.f32 %v7126, %v7377
      %v7379 = vpop.f32.mrf.mxu0
      %v7380 = vadd.f32 %v7126, %v7379
      %7381 = vmatmul.bf16.gmra.mxu0 %v7106
      %v7382 = vpop.f32.mrf.mxu0
      %v7383 = vadd.f32 %v7126, %v7382
      %v7384 = vpop.f32.mrf.mxu0
      %v7385 = vadd.f32 %v7126, %v7384
      %7386 = vdwg.mxu0
      %v7387 = vmul.f32 %v7219, 0.5
      %v7388 = vmul.f32 %v7308, 0.5
      %v7389 = vmul.f32 %v7221, 0.5
      %v7390 = vmul.f32 %v7310, 0.5
      %v7391 = vmul.f32 %v7224, 0.5
      %v7392 = vmul.f32 %v7313, 0.5
      %v7393 = vmul.f32 %v7226, 0.5
      %v7394 = vmul.f32 %v7315, 0.5
      %v7395 = vmul.f32 %v7229, 0.5
      %v7396 = vmul.f32 %v7318, 0.5
      %v7397 = vmul.f32 %v7231, 0.5
      %v7398 = vmul.f32 %v7320, 0.5
      %v7399 = vmul.f32 %v7234, 0.5
      %v7400 = vmul.f32 %v7323, 0.5
      %v7401 = vmul.f32 %v7236, 0.5
      %v7402 = vmul.f32 %v7325, 0.5
      %v7403 = vmul.f32 %v7239, 0.5
      %v7404 = vmul.f32 %v7328, 0.5
      %v7405 = vmul.f32 %v7241, 0.5
      %v7406 = vmul.f32 %v7330, 0.5
      %v7407 = vmul.f32 %v7244, 0.5
      %v7408 = vmul.f32 %v7333, 0.5
      %v7409 = vmul.f32 %v7246, 0.5
      %v7410 = vmul.f32 %v7335, 0.5
      %v7411 = vmul.f32 %v7249, 0.5
      %v7412 = vmul.f32 %v7338, 0.5
      %v7413 = vmul.f32 %v7251, 0.5
      %v7414 = vmul.f32 %v7340, 0.5
      %v7415 = vmul.f32 %v7254, 0.5
      %v7416 = vmul.f32 %v7343, 0.5
      %v7417 = vmul.f32 %v7256, 0.5
      %v7418 = vmul.f32 %v7345, 0.5
      %v7419 = vmul.f32 %v7259, 0.5
      %v7420 = vmul.f32 %v7348, 0.5
      %v7421 = vmul.f32 %v7261, 0.5
      %v7422 = vmul.f32 %v7350, 0.5
      %v7423 = vmul.f32 %v7264, 0.5
      %v7424 = vmul.f32 %v7353, 0.5
      %v7425 = vmul.f32 %v7266, 0.5
      %v7426 = vmul.f32 %v7355, 0.5
      %v7427 = vmul.f32 %v7269, 0.5
      %v7428 = vmul.f32 %v7358, 0.5
      %v7429 = vmul.f32 %v7271, 0.5
      %v7430 = vmul.f32 %v7360, 0.5
      %v7431 = vmul.f32 %v7274, 0.5
      %v7432 = vmul.f32 %v7363, 0.5
      %v7433 = vmul.f32 %v7276, 0.5
      %v7434 = vmul.f32 %v7365, 0.5
      %v7435 = vmul.f32 %v7279, 0.5
      %v7436 = vmul.f32 %v7368, 0.5
      %v7437 = vmul.f32 %v7281, 0.5
      %v7438 = vmul.f32 %v7370, 0.5
      %v7439 = vmul.f32 %v7284, 0.5
      %v7440 = vmul.f32 %v7373, 0.5
      %v7441 = vmul.f32 %v7286, 0.5
      %v7442 = vmul.f32 %v7375, 0.5
      %v7443 = vmul.f32 %v7289, 0.5
      %v7444 = vmul.f32 %v7378, 0.5
      %v7445 = vmul.f32 %v7291, 0.5
      %v7446 = vmul.f32 %v7380, 0.5
      %v7447 = vmul.f32 %v7294, 0.5
      %v7448 = vmul.f32 %v7383, 0.5
      %v7449 = vmul.f32 %v7296, 0.5
      %v7450 = vmul.f32 %v7385, 0.5
      %v7451 = vmul.f32 %v7219, 0.044715
      %v7452 = vmul.f32 %v7308, 0.044715
      %v7453 = vmul.f32 %v7221, 0.044715
      %v7454 = vmul.f32 %v7310, 0.044715
      %v7455 = vmul.f32 %v7224, 0.044715
      %v7456 = vmul.f32 %v7313, 0.044715
      %v7457 = vmul.f32 %v7226, 0.044715
      %v7458 = vmul.f32 %v7315, 0.044715
      %v7459 = vmul.f32 %v7229, 0.044715
      %v7460 = vmul.f32 %v7318, 0.044715
      %v7461 = vmul.f32 %v7231, 0.044715
      %v7462 = vmul.f32 %v7320, 0.044715
      %v7463 = vmul.f32 %v7234, 0.044715
      %v7464 = vmul.f32 %v7323, 0.044715
      %v7465 = vmul.f32 %v7236, 0.044715
      %v7466 = vmul.f32 %v7325, 0.044715
      %v7467 = vmul.f32 %v7239, 0.044715
      %v7468 = vmul.f32 %v7328, 0.044715
      %v7469 = vmul.f32 %v7241, 0.044715
      %v7470 = vmul.f32 %v7330, 0.044715
      %v7471 = vmul.f32 %v7244, 0.044715
      %v7472 = vmul.f32 %v7333, 0.044715
      %v7473 = vmul.f32 %v7246, 0.044715
      %v7474 = vmul.f32 %v7335, 0.044715
      %v7475 = vmul.f32 %v7249, 0.044715
      %v7476 = vmul.f32 %v7338, 0.044715
      %v7477 = vmul.f32 %v7251, 0.044715
      %v7478 = vmul.f32 %v7340, 0.044715
      %v7479 = vmul.f32 %v7254, 0.044715
      %v7480 = vmul.f32 %v7343, 0.044715
      %v7481 = vmul.f32 %v7256, 0.044715
      %v7482 = vmul.f32 %v7345, 0.044715
      %v7483 = vmul.f32 %v7259, 0.044715
      %v7484 = vmul.f32 %v7348, 0.044715
      %v7485 = vmul.f32 %v7261, 0.044715
      %v7486 = vmul.f32 %v7350, 0.044715
      %v7487 = vmul.f32 %v7264, 0.044715
      %v7488 = vmul.f32 %v7353, 0.044715
      %v7489 = vmul.f32 %v7266, 0.044715
      %v7490 = vmul.f32 %v7355, 0.044715
      %v7491 = vmul.f32 %v7269, 0.044715
      %v7492 = vmul.f32 %v7358, 0.044715
      %v7493 = vmul.f32 %v7271, 0.044715
      %v7494 = vmul.f32 %v7360, 0.044715
      %v7495 = vmul.f32 %v7274, 0.044715
      %v7496 = vmul.f32 %v7363, 0.044715
      %v7497 = vmul.f32 %v7276, 0.044715
      %v7498 = vmul.f32 %v7365, 0.044715
      %v7499 = vmul.f32 %v7279, 0.044715
      %v7500 = vmul.f32 %v7368, 0.044715
      %v7501 = vmul.f32 %v7281, 0.044715
      %v7502 = vmul.f32 %v7370, 0.044715
      %v7503 = vmul.f32 %v7284, 0.044715
      %v7504 = vmul.f32 %v7373, 0.044715
      %v7505 = vmul.f32 %v7286, 0.044715
      %v7506 = vmul.f32 %v7375, 0.044715
      %v7507 = vmul.f32 %v7289, 0.044715
      %v7508 = vmul.f32 %v7378, 0.044715
      %v7509 = vmul.f32 %v7291, 0.044715
      %v7510 = vmul.f32 %v7380, 0.044715
      %v7511 = vmul.f32 %v7294, 0.044715
      %v7512 = vmul.f32 %v7383, 0.044715
      %v7513 = vmul.f32 %v7296, 0.044715
      %v7514 = vmul.f32 %v7385, 0.044715
      %v7515 = vmul.f32 %v7451, %v7219
      %v7516 = vmul.f32 %v7452, %v7308
      %v7517 = vmul.f32 %v7453, %v7221
      %v7518 = vmul.f32 %v7454, %v7310
      %v7519 = vmul.f32 %v7455, %v7224
      %v7520 = vmul.f32 %v7456, %v7313
      %v7521 = vmul.f32 %v7457, %v7226
      %v7522 = vmul.f32 %v7458, %v7315
      %v7523 = vmul.f32 %v7459, %v7229
      %v7524 = vmul.f32 %v7460, %v7318
      %v7525 = vmul.f32 %v7461, %v7231
      %v7526 = vmul.f32 %v7462, %v7320
      %v7527 = vmul.f32 %v7463, %v7234
      %v7528 = vmul.f32 %v7464, %v7323
      %v7529 = vmul.f32 %v7465, %v7236
      %v7530 = vmul.f32 %v7466, %v7325
      %v7531 = vmul.f32 %v7467, %v7239
      %v7532 = vmul.f32 %v7468, %v7328
      %v7533 = vmul.f32 %v7469, %v7241
      %v7534 = vmul.f32 %v7470, %v7330
      %v7535 = vmul.f32 %v7471, %v7244
      %v7536 = vmul.f32 %v7472, %v7333
      %v7537 = vmul.f32 %v7473, %v7246
      %v7538 = vmul.f32 %v7474, %v7335
      %v7539 = vmul.f32 %v7475, %v7249
      %v7540 = vmul.f32 %v7476, %v7338
      %v7541 = vmul.f32 %v7477, %v7251
      %v7542 = vmul.f32 %v7478, %v7340
      %v7543 = vmul.f32 %v7479, %v7254
      %v7544 = vmul.f32 %v7480, %v7343
      %v7545 = vmul.f32 %v7481, %v7256
      %v7546 = vmul.f32 %v7482, %v7345
      %v7547 = vmul.f32 %v7483, %v7259
      %v7548 = vmul.f32 %v7484, %v7348
      %v7549 = vmul.f32 %v7485, %v7261
      %v7550 = vmul.f32 %v7486, %v7350
      %v7551 = vmul.f32 %v7487, %v7264
      %v7552 = vmul.f32 %v7488, %v7353
      %v7553 = vmul.f32 %v7489, %v7266
      %v7554 = vmul.f32 %v7490, %v7355
      %v7555 = vmul.f32 %v7491, %v7269
      %v7556 = vmul.f32 %v7492, %v7358
      %v7557 = vmul.f32 %v7493, %v7271
      %v7558 = vmul.f32 %v7494, %v7360
      %v7559 = vmul.f32 %v7495, %v7274
      %v7560 = vmul.f32 %v7496, %v7363
      %v7561 = vmul.f32 %v7497, %v7276
      %v7562 = vmul.f32 %v7498, %v7365
      %v7563 = vmul.f32 %v7499, %v7279
      %v7564 = vmul.f32 %v7500, %v7368
      %v7565 = vmul.f32 %v7501, %v7281
      %v7566 = vmul.f32 %v7502, %v7370
      %v7567 = vmul.f32 %v7503, %v7284
      %v7568 = vmul.f32 %v7504, %v7373
      %v7569 = vmul.f32 %v7505, %v7286
      %v7570 = vmul.f32 %v7506, %v7375
      %v7571 = vmul.f32 %v7507, %v7289
      %v7572 = vmul.f32 %v7508, %v7378
      %v7573 = vmul.f32 %v7509, %v7291
      %v7574 = vmul.f32 %v7510, %v7380
      %v7575 = vmul.f32 %v7511, %v7294
      %v7576 = vmul.f32 %v7512, %v7383
      %v7577 = vmul.f32 %v7513, %v7296
      %v7578 = vmul.f32 %v7514, %v7385
      %v7579 = vmul.f32 %v7515, %v7219
      %v7580 = vmul.f32 %v7516, %v7308
      %v7581 = vmul.f32 %v7517, %v7221
      %v7582 = vmul.f32 %v7518, %v7310
      %v7583 = vmul.f32 %v7519, %v7224
      %v7584 = vmul.f32 %v7520, %v7313
      %v7585 = vmul.f32 %v7521, %v7226
      %v7586 = vmul.f32 %v7522, %v7315
      %v7587 = vmul.f32 %v7523, %v7229
      %v7588 = vmul.f32 %v7524, %v7318
      %v7589 = vmul.f32 %v7525, %v7231
      %v7590 = vmul.f32 %v7526, %v7320
      %v7591 = vmul.f32 %v7527, %v7234
      %v7592 = vmul.f32 %v7528, %v7323
      %v7593 = vmul.f32 %v7529, %v7236
      %v7594 = vmul.f32 %v7530, %v7325
      %v7595 = vmul.f32 %v7531, %v7239
      %v7596 = vmul.f32 %v7532, %v7328
      %v7597 = vmul.f32 %v7533, %v7241
      %v7598 = vmul.f32 %v7534, %v7330
      %v7599 = vmul.f32 %v7535, %v7244
      %v7600 = vmul.f32 %v7536, %v7333
      %v7601 = vmul.f32 %v7537, %v7246
      %v7602 = vmul.f32 %v7538, %v7335
      %v7603 = vmul.f32 %v7539, %v7249
      %v7604 = vmul.f32 %v7540, %v7338
      %v7605 = vmul.f32 %v7541, %v7251
      %v7606 = vmul.f32 %v7542, %v7340
      %v7607 = vmul.f32 %v7543, %v7254
      %v7608 = vmul.f32 %v7544, %v7343
      %v7609 = vmul.f32 %v7545, %v7256
      %v7610 = vmul.f32 %v7546, %v7345
      %v7611 = vmul.f32 %v7547, %v7259
      %v7612 = vmul.f32 %v7548, %v7348
      %v7613 = vmul.f32 %v7549, %v7261
      %v7614 = vmul.f32 %v7550, %v7350
      %v7615 = vmul.f32 %v7551, %v7264
      %v7616 = vmul.f32 %v7552, %v7353
      %v7617 = vmul.f32 %v7553, %v7266
      %v7618 = vmul.f32 %v7554, %v7355
      %v7619 = vmul.f32 %v7555, %v7269
      %v7620 = vmul.f32 %v7556, %v7358
      %v7621 = vmul.f32 %v7557, %v7271
      %v7622 = vmul.f32 %v7558, %v7360
      %v7623 = vmul.f32 %v7559, %v7274
      %v7624 = vmul.f32 %v7560, %v7363
      %v7625 = vmul.f32 %v7561, %v7276
      %v7626 = vmul.f32 %v7562, %v7365
      %v7627 = vmul.f32 %v7563, %v7279
      %v7628 = vmul.f32 %v7564, %v7368
      %v7629 = vmul.f32 %v7565, %v7281
      %v7630 = vmul.f32 %v7566, %v7370
      %v7631 = vmul.f32 %v7567, %v7284
      %v7632 = vmul.f32 %v7568, %v7373
      %v7633 = vmul.f32 %v7569, %v7286
      %v7634 = vmul.f32 %v7570, %v7375
      %v7635 = vmul.f32 %v7571, %v7289
      %v7636 = vmul.f32 %v7572, %v7378
      %v7637 = vmul.f32 %v7573, %v7291
      %v7638 = vmul.f32 %v7574, %v7380
      %v7639 = vmul.f32 %v7575, %v7294
      %v7640 = vmul.f32 %v7576, %v7383
      %v7641 = vmul.f32 %v7577, %v7296
      %v7642 = vmul.f32 %v7578, %v7385
      %v7643 = vadd.f32 %v7219, %v7579
      %v7644 = vadd.f32 %v7308, %v7580
      %v7645 = vadd.f32 %v7221, %v7581
      %v7646 = vadd.f32 %v7310, %v7582
      %v7647 = vadd.f32 %v7224, %v7583
      %v7648 = vadd.f32 %v7313, %v7584
      %v7649 = vadd.f32 %v7226, %v7585
      %v7650 = vadd.f32 %v7315, %v7586
      %v7651 = vadd.f32 %v7229, %v7587
      %v7652 = vadd.f32 %v7318, %v7588
      %v7653 = vadd.f32 %v7231, %v7589
      %v7654 = vadd.f32 %v7320, %v7590
      %v7655 = vadd.f32 %v7234, %v7591
      %v7656 = vadd.f32 %v7323, %v7592
      %v7657 = vadd.f32 %v7236, %v7593
      %v7658 = vadd.f32 %v7325, %v7594
      %v7659 = vadd.f32 %v7239, %v7595
      %v7660 = vadd.f32 %v7328, %v7596
      %v7661 = vadd.f32 %v7241, %v7597
      %v7662 = vadd.f32 %v7330, %v7598
      %v7663 = vadd.f32 %v7244, %v7599
      %v7664 = vadd.f32 %v7333, %v7600
      %v7665 = vadd.f32 %v7246, %v7601
      %v7666 = vadd.f32 %v7335, %v7602
      %v7667 = vadd.f32 %v7249, %v7603
      %v7668 = vadd.f32 %v7338, %v7604
      %v7669 = vadd.f32 %v7251, %v7605
      %v7670 = vadd.f32 %v7340, %v7606
      %v7671 = vadd.f32 %v7254, %v7607
      %v7672 = vadd.f32 %v7343, %v7608
      %v7673 = vadd.f32 %v7256, %v7609
      %v7674 = vadd.f32 %v7345, %v7610
      %v7675 = vadd.f32 %v7259, %v7611
      %v7676 = vadd.f32 %v7348, %v7612
      %v7677 = vadd.f32 %v7261, %v7613
      %v7678 = vadd.f32 %v7350, %v7614
      %v7679 = vadd.f32 %v7264, %v7615
      %v7680 = vadd.f32 %v7353, %v7616
      %v7681 = vadd.f32 %v7266, %v7617
      %v7682 = vadd.f32 %v7355, %v7618
      %v7683 = vadd.f32 %v7269, %v7619
      %v7684 = vadd.f32 %v7358, %v7620
      %v7685 = vadd.f32 %v7271, %v7621
      %v7686 = vadd.f32 %v7360, %v7622
      %v7687 = vadd.f32 %v7274, %v7623
      %v7688 = vadd.f32 %v7363, %v7624
      %v7689 = vadd.f32 %v7276, %v7625
      %v7690 = vadd.f32 %v7365, %v7626
      %v7691 = vadd.f32 %v7279, %v7627
      %v7692 = vadd.f32 %v7368, %v7628
      %v7693 = vadd.f32 %v7281, %v7629
      %v7694 = vadd.f32 %v7370, %v7630
      %v7695 = vadd.f32 %v7284, %v7631
      %v7696 = vadd.f32 %v7373, %v7632
      %v7697 = vadd.f32 %v7286, %v7633
      %v7698 = vadd.f32 %v7375, %v7634
      %v7699 = vadd.f32 %v7289, %v7635
      %v7700 = vadd.f32 %v7378, %v7636
      %v7701 = vadd.f32 %v7291, %v7637
      %v7702 = vadd.f32 %v7380, %v7638
      %v7703 = vadd.f32 %v7294, %v7639
      %v7704 = vadd.f32 %v7383, %v7640
      %v7705 = vadd.f32 %v7296, %v7641
      %v7706 = vadd.f32 %v7385, %v7642
      %v7707 = vmul.f32 %v7643, 0.7978846
      %v7708 = vmul.f32 %v7644, 0.7978846
      %v7709 = vmul.f32 %v7645, 0.7978846
      %v7710 = vmul.f32 %v7646, 0.7978846
      %v7711 = vmul.f32 %v7647, 0.7978846
      %v7712 = vmul.f32 %v7648, 0.7978846
      %v7713 = vmul.f32 %v7649, 0.7978846
      %v7714 = vmul.f32 %v7650, 0.7978846
      %v7715 = vmul.f32 %v7651, 0.7978846
      %v7716 = vmul.f32 %v7652, 0.7978846
      %v7717 = vmul.f32 %v7653, 0.7978846
      %v7718 = vmul.f32 %v7654, 0.7978846
      %v7719 = vmul.f32 %v7655, 0.7978846
      %v7720 = vmul.f32 %v7656, 0.7978846
      %v7721 = vmul.f32 %v7657, 0.7978846
      %v7722 = vmul.f32 %v7658, 0.7978846
      %v7723 = vmul.f32 %v7659, 0.7978846
      %v7724 = vmul.f32 %v7660, 0.7978846
      %v7725 = vmul.f32 %v7661, 0.7978846
      %v7726 = vmul.f32 %v7662, 0.7978846
      %v7727 = vmul.f32 %v7663, 0.7978846
      %v7728 = vmul.f32 %v7664, 0.7978846
      %v7729 = vmul.f32 %v7665, 0.7978846
      %v7730 = vmul.f32 %v7666, 0.7978846
      %v7731 = vmul.f32 %v7667, 0.7978846
      %v7732 = vmul.f32 %v7668, 0.7978846
      %v7733 = vmul.f32 %v7669, 0.7978846
      %v7734 = vmul.f32 %v7670, 0.7978846
      %v7735 = vmul.f32 %v7671, 0.7978846
      %v7736 = vmul.f32 %v7672, 0.7978846
      %v7737 = vmul.f32 %v7673, 0.7978846
      %v7738 = vmul.f32 %v7674, 0.7978846
      %v7739 = vmul.f32 %v7675, 0.7978846
      %v7740 = vmul.f32 %v7676, 0.7978846
      %v7741 = vmul.f32 %v7677, 0.7978846
      %v7742 = vmul.f32 %v7678, 0.7978846
      %v7743 = vmul.f32 %v7679, 0.7978846
      %v7744 = vmul.f32 %v7680, 0.7978846
      %v7745 = vmul.f32 %v7681, 0.7978846
      %v7746 = vmul.f32 %v7682, 0.7978846
      %v7747 = vmul.f32 %v7683, 0.7978846
      %v7748 = vmul.f32 %v7684, 0.7978846
      %v7749 = vmul.f32 %v7685, 0.7978846
      %v7750 = vmul.f32 %v7686, 0.7978846
      %v7751 = vmul.f32 %v7687, 0.7978846
      %v7752 = vmul.f32 %v7688, 0.7978846
      %v7753 = vmul.f32 %v7689, 0.7978846
      %v7754 = vmul.f32 %v7690, 0.7978846
      %v7755 = vmul.f32 %v7691, 0.7978846
      %v7756 = vmul.f32 %v7692, 0.7978846
      %v7757 = vmul.f32 %v7693, 0.7978846
      %v7758 = vmul.f32 %v7694, 0.7978846
      %v7759 = vmul.f32 %v7695, 0.7978846
      %v7760 = vmul.f32 %v7696, 0.7978846
      %v7761 = vmul.f32 %v7697, 0.7978846
      %v7762 = vmul.f32 %v7698, 0.7978846
      %v7763 = vmul.f32 %v7699, 0.7978846
      %v7764 = vmul.f32 %v7700, 0.7978846
      %v7765 = vmul.f32 %v7701, 0.7978846
      %v7766 = vmul.f32 %v7702, 0.7978846
      %v7767 = vmul.f32 %v7703, 0.7978846
      %v7768 = vmul.f32 %v7704, 0.7978846
      %v7769 = vmul.f32 %v7705, 0.7978846
      %v7770 = vmul.f32 %v7706, 0.7978846
      %v7771 = vtanh.pop %v7707
      %v7772 = vtanh.pop %v7708
      %v7773 = vtanh.pop %v7709
      %v7774 = vtanh.pop %v7710
      %v7775 = vtanh.pop %v7711
      %v7776 = vtanh.pop %v7712
      %v7777 = vtanh.pop %v7713
      %v7778 = vtanh.pop %v7714
      %v7779 = vtanh.pop %v7715
      %v7780 = vtanh.pop %v7716
      %v7781 = vtanh.pop %v7717
      %v7782 = vtanh.pop %v7718
      %v7783 = vtanh.pop %v7719
      %v7784 = vtanh.pop %v7720
      %v7785 = vtanh.pop %v7721
      %v7786 = vtanh.pop %v7722
      %v7787 = vtanh.pop %v7723
      %v7788 = vtanh.pop %v7724
      %v7789 = vtanh.pop %v7725
      %v7790 = vtanh.pop %v7726
      %v7791 = vtanh.pop %v7727
      %v7792 = vtanh.pop %v7728
      %v7793 = vtanh.pop %v7729
      %v7794 = vtanh.pop %v7730
      %v7795 = vtanh.pop %v7731
      %v7796 = vtanh.pop %v7732
      %v7797 = vtanh.pop %v7733
      %v7798 = vtanh.pop %v7734
      %v7799 = vtanh.pop %v7735
      %v7800 = vtanh.pop %v7736
      %v7801 = vtanh.pop %v7737
      %v7802 = vtanh.pop %v7738
      %v7803 = vtanh.pop %v7739
      %v7804 = vtanh.pop %v7740
      %v7805 = vtanh.pop %v7741
      %v7806 = vtanh.pop %v7742
      %v7807 = vtanh.pop %v7743
      %v7808 = vtanh.pop %v7744
      %v7809 = vtanh.pop %v7745
      %v7810 = vtanh.pop %v7746
      %v7811 = vtanh.pop %v7747
      %v7812 = vtanh.pop %v7748
      %v7813 = vtanh.pop %v7749
      %v7814 = vtanh.pop %v7750
      %v7815 = vtanh.pop %v7751
      %v7816 = vtanh.pop %v7752
      %v7817 = vtanh.pop %v7753
      %v7818 = vtanh.pop %v7754
      %v7819 = vtanh.pop %v7755
      %v7820 = vtanh.pop %v7756
      %v7821 = vtanh.pop %v7757
      %v7822 = vtanh.pop %v7758
      %v7823 = vtanh.pop %v7759
      %v7824 = vtanh.pop %v7760
      %v7825 = vtanh.pop %v7761
      %v7826 = vtanh.pop %v7762
      %v7827 = vtanh.pop %v7763
      %v7828 = vtanh.pop %v7764
      %v7829 = vtanh.pop %v7765
      %v7830 = vtanh.pop %v7766
      %v7831 = vtanh.pop %v7767
      %v7832 = vtanh.pop %v7768
      %v7833 = vtanh.pop %v7769
      %v7834 = vtanh.pop %v7770
      %v7835 = vadd.f32 %v7771, 1.0
      %v7836 = vadd.f32 %v7772, 1.0
      %v7837 = vadd.f32 %v7773, 1.0
      %v7838 = vadd.f32 %v7774, 1.0
      %v7839 = vadd.f32 %v7775, 1.0
      %v7840 = vadd.f32 %v7776, 1.0
      %v7841 = vadd.f32 %v7777, 1.0
      %v7842 = vadd.f32 %v7778, 1.0
      %v7843 = vadd.f32 %v7779, 1.0
      %v7844 = vadd.f32 %v7780, 1.0
      %v7845 = vadd.f32 %v7781, 1.0
      %v7846 = vadd.f32 %v7782, 1.0
      %v7847 = vadd.f32 %v7783, 1.0
      %v7848 = vadd.f32 %v7784, 1.0
      %v7849 = vadd.f32 %v7785, 1.0
      %v7850 = vadd.f32 %v7786, 1.0
      %v7851 = vadd.f32 %v7787, 1.0
      %v7852 = vadd.f32 %v7788, 1.0
      %v7853 = vadd.f32 %v7789, 1.0
      %v7854 = vadd.f32 %v7790, 1.0
      %v7855 = vadd.f32 %v7791, 1.0
      %v7856 = vadd.f32 %v7792, 1.0
      %v7857 = vadd.f32 %v7793, 1.0
      %v7858 = vadd.f32 %v7794, 1.0
      %v7859 = vadd.f32 %v7795, 1.0
      %v7860 = vadd.f32 %v7796, 1.0
      %v7861 = vadd.f32 %v7797, 1.0
      %v7862 = vadd.f32 %v7798, 1.0
      %v7863 = vadd.f32 %v7799, 1.0
      %v7864 = vadd.f32 %v7800, 1.0
      %v7865 = vadd.f32 %v7801, 1.0
      %v7866 = vadd.f32 %v7802, 1.0
      %v7867 = vadd.f32 %v7803, 1.0
      %v7868 = vadd.f32 %v7804, 1.0
      %v7869 = vadd.f32 %v7805, 1.0
      %v7870 = vadd.f32 %v7806, 1.0
      %v7871 = vadd.f32 %v7807, 1.0
      %v7872 = vadd.f32 %v7808, 1.0
      %v7873 = vadd.f32 %v7809, 1.0
      %v7874 = vadd.f32 %v7810, 1.0
      %v7875 = vadd.f32 %v7811, 1.0
      %v7876 = vadd.f32 %v7812, 1.0
      %v7877 = vadd.f32 %v7813, 1.0
      %v7878 = vadd.f32 %v7814, 1.0
      %v7879 = vadd.f32 %v7815, 1.0
      %v7880 = vadd.f32 %v7816, 1.0
      %v7881 = vadd.f32 %v7817, 1.0
      %v7882 = vadd.f32 %v7818, 1.0
      %v7883 = vadd.f32 %v7819, 1.0
      %v7884 = vadd.f32 %v7820, 1.0
      %v7885 = vadd.f32 %v7821, 1.0
      %v7886 = vadd.f32 %v7822, 1.0
      %v7887 = vadd.f32 %v7823, 1.0
      %v7888 = vadd.f32 %v7824, 1.0
      %v7889 = vadd.f32 %v7825, 1.0
      %v7890 = vadd.f32 %v7826, 1.0
      %v7891 = vadd.f32 %v7827, 1.0
      %v7892 = vadd.f32 %v7828, 1.0
      %v7893 = vadd.f32 %v7829, 1.0
      %v7894 = vadd.f32 %v7830, 1.0
      %v7895 = vadd.f32 %v7831, 1.0
      %v7896 = vadd.f32 %v7832, 1.0
      %v7897 = vadd.f32 %v7833, 1.0
      %v7898 = vadd.f32 %v7834, 1.0
      %v7899 = vmul.f32 %v7387, %v7835
      %v7900 = vmul.f32 %v7388, %v7836
      %v7901 = vmul.f32 %v7389, %v7837
      %v7902 = vmul.f32 %v7390, %v7838
      %v7903 = vmul.f32 %v7391, %v7839
      %v7904 = vmul.f32 %v7392, %v7840
      %v7905 = vmul.f32 %v7393, %v7841
      %v7906 = vmul.f32 %v7394, %v7842
      %v7907 = vmul.f32 %v7395, %v7843
      %v7908 = vmul.f32 %v7396, %v7844
      %v7909 = vmul.f32 %v7397, %v7845
      %v7910 = vmul.f32 %v7398, %v7846
      %v7911 = vmul.f32 %v7399, %v7847
      %v7912 = vmul.f32 %v7400, %v7848
      %v7913 = vmul.f32 %v7401, %v7849
      %v7914 = vmul.f32 %v7402, %v7850
      %v7915 = vmul.f32 %v7403, %v7851
      %v7916 = vmul.f32 %v7404, %v7852
      %v7917 = vmul.f32 %v7405, %v7853
      %v7918 = vmul.f32 %v7406, %v7854
      %v7919 = vmul.f32 %v7407, %v7855
      %v7920 = vmul.f32 %v7408, %v7856
      %v7921 = vmul.f32 %v7409, %v7857
      %v7922 = vmul.f32 %v7410, %v7858
      %v7923 = vmul.f32 %v7411, %v7859
      %v7924 = vmul.f32 %v7412, %v7860
      %v7925 = vmul.f32 %v7413, %v7861
      %v7926 = vmul.f32 %v7414, %v7862
      %v7927 = vmul.f32 %v7415, %v7863
      %v7928 = vmul.f32 %v7416, %v7864
      %v7929 = vmul.f32 %v7417, %v7865
      %v7930 = vmul.f32 %v7418, %v7866
      %v7931 = vmul.f32 %v7419, %v7867
      %v7932 = vmul.f32 %v7420, %v7868
      %v7933 = vmul.f32 %v7421, %v7869
      %v7934 = vmul.f32 %v7422, %v7870
      %v7935 = vmul.f32 %v7423, %v7871
      %v7936 = vmul.f32 %v7424, %v7872
      %v7937 = vmul.f32 %v7425, %v7873
      %v7938 = vmul.f32 %v7426, %v7874
      %v7939 = vmul.f32 %v7427, %v7875
      %v7940 = vmul.f32 %v7428, %v7876
      %v7941 = vmul.f32 %v7429, %v7877
      %v7942 = vmul.f32 %v7430, %v7878
      %v7943 = vmul.f32 %v7431, %v7879
      %v7944 = vmul.f32 %v7432, %v7880
      %v7945 = vmul.f32 %v7433, %v7881
      %v7946 = vmul.f32 %v7434, %v7882
      %v7947 = vmul.f32 %v7435, %v7883
      %v7948 = vmul.f32 %v7436, %v7884
      %v7949 = vmul.f32 %v7437, %v7885
      %v7950 = vmul.f32 %v7438, %v7886
      %v7951 = vmul.f32 %v7439, %v7887
      %v7952 = vmul.f32 %v7440, %v7888
      %v7953 = vmul.f32 %v7441, %v7889
      %v7954 = vmul.f32 %v7442, %v7890
      %v7955 = vmul.f32 %v7443, %v7891
      %v7956 = vmul.f32 %v7444, %v7892
      %v7957 = vmul.f32 %v7445, %v7893
      %v7958 = vmul.f32 %v7446, %v7894
      %v7959 = vmul.f32 %v7447, %v7895
      %v7960 = vmul.f32 %v7448, %v7896
      %v7961 = vmul.f32 %v7449, %v7897
      %v7962 = vmul.f32 %v7450, %v7898
      %v7963 = vpack.c.bf16 %v7901, %v7899
      %v7964 = vpack.c.bf16 %v7902, %v7900
      %v7965 = vpack.c.bf16 %v7905, %v7903
      %v7966 = vpack.c.bf16 %v7906, %v7904
      %v7967 = vpack.c.bf16 %v7909, %v7907
      %v7968 = vpack.c.bf16 %v7910, %v7908
      %v7969 = vpack.c.bf16 %v7913, %v7911
      %v7970 = vpack.c.bf16 %v7914, %v7912
      %v7971 = vpack.c.bf16 %v7917, %v7915
      %v7972 = vpack.c.bf16 %v7918, %v7916
      %v7973 = vpack.c.bf16 %v7921, %v7919
      %v7974 = vpack.c.bf16 %v7922, %v7920
      %v7975 = vpack.c.bf16 %v7925, %v7923
      %v7976 = vpack.c.bf16 %v7926, %v7924
      %v7977 = vpack.c.bf16 %v7929, %v7927
      %v7978 = vpack.c.bf16 %v7930, %v7928
      %v7979 = vpack.c.bf16 %v7933, %v7931
      %v7980 = vpack.c.bf16 %v7934, %v7932
      %v7981 = vpack.c.bf16 %v7937, %v7935
      %v7982 = vpack.c.bf16 %v7938, %v7936
      %v7983 = vpack.c.bf16 %v7941, %v7939
      %v7984 = vpack.c.bf16 %v7942, %v7940
      %v7985 = vpack.c.bf16 %v7945, %v7943
      %v7986 = vpack.c.bf16 %v7946, %v7944
      %v7987 = vpack.c.bf16 %v7949, %v7947
      %v7988 = vpack.c.bf16 %v7950, %v7948
      %v7989 = vpack.c.bf16 %v7953, %v7951
      %v7990 = vpack.c.bf16 %v7954, %v7952
      %v7991 = vpack.c.bf16 %v7957, %v7955
      %v7992 = vpack.c.bf16 %v7958, %v7956
      %v7993 = vpack.c.bf16 %v7961, %v7959
      %v7994 = vpack.c.bf16 %v7962, %v7960
      %v7995 = vld [vmem:[%s685] sm:$0xf]
      %v7996 = vld [vmem:[%s685 + $0x4] sm:$0xf]
      %v7997 = vld [vmem:[%s685 + $0x8] sm:$0xf]
      %v7998 = vld [vmem:[%s685 + $0xc] sm:$0xf]
      %v7999 = vld [vmem:[%s685 + $0x10] sm:$0xf]
      %v8000 = vld [vmem:[%s685 + $0x14] sm:$0xf]
      %v8001 = vld [vmem:[%s685 + $0x18] sm:$0xf]
      %v8002 = vld [vmem:[%s685 + $0x1c] sm:$0xf]
      %v8003 = vld [vmem:[%s685 + $0x20] sm:$0xf]
      %v8004 = vld [vmem:[%s685 + $0x24] sm:$0xf]
      %v8005 = vld [vmem:[%s685 + $0x28] sm:$0xf]
      %v8006 = vld [vmem:[%s685 + $0x2c] sm:$0xf]
      %v8007 = vld [vmem:[%s685 + $0x30] sm:$0xf]
      %v8008 = vld [vmem:[%s685 + $0x34] sm:$0xf]
      %v8009 = vld [vmem:[%s685 + $0x38] sm:$0xf]
      %v8010 = vld [vmem:[%s685 + $0x3c] sm:$0xf]
      %v8011 = vld [vmem:[%s685 + $0x40] sm:$0xf]
      %v8012 = vld [vmem:[%s685 + $0x44] sm:$0xf]
      %v8013 = vld [vmem:[%s685 + $0x48] sm:$0xf]
      %v8014 = vld [vmem:[%s685 + $0x4c] sm:$0xf]
      %v8015 = vld [vmem:[%s685 + $0x50] sm:$0xf]
      %v8016 = vld [vmem:[%s685 + $0x54] sm:$0xf]
      %v8017 = vld [vmem:[%s685 + $0x58] sm:$0xf]
      %v8018 = vld [vmem:[%s685 + $0x5c] sm:$0xf]
      %v8019 = vld [vmem:[%s685 + $0x60] sm:$0xf]
      %v8020 = vld [vmem:[%s685 + $0x64] sm:$0xf]
      %v8021 = vld [vmem:[%s685 + $0x68] sm:$0xf]
      %v8022 = vld [vmem:[%s685 + $0x6c] sm:$0xf]
      %v8023 = vld [vmem:[%s685 + $0x70] sm:$0xf]
      %v8024 = vld [vmem:[%s685 + $0x74] sm:$0xf]
      %v8025 = vld [vmem:[%s685 + $0x78] sm:$0xf]
      %v8026 = vld [vmem:[%s685 + $0x7c] sm:$0xf]
      %v8027 = vld [vmem:[%s688] sm:$0x1]
      %v8029 = vperm.slane %v8027, 0
      %v8063 = vunpack.c.l.b16 %v7995
      %v8064 = vunpack.c.l.b16 %v7996
      %v8065 = vunpack.c.l.b16 %v7997
      %v8066 = vunpack.c.l.b16 %v7998
      %v8067 = vunpack.c.l.b16 %v7999
      %v8068 = vunpack.c.l.b16 %v8000
      %v8069 = vunpack.c.l.b16 %v8001
      %v8070 = vunpack.c.l.b16 %v8002
      %v8071 = vunpack.c.l.b16 %v8003
      %v8072 = vunpack.c.l.b16 %v8004
      %v8073 = vunpack.c.l.b16 %v8005
      %v8074 = vunpack.c.l.b16 %v8006
      %v8075 = vunpack.c.l.b16 %v8007
      %v8076 = vunpack.c.l.b16 %v8008
      %v8077 = vunpack.c.l.b16 %v8009
      %v8078 = vunpack.c.l.b16 %v8010
      %v8079 = vunpack.c.l.b16 %v8011
      %v8080 = vunpack.c.l.b16 %v8012
      %v8081 = vunpack.c.l.b16 %v8013
      %v8082 = vunpack.c.l.b16 %v8014
      %v8083 = vunpack.c.l.b16 %v8015
      %v8084 = vunpack.c.l.b16 %v8016
      %v8085 = vunpack.c.l.b16 %v8017
      %v8086 = vunpack.c.l.b16 %v8018
      %v8087 = vunpack.c.l.b16 %v8019
      %v8088 = vunpack.c.l.b16 %v8020
      %v8089 = vunpack.c.l.b16 %v8021
      %v8090 = vunpack.c.l.b16 %v8022
      %v8091 = vunpack.c.l.b16 %v8023
      %v8092 = vunpack.c.l.b16 %v8024
      %v8093 = vunpack.c.l.b16 %v8025
      %v8094 = vunpack.c.l.b16 %v8026
      %v8095 = vpack.c.b16 %v8064, %v8063
      %v8096 = vpack.c.b16 %v8066, %v8065
      %v8097 = vpack.c.b16 %v8068, %v8067
      %v8098 = vpack.c.b16 %v8070, %v8069
      %v8099 = vpack.c.b16 %v8072, %v8071
      %v8100 = vpack.c.b16 %v8074, %v8073
      %v8101 = vpack.c.b16 %v8076, %v8075
      %v8102 = vpack.c.b16 %v8078, %v8077
      %v8103 = vpack.c.b16 %v8080, %v8079
      %v8104 = vpack.c.b16 %v8082, %v8081
      %v8105 = vpack.c.b16 %v8084, %v8083
      %v8106 = vpack.c.b16 %v8086, %v8085
      %v8107 = vpack.c.b16 %v8088, %v8087
      %v8108 = vpack.c.b16 %v8090, %v8089
      %v8109 = vpack.c.b16 %v8092, %v8091
      %v8110 = vpack.c.b16 %v8094, %v8093
      %8127 = vmatpush.bf16.msra.mxu0 %v8102
      %8128 = vmatpush.bf16.msra.mxu0 %v8101
      %8129 = vmatpush.bf16.msra.mxu0 %v8100
      %8130 = vmatpush.bf16.msra.mxu0 %v8099
      %8131 = vmatpush.bf16.msra.mxu0 %v8098
      %8132 = vmatpush.bf16.msra.mxu0 %v8097
      %8133 = vmatpush.bf16.msra.mxu0 %v8096
      %8134 = vmatpush.bf16.msra.mxu0 %v8095
      %8135 = vmatmul.bf16.gmra.mxu0 %v7963
      %v8136 = vpop.f32.mrf.mxu0
      %v8137 = vadd.f32 %v8029, %v8136
      %v8138 = vpop.f32.mrf.mxu0
      %v8139 = vadd.f32 %v8029, %v8138
      %8140 = vmatmul.bf16.gmra.mxu0 %v7965
      %v8141 = vpop.f32.mrf.mxu0
      %v8142 = vadd.f32 %v8029, %v8141
      %v8143 = vpop.f32.mrf.mxu0
      %v8144 = vadd.f32 %v8029, %v8143
      %8145 = vmatmul.bf16.gmra.mxu0 %v7967
      %v8146 = vpop.f32.mrf.mxu0
      %v8147 = vadd.f32 %v8029, %v8146
      %v8148 = vpop.f32.mrf.mxu0
      %v8149 = vadd.f32 %v8029, %v8148
      %8150 = vmatmul.bf16.gmra.mxu0 %v7969
      %v8151 = vpop.f32.mrf.mxu0
      %v8152 = vadd.f32 %v8029, %v8151
      %v8153 = vpop.f32.mrf.mxu0
      %v8154 = vadd.f32 %v8029, %v8153
      %8155 = vmatmul.bf16.gmra.mxu0 %v7971
      %v8156 = vpop.f32.mrf.mxu0
      %v8157 = vadd.f32 %v8029, %v8156
      %v8158 = vpop.f32.mrf.mxu0
      %v8159 = vadd.f32 %v8029, %v8158
      %8160 = vmatmul.bf16.gmra.mxu0 %v7973
      %v8161 = vpop.f32.mrf.mxu0
      %v8162 = vadd.f32 %v8029, %v8161
      %v8163 = vpop.f32.mrf.mxu0
      %v8164 = vadd.f32 %v8029, %v8163
      %8165 = vmatmul.bf16.gmra.mxu0 %v7975
      %v8166 = vpop.f32.mrf.mxu0
      %v8167 = vadd.f32 %v8029, %v8166
      %v8168 = vpop.f32.mrf.mxu0
      %v8169 = vadd.f32 %v8029, %v8168
      %8170 = vmatmul.bf16.gmra.mxu0 %v7977
      %v8171 = vpop.f32.mrf.mxu0
      %v8172 = vadd.f32 %v8029, %v8171
      %v8173 = vpop.f32.mrf.mxu0
      %v8174 = vadd.f32 %v8029, %v8173
      %8175 = vmatmul.bf16.gmra.mxu0 %v7979
      %v8176 = vpop.f32.mrf.mxu0
      %v8177 = vadd.f32 %v8029, %v8176
      %v8178 = vpop.f32.mrf.mxu0
      %v8179 = vadd.f32 %v8029, %v8178
      %8180 = vmatmul.bf16.gmra.mxu0 %v7981
      %v8181 = vpop.f32.mrf.mxu0
      %v8182 = vadd.f32 %v8029, %v8181
      %v8183 = vpop.f32.mrf.mxu0
      %v8184 = vadd.f32 %v8029, %v8183
      %8185 = vmatmul.bf16.gmra.mxu0 %v7983
      %v8186 = vpop.f32.mrf.mxu0
      %v8187 = vadd.f32 %v8029, %v8186
      %v8188 = vpop.f32.mrf.mxu0
      %v8189 = vadd.f32 %v8029, %v8188
      %8190 = vmatmul.bf16.gmra.mxu0 %v7985
      %v8191 = vpop.f32.mrf.mxu0
      %v8192 = vadd.f32 %v8029, %v8191
      %v8193 = vpop.f32.mrf.mxu0
      %v8194 = vadd.f32 %v8029, %v8193
      %8195 = vmatmul.bf16.gmra.mxu0 %v7987
      %v8196 = vpop.f32.mrf.mxu0
      %v8197 = vadd.f32 %v8029, %v8196
      %v8198 = vpop.f32.mrf.mxu0
      %v8199 = vadd.f32 %v8029, %v8198
      %8200 = vmatmul.bf16.gmra.mxu0 %v7989
      %v8201 = vpop.f32.mrf.mxu0
      %v8202 = vadd.f32 %v8029, %v8201
      %v8203 = vpop.f32.mrf.mxu0
      %v8204 = vadd.f32 %v8029, %v8203
      %8205 = vmatmul.bf16.gmra.mxu0 %v7991
      %v8206 = vpop.f32.mrf.mxu0
      %v8207 = vadd.f32 %v8029, %v8206
      %v8208 = vpop.f32.mrf.mxu0
      %v8209 = vadd.f32 %v8029, %v8208
      %8210 = vmatmul.bf16.gmra.mxu0 %v7993
      %v8211 = vpop.f32.mrf.mxu0
      %v8212 = vadd.f32 %v8029, %v8211
      %v8213 = vpop.f32.mrf.mxu0
      %v8214 = vadd.f32 %v8029, %v8213
      %8215 = vdwg.mxu0
      %8216 = vmatpush.bf16.msra.mxu0 %v8110
      %8217 = vmatpush.bf16.msra.mxu0 %v8109
      %8218 = vmatpush.bf16.msra.mxu0 %v8108
      %8219 = vmatpush.bf16.msra.mxu0 %v8107
      %8220 = vmatpush.bf16.msra.mxu0 %v8106
      %8221 = vmatpush.bf16.msra.mxu0 %v8105
      %8222 = vmatpush.bf16.msra.mxu0 %v8104
      %8223 = vmatpush.bf16.msra.mxu0 %v8103
      %8224 = vmatmul.bf16.gmra.mxu0 %v7964
      %v8225 = vpop.f32.mrf.mxu0
      %v8226 = vadd.f32 %v8137, %v8225
      %v8227 = vpop.f32.mrf.mxu0
      %v8228 = vadd.f32 %v8139, %v8227
      %8229 = vmatmul.bf16.gmra.mxu0 %v7966
      %v8230 = vpop.f32.mrf.mxu0
      %v8231 = vadd.f32 %v8142, %v8230
      %v8232 = vpop.f32.mrf.mxu0
      %v8233 = vadd.f32 %v8144, %v8232
      %8234 = vmatmul.bf16.gmra.mxu0 %v7968
      %v8235 = vpop.f32.mrf.mxu0
      %v8236 = vadd.f32 %v8147, %v8235
      %v8237 = vpop.f32.mrf.mxu0
      %v8238 = vadd.f32 %v8149, %v8237
      %8239 = vmatmul.bf16.gmra.mxu0 %v7970
      %v8240 = vpop.f32.mrf.mxu0
      %v8241 = vadd.f32 %v8152, %v8240
      %v8242 = vpop.f32.mrf.mxu0
      %v8243 = vadd.f32 %v8154, %v8242
      %8244 = vmatmul.bf16.gmra.mxu0 %v7972
      %v8245 = vpop.f32.mrf.mxu0
      %v8246 = vadd.f32 %v8157, %v8245
      %v8247 = vpop.f32.mrf.mxu0
      %v8248 = vadd.f32 %v8159, %v8247
      %8249 = vmatmul.bf16.gmra.mxu0 %v7974
      %v8250 = vpop.f32.mrf.mxu0
      %v8251 = vadd.f32 %v8162, %v8250
      %v8252 = vpop.f32.mrf.mxu0
      %v8253 = vadd.f32 %v8164, %v8252
      %8254 = vmatmul.bf16.gmra.mxu0 %v7976
      %v8255 = vpop.f32.mrf.mxu0
      %v8256 = vadd.f32 %v8167, %v8255
      %v8257 = vpop.f32.mrf.mxu0
      %v8258 = vadd.f32 %v8169, %v8257
      %8259 = vmatmul.bf16.gmra.mxu0 %v7978
      %v8260 = vpop.f32.mrf.mxu0
      %v8261 = vadd.f32 %v8172, %v8260
      %v8262 = vpop.f32.mrf.mxu0
      %v8263 = vadd.f32 %v8174, %v8262
      %8264 = vmatmul.bf16.gmra.mxu0 %v7980
      %v8265 = vpop.f32.mrf.mxu0
      %v8266 = vadd.f32 %v8177, %v8265
      %v8267 = vpop.f32.mrf.mxu0
      %v8268 = vadd.f32 %v8179, %v8267
      %8269 = vmatmul.bf16.gmra.mxu0 %v7982
      %v8270 = vpop.f32.mrf.mxu0
      %v8271 = vadd.f32 %v8182, %v8270
      %v8272 = vpop.f32.mrf.mxu0
      %v8273 = vadd.f32 %v8184, %v8272
      %8274 = vmatmul.bf16.gmra.mxu0 %v7984
      %v8275 = vpop.f32.mrf.mxu0
      %v8276 = vadd.f32 %v8187, %v8275
      %v8277 = vpop.f32.mrf.mxu0
      %v8278 = vadd.f32 %v8189, %v8277
      %8279 = vmatmul.bf16.gmra.mxu0 %v7986
      %v8280 = vpop.f32.mrf.mxu0
      %v8281 = vadd.f32 %v8192, %v8280
      %v8282 = vpop.f32.mrf.mxu0
      %v8283 = vadd.f32 %v8194, %v8282
      %8284 = vmatmul.bf16.gmra.mxu0 %v7988
      %v8285 = vpop.f32.mrf.mxu0
      %v8286 = vadd.f32 %v8197, %v8285
      %v8287 = vpop.f32.mrf.mxu0
      %v8288 = vadd.f32 %v8199, %v8287
      %8289 = vmatmul.bf16.gmra.mxu0 %v7990
      %v8290 = vpop.f32.mrf.mxu0
      %v8291 = vadd.f32 %v8202, %v8290
      %v8292 = vpop.f32.mrf.mxu0
      %v8293 = vadd.f32 %v8204, %v8292
      %8294 = vmatmul.bf16.gmra.mxu0 %v7992
      %v8295 = vpop.f32.mrf.mxu0
      %v8296 = vadd.f32 %v8207, %v8295
      %v8297 = vpop.f32.mrf.mxu0
      %v8298 = vadd.f32 %v8209, %v8297
      %8299 = vmatmul.bf16.gmra.mxu0 %v7994
      %v8300 = vpop.f32.mrf.mxu0
      %v8301 = vadd.f32 %v8212, %v8300
      %v8302 = vpop.f32.mrf.mxu0
      %v8303 = vadd.f32 %v8214, %v8302
      %8304 = vdwg.mxu0
      %v8305 = vadd.f32 %v6347, %v8226
      %v8306 = vadd.f32 %v6348, %v8228
      %v8307 = vadd.f32 %v6349, %v8231
      %v8308 = vadd.f32 %v6350, %v8233
      %v8309 = vadd.f32 %v6351, %v8236
      %v8310 = vadd.f32 %v6352, %v8238
      %v8311 = vadd.f32 %v6353, %v8241
      %v8312 = vadd.f32 %v6354, %v8243
      %v8313 = vadd.f32 %v6355, %v8246
      %v8314 = vadd.f32 %v6356, %v8248
      %v8315 = vadd.f32 %v6357, %v8251
      %v8316 = vadd.f32 %v6358, %v8253
      %v8317 = vadd.f32 %v6359, %v8256
      %v8318 = vadd.f32 %v6360, %v8258
      %v8319 = vadd.f32 %v6361, %v8261
      %v8320 = vadd.f32 %v6362, %v8263
      %v8321 = vadd.f32 %v6363, %v8266
      %v8322 = vadd.f32 %v6364, %v8268
      %v8323 = vadd.f32 %v6365, %v8271
      %v8324 = vadd.f32 %v6366, %v8273
      %v8325 = vadd.f32 %v6367, %v8276
      %v8326 = vadd.f32 %v6368, %v8278
      %v8327 = vadd.f32 %v6369, %v8281
      %v8328 = vadd.f32 %v6370, %v8283
      %v8329 = vadd.f32 %v6371, %v8286
      %v8330 = vadd.f32 %v6372, %v8288
      %v8331 = vadd.f32 %v6373, %v8291
      %v8332 = vadd.f32 %v6374, %v8293
      %v8333 = vadd.f32 %v6375, %v8296
      %v8334 = vadd.f32 %v6376, %v8298
      %v8335 = vadd.f32 %v6377, %v8301
      %v8336 = vadd.f32 %v6378, %v8303
      %8337 = vst [vmem:[#allocation2] sm:$0xff] %v8305
      %8338 = vst [vmem:[#allocation2 + $0x8] sm:$0xff] %v8306
      %8339 = vst [vmem:[#allocation2 + $0x10] sm:$0xff] %v8307
      %8340 = vst [vmem:[#allocation2 + $0x18] sm:$0xff] %v8308
      %8341 = vst [vmem:[#allocation2 + $0x20] sm:$0xff] %v8309
      %8342 = vst [vmem:[#allocation2 + $0x28] sm:$0xff] %v8310
      %8343 = vst [vmem:[#allocation2 + $0x30] sm:$0xff] %v8311
      %8344 = vst [vmem:[#allocation2 + $0x38] sm:$0xff] %v8312
      %8345 = vst [vmem:[#allocation2 + $0x40] sm:$0xff] %v8313
      %8346 = vst [vmem:[#allocation2 + $0x48] sm:$0xff] %v8314
      %8347 = vst [vmem:[#allocation2 + $0x50] sm:$0xff] %v8315
      %8348 = vst [vmem:[#allocation2 + $0x58] sm:$0xff] %v8316
      %8349 = vst [vmem:[#allocation2 + $0x60] sm:$0xff] %v8317
      %8350 = vst [vmem:[#allocation2 + $0x68] sm:$0xff] %v8318
      %8351 = vst [vmem:[#allocation2 + $0x70] sm:$0xff] %v8319
      %8352 = vst [vmem:[#allocation2 + $0x78] sm:$0xff] %v8320
      %8353 = vst [vmem:[#allocation2 + $0x80] sm:$0xff] %v8321
      %8354 = vst [vmem:[#allocation2 + $0x88] sm:$0xff] %v8322
      %8355 = vst [vmem:[#allocation2 + $0x90] sm:$0xff] %v8323
      %8356 = vst [vmem:[#allocation2 + $0x98] sm:$0xff] %v8324
      %8357 = vst [vmem:[#allocation2 + $0xa0] sm:$0xff] %v8325
      %8358 = vst [vmem:[#allocation2 + $0xa8] sm:$0xff] %v8326
      %8359 = vst [vmem:[#allocation2 + $0xb0] sm:$0xff] %v8327
      %8360 = vst [vmem:[#allocation2 + $0xb8] sm:$0xff] %v8328
      %8361 = vst [vmem:[#allocation2 + $0xc0] sm:$0xff] %v8329
      %8362 = vst [vmem:[#allocation2 + $0xc8] sm:$0xff] %v8330
      %8363 = vst [vmem:[#allocation2 + $0xd0] sm:$0xff] %v8331
      %8364 = vst [vmem:[#allocation2 + $0xd8] sm:$0xff] %v8332
      %8365 = vst [vmem:[#allocation2 + $0xe0] sm:$0xff] %v8333
      %8366 = vst [vmem:[#allocation2 + $0xe8] sm:$0xff] %v8334
      %8367 = vst [vmem:[#allocation2 + $0xf0] sm:$0xff] %v8335
      %8368 = vst [vmem:[#allocation2 + $0xf8] sm:$0xff] %v8336
      %p8369 = scmp.eq.s32.totalorder %s31, 1
      // Predicated region
      $region85: #{_lambda_.3} parent=79 // pred_check
        %p8370 = pneg %p8369
      $region86: #{_lambda_.3} parent=79 // pred_check_branch
        %8372 = sbr.rel (%p8370) target = $region88
      $region87: #{_lambda_.3} parent=79 // pred_region
        %v8373 = vld [vmem:[%s13] sm:$0x1]
        %v8374 = vld [vmem:[%s14] sm:$0x1]
        %8375 = vadd.xlane.f32.xlu0 %v8305
        %v8376 = vpop.xlane.xlu0 %8375
        %8377 = vadd.xlane.f32.xlu0 %v8306
        %v8378 = vpop.xlane.xlu0 %8377
        %8379 = vadd.xlane.f32.xlu0 %v8307
        %v8380 = vpop.xlane.xlu0 %8379
        %8381 = vadd.xlane.f32.xlu0 %v8308
        %v8382 = vpop.xlane.xlu0 %8381
        %8383 = vadd.xlane.f32.xlu0 %v8309
        %v8384 = vpop.xlane.xlu0 %8383
        %8385 = vadd.xlane.f32.xlu0 %v8310
        %v8386 = vpop.xlane.xlu0 %8385
        %8387 = vadd.xlane.f32.xlu0 %v8311
        %v8388 = vpop.xlane.xlu0 %8387
        %8389 = vadd.xlane.f32.xlu0 %v8312
        %v8390 = vpop.xlane.xlu0 %8389
        %8391 = vadd.xlane.f32.xlu0 %v8313
        %v8392 = vpop.xlane.xlu0 %8391
        %8393 = vadd.xlane.f32.xlu0 %v8314
        %v8394 = vpop.xlane.xlu0 %8393
        %8395 = vadd.xlane.f32.xlu0 %v8315
        %v8396 = vpop.xlane.xlu0 %8395
        %8397 = vadd.xlane.f32.xlu0 %v8316
        %v8398 = vpop.xlane.xlu0 %8397
        %8399 = vadd.xlane.f32.xlu0 %v8317
        %v8400 = vpop.xlane.xlu0 %8399
        %8401 = vadd.xlane.f32.xlu0 %v8318
        %v8402 = vpop.xlane.xlu0 %8401
        %8403 = vadd.xlane.f32.xlu0 %v8319
        %v8404 = vpop.xlane.xlu0 %8403
        %8405 = vadd.xlane.f32.xlu0 %v8320
        %v8406 = vpop.xlane.xlu0 %8405
        %8407 = vadd.xlane.f32.xlu0 %v8321
        %v8408 = vpop.xlane.xlu0 %8407
        %8409 = vadd.xlane.f32.xlu0 %v8322
        %v8410 = vpop.xlane.xlu0 %8409
        %8411 = vadd.xlane.f32.xlu0 %v8323
        %v8412 = vpop.xlane.xlu0 %8411
        %8413 = vadd.xlane.f32.xlu0 %v8324
        %v8414 = vpop.xlane.xlu0 %8413
        %8415 = vadd.xlane.f32.xlu0 %v8325
        %v8416 = vpop.xlane.xlu0 %8415
        %8417 = vadd.xlane.f32.xlu0 %v8326
        %v8418 = vpop.xlane.xlu0 %8417
        %8419 = vadd.xlane.f32.xlu0 %v8327
        %v8420 = vpop.xlane.xlu0 %8419
        %8421 = vadd.xlane.f32.xlu0 %v8328
        %v8422 = vpop.xlane.xlu0 %8421
        %8423 = vadd.xlane.f32.xlu0 %v8329
        %v8424 = vpop.xlane.xlu0 %8423
        %8425 = vadd.xlane.f32.xlu0 %v8330
        %v8426 = vpop.xlane.xlu0 %8425
        %8427 = vadd.xlane.f32.xlu0 %v8331
        %v8428 = vpop.xlane.xlu0 %8427
        %8429 = vadd.xlane.f32.xlu0 %v8332
        %v8430 = vpop.xlane.xlu0 %8429
        %8431 = vadd.xlane.f32.xlu0 %v8333
        %v8432 = vpop.xlane.xlu0 %8431
        %8433 = vadd.xlane.f32.xlu0 %v8334
        %v8434 = vpop.xlane.xlu0 %8433
        %8435 = vadd.xlane.f32.xlu0 %v8335
        %v8436 = vpop.xlane.xlu0 %8435
        %8437 = vadd.xlane.f32.xlu0 %v8336
        %v8438 = vpop.xlane.xlu0 %8437
        %v8439 = vmul.f32 %v8376, %v948
        %v8440 = vmul.f32 %v8378, %v948
        %v8441 = vmul.f32 %v8380, %v948
        %v8442 = vmul.f32 %v8382, %v948
        %v8443 = vmul.f32 %v8384, %v948
        %v8444 = vmul.f32 %v8386, %v948
        %v8445 = vmul.f32 %v8388, %v948
        %v8446 = vmul.f32 %v8390, %v948
        %v8447 = vmul.f32 %v8392, %v948
        %v8448 = vmul.f32 %v8394, %v948
        %v8449 = vmul.f32 %v8396, %v948
        %v8450 = vmul.f32 %v8398, %v948
        %v8451 = vmul.f32 %v8400, %v948
        %v8452 = vmul.f32 %v8402, %v948
        %v8453 = vmul.f32 %v8404, %v948
        %v8454 = vmul.f32 %v8406, %v948
        %v8455 = vmul.f32 %v8408, %v948
        %v8456 = vmul.f32 %v8410, %v948
        %v8457 = vmul.f32 %v8412, %v948
        %v8458 = vmul.f32 %v8414, %v948
        %v8459 = vmul.f32 %v8416, %v948
        %v8460 = vmul.f32 %v8418, %v948
        %v8461 = vmul.f32 %v8420, %v948
        %v8462 = vmul.f32 %v8422, %v948
        %v8463 = vmul.f32 %v8424, %v948
        %v8464 = vmul.f32 %v8426, %v948
        %v8465 = vmul.f32 %v8428, %v948
        %v8466 = vmul.f32 %v8430, %v948
        %v8467 = vmul.f32 %v8432, %v948
        %v8468 = vmul.f32 %v8434, %v948
        %v8469 = vmul.f32 %v8436, %v948
        %v8470 = vmul.f32 %v8438, %v948
        %v8471 = vsub.f32 %v8305, %v8439
        %v8472 = vsub.f32 %v8306, %v8440
        %v8473 = vsub.f32 %v8307, %v8441
        %v8474 = vsub.f32 %v8308, %v8442
        %v8475 = vsub.f32 %v8309, %v8443
        %v8476 = vsub.f32 %v8310, %v8444
        %v8477 = vsub.f32 %v8311, %v8445
        %v8478 = vsub.f32 %v8312, %v8446
        %v8479 = vsub.f32 %v8313, %v8447
        %v8480 = vsub.f32 %v8314, %v8448
        %v8481 = vsub.f32 %v8315, %v8449
        %v8482 = vsub.f32 %v8316, %v8450
        %v8483 = vsub.f32 %v8317, %v8451
        %v8484 = vsub.f32 %v8318, %v8452
        %v8485 = vsub.f32 %v8319, %v8453
        %v8486 = vsub.f32 %v8320, %v8454
        %v8487 = vsub.f32 %v8321, %v8455
        %v8488 = vsub.f32 %v8322, %v8456
        %v8489 = vsub.f32 %v8323, %v8457
        %v8490 = vsub.f32 %v8324, %v8458
        %v8491 = vsub.f32 %v8325, %v8459
        %v8492 = vsub.f32 %v8326, %v8460
        %v8493 = vsub.f32 %v8327, %v8461
        %v8494 = vsub.f32 %v8328, %v8462
        %v8495 = vsub.f32 %v8329, %v8463
        %v8496 = vsub.f32 %v8330, %v8464
        %v8497 = vsub.f32 %v8331, %v8465
        %v8498 = vsub.f32 %v8332, %v8466
        %v8499 = vsub.f32 %v8333, %v8467
        %v8500 = vsub.f32 %v8334, %v8468
        %v8501 = vsub.f32 %v8335, %v8469
        %v8502 = vsub.f32 %v8336, %v8470
        %v8503 = vmul.f32 %v8471, %v8471
        %v8504 = vmul.f32 %v8472, %v8472
        %v8505 = vmul.f32 %v8473, %v8473
        %v8506 = vmul.f32 %v8474, %v8474
        %v8507 = vmul.f32 %v8475, %v8475
        %v8508 = vmul.f32 %v8476, %v8476
        %v8509 = vmul.f32 %v8477, %v8477
        %v8510 = vmul.f32 %v8478, %v8478
        %v8511 = vmul.f32 %v8479, %v8479
        %v8512 = vmul.f32 %v8480, %v8480
        %v8513 = vmul.f32 %v8481, %v8481
        %v8514 = vmul.f32 %v8482, %v8482
        %v8515 = vmul.f32 %v8483, %v8483
        %v8516 = vmul.f32 %v8484, %v8484
        %v8517 = vmul.f32 %v8485, %v8485
        %v8518 = vmul.f32 %v8486, %v8486
        %v8519 = vmul.f32 %v8487, %v8487
        %v8520 = vmul.f32 %v8488, %v8488
        %v8521 = vmul.f32 %v8489, %v8489
        %v8522 = vmul.f32 %v8490, %v8490
        %v8523 = vmul.f32 %v8491, %v8491
        %v8524 = vmul.f32 %v8492, %v8492
        %v8525 = vmul.f32 %v8493, %v8493
        %v8526 = vmul.f32 %v8494, %v8494
        %v8527 = vmul.f32 %v8495, %v8495
        %v8528 = vmul.f32 %v8496, %v8496
        %v8529 = vmul.f32 %v8497, %v8497
        %v8530 = vmul.f32 %v8498, %v8498
        %v8531 = vmul.f32 %v8499, %v8499
        %v8532 = vmul.f32 %v8500, %v8500
        %v8533 = vmul.f32 %v8501, %v8501
        %v8534 = vmul.f32 %v8502, %v8502
        %8535 = vadd.xlane.f32.xlu0 %v8503
        %v8536 = vpop.xlane.xlu0 %8535
        %8537 = vadd.xlane.f32.xlu0 %v8504
        %v8538 = vpop.xlane.xlu0 %8537
        %8539 = vadd.xlane.f32.xlu0 %v8505
        %v8540 = vpop.xlane.xlu0 %8539
        %8541 = vadd.xlane.f32.xlu0 %v8506
        %v8542 = vpop.xlane.xlu0 %8541
        %8543 = vadd.xlane.f32.xlu0 %v8507
        %v8544 = vpop.xlane.xlu0 %8543
        %8545 = vadd.xlane.f32.xlu0 %v8508
        %v8546 = vpop.xlane.xlu0 %8545
        %8547 = vadd.xlane.f32.xlu0 %v8509
        %v8548 = vpop.xlane.xlu0 %8547
        %8549 = vadd.xlane.f32.xlu0 %v8510
        %v8550 = vpop.xlane.xlu0 %8549
        %8551 = vadd.xlane.f32.xlu0 %v8511
        %v8552 = vpop.xlane.xlu0 %8551
        %8553 = vadd.xlane.f32.xlu0 %v8512
        %v8554 = vpop.xlane.xlu0 %8553
        %8555 = vadd.xlane.f32.xlu0 %v8513
        %v8556 = vpop.xlane.xlu0 %8555
        %8557 = vadd.xlane.f32.xlu0 %v8514
        %v8558 = vpop.xlane.xlu0 %8557
        %8559 = vadd.xlane.f32.xlu0 %v8515
        %v8560 = vpop.xlane.xlu0 %8559
        %8561 = vadd.xlane.f32.xlu0 %v8516
        %v8562 = vpop.xlane.xlu0 %8561
        %8563 = vadd.xlane.f32.xlu0 %v8517
        %v8564 = vpop.xlane.xlu0 %8563
        %8565 = vadd.xlane.f32.xlu0 %v8518
        %v8566 = vpop.xlane.xlu0 %8565
        %8567 = vadd.xlane.f32.xlu0 %v8519
        %v8568 = vpop.xlane.xlu0 %8567
        %8569 = vadd.xlane.f32.xlu0 %v8520
        %v8570 = vpop.xlane.xlu0 %8569
        %8571 = vadd.xlane.f32.xlu0 %v8521
        %v8572 = vpop.xlane.xlu0 %8571
        %8573 = vadd.xlane.f32.xlu0 %v8522
        %v8574 = vpop.xlane.xlu0 %8573
        %8575 = vadd.xlane.f32.xlu0 %v8523
        %v8576 = vpop.xlane.xlu0 %8575
        %8577 = vadd.xlane.f32.xlu0 %v8524
        %v8578 = vpop.xlane.xlu0 %8577
        %8579 = vadd.xlane.f32.xlu0 %v8525
        %v8580 = vpop.xlane.xlu0 %8579
        %8581 = vadd.xlane.f32.xlu0 %v8526
        %v8582 = vpop.xlane.xlu0 %8581
        %8583 = vadd.xlane.f32.xlu0 %v8527
        %v8584 = vpop.xlane.xlu0 %8583
        %8585 = vadd.xlane.f32.xlu0 %v8528
        %v8586 = vpop.xlane.xlu0 %8585
        %8587 = vadd.xlane.f32.xlu0 %v8529
        %v8588 = vpop.xlane.xlu0 %8587
        %8589 = vadd.xlane.f32.xlu0 %v8530
        %v8590 = vpop.xlane.xlu0 %8589
        %8591 = vadd.xlane.f32.xlu0 %v8531
        %v8592 = vpop.xlane.xlu0 %8591
        %8593 = vadd.xlane.f32.xlu0 %v8532
        %v8594 = vpop.xlane.xlu0 %8593
        %8595 = vadd.xlane.f32.xlu0 %v8533
        %v8596 = vpop.xlane.xlu0 %8595
        %8597 = vadd.xlane.f32.xlu0 %v8534
        %v8598 = vpop.xlane.xlu0 %8597
        %v8599 = vmul.f32 %v8536, %v948
        %v8600 = vmul.f32 %v8538, %v948
        %v8601 = vmul.f32 %v8540, %v948
        %v8602 = vmul.f32 %v8542, %v948
        %v8603 = vmul.f32 %v8544, %v948
        %v8604 = vmul.f32 %v8546, %v948
        %v8605 = vmul.f32 %v8548, %v948
        %v8606 = vmul.f32 %v8550, %v948
        %v8607 = vmul.f32 %v8552, %v948
        %v8608 = vmul.f32 %v8554, %v948
        %v8609 = vmul.f32 %v8556, %v948
        %v8610 = vmul.f32 %v8558, %v948
        %v8611 = vmul.f32 %v8560, %v948
        %v8612 = vmul.f32 %v8562, %v948
        %v8613 = vmul.f32 %v8564, %v948
        %v8614 = vmul.f32 %v8566, %v948
        %v8615 = vmul.f32 %v8568, %v948
        %v8616 = vmul.f32 %v8570, %v948
        %v8617 = vmul.f32 %v8572, %v948
        %v8618 = vmul.f32 %v8574, %v948
        %v8619 = vmul.f32 %v8576, %v948
        %v8620 = vmul.f32 %v8578, %v948
        %v8621 = vmul.f32 %v8580, %v948
        %v8622 = vmul.f32 %v8582, %v948
        %v8623 = vmul.f32 %v8584, %v948
        %v8624 = vmul.f32 %v8586, %v948
        %v8625 = vmul.f32 %v8588, %v948
        %v8626 = vmul.f32 %v8590, %v948
        %v8627 = vmul.f32 %v8592, %v948
        %v8628 = vmul.f32 %v8594, %v948
        %v8629 = vmul.f32 %v8596, %v948
        %v8630 = vmul.f32 %v8598, %v948
        %v8631 = vadd.f32 %v8599, 1e-05
        %v8632 = vadd.f32 %v8600, 1e-05
        %v8633 = vadd.f32 %v8601, 1e-05
        %v8634 = vadd.f32 %v8602, 1e-05
        %v8635 = vadd.f32 %v8603, 1e-05
        %v8636 = vadd.f32 %v8604, 1e-05
        %v8637 = vadd.f32 %v8605, 1e-05
        %v8638 = vadd.f32 %v8606, 1e-05
        %v8639 = vadd.f32 %v8607, 1e-05
        %v8640 = vadd.f32 %v8608, 1e-05
        %v8641 = vadd.f32 %v8609, 1e-05
        %v8642 = vadd.f32 %v8610, 1e-05
        %v8643 = vadd.f32 %v8611, 1e-05
        %v8644 = vadd.f32 %v8612, 1e-05
        %v8645 = vadd.f32 %v8613, 1e-05
        %v8646 = vadd.f32 %v8614, 1e-05
        %v8647 = vadd.f32 %v8615, 1e-05
        %v8648 = vadd.f32 %v8616, 1e-05
        %v8649 = vadd.f32 %v8617, 1e-05
        %v8650 = vadd.f32 %v8618, 1e-05
        %v8651 = vadd.f32 %v8619, 1e-05
        %v8652 = vadd.f32 %v8620, 1e-05
        %v8653 = vadd.f32 %v8621, 1e-05
        %v8654 = vadd.f32 %v8622, 1e-05
        %v8655 = vadd.f32 %v8623, 1e-05
        %v8656 = vadd.f32 %v8624, 1e-05
        %v8657 = vadd.f32 %v8625, 1e-05
        %v8658 = vadd.f32 %v8626, 1e-05
        %v8659 = vadd.f32 %v8627, 1e-05
        %v8660 = vadd.f32 %v8628, 1e-05
        %v8661 = vadd.f32 %v8629, 1e-05
        %v8662 = vadd.f32 %v8630, 1e-05
        %v8663 = vrsqrt.pop %v8631
        %v8664 = vmul.f32 %v8663, %v8631
        %v8665 = vmul.f32 %v8664, %v8663
        %v8666 = vmul.f32 0.5, %v8665
        %v8667 = vsub.f32 1.5, %v8666
        %v8668 = vmul.f32 %v8663, %v8667
        %vm8669 = vweird.f32 %v8631
        %vm8670 = vweird.f32 %v8663
        %vm8671 = vmor %vm8669, %vm8670
        %v8672 = vsel %vm8671, %v8663, %v8668
        %v8673 = vrsqrt.pop %v8632
        %v8674 = vmul.f32 %v8673, %v8632
        %v8675 = vmul.f32 %v8674, %v8673
        %v8676 = vmul.f32 0.5, %v8675
        %v8677 = vsub.f32 1.5, %v8676
        %v8678 = vmul.f32 %v8673, %v8677
        %vm8679 = vweird.f32 %v8632
        %vm8680 = vweird.f32 %v8673
        %vm8681 = vmor %vm8679, %vm8680
        %v8682 = vsel %vm8681, %v8673, %v8678
        %v8683 = vrsqrt.pop %v8633
        %v8684 = vmul.f32 %v8683, %v8633
        %v8685 = vmul.f32 %v8684, %v8683
        %v8686 = vmul.f32 0.5, %v8685
        %v8687 = vsub.f32 1.5, %v8686
        %v8688 = vmul.f32 %v8683, %v8687
        %vm8689 = vweird.f32 %v8633
        %vm8690 = vweird.f32 %v8683
        %vm8691 = vmor %vm8689, %vm8690
        %v8692 = vsel %vm8691, %v8683, %v8688
        %v8693 = vrsqrt.pop %v8634
        %v8694 = vmul.f32 %v8693, %v8634
        %v8695 = vmul.f32 %v8694, %v8693
        %v8696 = vmul.f32 0.5, %v8695
        %v8697 = vsub.f32 1.5, %v8696
        %v8698 = vmul.f32 %v8693, %v8697
        %vm8699 = vweird.f32 %v8634
        %vm8700 = vweird.f32 %v8693
        %vm8701 = vmor %vm8699, %vm8700
        %v8702 = vsel %vm8701, %v8693, %v8698
        %v8703 = vrsqrt.pop %v8635
        %v8704 = vmul.f32 %v8703, %v8635
        %v8705 = vmul.f32 %v8704, %v8703
        %v8706 = vmul.f32 0.5, %v8705
        %v8707 = vsub.f32 1.5, %v8706
        %v8708 = vmul.f32 %v8703, %v8707
        %vm8709 = vweird.f32 %v8635
        %vm8710 = vweird.f32 %v8703
        %vm8711 = vmor %vm8709, %vm8710
        %v8712 = vsel %vm8711, %v8703, %v8708
        %v8713 = vrsqrt.pop %v8636
        %v8714 = vmul.f32 %v8713, %v8636
        %v8715 = vmul.f32 %v8714, %v8713
        %v8716 = vmul.f32 0.5, %v8715
        %v8717 = vsub.f32 1.5, %v8716
        %v8718 = vmul.f32 %v8713, %v8717
        %vm8719 = vweird.f32 %v8636
        %vm8720 = vweird.f32 %v8713
        %vm8721 = vmor %vm8719, %vm8720
        %v8722 = vsel %vm8721, %v8713, %v8718
        %v8723 = vrsqrt.pop %v8637
        %v8724 = vmul.f32 %v8723, %v8637
        %v8725 = vmul.f32 %v8724, %v8723
        %v8726 = vmul.f32 0.5, %v8725
        %v8727 = vsub.f32 1.5, %v8726
        %v8728 = vmul.f32 %v8723, %v8727
        %vm8729 = vweird.f32 %v8637
        %vm8730 = vweird.f32 %v8723
        %vm8731 = vmor %vm8729, %vm8730
        %v8732 = vsel %vm8731, %v8723, %v8728
        %v8733 = vrsqrt.pop %v8638
        %v8734 = vmul.f32 %v8733, %v8638
        %v8735 = vmul.f32 %v8734, %v8733
        %v8736 = vmul.f32 0.5, %v8735
        %v8737 = vsub.f32 1.5, %v8736
        %v8738 = vmul.f32 %v8733, %v8737
        %vm8739 = vweird.f32 %v8638
        %vm8740 = vweird.f32 %v8733
        %vm8741 = vmor %vm8739, %vm8740
        %v8742 = vsel %vm8741, %v8733, %v8738
        %v8743 = vrsqrt.pop %v8639
        %v8744 = vmul.f32 %v8743, %v8639
        %v8745 = vmul.f32 %v8744, %v8743
        %v8746 = vmul.f32 0.5, %v8745
        %v8747 = vsub.f32 1.5, %v8746
        %v8748 = vmul.f32 %v8743, %v8747
        %vm8749 = vweird.f32 %v8639
        %vm8750 = vweird.f32 %v8743
        %vm8751 = vmor %vm8749, %vm8750
        %v8752 = vsel %vm8751, %v8743, %v8748
        %v8753 = vrsqrt.pop %v8640
        %v8754 = vmul.f32 %v8753, %v8640
        %v8755 = vmul.f32 %v8754, %v8753
        %v8756 = vmul.f32 0.5, %v8755
        %v8757 = vsub.f32 1.5, %v8756
        %v8758 = vmul.f32 %v8753, %v8757
        %vm8759 = vweird.f32 %v8640
        %vm8760 = vweird.f32 %v8753
        %vm8761 = vmor %vm8759, %vm8760
        %v8762 = vsel %vm8761, %v8753, %v8758
        %v8763 = vrsqrt.pop %v8641
        %v8764 = vmul.f32 %v8763, %v8641
        %v8765 = vmul.f32 %v8764, %v8763
        %v8766 = vmul.f32 0.5, %v8765
        %v8767 = vsub.f32 1.5, %v8766
        %v8768 = vmul.f32 %v8763, %v8767
        %vm8769 = vweird.f32 %v8641
        %vm8770 = vweird.f32 %v8763
        %vm8771 = vmor %vm8769, %vm8770
        %v8772 = vsel %vm8771, %v8763, %v8768
        %v8773 = vrsqrt.pop %v8642
        %v8774 = vmul.f32 %v8773, %v8642
        %v8775 = vmul.f32 %v8774, %v8773
        %v8776 = vmul.f32 0.5, %v8775
        %v8777 = vsub.f32 1.5, %v8776
        %v8778 = vmul.f32 %v8773, %v8777
        %vm8779 = vweird.f32 %v8642
        %vm8780 = vweird.f32 %v8773
        %vm8781 = vmor %vm8779, %vm8780
        %v8782 = vsel %vm8781, %v8773, %v8778
        %v8783 = vrsqrt.pop %v8643
        %v8784 = vmul.f32 %v8783, %v8643
        %v8785 = vmul.f32 %v8784, %v8783
        %v8786 = vmul.f32 0.5, %v8785
        %v8787 = vsub.f32 1.5, %v8786
        %v8788 = vmul.f32 %v8783, %v8787
        %vm8789 = vweird.f32 %v8643
        %vm8790 = vweird.f32 %v8783
        %vm8791 = vmor %vm8789, %vm8790
        %v8792 = vsel %vm8791, %v8783, %v8788
        %v8793 = vrsqrt.pop %v8644
        %v8794 = vmul.f32 %v8793, %v8644
        %v8795 = vmul.f32 %v8794, %v8793
        %v8796 = vmul.f32 0.5, %v8795
        %v8797 = vsub.f32 1.5, %v8796
        %v8798 = vmul.f32 %v8793, %v8797
        %vm8799 = vweird.f32 %v8644
        %vm8800 = vweird.f32 %v8793
        %vm8801 = vmor %vm8799, %vm8800
        %v8802 = vsel %vm8801, %v8793, %v8798
        %v8803 = vrsqrt.pop %v8645
        %v8804 = vmul.f32 %v8803, %v8645
        %v8805 = vmul.f32 %v8804, %v8803
        %v8806 = vmul.f32 0.5, %v8805
        %v8807 = vsub.f32 1.5, %v8806
        %v8808 = vmul.f32 %v8803, %v8807
        %vm8809 = vweird.f32 %v8645
        %vm8810 = vweird.f32 %v8803
        %vm8811 = vmor %vm8809, %vm8810
        %v8812 = vsel %vm8811, %v8803, %v8808
        %v8813 = vrsqrt.pop %v8646
        %v8814 = vmul.f32 %v8813, %v8646
        %v8815 = vmul.f32 %v8814, %v8813
        %v8816 = vmul.f32 0.5, %v8815
        %v8817 = vsub.f32 1.5, %v8816
        %v8818 = vmul.f32 %v8813, %v8817
        %vm8819 = vweird.f32 %v8646
        %vm8820 = vweird.f32 %v8813
        %vm8821 = vmor %vm8819, %vm8820
        %v8822 = vsel %vm8821, %v8813, %v8818
        %v8823 = vrsqrt.pop %v8647
        %v8824 = vmul.f32 %v8823, %v8647
        %v8825 = vmul.f32 %v8824, %v8823
        %v8826 = vmul.f32 0.5, %v8825
        %v8827 = vsub.f32 1.5, %v8826
        %v8828 = vmul.f32 %v8823, %v8827
        %vm8829 = vweird.f32 %v8647
        %vm8830 = vweird.f32 %v8823
        %vm8831 = vmor %vm8829, %vm8830
        %v8832 = vsel %vm8831, %v8823, %v8828
        %v8833 = vrsqrt.pop %v8648
        %v8834 = vmul.f32 %v8833, %v8648
        %v8835 = vmul.f32 %v8834, %v8833
        %v8836 = vmul.f32 0.5, %v8835
        %v8837 = vsub.f32 1.5, %v8836
        %v8838 = vmul.f32 %v8833, %v8837
        %vm8839 = vweird.f32 %v8648
        %vm8840 = vweird.f32 %v8833
        %vm8841 = vmor %vm8839, %vm8840
        %v8842 = vsel %vm8841, %v8833, %v8838
        %v8843 = vrsqrt.pop %v8649
        %v8844 = vmul.f32 %v8843, %v8649
        %v8845 = vmul.f32 %v8844, %v8843
        %v8846 = vmul.f32 0.5, %v8845
        %v8847 = vsub.f32 1.5, %v8846
        %v8848 = vmul.f32 %v8843, %v8847
        %vm8849 = vweird.f32 %v8649
        %vm8850 = vweird.f32 %v8843
        %vm8851 = vmor %vm8849, %vm8850
        %v8852 = vsel %vm8851, %v8843, %v8848
        %v8853 = vrsqrt.pop %v8650
        %v8854 = vmul.f32 %v8853, %v8650
        %v8855 = vmul.f32 %v8854, %v8853
        %v8856 = vmul.f32 0.5, %v8855
        %v8857 = vsub.f32 1.5, %v8856
        %v8858 = vmul.f32 %v8853, %v8857
        %vm8859 = vweird.f32 %v8650
        %vm8860 = vweird.f32 %v8853
        %vm8861 = vmor %vm8859, %vm8860
        %v8862 = vsel %vm8861, %v8853, %v8858
        %v8863 = vrsqrt.pop %v8651
        %v8864 = vmul.f32 %v8863, %v8651
        %v8865 = vmul.f32 %v8864, %v8863
        %v8866 = vmul.f32 0.5, %v8865
        %v8867 = vsub.f32 1.5, %v8866
        %v8868 = vmul.f32 %v8863, %v8867
        %vm8869 = vweird.f32 %v8651
        %vm8870 = vweird.f32 %v8863
        %vm8871 = vmor %vm8869, %vm8870
        %v8872 = vsel %vm8871, %v8863, %v8868
        %v8873 = vrsqrt.pop %v8652
        %v8874 = vmul.f32 %v8873, %v8652
        %v8875 = vmul.f32 %v8874, %v8873
        %v8876 = vmul.f32 0.5, %v8875
        %v8877 = vsub.f32 1.5, %v8876
        %v8878 = vmul.f32 %v8873, %v8877
        %vm8879 = vweird.f32 %v8652
        %vm8880 = vweird.f32 %v8873
        %vm8881 = vmor %vm8879, %vm8880
        %v8882 = vsel %vm8881, %v8873, %v8878
        %v8883 = vrsqrt.pop %v8653
        %v8884 = vmul.f32 %v8883, %v8653
        %v8885 = vmul.f32 %v8884, %v8883
        %v8886 = vmul.f32 0.5, %v8885
        %v8887 = vsub.f32 1.5, %v8886
        %v8888 = vmul.f32 %v8883, %v8887
        %vm8889 = vweird.f32 %v8653
        %vm8890 = vweird.f32 %v8883
        %vm8891 = vmor %vm8889, %vm8890
        %v8892 = vsel %vm8891, %v8883, %v8888
        %v8893 = vrsqrt.pop %v8654
        %v8894 = vmul.f32 %v8893, %v8654
        %v8895 = vmul.f32 %v8894, %v8893
        %v8896 = vmul.f32 0.5, %v8895
        %v8897 = vsub.f32 1.5, %v8896
        %v8898 = vmul.f32 %v8893, %v8897
        %vm8899 = vweird.f32 %v8654
        %vm8900 = vweird.f32 %v8893
        %vm8901 = vmor %vm8899, %vm8900
        %v8902 = vsel %vm8901, %v8893, %v8898
        %v8903 = vrsqrt.pop %v8655
        %v8904 = vmul.f32 %v8903, %v8655
        %v8905 = vmul.f32 %v8904, %v8903
        %v8906 = vmul.f32 0.5, %v8905
        %v8907 = vsub.f32 1.5, %v8906
        %v8908 = vmul.f32 %v8903, %v8907
        %vm8909 = vweird.f32 %v8655
        %vm8910 = vweird.f32 %v8903
        %vm8911 = vmor %vm8909, %vm8910
        %v8912 = vsel %vm8911, %v8903, %v8908
        %v8913 = vrsqrt.pop %v8656
        %v8914 = vmul.f32 %v8913, %v8656
        %v8915 = vmul.f32 %v8914, %v8913
        %v8916 = vmul.f32 0.5, %v8915
        %v8917 = vsub.f32 1.5, %v8916
        %v8918 = vmul.f32 %v8913, %v8917
        %vm8919 = vweird.f32 %v8656
        %vm8920 = vweird.f32 %v8913
        %vm8921 = vmor %vm8919, %vm8920
        %v8922 = vsel %vm8921, %v8913, %v8918
        %v8923 = vrsqrt.pop %v8657
        %v8924 = vmul.f32 %v8923, %v8657
        %v8925 = vmul.f32 %v8924, %v8923
        %v8926 = vmul.f32 0.5, %v8925
        %v8927 = vsub.f32 1.5, %v8926
        %v8928 = vmul.f32 %v8923, %v8927
        %vm8929 = vweird.f32 %v8657
        %vm8930 = vweird.f32 %v8923
        %vm8931 = vmor %vm8929, %vm8930
        %v8932 = vsel %vm8931, %v8923, %v8928
        %v8933 = vrsqrt.pop %v8658
        %v8934 = vmul.f32 %v8933, %v8658
        %v8935 = vmul.f32 %v8934, %v8933
        %v8936 = vmul.f32 0.5, %v8935
        %v8937 = vsub.f32 1.5, %v8936
        %v8938 = vmul.f32 %v8933, %v8937
        %vm8939 = vweird.f32 %v8658
        %vm8940 = vweird.f32 %v8933
        %vm8941 = vmor %vm8939, %vm8940
        %v8942 = vsel %vm8941, %v8933, %v8938
        %v8943 = vrsqrt.pop %v8659
        %v8944 = vmul.f32 %v8943, %v8659
        %v8945 = vmul.f32 %v8944, %v8943
        %v8946 = vmul.f32 0.5, %v8945
        %v8947 = vsub.f32 1.5, %v8946
        %v8948 = vmul.f32 %v8943, %v8947
        %vm8949 = vweird.f32 %v8659
        %vm8950 = vweird.f32 %v8943
        %vm8951 = vmor %vm8949, %vm8950
        %v8952 = vsel %vm8951, %v8943, %v8948
        %v8953 = vrsqrt.pop %v8660
        %v8954 = vmul.f32 %v8953, %v8660
        %v8955 = vmul.f32 %v8954, %v8953
        %v8956 = vmul.f32 0.5, %v8955
        %v8957 = vsub.f32 1.5, %v8956
        %v8958 = vmul.f32 %v8953, %v8957
        %vm8959 = vweird.f32 %v8660
        %vm8960 = vweird.f32 %v8953
        %vm8961 = vmor %vm8959, %vm8960
        %v8962 = vsel %vm8961, %v8953, %v8958
        %v8963 = vrsqrt.pop %v8661
        %v8964 = vmul.f32 %v8963, %v8661
        %v8965 = vmul.f32 %v8964, %v8963
        %v8966 = vmul.f32 0.5, %v8965
        %v8967 = vsub.f32 1.5, %v8966
        %v8968 = vmul.f32 %v8963, %v8967
        %vm8969 = vweird.f32 %v8661
        %vm8970 = vweird.f32 %v8963
        %vm8971 = vmor %vm8969, %vm8970
        %v8972 = vsel %vm8971, %v8963, %v8968
        %v8973 = vrsqrt.pop %v8662
        %v8974 = vmul.f32 %v8973, %v8662
        %v8975 = vmul.f32 %v8974, %v8973
        %v8976 = vmul.f32 0.5, %v8975
        %v8977 = vsub.f32 1.5, %v8976
        %v8978 = vmul.f32 %v8973, %v8977
        %vm8979 = vweird.f32 %v8662
        %vm8980 = vweird.f32 %v8973
        %vm8981 = vmor %vm8979, %vm8980
        %v8982 = vsel %vm8981, %v8973, %v8978
        %v8983 = vmul.f32 %v8471, %v8672
        %v8984 = vmul.f32 %v8472, %v8682
        %v8985 = vmul.f32 %v8473, %v8692
        %v8986 = vmul.f32 %v8474, %v8702
        %v8987 = vmul.f32 %v8475, %v8712
        %v8988 = vmul.f32 %v8476, %v8722
        %v8989 = vmul.f32 %v8477, %v8732
        %v8990 = vmul.f32 %v8478, %v8742
        %v8991 = vmul.f32 %v8479, %v8752
        %v8992 = vmul.f32 %v8480, %v8762
        %v8993 = vmul.f32 %v8481, %v8772
        %v8994 = vmul.f32 %v8482, %v8782
        %v8995 = vmul.f32 %v8483, %v8792
        %v8996 = vmul.f32 %v8484, %v8802
        %v8997 = vmul.f32 %v8485, %v8812
        %v8998 = vmul.f32 %v8486, %v8822
        %v8999 = vmul.f32 %v8487, %v8832
        %v9000 = vmul.f32 %v8488, %v8842
        %v9001 = vmul.f32 %v8489, %v8852
        %v9002 = vmul.f32 %v8490, %v8862
        %v9003 = vmul.f32 %v8491, %v8872
        %v9004 = vmul.f32 %v8492, %v8882
        %v9005 = vmul.f32 %v8493, %v8892
        %v9006 = vmul.f32 %v8494, %v8902
        %v9007 = vmul.f32 %v8495, %v8912
        %v9008 = vmul.f32 %v8496, %v8922
        %v9009 = vmul.f32 %v8497, %v8932
        %v9010 = vmul.f32 %v8498, %v8942
        %v9011 = vmul.f32 %v8499, %v8952
        %v9012 = vmul.f32 %v8500, %v8962
        %v9013 = vmul.f32 %v8501, %v8972
        %v9014 = vmul.f32 %v8502, %v8982
        %v9016 = vperm.slane %v8373, 0
        %v9018 = vmul.f32 %v8983, %v9016
        %v9019 = vmul.f32 %v8984, %v9016
        %v9020 = vmul.f32 %v8985, %v9016
        %v9021 = vmul.f32 %v8986, %v9016
        %v9022 = vmul.f32 %v8987, %v9016
        %v9023 = vmul.f32 %v8988, %v9016
        %v9024 = vmul.f32 %v8989, %v9016
        %v9025 = vmul.f32 %v8990, %v9016
        %v9026 = vmul.f32 %v8991, %v9016
        %v9027 = vmul.f32 %v8992, %v9016
        %v9028 = vmul.f32 %v8993, %v9016
        %v9029 = vmul.f32 %v8994, %v9016
        %v9030 = vmul.f32 %v8995, %v9016
        %v9031 = vmul.f32 %v8996, %v9016
        %v9032 = vmul.f32 %v8997, %v9016
        %v9033 = vmul.f32 %v8998, %v9016
        %v9034 = vmul.f32 %v8999, %v9016
        %v9035 = vmul.f32 %v9000, %v9016
        %v9036 = vmul.f32 %v9001, %v9016
        %v9037 = vmul.f32 %v9002, %v9016
        %v9038 = vmul.f32 %v9003, %v9016
        %v9039 = vmul.f32 %v9004, %v9016
        %v9040 = vmul.f32 %v9005, %v9016
        %v9041 = vmul.f32 %v9006, %v9016
        %v9042 = vmul.f32 %v9007, %v9016
        %v9043 = vmul.f32 %v9008, %v9016
        %v9044 = vmul.f32 %v9009, %v9016
        %v9045 = vmul.f32 %v9010, %v9016
        %v9046 = vmul.f32 %v9011, %v9016
        %v9047 = vmul.f32 %v9012, %v9016
        %v9048 = vmul.f32 %v9013, %v9016
        %v9049 = vmul.f32 %v9014, %v9016
        %v9051 = vperm.slane %v8374, 0
        %v9053 = vadd.f32 %v9018, %v9051
        %v9054 = vadd.f32 %v9019, %v9051
        %v9055 = vadd.f32 %v9020, %v9051
        %v9056 = vadd.f32 %v9021, %v9051
        %v9057 = vadd.f32 %v9022, %v9051
        %v9058 = vadd.f32 %v9023, %v9051
        %v9059 = vadd.f32 %v9024, %v9051
        %v9060 = vadd.f32 %v9025, %v9051
        %v9061 = vadd.f32 %v9026, %v9051
        %v9062 = vadd.f32 %v9027, %v9051
        %v9063 = vadd.f32 %v9028, %v9051
        %v9064 = vadd.f32 %v9029, %v9051
        %v9065 = vadd.f32 %v9030, %v9051
        %v9066 = vadd.f32 %v9031, %v9051
        %v9067 = vadd.f32 %v9032, %v9051
        %v9068 = vadd.f32 %v9033, %v9051
        %v9069 = vadd.f32 %v9034, %v9051
        %v9070 = vadd.f32 %v9035, %v9051
        %v9071 = vadd.f32 %v9036, %v9051
        %v9072 = vadd.f32 %v9037, %v9051
        %v9073 = vadd.f32 %v9038, %v9051
        %v9074 = vadd.f32 %v9039, %v9051
        %v9075 = vadd.f32 %v9040, %v9051
        %v9076 = vadd.f32 %v9041, %v9051
        %v9077 = vadd.f32 %v9042, %v9051
        %v9078 = vadd.f32 %v9043, %v9051
        %v9079 = vadd.f32 %v9044, %v9051
        %v9080 = vadd.f32 %v9045, %v9051
        %v9081 = vadd.f32 %v9046, %v9051
        %v9082 = vadd.f32 %v9047, %v9051
        %v9083 = vadd.f32 %v9048, %v9051
        %v9084 = vadd.f32 %v9049, %v9051
        %9085 = vst [vmem:[%s694] sm:$0xff] %v9053
        %9086 = vst [vmem:[%s694 + $0x8] sm:$0xff] %v9054
        %9087 = vst [vmem:[%s694 + $0x10] sm:$0xff] %v9055
        %9088 = vst [vmem:[%s694 + $0x18] sm:$0xff] %v9056
        %9089 = vst [vmem:[%s694 + $0x20] sm:$0xff] %v9057
        %9090 = vst [vmem:[%s694 + $0x28] sm:$0xff] %v9058
        %9091 = vst [vmem:[%s694 + $0x30] sm:$0xff] %v9059
        %9092 = vst [vmem:[%s694 + $0x38] sm:$0xff] %v9060
        %9093 = vst [vmem:[%s694 + $0x40] sm:$0xff] %v9061
        %9094 = vst [vmem:[%s694 + $0x48] sm:$0xff] %v9062
        %9095 = vst [vmem:[%s694 + $0x50] sm:$0xff] %v9063
        %9096 = vst [vmem:[%s694 + $0x58] sm:$0xff] %v9064
        %9097 = vst [vmem:[%s694 + $0x60] sm:$0xff] %v9065
        %9098 = vst [vmem:[%s694 + $0x68] sm:$0xff] %v9066
        %9099 = vst [vmem:[%s694 + $0x70] sm:$0xff] %v9067
        %9100 = vst [vmem:[%s694 + $0x78] sm:$0xff] %v9068
        %9101 = vst [vmem:[%s694 + $0x80] sm:$0xff] %v9069
        %9102 = vst [vmem:[%s694 + $0x88] sm:$0xff] %v9070
        %9103 = vst [vmem:[%s694 + $0x90] sm:$0xff] %v9071
        %9104 = vst [vmem:[%s694 + $0x98] sm:$0xff] %v9072
        %9105 = vst [vmem:[%s694 + $0xa0] sm:$0xff] %v9073
        %9106 = vst [vmem:[%s694 + $0xa8] sm:$0xff] %v9074
        %9107 = vst [vmem:[%s694 + $0xb0] sm:$0xff] %v9075
        %9108 = vst [vmem:[%s694 + $0xb8] sm:$0xff] %v9076
        %9109 = vst [vmem:[%s694 + $0xc0] sm:$0xff] %v9077
        %9110 = vst [vmem:[%s694 + $0xc8] sm:$0xff] %v9078
        %9111 = vst [vmem:[%s694 + $0xd0] sm:$0xff] %v9079
        %9112 = vst [vmem:[%s694 + $0xd8] sm:$0xff] %v9080
        %9113 = vst [vmem:[%s694 + $0xe0] sm:$0xff] %v9081
        %9114 = vst [vmem:[%s694 + $0xe8] sm:$0xff] %v9082
        %9115 = vst [vmem:[%s694 + $0xf0] sm:$0xff] %v9083
        %9116 = vst [vmem:[%s694 + $0xf8] sm:$0xff] %v9084
      $region88: #{_lambda_.3} parent=79 // pred_fallthru
        _
      %s9117 = smul.u32 2, %s30
      %p9118 = scmp.lt.s32.totalorder %s9117, 1
      %s9119 = scalar_select %p9118, %s9117, 1
      %s9120 = smul.addr %s9119, 16
      %s9121 = smul.addr %s9120, 8
      %s9122 = scalar_lea.vmem %s15, %s9121
      // Predicated region
      $region89: #{_lambda_.3} parent=79 // pred_check
        %p9123 = pneg %p431
      $region90: #{_lambda_.3} parent=79 // pred_check_branch
        %9125 = sbr.rel (%p9123) target = $region92
      $region91: #{_lambda_.3} parent=79 // pred_region
        %s9126 = smul.u32 2, %s30
      $region92: #{_lambda_.3} parent=79 // pred_fallthru
        _
      // Predicated region
      $region93: #{_lambda_.3} parent=79 // pred_check
        %p9127 = pneg %p431
      $region94: #{_lambda_.3} parent=79 // pred_check_branch
        %9129 = sbr.rel (%p9127) target = $region96
      $region95: #{_lambda_.3} parent=79 // pred_region
        %s9130 = smul.u32 2, %s30
        %p9131 = scmp.lt.s32.totalorder %s9130, 1
        %s9132 = scalar_select %p9131, %s9130, 1
        %s9133 = smul.addr %s9132, 16
        %s9134 = smul.addr %s9133, 8
        %s9135 = scalar_lea.vmem %s15, %s9134
      $region96: #{_lambda_.3} parent=79 // pred_fallthru
        _
    $region80: #{_lambda_.3} parent=5 // pred_fallthru
      _
    %p9136 = scmp.le.s32.totalorder 2, %s21
    // Predicated region
    $region97: #{_lambda_.3} parent=5 // pred_check
      %p9137 = pneg %p9136
    $region98: #{_lambda_.3} parent=5 // pred_check_branch
      %9139 = sbr.rel (%p9137) target = $region100
    $region99: #{_lambda_.3} parent=5 // pred_region
      %s9140 = ssub.s32 %s21, 2
    $region100: #{_lambda_.3} parent=5 // pred_fallthru
      _
  $region6: #{_lambda_.3} parent=0 // loop_footer
    %s25 = sadd.s32 1, %s21
  $region7: #{_lambda_.3} parent=0 // loop_footer_branch
    %20 = sbr.rel target = $region3
  $region8: #{_lambda_.3} parent=0 // loop_exit
    _

</llo_original>
